<compile_context>
chip_gen: v7x
topology: tpu7x:2x2x1
jax: 0.10.0
libtpu: 0.0.40
codegen_flags: <defaults>
</compile_context>

<pallas_src>
import functools

import numpy as np

import jax
import jax.numpy as jnp
from jax.experimental import pallas as pl
from jax.experimental.pallas import tpu as pltpu

_BN_EPS = 1e-5
_LANE = 128


def _round_up(x, m):
    return ((x + m - 1) // m) * m


def _vmem_limit_bytes():
    # Leave ~25% headroom for Mosaic-internal scratch / pipeline buffers.
    try:
        cap = int(pltpu.get_tpu_info().vmem_capacity_bytes)
    except Exception:  # pragma: no cover - conservative fallback
        cap = 128 * 1024 * 1024
    return cap * 3 // 4


_VMEM_LIMIT = _vmem_limit_bytes()


def _double_conv_kernel(x_ref, w1_ref, w2_ref, b2_ref, o_ref, mid_ref, *,
                        H, W, base, int_start, mrows):
    # x_ref:   (1, H*WP, K1p)  im2col'd conv1 input in the "wide" row layout:
    #          row i*WP + j is the 3x3xCin patch (+ constant-1 bias feature) for output
    #          pixel (i, j); rows with j >= W are all-zero.
    # w1_ref:  (K1p, Mp)   conv1 taps stacked along K with BN1 scale folded in; the
    #                      folded conv-bias + BN1-bias sits in the constant-1 feature row.
    # w2_ref:  (9, Mp, Op) conv2 taps (BN2 scale folded in), k = ky*3 + kx.
    # b2_ref:  (1, Op)     folded conv2-bias + BN2-bias (kept f32).
    # o_ref:   (1, H*WP, Op)  output in the same "wide" row layout.
    # mid_ref: (mrows, Mp) f32 scratch: padded conv1 feature map, flattened so that padded
    #          pixel (r, c) lives at flat row  base + r*WP + c  (base aligns the interior
    #          store to a sublane boundary).
    WP = W + 2
    HWP = H * WP
    Mp = w1_ref.shape[-1]
    Op = w2_ref.shape[-1]

    # Zero only the halo rows that are never written below (~2*WP rows, not the whole map).
    # Done every step so the kernel has no cross-iteration state -> safe under megacore
    # "parallel" partitioning of the batch grid axis.
    mid_ref[0:int_start, :] = jnp.zeros((int_start, Mp), mid_ref.dtype)
    mid_ref[int_start + HWP:mrows, :] = jnp.zeros(
        (mrows - int_start - HWP, Mp), mid_ref.dtype)

    # ---- conv1 + BN1 + ReLU: one long-K matmul, f32 accumulation ----
    # The all-zero "wide junk" rows (j >= W) stay exactly zero (zero patch, zero bias
    # feature), so after the store they double as the left/right halo columns of mid.
    acc1 = jnp.dot(x_ref[0], w1_ref[...], preferred_element_type=jnp.float32)
    mid_ref[int_start:int_start + HWP, :] = jnp.maximum(acc1, 0.0)

    # ---- conv2 + BN2 + ReLU: 9 shifted matmuls over the flat padded layout ----
    # Each tap is a contiguous row-slice of the scratch (flat offset base + ky*WP + kx);
    # no H/W-merging relayout.  The slice is cast to the weight dtype so bf16 mode keeps
    # the MXU in bf16 while accumulation stays f32.
    acc2 = jnp.zeros((HWP, Op), jnp.float32)
    for k in range(9):
        ky, kx = divmod(k, 3)
        off = base + ky * WP + kx
        lhs = mid_ref[off:off + HWP, :].astype(w2_ref.dtype)
        acc2 += jnp.dot(lhs, w2_ref[k], preferred_element_type=jnp.float32)

    y = jnp.maximum(acc2 + b2_ref[...], 0.0)
    o_ref[0] = y.astype(o_ref.dtype)


def _prep_and_call(x, w1, cb1, g1, beta1, m1, v1, w2, cb2, g2, beta2, m2, v2, *,
                   compute_dtype, single_buffer_weights):
    N, Cin, H, W = x.shape
    Cmid = w1.shape[0]
    Cout = w2.shape[0]
    WP = W + 2
    HWP = H * WP

    K1 = 9 * Cin + 1                       # stacked taps + constant-1 bias feature
    K1p = _round_up(K1, _LANE)
    Mp = _round_up(Cmid, _LANE)
    Op = _round_up(Cout, _LANE)

    base = (-(WP + 1)) % 8                 # makes the interior scratch store sublane-aligned
    int_start = base + WP + 1
    mrows = _round_up(base + 2 * WP + 2 + HWP, 8)

    f32 = jnp.float32

    # Fold eval-mode BatchNorm into the conv weights / biases.
    s1 = (g1 / jnp.sqrt(v1 + _BN_EPS)).astype(f32)
    b1 = ((cb1 - m1) * s1 + beta1).astype(f32)
    s2 = (g2 / jnp.sqrt(v2 + _BN_EPS)).astype(f32)
    b2 = ((cb2 - m2) * s2 + beta2).astype(f32)

    # conv1 weights: (Cmid, Cin, 3, 3) -> (9*Cin, Cmid), BN1 scale folded, bias as extra row.
    w1_t = jnp.transpose(w1.astype(f32), (2, 3, 1, 0)).reshape(9 * Cin, Cmid) * s1[None, :]
    w1_aug = jnp.concatenate([w1_t, b1[None, :]], axis=0)                    # (K1, Cmid)
    w1_aug = jnp.pad(w1_aug, ((0, K1p - K1), (0, Mp - Cmid))).astype(compute_dtype)

    # conv2 weights: (Cout, Cmid, 3, 3) -> (9, Cmid, Cout), BN2 scale folded.
    w2_t = (jnp.transpose(w2.astype(f32), (2, 3, 1, 0)).reshape(9, Cmid, Cout)
            * s2[None, None, :])
    w2_r = jnp.pad(w2_t, ((0, 0), (0, Mp - Cmid), (0, Op - Cout))).astype(compute_dtype)
    b2p = jnp.pad(b2, (0, Op - Cout)).reshape(1, Op)                         # stays f32

    # im2col for conv1 in the "wide" row layout.  The 2 junk columns per row and the padded
    # K channels are introduced via zero-padding, so those rows are exactly zero.
    x_nhwc = jnp.transpose(x, (0, 2, 3, 1)).astype(f32)                      # (N, H, W, Cin)
    x_sp = jnp.pad(x_nhwc, ((0, 0), (1, 1), (1, 1), (0, 0)))                 # (N, H+2, W+2, Cin)
    taps = [x_sp[:, ky:ky + H, kx:kx + W, :] for ky in range(3) for kx in range(3)]
    cols = jnp.concatenate(taps + [jnp.ones((N, H, W, 1), f32)], axis=-1)    # (N, H, W, K1)
    cols = jnp.pad(cols, ((0, 0), (0, 0), (0, 2), (0, K1p - K1)))            # (N, H, WP, K1p)
    x_cols = cols.reshape(N, HWP, K1p).astype(compute_dtype)

    kernel = functools.partial(_double_conv_kernel, H=H, W=W, base=base,
                               int_start=int_start, mrows=mrows)

    # Weight/scale/bias blocks never change across the grid -> single-buffer them.
    const_spec = (dict(pipeline_mode=pl.Buffered(buffer_count=1))
                  if single_buffer_weights else {})

    itemsize = np.dtype(compute_dtype).itemsize
    flops = 2 * N * HWP * (K1p * Mp + 9 * Mp * Op)
    bytes_accessed = int((x_cols.size + w1_aug.size + w2_r.size + N * HWP * Op) * itemsize
                         + b2p.size * 4)

    out_wide = pl.pallas_call(
        kernel,
        out_shape=jax.ShapeDtypeStruct((N, HWP, Op), compute_dtype),
        grid_spec=pltpu.PrefetchScalarGridSpec(
            num_scalar_prefetch=0,
            grid=(N,),
            in_specs=[
                pl.BlockSpec((1, HWP, K1p), lambda n: (n, 0, 0)),             # im2col input
                pl.BlockSpec((K1p, Mp), lambda n: (0, 0), **const_spec),      # W1 (resident)
                pl.BlockSpec((9, Mp, Op), lambda n: (0, 0, 0), **const_spec),  # W2 (resident)
                pl.BlockSpec((1, Op), lambda n: (0, 0), **const_spec),        # bias2
            ],
            out_specs=pl.BlockSpec((1, HWP, Op), lambda n: (n, 0, 0)),
            scratch_shapes=[pltpu.VMEM((mrows, Mp), jnp.float32)],
        ),
        compiler_params=pltpu.CompilerParams(
            dimension_semantics=("parallel",),
            vmem_limit_bytes=_VMEM_LIMIT,
        ),
        cost_estimate=pl.CostEstimate(
            flops=flops, transcendentals=0, bytes_accessed=bytes_accessed),
    )(x_cols, w1_aug, w2_r, b2p)

    # Back to the PyTorch contract: drop junk width columns / padded channels, NHWC -> NCHW.
    out = out_wide.reshape(N, H, WP, Op)[:, :, :W, :Cout].astype(f32)
    return jnp.transpose(out, (0, 3, 1, 2))


_prep_and_call_jit = jax.jit(
    _prep_and_call, static_argnames=("compute_dtype", "single_buffer_weights"))


def double_conv(x, w1, cb1, g1, beta1, m1, v1, w2, cb2, g2, beta2, m2, v2,
                compute_dtype=jnp.float32):
    """DoubleConv forward (inference-mode BatchNorm), matching the PyTorch module.

    x: (N, Cin, H, W) NCHW.  Returns (N, Cout, H, W), f32.
    """
    args = (x, w1, cb1, g1, beta1, m1, v1, w2, cb2, g2, beta2, m2, v2)
    try:
        return _prep_and_call_jit(*args, compute_dtype=compute_dtype,
                                  single_buffer_weights=True)
    except Exception:
        # pl.Buffered(1) not supported by this jax/libtpu -> default double-buffering.
        return _prep_and_call_jit(*args, compute_dtype=compute_dtype,
                                  single_buffer_weights=False)


def _reference(x, w1, cb1, g1, beta1, m1, v1, w2, cb2, g2, beta2, m2, v2):
    """Pure-JAX (XLA) reference mirroring the PyTorch DoubleConv in eval mode."""
    def conv_bn_relu(z, w, cb, g, b, m, v):
        y = jax.lax.conv_general_dilated(
            z, w, window_strides=(1, 1), padding=((1, 1), (1, 1)),
            dimension_numbers=("NCHW", "OIHW", "NCHW"))
        y = y + cb[None, :, None, None]
        y = (y - m[None, :, None, None]) / jnp.sqrt(v[None, :, None, None] + _BN_EPS)
        y = y * g[None, :, None, None] + b[None, :, None, None]
        return jnp.maximum(y, 0.0)

    h = conv_bn_relu(x, w1, cb1, g1, beta1, m1, v1)
    return conv_bn_relu(h, w2, cb2, g2, beta2, m2, v2)


if __name__ == "__main__":
    # Small shapes consistent with the module: batch=2, channels=4, spatial=16x16.
    N, Cin, Cmid, Cout, H, W = 2, 4, 8, 8, 16, 16

    key = jax.random.PRNGKey(0)
    ks = jax.random.split(key, 13)
    x = jax.random.normal(ks[0], (N, Cin, H, W), jnp.float32)

    w1 = jax.random.normal(ks[1], (Cmid, Cin, 3, 3), jnp.float32) * 0.1
    cb1 = jax.random.normal(ks[2], (Cmid,), jnp.float32) * 0.1
    g1 = 1.0 + 0.1 * jax.random.normal(ks[3], (Cmid,), jnp.float32)
    beta1 = 0.1 * jax.random.normal(ks[4], (Cmid,), jnp.float32)
    m1 = 0.1 * jax.random.normal(ks[5], (Cmid,), jnp.float32)
    v1 = jnp.abs(jax.random.normal(ks[6], (Cmid,), jnp.float32)) + 0.5

    w2 = jax.random.normal(ks[7], (Cout, Cmid, 3, 3), jnp.float32) * 0.1
    cb2 = jax.random.normal(ks[8], (Cout,), jnp.float32) * 0.1
    g2 = 1.0 + 0.1 * jax.random.normal(ks[9], (Cout,), jnp.float32)
    beta2 = 0.1 * jax.random.normal(ks[10], (Cout,), jnp.float32)
    m2 = 0.1 * jax.random.normal(ks[11], (Cout,), jnp.float32)
    v2 = jnp.abs(jax.random.normal(ks[12], (Cout,), jnp.float32)) + 0.5

    params = (w1, cb1, g1, beta1, m1, v1, w2, cb2, g2, beta2, m2, v2)
    ref = _reference(x, *params)

    # f32 compute path (matches PyTorch numerics).
    out_f32 = jax.block_until_ready(double_conv(x, *params, compute_dtype=jnp.float32))
    assert out_f32.shape == (N, Cout, H, W), out_f32.shape
    assert jnp.allclose(out_f32, ref, atol=2e-4, rtol=2e-4), "f32 mismatch vs reference"

    # bf16 compute path (halved DMA / resident-weight bytes, f32 accumulation).
    out_bf16 = jax.block_until_ready(double_conv(x, *params, compute_dtype=jnp.bfloat16))
    assert out_bf16.shape == (N, Cout, H, W), out_bf16.shape
    assert jnp.allclose(out_bf16, ref, atol=5e-2, rtol=5e-2), "bf16 mismatch vs reference"

    print("KERNEL_OK")
</pallas_src>

<mosaic_0001>
module attributes {stable_mosaic.version = 11 : i64} {
  func.func @_double_conv_kernel(%arg0: i32, %arg1: memref<1x288x128xf32, #tpu.memory_space<vmem>>, %arg2: memref<128x128xf32, #tpu.memory_space<vmem>>, %arg3: memref<9x128x128xf32, #tpu.memory_space<vmem>>, %arg4: memref<1x128xf32, #tpu.memory_space<vmem>>, %arg5: memref<1x288x128xf32, #tpu.memory_space<vmem>>, %arg6: memref<336x128xf32, #tpu.memory_space<vmem>>) attributes {dimension_semantics = [#tpu.dimension_semantics<parallel>], iteration_bounds = array<i64: 2>, scalar_prefetch = 0 : i64, scratch_operands = 1 : i64, tpu.core_type = #tpu.core_type<tc>, window_params = [{transform_indices = @transform_0, window_bounds = array<i64: 1, 288, 128>}, {pipeline_mode = #tpu.pipeline_mode<synchronous>, transform_indices = @transform_1, window_bounds = array<i64: 128, 128>}, {pipeline_mode = #tpu.pipeline_mode<synchronous>, transform_indices = @transform_2, window_bounds = array<i64: 9, 128, 128>}, {pipeline_mode = #tpu.pipeline_mode<synchronous>, transform_indices = @transform_3, window_bounds = array<i64: 1, 128>}, {transform_indices = @transform_4, window_bounds = array<i64: 1, 288, 128>}]} {
    %cst = arith.constant 0.000000e+00 : f32
    %0 = vector.broadcast %cst : f32 to vector<24x128xf32>
    %c0 = arith.constant 0 : index
    %c0_0 = arith.constant 0 : index
    %1 = vector.load %arg6[%c0, %c0_0] : memref<336x128xf32, #tpu.memory_space<vmem>>, vector<24x128xf32>
    tpu.vector_store %arg6[%c0, %c0_0], %0 {strides = array<i32>} : memref<336x128xf32, #tpu.memory_space<vmem>>, vector<24x128xf32>,
    %cst_1 = arith.constant 0.000000e+00 : f32
    %2 = vector.broadcast %cst_1 : f32 to vector<24x128xf32>
    %c312 = arith.constant 312 : index
    %c0_2 = arith.constant 0 : index
    %3 = vector.load %arg6[%c312, %c0_2] : memref<336x128xf32, #tpu.memory_space<vmem>>, vector<24x128xf32>
    tpu.vector_store %arg6[%c312, %c0_2], %2 {strides = array<i32>} : memref<336x128xf32, #tpu.memory_space<vmem>>, vector<24x128xf32>,
    %c0_3 = arith.constant 0 : index
    %c0_4 = arith.constant 0 : index
    %c0_5 = arith.constant 0 : index
    %4 = vector.load %arg1[%c0_3, %c0_4, %c0_5] : memref<1x288x128xf32, #tpu.memory_space<vmem>>, vector<1x288x128xf32>
    %5 = vector.shape_cast %4 : vector<1x288x128xf32> to vector<288x128xf32>
    %c0_6 = arith.constant 0 : index
    %c0_7 = arith.constant 0 : index
    %6 = vector.load %arg2[%c0_6, %c0_7] : memref<128x128xf32, #tpu.memory_space<vmem>>, vector<128x128xf32>
    %cst_8 = arith.constant dense<0.000000e+00> : vector<288x128xf32>
    %7 = tpu.matmul %5, %6, %cst_8 {dimension_numbers = #tpu.dot_dimension_numbers<[1], [0], [0], [1], [0, 0, 1, 1], [], []>} : vector<288x128xf32>, vector<128x128xf32>, vector<288x128xf32> -> vector<288x128xf32>
    %cst_9 = arith.constant 0.000000e+00 : f32
    %8 = vector.broadcast %cst_9 : f32 to vector<288x128xf32>
    %9 = arith.maximumf %7, %8 : vector<288x128xf32>
    %c24 = arith.constant 24 : index
    %c0_10 = arith.constant 0 : index
    %10 = vector.load %arg6[%c24, %c0_10] : memref<336x128xf32, #tpu.memory_space<vmem>>, vector<288x128xf32>
    tpu.vector_store %arg6[%c24, %c0_10], %9 {strides = array<i32>} : memref<336x128xf32, #tpu.memory_space<vmem>>, vector<288x128xf32>,
    %cst_11 = arith.constant 0.000000e+00 : f32
    %11 = vector.broadcast %cst_11 : f32 to vector<288x128xf32>
    %c5 = arith.constant 5 : index
    %c0_12 = arith.constant 0 : index
    %12 = vector.load %arg6[%c5, %c0_12] : memref<336x128xf32, #tpu.memory_space<vmem>>, vector<288x128xf32>
    %c0_13 = arith.constant 0 : index
    %c0_14 = arith.constant 0 : index
    %c0_15 = arith.constant 0 : index
    %13 = vector.load %arg3[%c0_13, %c0_14, %c0_15] : memref<9x128x128xf32, #tpu.memory_space<vmem>>, vector<1x128x128xf32>
    %14 = vector.shape_cast %13 : vector<1x128x128xf32> to vector<128x128xf32>
    %cst_16 = arith.constant dense<0.000000e+00> : vector<288x128xf32>
    %15 = tpu.matmul %12, %14, %cst_16 {dimension_numbers = #tpu.dot_dimension_numbers<[1], [0], [0], [1], [0, 0, 1, 1], [], []>} : vector<288x128xf32>, vector<128x128xf32>, vector<288x128xf32> -> vector<288x128xf32>
    %16 = arith.addf %11, %15 : vector<288x128xf32>
    %c6 = arith.constant 6 : index
    %c0_17 = arith.constant 0 : index
    %17 = vector.load %arg6[%c6, %c0_17] : memref<336x128xf32, #tpu.memory_space<vmem>>, vector<288x128xf32>
    %c1 = arith.constant 1 : index
    %c0_18 = arith.constant 0 : index
    %c0_19 = arith.constant 0 : index
    %18 = vector.load %arg3[%c1, %c0_18, %c0_19] : memref<9x128x128xf32, #tpu.memory_space<vmem>>, vector<1x128x128xf32>
    %19 = vector.shape_cast %18 : vector<1x128x128xf32> to vector<128x128xf32>
    %cst_20 = arith.constant dense<0.000000e+00> : vector<288x128xf32>
    %20 = tpu.matmul %17, %19, %cst_20 {dimension_numbers = #tpu.dot_dimension_numbers<[1], [0], [0], [1], [0, 0, 1, 1], [], []>} : vector<288x128xf32>, vector<128x128xf32>, vector<288x128xf32> -> vector<288x128xf32>
    %21 = arith.addf %16, %20 : vector<288x128xf32>
    %c7 = arith.constant 7 : index
    %c0_21 = arith.constant 0 : index
    %22 = vector.load %arg6[%c7, %c0_21] : memref<336x128xf32, #tpu.memory_space<vmem>>, vector<288x128xf32>
    %c2 = arith.constant 2 : index
    %c0_22 = arith.constant 0 : index
    %c0_23 = arith.constant 0 : index
    %23 = vector.load %arg3[%c2, %c0_22, %c0_23] : memref<9x128x128xf32, #tpu.memory_space<vmem>>, vector<1x128x128xf32>
    %24 = vector.shape_cast %23 : vector<1x128x128xf32> to vector<128x128xf32>
    %cst_24 = arith.constant dense<0.000000e+00> : vector<288x128xf32>
    %25 = tpu.matmul %22, %24, %cst_24 {dimension_numbers = #tpu.dot_dimension_numbers<[1], [0], [0], [1], [0, 0, 1, 1], [], []>} : vector<288x128xf32>, vector<128x128xf32>, vector<288x128xf32> -> vector<288x128xf32>
    %26 = arith.addf %21, %25 : vector<288x128xf32>
    %c23 = arith.constant 23 : index
    %c0_25 = arith.constant 0 : index
    %27 = vector.load %arg6[%c23, %c0_25] : memref<336x128xf32, #tpu.memory_space<vmem>>, vector<288x128xf32>
    %c3 = arith.constant 3 : index
    %c0_26 = arith.constant 0 : index
    %c0_27 = arith.constant 0 : index
    %28 = vector.load %arg3[%c3, %c0_26, %c0_27] : memref<9x128x128xf32, #tpu.memory_space<vmem>>, vector<1x128x128xf32>
    %29 = vector.shape_cast %28 : vector<1x128x128xf32> to vector<128x128xf32>
    %cst_28 = arith.constant dense<0.000000e+00> : vector<288x128xf32>
    %30 = tpu.matmul %27, %29, %cst_28 {dimension_numbers = #tpu.dot_dimension_numbers<[1], [0], [0], [1], [0, 0, 1, 1], [], []>} : vector<288x128xf32>, vector<128x128xf32>, vector<288x128xf32> -> vector<288x128xf32>
    %31 = arith.addf %26, %30 : vector<288x128xf32>
    %c24_29 = arith.constant 24 : index
    %c0_30 = arith.constant 0 : index
    %32 = vector.load %arg6[%c24_29, %c0_30] : memref<336x128xf32, #tpu.memory_space<vmem>>, vector<288x128xf32>
    %c4 = arith.constant 4 : index
    %c0_31 = arith.constant 0 : index
    %c0_32 = arith.constant 0 : index
    %33 = vector.load %arg3[%c4, %c0_31, %c0_32] : memref<9x128x128xf32, #tpu.memory_space<vmem>>, vector<1x128x128xf32>
    %34 = vector.shape_cast %33 : vector<1x128x128xf32> to vector<128x128xf32>
    %cst_33 = arith.constant dense<0.000000e+00> : vector<288x128xf32>
    %35 = tpu.matmul %32, %34, %cst_33 {dimension_numbers = #tpu.dot_dimension_numbers<[1], [0], [0], [1], [0, 0, 1, 1], [], []>} : vector<288x128xf32>, vector<128x128xf32>, vector<288x128xf32> -> vector<288x128xf32>
    %36 = arith.addf %31, %35 : vector<288x128xf32>
    %c25 = arith.constant 25 : index
    %c0_34 = arith.constant 0 : index
    %37 = vector.load %arg6[%c25, %c0_34] : memref<336x128xf32, #tpu.memory_space<vmem>>, vector<288x128xf32>
    %c5_35 = arith.constant 5 : index
    %c0_36 = arith.constant 0 : index
    %c0_37 = arith.constant 0 : index
    %38 = vector.load %arg3[%c5_35, %c0_36, %c0_37] : memref<9x128x128xf32, #tpu.memory_space<vmem>>, vector<1x128x128xf32>
    %39 = vector.shape_cast %38 : vector<1x128x128xf32> to vector<128x128xf32>
    %cst_38 = arith.constant dense<0.000000e+00> : vector<288x128xf32>
    %40 = tpu.matmul %37, %39, %cst_38 {dimension_numbers = #tpu.dot_dimension_numbers<[1], [0], [0], [1], [0, 0, 1, 1], [], []>} : vector<288x128xf32>, vector<128x128xf32>, vector<288x128xf32> -> vector<288x128xf32>
    %41 = arith.addf %36, %40 : vector<288x128xf32>
    %c41 = arith.constant 41 : index
    %c0_39 = arith.constant 0 : index
    %42 = vector.load %arg6[%c41, %c0_39] : memref<336x128xf32, #tpu.memory_space<vmem>>, vector<288x128xf32>
    %c6_40 = arith.constant 6 : index
    %c0_41 = arith.constant 0 : index
    %c0_42 = arith.constant 0 : index
    %43 = vector.load %arg3[%c6_40, %c0_41, %c0_42] : memref<9x128x128xf32, #tpu.memory_space<vmem>>, vector<1x128x128xf32>
    %44 = vector.shape_cast %43 : vector<1x128x128xf32> to vector<128x128xf32>
    %cst_43 = arith.constant dense<0.000000e+00> : vector<288x128xf32>
    %45 = tpu.matmul %42, %44, %cst_43 {dimension_numbers = #tpu.dot_dimension_numbers<[1], [0], [0], [1], [0, 0, 1, 1], [], []>} : vector<288x128xf32>, vector<128x128xf32>, vector<288x128xf32> -> vector<288x128xf32>
    %46 = arith.addf %41, %45 : vector<288x128xf32>
    %c42 = arith.constant 42 : index
    %c0_44 = arith.constant 0 : index
    %47 = vector.load %arg6[%c42, %c0_44] : memref<336x128xf32, #tpu.memory_space<vmem>>, vector<288x128xf32>
    %c7_45 = arith.constant 7 : index
    %c0_46 = arith.constant 0 : index
    %c0_47 = arith.constant 0 : index
    %48 = vector.load %arg3[%c7_45, %c0_46, %c0_47] : memref<9x128x128xf32, #tpu.memory_space<vmem>>, vector<1x128x128xf32>
    %49 = vector.shape_cast %48 : vector<1x128x128xf32> to vector<128x128xf32>
    %cst_48 = arith.constant dense<0.000000e+00> : vector<288x128xf32>
    %50 = tpu.matmul %47, %49, %cst_48 {dimension_numbers = #tpu.dot_dimension_numbers<[1], [0], [0], [1], [0, 0, 1, 1], [], []>} : vector<288x128xf32>, vector<128x128xf32>, vector<288x128xf32> -> vector<288x128xf32>
    %51 = arith.addf %46, %50 : vector<288x128xf32>
    %c43 = arith.constant 43 : index
    %c0_49 = arith.constant 0 : index
    %52 = vector.load %arg6[%c43, %c0_49] : memref<336x128xf32, #tpu.memory_space<vmem>>, vector<288x128xf32>
    %c8 = arith.constant 8 : index
    %c0_50 = arith.constant 0 : index
    %c0_51 = arith.constant 0 : index
    %53 = vector.load %arg3[%c8, %c0_50, %c0_51] : memref<9x128x128xf32, #tpu.memory_space<vmem>>, vector<1x128x128xf32>
    %54 = vector.shape_cast %53 : vector<1x128x128xf32> to vector<128x128xf32>
    %cst_52 = arith.constant dense<0.000000e+00> : vector<288x128xf32>
    %55 = tpu.matmul %52, %54, %cst_52 {dimension_numbers = #tpu.dot_dimension_numbers<[1], [0], [0], [1], [0, 0, 1, 1], [], []>} : vector<288x128xf32>, vector<128x128xf32>, vector<288x128xf32> -> vector<288x128xf32>
    %56 = arith.addf %51, %55 : vector<288x128xf32>
    %c0_53 = arith.constant 0 : index
    %c0_54 = arith.constant 0 : index
    %57 = vector.load %arg4[%c0_53, %c0_54] : memref<1x128xf32, #tpu.memory_space<vmem>>, vector<1x128xf32>
    %58 = vector.broadcast %57 : vector<1x128xf32> to vector<288x128xf32>
    %59 = arith.addf %56, %58 : vector<288x128xf32>
    %cst_55 = arith.constant 0.000000e+00 : f32
    %60 = vector.broadcast %cst_55 : f32 to vector<288x128xf32>
    %61 = arith.maximumf %59, %60 : vector<288x128xf32>
    %c0_56 = arith.constant 0 : index
    %c0_57 = arith.constant 0 : index
    %c0_58 = arith.constant 0 : index
    %62 = vector.load %arg5[%c0_56, %c0_57, %c0_58] : memref<1x288x128xf32, #tpu.memory_space<vmem>>, vector<1x288x128xf32>
    %63 = vector.shape_cast %62 : vector<1x288x128xf32> to vector<288x128xf32>
    %64 = vector.shape_cast %61 : vector<288x128xf32> to vector<1x288x128xf32>
    tpu.vector_store %arg5[%c0_56, %c0_57, %c0_58], %64 {strides = array<i32>} : memref<1x288x128xf32, #tpu.memory_space<vmem>>, vector<1x288x128xf32>,
    return
  }
  func.func @transform_0(%arg0: i32) -> (i32, i32, i32) {
    %c0_i32 = arith.constant 0 : i32
    %c0_i32_0 = arith.constant 0 : i32
    %c0_i32_1 = arith.constant 0 : i32
    return %arg0, %c0_i32, %c0_i32_0 : i32, i32, i32
  }
  func.func @transform_1(%arg0: i32) -> (i32, i32) {
    %c0_i32 = arith.constant 0 : i32
    %c0_i32_0 = arith.constant 0 : i32
    %c0_i32_1 = arith.constant 0 : i32
    return %c0_i32, %c0_i32_0 : i32, i32
  }
  func.func @transform_2(%arg0: i32) -> (i32, i32, i32) {
    %c0_i32 = arith.constant 0 : i32
    %c0_i32_0 = arith.constant 0 : i32
    %c0_i32_1 = arith.constant 0 : i32
    %c0_i32_2 = arith.constant 0 : i32
    return %c0_i32, %c0_i32_0, %c0_i32_1 : i32, i32, i32
  }
  func.func @transform_3(%arg0: i32) -> (i32, i32) {
    %c0_i32 = arith.constant 0 : i32
    %c0_i32_0 = arith.constant 0 : i32
    %c0_i32_1 = arith.constant 0 : i32
    return %c0_i32, %c0_i32_0 : i32, i32
  }
  func.func @transform_4(%arg0: i32) -> (i32, i32, i32) {
    %c0_i32 = arith.constant 0 : i32
    %c0_i32_0 = arith.constant 0 : i32
    %c0_i32_1 = arith.constant 0 : i32
    return %arg0, %c0_i32, %c0_i32_0 : i32, i32, i32
  }
}

module attributes {stable_mosaic.version = 11 : i64} {
  func.func @_double_conv_kernel(%arg0: i32, %arg1: memref<1x288x128xf32, #tpu.memory_space<vmem>>, %arg2: memref<128x128xf32, #tpu.memory_space<vmem>>, %arg3: memref<9x128x128xf32, #tpu.memory_space<vmem>>, %arg4: memref<1x128xf32, #tpu.memory_space<vmem>>, %arg5: memref<1x288x128xf32, #tpu.memory_space<vmem>>, %arg6: memref<336x128xf32, #tpu.memory_space<vmem>>) attributes {dimension_semantics = [#tpu.dimension_semantics<parallel>], iteration_bounds = array<i64: 2>, scalar_prefetch = 0 : i64, scratch_operands = 1 : i64, tpu.core_type = #tpu.core_type<tc>, window_params = [{transform_indices = @transform_0, window_bounds = array<i64: 1, 288, 128>}, {pipeline_mode = #tpu.pipeline_mode<synchronous>, transform_indices = @transform_1, window_bounds = array<i64: 128, 128>}, {pipeline_mode = #tpu.pipeline_mode<synchronous>, transform_indices = @transform_2, window_bounds = array<i64: 9, 128, 128>}, {pipeline_mode = #tpu.pipeline_mode<synchronous>, transform_indices = @transform_3, window_bounds = array<i64: 1, 128>}, {transform_indices = @transform_4, window_bounds = array<i64: 1, 288, 128>}]} {
    %cst = arith.constant 0.000000e+00 : f32
    %0 = vector.broadcast %cst : f32 to vector<24x128xf32>
    %c0 = arith.constant 0 : index
    %c0_0 = arith.constant 0 : index
    %1 = vector.load %arg6[%c0, %c0_0] : memref<336x128xf32, #tpu.memory_space<vmem>>, vector<24x128xf32>
    tpu.vector_store %arg6[%c0, %c0_0], %0 {strides = array<i32>} : memref<336x128xf32, #tpu.memory_space<vmem>>, vector<24x128xf32>,
    %cst_1 = arith.constant 0.000000e+00 : f32
    %2 = vector.broadcast %cst_1 : f32 to vector<24x128xf32>
    %c312 = arith.constant 312 : index
    %c0_2 = arith.constant 0 : index
    %3 = vector.load %arg6[%c312, %c0_2] : memref<336x128xf32, #tpu.memory_space<vmem>>, vector<24x128xf32>
    tpu.vector_store %arg6[%c312, %c0_2], %2 {strides = array<i32>} : memref<336x128xf32, #tpu.memory_space<vmem>>, vector<24x128xf32>,
    %c0_3 = arith.constant 0 : index
    %c0_4 = arith.constant 0 : index
    %c0_5 = arith.constant 0 : index
    %4 = vector.load %arg1[%c0_3, %c0_4, %c0_5] : memref<1x288x128xf32, #tpu.memory_space<vmem>>, vector<1x288x128xf32>
    %5 = vector.shape_cast %4 : vector<1x288x128xf32> to vector<288x128xf32>
    %c0_6 = arith.constant 0 : index
    %c0_7 = arith.constant 0 : index
    %6 = vector.load %arg2[%c0_6, %c0_7] : memref<128x128xf32, #tpu.memory_space<vmem>>, vector<128x128xf32>
    %cst_8 = arith.constant dense<0.000000e+00> : vector<288x128xf32>
    %7 = tpu.matmul %5, %6, %cst_8 {dimension_numbers = #tpu.dot_dimension_numbers<[1], [0], [0], [1], [0, 0, 1, 1], [], []>} : vector<288x128xf32>, vector<128x128xf32>, vector<288x128xf32> -> vector<288x128xf32>
    %cst_9 = arith.constant 0.000000e+00 : f32
    %8 = vector.broadcast %cst_9 : f32 to vector<288x128xf32>
    %9 = arith.maximumf %7, %8 : vector<288x128xf32>
    %c24 = arith.constant 24 : index
    %c0_10 = arith.constant 0 : index
    %10 = vector.load %arg6[%c24, %c0_10] : memref<336x128xf32, #tpu.memory_space<vmem>>, vector<288x128xf32>
    tpu.vector_store %arg6[%c24, %c0_10], %9 {strides = array<i32>} : memref<336x128xf32, #tpu.memory_space<vmem>>, vector<288x128xf32>,
    %cst_11 = arith.constant 0.000000e+00 : f32
    %11 = vector.broadcast %cst_11 : f32 to vector<288x128xf32>
    %c5 = arith.constant 5 : index
    %c0_12 = arith.constant 0 : index
    %12 = vector.load %arg6[%c5, %c0_12] : memref<336x128xf32, #tpu.memory_space<vmem>>, vector<288x128xf32>
    %c0_13 = arith.constant 0 : index
    %c0_14 = arith.constant 0 : index
    %c0_15 = arith.constant 0 : index
    %13 = vector.load %arg3[%c0_13, %c0_14, %c0_15] : memref<9x128x128xf32, #tpu.memory_space<vmem>>, vector<1x128x128xf32>
    %14 = vector.shape_cast %13 : vector<1x128x128xf32> to vector<128x128xf32>
    %cst_16 = arith.constant dense<0.000000e+00> : vector<288x128xf32>
    %15 = tpu.matmul %12, %14, %cst_16 {dimension_numbers = #tpu.dot_dimension_numbers<[1], [0], [0], [1], [0, 0, 1, 1], [], []>} : vector<288x128xf32>, vector<128x128xf32>, vector<288x128xf32> -> vector<288x128xf32>
    %16 = arith.addf %11, %15 : vector<288x128xf32>
    %c6 = arith.constant 6 : index
    %c0_17 = arith.constant 0 : index
    %17 = vector.load %arg6[%c6, %c0_17] : memref<336x128xf32, #tpu.memory_space<vmem>>, vector<288x128xf32>
    %c1 = arith.constant 1 : index
    %c0_18 = arith.constant 0 : index
    %c0_19 = arith.constant 0 : index
    %18 = vector.load %arg3[%c1, %c0_18, %c0_19] : memref<9x128x128xf32, #tpu.memory_space<vmem>>, vector<1x128x128xf32>
    %19 = vector.shape_cast %18 : vector<1x128x128xf32> to vector<128x128xf32>
    %cst_20 = arith.constant dense<0.000000e+00> : vector<288x128xf32>
    %20 = tpu.matmul %17, %19, %cst_20 {dimension_numbers = #tpu.dot_dimension_numbers<[1], [0], [0], [1], [0, 0, 1, 1], [], []>} : vector<288x128xf32>, vector<128x128xf32>, vector<288x128xf32> -> vector<288x128xf32>
    %21 = arith.addf %16, %20 : vector<288x128xf32>
    %c7 = arith.constant 7 : index
    %c0_21 = arith.constant 0 : index
    %22 = vector.load %arg6[%c7, %c0_21] : memref<336x128xf32, #tpu.memory_space<vmem>>, vector<288x128xf32>
    %c2 = arith.constant 2 : index
    %c0_22 = arith.constant 0 : index
    %c0_23 = arith.constant 0 : index
    %23 = vector.load %arg3[%c2, %c0_22, %c0_23] : memref<9x128x128xf32, #tpu.memory_space<vmem>>, vector<1x128x128xf32>
    %24 = vector.shape_cast %23 : vector<1x128x128xf32> to vector<128x128xf32>
    %cst_24 = arith.constant dense<0.000000e+00> : vector<288x128xf32>
    %25 = tpu.matmul %22, %24, %cst_24 {dimension_numbers = #tpu.dot_dimension_numbers<[1], [0], [0], [1], [0, 0, 1, 1], [], []>} : vector<288x128xf32>, vector<128x128xf32>, vector<288x128xf32> -> vector<288x128xf32>
    %26 = arith.addf %21, %25 : vector<288x128xf32>
    %c23 = arith.constant 23 : index
    %c0_25 = arith.constant 0 : index
    %27 = vector.load %arg6[%c23, %c0_25] : memref<336x128xf32, #tpu.memory_space<vmem>>, vector<288x128xf32>
    %c3 = arith.constant 3 : index
    %c0_26 = arith.constant 0 : index
    %c0_27 = arith.constant 0 : index
    %28 = vector.load %arg3[%c3, %c0_26, %c0_27] : memref<9x128x128xf32, #tpu.memory_space<vmem>>, vector<1x128x128xf32>
    %29 = vector.shape_cast %28 : vector<1x128x128xf32> to vector<128x128xf32>
    %cst_28 = arith.constant dense<0.000000e+00> : vector<288x128xf32>
    %30 = tpu.matmul %27, %29, %cst_28 {dimension_numbers = #tpu.dot_dimension_numbers<[1], [0], [0], [1], [0, 0, 1, 1], [], []>} : vector<288x128xf32>, vector<128x128xf32>, vector<288x128xf32> -> vector<288x128xf32>
    %31 = arith.addf %26, %30 : vector<288x128xf32>
    %c24_29 = arith.constant 24 : index
    %c0_30 = arith.constant 0 : index
    %32 = vector.load %arg6[%c24_29, %c0_30] : memref<336x128xf32, #tpu.memory_space<vmem>>, vector<288x128xf32>
    %c4 = arith.constant 4 : index
    %c0_31 = arith.constant 0 : index
    %c0_32 = arith.constant 0 : index
    %33 = vector.load %arg3[%c4, %c0_31, %c0_32] : memref<9x128x128xf32, #tpu.memory_space<vmem>>, vector<1x128x128xf32>
    %34 = vector.shape_cast %33 : vector<1x128x128xf32> to vector<128x128xf32>
    %cst_33 = arith.constant dense<0.000000e+00> : vector<288x128xf32>
    %35 = tpu.matmul %32, %34, %cst_33 {dimension_numbers = #tpu.dot_dimension_numbers<[1], [0], [0], [1], [0, 0, 1, 1], [], []>} : vector<288x128xf32>, vector<128x128xf32>, vector<288x128xf32> -> vector<288x128xf32>
    %36 = arith.addf %31, %35 : vector<288x128xf32>
    %c25 = arith.constant 25 : index
    %c0_34 = arith.constant 0 : index
    %37 = vector.load %arg6[%c25, %c0_34] : memref<336x128xf32, #tpu.memory_space<vmem>>, vector<288x128xf32>
    %c5_35 = arith.constant 5 : index
    %c0_36 = arith.constant 0 : index
    %c0_37 = arith.constant 0 : index
    %38 = vector.load %arg3[%c5_35, %c0_36, %c0_37] : memref<9x128x128xf32, #tpu.memory_space<vmem>>, vector<1x128x128xf32>
    %39 = vector.shape_cast %38 : vector<1x128x128xf32> to vector<128x128xf32>
    %cst_38 = arith.constant dense<0.000000e+00> : vector<288x128xf32>
    %40 = tpu.matmul %37, %39, %cst_38 {dimension_numbers = #tpu.dot_dimension_numbers<[1], [0], [0], [1], [0, 0, 1, 1], [], []>} : vector<288x128xf32>, vector<128x128xf32>, vector<288x128xf32> -> vector<288x128xf32>
    %41 = arith.addf %36, %40 : vector<288x128xf32>
    %c41 = arith.constant 41 : index
    %c0_39 = arith.constant 0 : index
    %42 = vector.load %arg6[%c41, %c0_39] : memref<336x128xf32, #tpu.memory_space<vmem>>, vector<288x128xf32>
    %c6_40 = arith.constant 6 : index
    %c0_41 = arith.constant 0 : index
    %c0_42 = arith.constant 0 : index
    %43 = vector.load %arg3[%c6_40, %c0_41, %c0_42] : memref<9x128x128xf32, #tpu.memory_space<vmem>>, vector<1x128x128xf32>
    %44 = vector.shape_cast %43 : vector<1x128x128xf32> to vector<128x128xf32>
    %cst_43 = arith.constant dense<0.000000e+00> : vector<288x128xf32>
    %45 = tpu.matmul %42, %44, %cst_43 {dimension_numbers = #tpu.dot_dimension_numbers<[1], [0], [0], [1], [0, 0, 1, 1], [], []>} : vector<288x128xf32>, vector<128x128xf32>, vector<288x128xf32> -> vector<288x128xf32>
    %46 = arith.addf %41, %45 : vector<288x128xf32>
    %c42 = arith.constant 42 : index
    %c0_44 = arith.constant 0 : index
    %47 = vector.load %arg6[%c42, %c0_44] : memref<336x128xf32, #tpu.memory_space<vmem>>, vector<288x128xf32>
    %c7_45 = arith.constant 7 : index
    %c0_46 = arith.constant 0 : index
    %c0_47 = arith.constant 0 : index
    %48 = vector.load %arg3[%c7_45, %c0_46, %c0_47] : memref<9x128x128xf32, #tpu.memory_space<vmem>>, vector<1x128x128xf32>
    %49 = vector.shape_cast %48 : vector<1x128x128xf32> to vector<128x128xf32>
    %cst_48 = arith.constant dense<0.000000e+00> : vector<288x128xf32>
    %50 = tpu.matmul %47, %49, %cst_48 {dimension_numbers = #tpu.dot_dimension_numbers<[1], [0], [0], [1], [0, 0, 1, 1], [], []>} : vector<288x128xf32>, vector<128x128xf32>, vector<288x128xf32> -> vector<288x128xf32>
    %51 = arith.addf %46, %50 : vector<288x128xf32>
    %c43 = arith.constant 43 : index
    %c0_49 = arith.constant 0 : index
    %52 = vector.load %arg6[%c43, %c0_49] : memref<336x128xf32, #tpu.memory_space<vmem>>, vector<288x128xf32>
    %c8 = arith.constant 8 : index
    %c0_50 = arith.constant 0 : index
    %c0_51 = arith.constant 0 : index
    %53 = vector.load %arg3[%c8, %c0_50, %c0_51] : memref<9x128x128xf32, #tpu.memory_space<vmem>>, vector<1x128x128xf32>
    %54 = vector.shape_cast %53 : vector<1x128x128xf32> to vector<128x128xf32>
    %cst_52 = arith.constant dense<0.000000e+00> : vector<288x128xf32>
    %55 = tpu.matmul %52, %54, %cst_52 {dimension_numbers = #tpu.dot_dimension_numbers<[1], [0], [0], [1], [0, 0, 1, 1], [], []>} : vector<288x128xf32>, vector<128x128xf32>, vector<288x128xf32> -> vector<288x128xf32>
    %56 = arith.addf %51, %55 : vector<288x128xf32>
    %c0_53 = arith.constant 0 : index
    %c0_54 = arith.constant 0 : index
    %57 = vector.load %arg4[%c0_53, %c0_54] : memref<1x128xf32, #tpu.memory_space<vmem>>, vector<1x128xf32>
    %58 = vector.broadcast %57 : vector<1x128xf32> to vector<288x128xf32>
    %59 = arith.addf %56, %58 : vector<288x128xf32>
    %cst_55 = arith.constant 0.000000e+00 : f32
    %60 = vector.broadcast %cst_55 : f32 to vector<288x128xf32>
    %61 = arith.maximumf %59, %60 : vector<288x128xf32>
    %c0_56 = arith.constant 0 : index
    %c0_57 = arith.constant 0 : index
    %c0_58 = arith.constant 0 : index
    %62 = vector.load %arg5[%c0_56, %c0_57, %c0_58] : memref<1x288x128xf32, #tpu.memory_space<vmem>>, vector<1x288x128xf32>
    %63 = vector.shape_cast %62 : vector<1x288x128xf32> to vector<288x128xf32>
    %64 = vector.shape_cast %61 : vector<288x128xf32> to vector<1x288x128xf32>
    tpu.vector_store %arg5[%c0_56, %c0_57, %c0_58], %64 {strides = array<i32>} : memref<1x288x128xf32, #tpu.memory_space<vmem>>, vector<1x288x128xf32>,
    return
  }
  func.func @transform_0(%arg0: i32) -> (i32, i32, i32) {
    %c0_i32 = arith.constant 0 : i32
    %c0_i32_0 = arith.constant 0 : i32
    %c0_i32_1 = arith.constant 0 : i32
    return %arg0, %c0_i32, %c0_i32_0 : i32, i32, i32
  }
  func.func @transform_1(%arg0: i32) -> (i32, i32) {
    %c0_i32 = arith.constant 0 : i32
    %c0_i32_0 = arith.constant 0 : i32
    %c0_i32_1 = arith.constant 0 : i32
    return %c0_i32, %c0_i32_0 : i32, i32
  }
  func.func @transform_2(%arg0: i32) -> (i32, i32, i32) {
    %c0_i32 = arith.constant 0 : i32
    %c0_i32_0 = arith.constant 0 : i32
    %c0_i32_1 = arith.constant 0 : i32
    %c0_i32_2 = arith.constant 0 : i32
    return %c0_i32, %c0_i32_0, %c0_i32_1 : i32, i32, i32
  }
  func.func @transform_3(%arg0: i32) -> (i32, i32) {
    %c0_i32 = arith.constant 0 : i32
    %c0_i32_0 = arith.constant 0 : i32
    %c0_i32_1 = arith.constant 0 : i32
    return %c0_i32, %c0_i32_0 : i32, i32
  }
  func.func @transform_4(%arg0: i32) -> (i32, i32, i32) {
    %c0_i32 = arith.constant 0 : i32
    %c0_i32_0 = arith.constant 0 : i32
    %c0_i32_1 = arith.constant 0 : i32
    return %arg0, %c0_i32, %c0_i32_0 : i32, i32, i32
  }
}

</mosaic_0001>

<llo_original>
// kernel: _prep_and_call.1
$region0: #{_prep_and_call.1}
  #allocation0 [shape = 'u32[]', space=smem, size = 0x4, offset = 0x4, fixed_abs, tag = 'smem constant byte address 0x4 - core index']
  #allocation1 [shape = 'u32[144,128]{1,0:T(1,128)}', space=vmem, size = 0x12000, scoped, tag = 'internal scratch']
  #allocation2 [shape = 'f32[336,128]{1,0:T(8,128)}', space=vmem, size = 0x2a000, scoped, tag = 'scratch operand']
  %s0 = inlined_call_operand.hbm [shape: f32[2,288,128], index: 0, kind: input, shape index: {}]
  %s1 = inlined_call_operand.hbm [shape: f32[128,128], index: 1, kind: input, shape index: {}]
  %s2 = inlined_call_operand.hbm [shape: f32[9,128,128], index: 2, kind: input, shape index: {}]
  %s3 = inlined_call_operand.hbm [shape: f32[1,128], index: 3, kind: input, shape index: {}]
  %s4 = inlined_call_operand.hbm [shape: f32[2,288,128], index: 4, kind: output, shape index: {}]
  %s5 = sld [smem:[#allocation0]]
  $region65: #{_prep_and_call.1} parent=0
    _
  %s7 = ssub.s32 1, %s5
  %s8 = scalar_select 0, %s7, %s5
  $region1: #{_prep_and_call.1} parent=0
    #allocation3 [shape = 'u8[294912]{0}', space=vmem, size = 0x48000, scoped, tag = 'input window, operand 0']
    #allocation4 [shape = 's32[2]{0}', space=sflag, size = 0x8, scoped, tag = 'scoped memory for _prep_and_call.1']
    #allocation5 [shape = 's32[2]{0}', space=sflag, size = 0x8, scoped, tag = 'scoped memory for _prep_and_call.1']
    #allocation6 [shape = 'u8[65536]{0}', space=vmem, size = 0x10000, scoped, tag = 'input window, operand 1, single buffered']
    #allocation7 [shape = 's32[1]{0}', space=sflag, size = 0x4, scoped, tag = 'scoped memory for _prep_and_call.1']
    #allocation8 [shape = 'u8[589824]{0}', space=vmem, size = 0x90000, scoped, tag = 'input window, operand 2, single buffered']
    #allocation9 [shape = 'u8[512]{0}', space=vmem, size = 0x400, scoped, tag = 'input window, operand 3, single buffered']
    #allocation10 [shape = 's32[1]{0}', space=sflag, size = 0x4, scoped, tag = 'scoped memory for _prep_and_call.1']
    #allocation11 [shape = 'u8[294912]{0}', space=vmem, size = 0x48000, scoped, tag = 'output window, operand 0']
    %9 = vsyncpa [#allocation4], 0
    %s10 = scalar_lea.sflag [#allocation4], 1
    %11 = vsyncpa %s10, 0
    %12 = vsyncpa [#allocation7], 0
    %13 = vsyncpa [#allocation10], 0
    %14 = vsyncpa [#allocation5], 0
    %s15 = scalar_lea.sflag [#allocation5], 1
    %16 = vsyncpa %s15, 0
    loop: start=0, step=1, limit=4
    $region2: #{_prep_and_call.1} parent=1 // loop_pre_header
      _
    $region3: #{_prep_and_call.1} parent=1 // loop_header
      %s18 = sphi 0, %s22
      %p19 = scmp.ge.s32.totalorder %s18, 4
      %s28 = sphi 0, %s30
      %s31 = sphi 0, %s28
      %s32 = sphi 0, %s31
      %s48 = sphi 0, %s32
      %s52 = sphi 0, %s52
      %s54 = sphi 0, %s52
      %s55 = sphi 0, %s54
      %s69 = sphi 0, %s55
      %s73 = sphi 0, %s73
      %s75 = sphi 0, %s73
      %s76 = sphi 0, %s75
      %s90 = sphi 0, %s76
      %s94 = sphi 0, %s94
      %s96 = sphi 0, %s94
      %s97 = sphi 0, %s96
      %s111 = sphi 0, %s97
      %s117 = sphi 0, %s119
      %s120 = sphi 0, %s117
      %s121 = sphi 0, %s120
      %s137 = sphi 0, %s121
    $region4: #{_prep_and_call.1} parent=1 // loop_header_branch
      %21 = sbr.rel (%p19) target = $region8
    $region5: #{_prep_and_call.1} parent=1 // loop_body
      %s23 = ssub.s32 %s18, 1
      %s24 = ssub.s32 %s18, 2
      %s25 = sadd.s32 %s18, 1
      %s26 = ssub.s32 %s18, %s25
      %p27 = scmp.eq.s32.totalorder %s26, 0
      %s29 = sadd.s32 %s28, 1
      %s30 = scalar_select %p27, %s28, %s29
      %p33 = pneg %p27
      %p34 = scmp.eq.s32.totalorder %s18, 1
      %p35 = por %p33, %p34
      %p36 = scmp.ne.s32.totalorder %s28, %s31
      %p37 = scmp.eq.s32.totalorder %s18, 0
      %p38 = por %p36, %p37
      %p39 = scmp.ne.s32.totalorder %s28, %s31
      %p40 = scmp.eq.s32.totalorder %s23, 1
      %p41 = por %p39, %p40
      %p42 = scmp.ne.s32.totalorder %s31, %s32
      %p43 = scmp.eq.s32.totalorder %s23, 0
      %p44 = por %p42, %p43
      %p45 = scmp.ne.s32.totalorder %s31, %s32
      %p46 = scmp.eq.s32.totalorder %s24, 1
      %p47 = por %p45, %p46
      %p49 = scmp.ne.s32.totalorder %s32, %s48
      %p50 = scmp.eq.s32.totalorder %s24, 0
      %p51 = por %p49, %p50
      %s53 = sadd.s32 %s52, 1
      %p56 = scmp.eq.s32.totalorder %s18, 1
      %p57 = scmp.ne.s32.totalorder %s52, %s54
      %p58 = scmp.eq.s32.totalorder %s18, 0
      %p59 = por %p57, %p58
      %p60 = scmp.ne.s32.totalorder %s52, %s54
      %p61 = scmp.eq.s32.totalorder %s23, 1
      %p62 = por %p60, %p61
      %p63 = scmp.ne.s32.totalorder %s54, %s55
      %p64 = scmp.eq.s32.totalorder %s23, 0
      %p65 = por %p63, %p64
      %p66 = scmp.ne.s32.totalorder %s54, %s55
      %p67 = scmp.eq.s32.totalorder %s24, 1
      %p68 = por %p66, %p67
      %p70 = scmp.ne.s32.totalorder %s55, %s69
      %p71 = scmp.eq.s32.totalorder %s24, 0
      %p72 = por %p70, %p71
      %s74 = sadd.s32 %s73, 1
      %p77 = scmp.eq.s32.totalorder %s18, 1
      %p78 = scmp.ne.s32.totalorder %s73, %s75
      %p79 = scmp.eq.s32.totalorder %s18, 0
      %p80 = por %p78, %p79
      %p81 = scmp.ne.s32.totalorder %s73, %s75
      %p82 = scmp.eq.s32.totalorder %s23, 1
      %p83 = por %p81, %p82
      %p84 = scmp.ne.s32.totalorder %s75, %s76
      %p85 = scmp.eq.s32.totalorder %s23, 0
      %p86 = por %p84, %p85
      %p87 = scmp.ne.s32.totalorder %s75, %s76
      %p88 = scmp.eq.s32.totalorder %s24, 1
      %p89 = por %p87, %p88
      %p91 = scmp.ne.s32.totalorder %s76, %s90
      %p92 = scmp.eq.s32.totalorder %s24, 0
      %p93 = por %p91, %p92
      %s95 = sadd.s32 %s94, 1
      %p98 = scmp.eq.s32.totalorder %s18, 1
      %p99 = scmp.ne.s32.totalorder %s94, %s96
      %p100 = scmp.eq.s32.totalorder %s18, 0
      %p101 = por %p99, %p100
      %p102 = scmp.ne.s32.totalorder %s94, %s96
      %p103 = scmp.eq.s32.totalorder %s23, 1
      %p104 = por %p102, %p103
      %p105 = scmp.ne.s32.totalorder %s96, %s97
      %p106 = scmp.eq.s32.totalorder %s23, 0
      %p107 = por %p105, %p106
      %p108 = scmp.ne.s32.totalorder %s96, %s97
      %p109 = scmp.eq.s32.totalorder %s24, 1
      %p110 = por %p108, %p109
      %p112 = scmp.ne.s32.totalorder %s97, %s111
      %p113 = scmp.eq.s32.totalorder %s24, 0
      %p114 = por %p112, %p113
      %s115 = ssub.s32 %s18, %s25
      %p116 = scmp.eq.s32.totalorder %s115, 0
      %s118 = sadd.s32 %s117, 1
      %s119 = scalar_select %p116, %s117, %s118
      %p122 = pneg %p116
      %p123 = scmp.eq.s32.totalorder %s18, 1
      %p124 = por %p122, %p123
      %p125 = scmp.ne.s32.totalorder %s117, %s120
      %p126 = scmp.eq.s32.totalorder %s18, 0
      %p127 = por %p125, %p126
      %p128 = scmp.ne.s32.totalorder %s117, %s120
      %p129 = scmp.eq.s32.totalorder %s23, 1
      %p130 = por %p128, %p129
      %p131 = scmp.ne.s32.totalorder %s120, %s121
      %p132 = scmp.eq.s32.totalorder %s23, 0
      %p133 = por %p131, %p132
      %p134 = scmp.ne.s32.totalorder %s120, %s121
      %p135 = scmp.eq.s32.totalorder %s24, 1
      %p136 = por %p134, %p135
      %p138 = scmp.ne.s32.totalorder %s121, %s137
      %p139 = scmp.eq.s32.totalorder %s24, 0
      %p140 = por %p138, %p139
      %p141 = scmp.le.s32.totalorder 1, %s18
      %p142 = scmp.lt.s32.totalorder %s18, 3
      %p143 = pnand %p141, %p142
      %p144 = pneg %p143
      // Predicated region
      $region9: #{_prep_and_call.1} parent=5 // pred_check
        _
      $region10: #{_prep_and_call.1} parent=5 // pred_check_branch
        %146 = sbr.rel (%p143) target = $region12
      $region11: #{_prep_and_call.1} parent=5 // pred_region
        %s147 = ssub.s32 %s18, 1
        // Predicated region
        $region13: #{_prep_and_call.1} parent=11 // pred_check
          %p148 = pneg %p65
        $region14: #{_prep_and_call.1} parent=11 // pred_check_branch
          %150 = sbr.rel (%p148) target = $region16
        $region15: #{_prep_and_call.1} parent=11 // pred_region
          %s152 = ssub.s32 2048, 2048
          %153 = vsyncadd [#allocation7], %s152
          %s154 = sshll.u32 [#allocation6], 4
          %s155 = int_to_ptr.vmem [resolvable:$true] %s154
          %160 = dma.hbm_to_vmem [thread:$0]  %s1, 2048, %s155, [#allocation7], 128, 128, 8
        $region16: #{_prep_and_call.1} parent=11 // pred_fallthru
          _
        // Predicated region
        $region17: #{_prep_and_call.1} parent=11 // pred_check
          %p161 = pneg %p86
        $region18: #{_prep_and_call.1} parent=11 // pred_check_branch
          %163 = sbr.rel (%p161) target = $region20
        $region19: #{_prep_and_call.1} parent=11 // pred_region
          %s165 = ssub.s32 18432, 18432
          %166 = vsyncadd [#allocation7], %s165
          %s167 = sshll.u32 [#allocation8], 4
          %s168 = int_to_ptr.vmem [resolvable:$true] %s167
          %173 = dma.hbm_to_vmem [thread:$0]  %s2, 18432, %s168, [#allocation7], 128, 128, 8
        $region20: #{_prep_and_call.1} parent=11 // pred_fallthru
          _
        // Predicated region
        $region21: #{_prep_and_call.1} parent=11 // pred_check
          %p174 = pneg %p107
        $region22: #{_prep_and_call.1} parent=11 // pred_check_branch
          %176 = sbr.rel (%p174) target = $region24
        $region23: #{_prep_and_call.1} parent=11 // pred_region
          %s178 = ssub.s32 16, 16
          %179 = vsyncadd [#allocation10], %s178
          %s181 = sshll.u32 [#allocation9], 4
          %s182 = int_to_ptr.vmem [resolvable:$true] %s181
          %184 = dma.hbm_to_vmem [thread:$0]  %s3, 16, %s182, [#allocation10]
        $region24: #{_prep_and_call.1} parent=11 // pred_fallthru
          _
      $region12: #{_prep_and_call.1} parent=5 // pred_fallthru
        _
      %p185 = scmp.lt.s32.totalorder %s18, 2
      // Predicated region
      $region25: #{_prep_and_call.1} parent=5 // pred_check
        %p186 = pneg %p185
      $region26: #{_prep_and_call.1} parent=5 // pred_check_branch
        %188 = sbr.rel (%p186) target = $region28
      $region27: #{_prep_and_call.1} parent=5 // pred_region
        // Predicated region
        $region29: #{_prep_and_call.1} parent=27 // pred_check
          %p189 = pneg %p38
        $region30: #{_prep_and_call.1} parent=27 // pred_check_branch
          %191 = sbr.rel (%p189) target = $region32
        $region31: #{_prep_and_call.1} parent=27 // pred_region
          %s192 = sand.u32 %s28, 1
          %s193 = scalar_lea.sflag [#allocation4], %s192
          %s194 = sand.u32 %s28, 1
          %s195 = smul.addr %s194, 288
          %s196 = scalar_lea.vmem [#allocation3], %s195
          %s198 = ssub.s32 4608, 4608
          %199 = vsyncadd %s193, %s198
          %s200 = smul.addr %s18, 36
          %s201 = smul.addr %s200, 128
          %s202 = scalar_lea.hbm %s0, %s201
          %s203 = sshll.u32 %s196, 4
          %s204 = int_to_ptr.vmem [resolvable:$true] %s203
          %209 = dma.hbm_to_vmem [thread:$0]  %s202, 4608, %s204, %s193, 128, 128, 8
        $region32: #{_prep_and_call.1} parent=27 // pred_fallthru
          _
      $region28: #{_prep_and_call.1} parent=5 // pred_fallthru
        _
      %p210 = scmp.le.s32.totalorder 1, %s18
      %p211 = scmp.lt.s32.totalorder %s18, 3
      %p212 = pnand %p210, %p211
      %p213 = pneg %p212
      // Predicated region
      $region33: #{_prep_and_call.1} parent=5 // pred_check
        _
      $region34: #{_prep_and_call.1} parent=5 // pred_check_branch
        %215 = sbr.rel (%p212) target = $region36
      $region35: #{_prep_and_call.1} parent=5 // pred_region
        %s216 = ssub.s32 %s18, 1
        %s217 = sand.u32 %s31, 1
        %s218 = scalar_lea.sflag [#allocation4], %s217
        %s219 = sand.u32 %s31, 1
        %s220 = smul.addr %s219, 288
        %s221 = scalar_lea.vmem [#allocation3], %s220
        // Predicated region
        $region37: #{_prep_and_call.1} parent=35 // pred_check
          %p222 = pneg %p44
        $region38: #{_prep_and_call.1} parent=35 // pred_check_branch
          %224 = sbr.rel (%p222) target = $region40
        $region39: #{_prep_and_call.1} parent=35 // pred_region
          %225 = dma.done %s218, 4608
        $region40: #{_prep_and_call.1} parent=35 // pred_fallthru
          _
        // Predicated region
        $region41: #{_prep_and_call.1} parent=35 // pred_check
          %p226 = pneg %p65
        $region42: #{_prep_and_call.1} parent=35 // pred_check_branch
          %228 = sbr.rel (%p226) target = $region44
        $region43: #{_prep_and_call.1} parent=35 // pred_region
          %229 = dma.done [#allocation7], 2048
        $region44: #{_prep_and_call.1} parent=35 // pred_fallthru
          _
        // Predicated region
        $region45: #{_prep_and_call.1} parent=35 // pred_check
          %p230 = pneg %p86
        $region46: #{_prep_and_call.1} parent=35 // pred_check_branch
          %232 = sbr.rel (%p230) target = $region48
        $region47: #{_prep_and_call.1} parent=35 // pred_region
          %233 = dma.done [#allocation7], 18432
        $region48: #{_prep_and_call.1} parent=35 // pred_fallthru
          _
        // Predicated region
        $region49: #{_prep_and_call.1} parent=35 // pred_check
          %p234 = pneg %p107
        $region50: #{_prep_and_call.1} parent=35 // pred_check_branch
          %236 = sbr.rel (%p234) target = $region52
        $region51: #{_prep_and_call.1} parent=35 // pred_region
          %237 = dma.done [#allocation10], 16
        $region52: #{_prep_and_call.1} parent=35 // pred_fallthru
          _
        %s238 = sand.u32 %s31, 1
        %s239 = scalar_lea.sflag [#allocation4], %s238
        %s240 = sand.u32 %s31, 1
        %s241 = smul.addr %s240, 288
        %s242 = scalar_lea.vmem [#allocation3], %s241
        %p243 = pneg %p44
        %p244 = pneg %p41
        %p245 = pneg %p65
        %p246 = pneg %p62
        %p247 = pneg %p86
        %p248 = pneg %p83
        %p249 = pneg %p107
        %p250 = pneg %p104
        %p251 = pneg %p133
        %p252 = pneg %p130
        %s253 = sand.u32 %s120, 1
        %s254 = scalar_lea.sflag [#allocation5], %s253
        %s255 = sand.u32 %s120, 1
        %s256 = smul.addr %s255, 288
        %s257 = scalar_lea.vmem [#allocation11], %s256
        %258 = vst [vmem:[#allocation2] sm:$0xff] 0.0
        %259 = vst [vmem:[#allocation2 + $0x8] sm:$0xff] 0.0
        %260 = vst [vmem:[#allocation2 + $0x10] sm:$0xff] 0.0
        %261 = vst [vmem:[#allocation2 + $0x138] sm:$0xff] 0.0
        %262 = vst [vmem:[#allocation2 + $0x140] sm:$0xff] 0.0
        %263 = vst [vmem:[#allocation2 + $0x148] sm:$0xff] 0.0
        %v264 = vld [vmem:[%s221] sm:$0xff]
        %v265 = vld [vmem:[%s221 + $0x8] sm:$0xff]
        %v266 = vld [vmem:[%s221 + $0x10] sm:$0xff]
        %v267 = vld [vmem:[%s221 + $0x18] sm:$0xff]
        %v268 = vld [vmem:[%s221 + $0x20] sm:$0xff]
        %v269 = vld [vmem:[%s221 + $0x28] sm:$0xff]
        %v270 = vld [vmem:[%s221 + $0x30] sm:$0xff]
        %v271 = vld [vmem:[%s221 + $0x38] sm:$0xff]
        %v272 = vld [vmem:[%s221 + $0x40] sm:$0xff]
        %v273 = vld [vmem:[%s221 + $0x48] sm:$0xff]
        %v274 = vld [vmem:[%s221 + $0x50] sm:$0xff]
        %v275 = vld [vmem:[%s221 + $0x58] sm:$0xff]
        %v276 = vld [vmem:[%s221 + $0x60] sm:$0xff]
        %v277 = vld [vmem:[%s221 + $0x68] sm:$0xff]
        %v278 = vld [vmem:[%s221 + $0x70] sm:$0xff]
        %v279 = vld [vmem:[%s221 + $0x78] sm:$0xff]
        %v280 = vld [vmem:[%s221 + $0x80] sm:$0xff]
        %v281 = vld [vmem:[%s221 + $0x88] sm:$0xff]
        %v282 = vld [vmem:[%s221 + $0x90] sm:$0xff]
        %v283 = vld [vmem:[%s221 + $0x98] sm:$0xff]
        %v284 = vld [vmem:[%s221 + $0xa0] sm:$0xff]
        %v285 = vld [vmem:[%s221 + $0xa8] sm:$0xff]
        %v286 = vld [vmem:[%s221 + $0xb0] sm:$0xff]
        %v287 = vld [vmem:[%s221 + $0xb8] sm:$0xff]
        %v288 = vld [vmem:[%s221 + $0xc0] sm:$0xff]
        %v289 = vld [vmem:[%s221 + $0xc8] sm:$0xff]
        %v290 = vld [vmem:[%s221 + $0xd0] sm:$0xff]
        %v291 = vld [vmem:[%s221 + $0xd8] sm:$0xff]
        %v292 = vld [vmem:[%s221 + $0xe0] sm:$0xff]
        %v293 = vld [vmem:[%s221 + $0xe8] sm:$0xff]
        %v294 = vld [vmem:[%s221 + $0xf0] sm:$0xff]
        %v295 = vld [vmem:[%s221 + $0xf8] sm:$0xff]
        %v296 = vld [vmem:[%s221 + $0x100] sm:$0xff]
        %v297 = vld [vmem:[%s221 + $0x108] sm:$0xff]
        %v298 = vld [vmem:[%s221 + $0x110] sm:$0xff]
        %v299 = vld [vmem:[%s221 + $0x118] sm:$0xff]
        %v300 = vld [vmem:[#allocation6] sm:$0xff]
        %v301 = vld [vmem:[#allocation6 + $0x8] sm:$0xff]
        %v302 = vld [vmem:[#allocation6 + $0x10] sm:$0xff]
        %v303 = vld [vmem:[#allocation6 + $0x18] sm:$0xff]
        %v304 = vld [vmem:[#allocation6 + $0x20] sm:$0xff]
        %v305 = vld [vmem:[#allocation6 + $0x28] sm:$0xff]
        %v306 = vld [vmem:[#allocation6 + $0x30] sm:$0xff]
        %v307 = vld [vmem:[#allocation6 + $0x38] sm:$0xff]
        %v308 = vld [vmem:[#allocation6 + $0x40] sm:$0xff]
        %v309 = vld [vmem:[#allocation6 + $0x48] sm:$0xff]
        %v310 = vld [vmem:[#allocation6 + $0x50] sm:$0xff]
        %v311 = vld [vmem:[#allocation6 + $0x58] sm:$0xff]
        %v312 = vld [vmem:[#allocation6 + $0x60] sm:$0xff]
        %v313 = vld [vmem:[#allocation6 + $0x68] sm:$0xff]
        %v314 = vld [vmem:[#allocation6 + $0x70] sm:$0xff]
        %v315 = vld [vmem:[#allocation6 + $0x78] sm:$0xff]
        %316 = vmatprep.subr.mxu0 0.0
        %317 = vmatpush1.msra.mxu0 %v300
        %318 = vmatprep.subr.mxu0 0.0
        %319 = vmatpush1.msra.mxu0 %v301
        %320 = vmatprep.subr.mxu0 0.0
        %321 = vmatpush1.msra.mxu0 %v302
        %322 = vmatprep.subr.mxu0 0.0
        %323 = vmatpush1.msra.mxu0 %v303
        %324 = vmatprep.subr.mxu0 0.0
        %325 = vmatpush1.msra.mxu0 %v304
        %326 = vmatprep.subr.mxu0 0.0
        %327 = vmatpush1.msra.mxu0 %v305
        %328 = vmatprep.subr.mxu0 0.0
        %329 = vmatpush1.msra.mxu0 %v306
        %330 = vmatprep.subr.mxu0 0.0
        %331 = vmatpush1.msra.mxu0 %v307
        %332 = vmatprep.subr.mxu0 0.0
        %333 = vmatpush1.msra.mxu0 %v308
        %334 = vmatprep.subr.mxu0 0.0
        %335 = vmatpush1.msra.mxu0 %v309
        %336 = vmatprep.subr.mxu0 0.0
        %337 = vmatpush1.msra.mxu0 %v310
        %338 = vmatprep.subr.mxu0 0.0
        %339 = vmatpush1.msra.mxu0 %v311
        %340 = vmatprep.subr.mxu0 0.0
        %341 = vmatpush1.msra.mxu0 %v312
        %342 = vmatprep.subr.mxu0 0.0
        %343 = vmatpush1.msra.mxu0 %v313
        %344 = vmatprep.subr.mxu0 0.0
        %345 = vmatpush1.msra.mxu0 %v314
        %346 = vmatprep.subr.mxu0 0.0
        %347 = vmatpush1.msra.mxu0 %v315
        %348 = vmatprep.subr.mxu0 0.0
        %349 = vmatpush1.msra.mxu0 0.0
        %350 = vmatprep.subr.mxu0 0.0
        %351 = vmatpush1.msra.mxu0 0.0
        %352 = vmatprep.subr.mxu0 0.0
        %353 = vmatpush1.msra.mxu0 0.0
        %354 = vmatprep.subr.mxu0 0.0
        %355 = vmatpush1.msra.mxu0 0.0
        %356 = vmatprep.subr.mxu0 0.0
        %357 = vmatpush1.msra.mxu0 0.0
        %358 = vmatprep.subr.mxu0 0.0
        %359 = vmatpush1.msra.mxu0 0.0
        %360 = vmatprep.subr.mxu0 0.0
        %361 = vmatpush1.msra.mxu0 0.0
        %362 = vmatprep.subr.mxu0 0.0
        %363 = vmatpush1.msra.mxu0 0.0
        %364 = vmatprep.subr.mxu0 0.0
        %365 = vmatpush1.msra.mxu0 0.0
        %366 = vmatprep.subr.mxu0 0.0
        %367 = vmatpush1.msra.mxu0 0.0
        %368 = vmatprep.subr.mxu0 0.0
        %369 = vmatpush1.msra.mxu0 0.0
        %370 = vmatprep.subr.mxu0 0.0
        %371 = vmatpush1.msra.mxu0 0.0
        %372 = vmatprep.subr.mxu0 0.0
        %373 = vmatpush1.msra.mxu0 0.0
        %374 = vmatprep.subr.mxu0 0.0
        %375 = vmatpush1.msra.mxu0 0.0
        %376 = vmatprep.subr.mxu0 0.0
        %377 = vmatpush1.msra.mxu0 0.0
        %378 = vmatprep.subr.mxu0 0.0
        %379 = vmatpush1.msra.mxu0 0.0
        %380 = vmatprep.mubr.f32.mxu0 0.0
        %381 = vmatmul.mubr.f32.gmra.mrb[0].mxu0 %v264
        %v382 = vpop.f32.mrb[0].mxu0
        %v383 = vadd.f32 0.0, %v382
        %v384 = vpop.f32.mrb[0].mxu0
        %385 = vmatprep.mubr.f32.mxu0 0.0
        %386 = vmatmul.mubr.f32.gmra.mrb[0].mxu0 %v265
        %v387 = vpop.f32.mrb[0].mxu0
        %v388 = vadd.f32 0.0, %v387
        %v389 = vpop.f32.mrb[0].mxu0
        %390 = vmatprep.mubr.f32.mxu0 0.0
        %391 = vmatmul.mubr.f32.gmra.mrb[0].mxu0 %v266
        %v392 = vpop.f32.mrb[0].mxu0
        %v393 = vadd.f32 0.0, %v392
        %v394 = vpop.f32.mrb[0].mxu0
        %395 = vmatprep.mubr.f32.mxu0 0.0
        %396 = vmatmul.mubr.f32.gmra.mrb[0].mxu0 %v267
        %v397 = vpop.f32.mrb[0].mxu0
        %v398 = vadd.f32 0.0, %v397
        %v399 = vpop.f32.mrb[0].mxu0
        %400 = vmatprep.mubr.f32.mxu0 0.0
        %401 = vmatmul.mubr.f32.gmra.mrb[0].mxu0 %v268
        %v402 = vpop.f32.mrb[0].mxu0
        %v403 = vadd.f32 0.0, %v402
        %v404 = vpop.f32.mrb[0].mxu0
        %405 = vmatprep.mubr.f32.mxu0 0.0
        %406 = vmatmul.mubr.f32.gmra.mrb[0].mxu0 %v269
        %v407 = vpop.f32.mrb[0].mxu0
        %v408 = vadd.f32 0.0, %v407
        %v409 = vpop.f32.mrb[0].mxu0
        %410 = vmatprep.mubr.f32.mxu0 0.0
        %411 = vmatmul.mubr.f32.gmra.mrb[0].mxu0 %v270
        %v412 = vpop.f32.mrb[0].mxu0
        %v413 = vadd.f32 0.0, %v412
        %v414 = vpop.f32.mrb[0].mxu0
        %415 = vmatprep.mubr.f32.mxu0 0.0
        %416 = vmatmul.mubr.f32.gmra.mrb[0].mxu0 %v271
        %v417 = vpop.f32.mrb[0].mxu0
        %v418 = vadd.f32 0.0, %v417
        %v419 = vpop.f32.mrb[0].mxu0
        %420 = vmatprep.mubr.f32.mxu0 0.0
        %421 = vmatmul.mubr.f32.gmra.mrb[0].mxu0 %v272
        %v422 = vpop.f32.mrb[0].mxu0
        %v423 = vadd.f32 0.0, %v422
        %v424 = vpop.f32.mrb[0].mxu0
        %425 = vmatprep.mubr.f32.mxu0 0.0
        %426 = vmatmul.mubr.f32.gmra.mrb[0].mxu0 %v273
        %v427 = vpop.f32.mrb[0].mxu0
        %v428 = vadd.f32 0.0, %v427
        %v429 = vpop.f32.mrb[0].mxu0
        %430 = vmatprep.mubr.f32.mxu0 0.0
        %431 = vmatmul.mubr.f32.gmra.mrb[0].mxu0 %v274
        %v432 = vpop.f32.mrb[0].mxu0
        %v433 = vadd.f32 0.0, %v432
        %v434 = vpop.f32.mrb[0].mxu0
        %435 = vmatprep.mubr.f32.mxu0 0.0
        %436 = vmatmul.mubr.f32.gmra.mrb[0].mxu0 %v275
        %v437 = vpop.f32.mrb[0].mxu0
        %v438 = vadd.f32 0.0, %v437
        %v439 = vpop.f32.mrb[0].mxu0
        %440 = vmatprep.mubr.f32.mxu0 0.0
        %441 = vmatmul.mubr.f32.gmra.mrb[0].mxu0 %v276
        %v442 = vpop.f32.mrb[0].mxu0
        %v443 = vadd.f32 0.0, %v442
        %v444 = vpop.f32.mrb[0].mxu0
        %445 = vmatprep.mubr.f32.mxu0 0.0
        %446 = vmatmul.mubr.f32.gmra.mrb[0].mxu0 %v277
        %v447 = vpop.f32.mrb[0].mxu0
        %v448 = vadd.f32 0.0, %v447
        %v449 = vpop.f32.mrb[0].mxu0
        %450 = vmatprep.mubr.f32.mxu0 0.0
        %451 = vmatmul.mubr.f32.gmra.mrb[0].mxu0 %v278
        %v452 = vpop.f32.mrb[0].mxu0
        %v453 = vadd.f32 0.0, %v452
        %v454 = vpop.f32.mrb[0].mxu0
        %455 = vmatprep.mubr.f32.mxu0 0.0
        %456 = vmatmul.mubr.f32.gmra.mrb[0].mxu0 %v279
        %v457 = vpop.f32.mrb[0].mxu0
        %v458 = vadd.f32 0.0, %v457
        %v459 = vpop.f32.mrb[0].mxu0
        %460 = vmatprep.mubr.f32.mxu0 0.0
        %461 = vmatmul.mubr.f32.gmra.mrb[0].mxu0 %v280
        %v462 = vpop.f32.mrb[0].mxu0
        %v463 = vadd.f32 0.0, %v462
        %v464 = vpop.f32.mrb[0].mxu0
        %465 = vmatprep.mubr.f32.mxu0 0.0
        %466 = vmatmul.mubr.f32.gmra.mrb[0].mxu0 %v281
        %v467 = vpop.f32.mrb[0].mxu0
        %v468 = vadd.f32 0.0, %v467
        %v469 = vpop.f32.mrb[0].mxu0
        %470 = vmatprep.mubr.f32.mxu0 0.0
        %471 = vmatmul.mubr.f32.gmra.mrb[0].mxu0 %v282
        %v472 = vpop.f32.mrb[0].mxu0
        %v473 = vadd.f32 0.0, %v472
        %v474 = vpop.f32.mrb[0].mxu0
        %475 = vmatprep.mubr.f32.mxu0 0.0
        %476 = vmatmul.mubr.f32.gmra.mrb[0].mxu0 %v283
        %v477 = vpop.f32.mrb[0].mxu0
        %v478 = vadd.f32 0.0, %v477
        %v479 = vpop.f32.mrb[0].mxu0
        %480 = vmatprep.mubr.f32.mxu0 0.0
        %481 = vmatmul.mubr.f32.gmra.mrb[0].mxu0 %v284
        %v482 = vpop.f32.mrb[0].mxu0
        %v483 = vadd.f32 0.0, %v482
        %v484 = vpop.f32.mrb[0].mxu0
        %485 = vmatprep.mubr.f32.mxu0 0.0
        %486 = vmatmul.mubr.f32.gmra.mrb[0].mxu0 %v285
        %v487 = vpop.f32.mrb[0].mxu0
        %v488 = vadd.f32 0.0, %v487
        %v489 = vpop.f32.mrb[0].mxu0
        %490 = vmatprep.mubr.f32.mxu0 0.0
        %491 = vmatmul.mubr.f32.gmra.mrb[0].mxu0 %v286
        %v492 = vpop.f32.mrb[0].mxu0
        %v493 = vadd.f32 0.0, %v492
        %v494 = vpop.f32.mrb[0].mxu0
        %495 = vmatprep.mubr.f32.mxu0 0.0
        %496 = vmatmul.mubr.f32.gmra.mrb[0].mxu0 %v287
        %v497 = vpop.f32.mrb[0].mxu0
        %v498 = vadd.f32 0.0, %v497
        %v499 = vpop.f32.mrb[0].mxu0
        %500 = vmatprep.mubr.f32.mxu0 0.0
        %501 = vmatmul.mubr.f32.gmra.mrb[0].mxu0 %v288
        %v502 = vpop.f32.mrb[0].mxu0
        %v503 = vadd.f32 0.0, %v502
        %v504 = vpop.f32.mrb[0].mxu0
        %505 = vmatprep.mubr.f32.mxu0 0.0
        %506 = vmatmul.mubr.f32.gmra.mrb[0].mxu0 %v289
        %v507 = vpop.f32.mrb[0].mxu0
        %v508 = vadd.f32 0.0, %v507
        %v509 = vpop.f32.mrb[0].mxu0
        %510 = vmatprep.mubr.f32.mxu0 0.0
        %511 = vmatmul.mubr.f32.gmra.mrb[0].mxu0 %v290
        %v512 = vpop.f32.mrb[0].mxu0
        %v513 = vadd.f32 0.0, %v512
        %v514 = vpop.f32.mrb[0].mxu0
        %515 = vmatprep.mubr.f32.mxu0 0.0
        %516 = vmatmul.mubr.f32.gmra.mrb[0].mxu0 %v291
        %v517 = vpop.f32.mrb[0].mxu0
        %v518 = vadd.f32 0.0, %v517
        %v519 = vpop.f32.mrb[0].mxu0
        %520 = vmatprep.mubr.f32.mxu0 0.0
        %521 = vmatmul.mubr.f32.gmra.mrb[0].mxu0 %v292
        %v522 = vpop.f32.mrb[0].mxu0
        %v523 = vadd.f32 0.0, %v522
        %v524 = vpop.f32.mrb[0].mxu0
        %525 = vmatprep.mubr.f32.mxu0 0.0
        %526 = vmatmul.mubr.f32.gmra.mrb[0].mxu0 %v293
        %v527 = vpop.f32.mrb[0].mxu0
        %v528 = vadd.f32 0.0, %v527
        %v529 = vpop.f32.mrb[0].mxu0
        %530 = vmatprep.mubr.f32.mxu0 0.0
        %531 = vmatmul.mubr.f32.gmra.mrb[0].mxu0 %v294
        %v532 = vpop.f32.mrb[0].mxu0
        %v533 = vadd.f32 0.0, %v532
        %v534 = vpop.f32.mrb[0].mxu0
        %535 = vmatprep.mubr.f32.mxu0 0.0
        %536 = vmatmul.mubr.f32.gmra.mrb[0].mxu0 %v295
        %v537 = vpop.f32.mrb[0].mxu0
        %v538 = vadd.f32 0.0, %v537
        %v539 = vpop.f32.mrb[0].mxu0
        %540 = vmatprep.mubr.f32.mxu0 0.0
        %541 = vmatmul.mubr.f32.gmra.mrb[0].mxu0 %v296
        %v542 = vpop.f32.mrb[0].mxu0
        %v543 = vadd.f32 0.0, %v542
        %v544 = vpop.f32.mrb[0].mxu0
        %545 = vmatprep.mubr.f32.mxu0 0.0
        %546 = vmatmul.mubr.f32.gmra.mrb[0].mxu0 %v297
        %v547 = vpop.f32.mrb[0].mxu0
        %v548 = vadd.f32 0.0, %v547
        %v549 = vpop.f32.mrb[0].mxu0
        %550 = vmatprep.mubr.f32.mxu0 0.0
        %551 = vmatmul.mubr.f32.gmra.mrb[0].mxu0 %v298
        %v552 = vpop.f32.mrb[0].mxu0
        %v553 = vadd.f32 0.0, %v552
        %v554 = vpop.f32.mrb[0].mxu0
        %555 = vmatprep.mubr.f32.mxu0 0.0
        %556 = vmatmul.mubr.f32.gmra.mrb[0].mxu0 %v299
        %v557 = vpop.f32.mrb[0].mxu0
        %v558 = vadd.f32 0.0, %v557
        %v559 = vpop.f32.mrb[0].mxu0
        %560 = vdwg.mxu0
        %v561 = vmax.f32 %v383, 0.0
        %v562 = vmax.f32 %v388, 0.0
        %v563 = vmax.f32 %v393, 0.0
        %v564 = vmax.f32 %v398, 0.0
        %v565 = vmax.f32 %v403, 0.0
        %v566 = vmax.f32 %v408, 0.0
        %v567 = vmax.f32 %v413, 0.0
        %v568 = vmax.f32 %v418, 0.0
        %v569 = vmax.f32 %v423, 0.0
        %v570 = vmax.f32 %v428, 0.0
        %v571 = vmax.f32 %v433, 0.0
        %v572 = vmax.f32 %v438, 0.0
        %v573 = vmax.f32 %v443, 0.0
        %v574 = vmax.f32 %v448, 0.0
        %v575 = vmax.f32 %v453, 0.0
        %v576 = vmax.f32 %v458, 0.0
        %v577 = vmax.f32 %v463, 0.0
        %v578 = vmax.f32 %v468, 0.0
        %v579 = vmax.f32 %v473, 0.0
        %v580 = vmax.f32 %v478, 0.0
        %v581 = vmax.f32 %v483, 0.0
        %v582 = vmax.f32 %v488, 0.0
        %v583 = vmax.f32 %v493, 0.0
        %v584 = vmax.f32 %v498, 0.0
        %v585 = vmax.f32 %v503, 0.0
        %v586 = vmax.f32 %v508, 0.0
        %v587 = vmax.f32 %v513, 0.0
        %v588 = vmax.f32 %v518, 0.0
        %v589 = vmax.f32 %v523, 0.0
        %v590 = vmax.f32 %v528, 0.0
        %v591 = vmax.f32 %v533, 0.0
        %v592 = vmax.f32 %v538, 0.0
        %v593 = vmax.f32 %v543, 0.0
        %v594 = vmax.f32 %v548, 0.0
        %v595 = vmax.f32 %v553, 0.0
        %v596 = vmax.f32 %v558, 0.0
        %597 = vst [vmem:[#allocation2 + $0x18] sm:$0xff] %v561
        %598 = vst [vmem:[#allocation2 + $0x20] sm:$0xff] %v562
        %599 = vst [vmem:[#allocation2 + $0x28] sm:$0xff] %v563
        %600 = vst [vmem:[#allocation2 + $0x30] sm:$0xff] %v564
        %601 = vst [vmem:[#allocation2 + $0x38] sm:$0xff] %v565
        %602 = vst [vmem:[#allocation2 + $0x40] sm:$0xff] %v566
        %603 = vst [vmem:[#allocation2 + $0x48] sm:$0xff] %v567
        %604 = vst [vmem:[#allocation2 + $0x50] sm:$0xff] %v568
        %605 = vst [vmem:[#allocation2 + $0x58] sm:$0xff] %v569
        %606 = vst [vmem:[#allocation2 + $0x60] sm:$0xff] %v570
        %607 = vst [vmem:[#allocation2 + $0x68] sm:$0xff] %v571
        %608 = vst [vmem:[#allocation2 + $0x70] sm:$0xff] %v572
        %609 = vst [vmem:[#allocation2 + $0x78] sm:$0xff] %v573
        %610 = vst [vmem:[#allocation2 + $0x80] sm:$0xff] %v574
        %611 = vst [vmem:[#allocation2 + $0x88] sm:$0xff] %v575
        %612 = vst [vmem:[#allocation2 + $0x90] sm:$0xff] %v576
        %613 = vst [vmem:[#allocation2 + $0x98] sm:$0xff] %v577
        %614 = vst [vmem:[#allocation2 + $0xa0] sm:$0xff] %v578
        %615 = vst [vmem:[#allocation2 + $0xa8] sm:$0xff] %v579
        %616 = vst [vmem:[#allocation2 + $0xb0] sm:$0xff] %v580
        %617 = vst [vmem:[#allocation2 + $0xb8] sm:$0xff] %v581
        %618 = vst [vmem:[#allocation2 + $0xc0] sm:$0xff] %v582
        %619 = vst [vmem:[#allocation2 + $0xc8] sm:$0xff] %v583
        %620 = vst [vmem:[#allocation2 + $0xd0] sm:$0xff] %v584
        %621 = vst [vmem:[#allocation2 + $0xd8] sm:$0xff] %v585
        %622 = vst [vmem:[#allocation2 + $0xe0] sm:$0xff] %v586
        %623 = vst [vmem:[#allocation2 + $0xe8] sm:$0xff] %v587
        %624 = vst [vmem:[#allocation2 + $0xf0] sm:$0xff] %v588
        %625 = vst [vmem:[#allocation2 + $0xf8] sm:$0xff] %v589
        %626 = vst [vmem:[#allocation2 + $0x100] sm:$0xff] %v590
        %627 = vst [vmem:[#allocation2 + $0x108] sm:$0xff] %v591
        %628 = vst [vmem:[#allocation2 + $0x110] sm:$0xff] %v592
        %629 = vst [vmem:[#allocation2 + $0x118] sm:$0xff] %v593
        %630 = vst [vmem:[#allocation2 + $0x120] sm:$0xff] %v594
        %631 = vst [vmem:[#allocation2 + $0x128] sm:$0xff] %v595
        %632 = vst [vmem:[#allocation2 + $0x130] sm:$0xff] %v596
        %v633 = vld [vmem:[#allocation2 + $0x5] sm:$0xff]
        %v634 = vld [vmem:[#allocation2 + $0xd] sm:$0xff]
        %v635 = vld [vmem:[#allocation2 + $0x15] sm:$0xff]
        %v636 = vld [vmem:[#allocation2 + $0x1d] sm:$0xff]
        %v637 = vld [vmem:[#allocation2 + $0x25] sm:$0xff]
        %v638 = vld [vmem:[#allocation2 + $0x2d] sm:$0xff]
        %v639 = vld [vmem:[#allocation2 + $0x35] sm:$0xff]
        %v640 = vld [vmem:[#allocation2 + $0x3d] sm:$0xff]
        %v641 = vld [vmem:[#allocation2 + $0x45] sm:$0xff]
        %v642 = vld [vmem:[#allocation2 + $0x4d] sm:$0xff]
        %v643 = vld [vmem:[#allocation2 + $0x55] sm:$0xff]
        %v644 = vld [vmem:[#allocation2 + $0x5d] sm:$0xff]
        %v645 = vld [vmem:[#allocation2 + $0x65] sm:$0xff]
        %v646 = vld [vmem:[#allocation2 + $0x6d] sm:$0xff]
        %v647 = vld [vmem:[#allocation2 + $0x75] sm:$0xff]
        %v648 = vld [vmem:[#allocation2 + $0x7d] sm:$0xff]
        %v649 = vld [vmem:[#allocation2 + $0x85] sm:$0xff]
        %v650 = vld [vmem:[#allocation2 + $0x8d] sm:$0xff]
        %v651 = vld [vmem:[#allocation2 + $0x95] sm:$0xff]
        %v652 = vld [vmem:[#allocation2 + $0x9d] sm:$0xff]
        %v653 = vld [vmem:[#allocation2 + $0xa5] sm:$0xff]
        %v654 = vld [vmem:[#allocation2 + $0xad] sm:$0xff]
        %v655 = vld [vmem:[#allocation2 + $0xb5] sm:$0xff]
        %v656 = vld [vmem:[#allocation2 + $0xbd] sm:$0xff]
        %v657 = vld [vmem:[#allocation2 + $0xc5] sm:$0xff]
        %v658 = vld [vmem:[#allocation2 + $0xcd] sm:$0xff]
        %v659 = vld [vmem:[#allocation2 + $0xd5] sm:$0xff]
        %v660 = vld [vmem:[#allocation2 + $0xdd] sm:$0xff]
        %v661 = vld [vmem:[#allocation2 + $0xe5] sm:$0xff]
        %v662 = vld [vmem:[#allocation2 + $0xed] sm:$0xff]
        %v663 = vld [vmem:[#allocation2 + $0xf5] sm:$0xff]
        %v664 = vld [vmem:[#allocation2 + $0xfd] sm:$0xff]
        %v665 = vld [vmem:[#allocation2 + $0x105] sm:$0xff]
        %v666 = vld [vmem:[#allocation2 + $0x10d] sm:$0xff]
        %v667 = vld [vmem:[#allocation2 + $0x115] sm:$0xff]
        %v668 = vld [vmem:[#allocation2 + $0x11d] sm:$0xff]
        %v669 = vld [vmem:[#allocation8] sm:$0xff]
        %v670 = vld [vmem:[#allocation8 + $0x8] sm:$0xff]
        %v671 = vld [vmem:[#allocation8 + $0x10] sm:$0xff]
        %v672 = vld [vmem:[#allocation8 + $0x18] sm:$0xff]
        %v673 = vld [vmem:[#allocation8 + $0x20] sm:$0xff]
        %v674 = vld [vmem:[#allocation8 + $0x28] sm:$0xff]
        %v675 = vld [vmem:[#allocation8 + $0x30] sm:$0xff]
        %v676 = vld [vmem:[#allocation8 + $0x38] sm:$0xff]
        %v677 = vld [vmem:[#allocation8 + $0x40] sm:$0xff]
        %v678 = vld [vmem:[#allocation8 + $0x48] sm:$0xff]
        %v679 = vld [vmem:[#allocation8 + $0x50] sm:$0xff]
        %v680 = vld [vmem:[#allocation8 + $0x58] sm:$0xff]
        %v681 = vld [vmem:[#allocation8 + $0x60] sm:$0xff]
        %v682 = vld [vmem:[#allocation8 + $0x68] sm:$0xff]
        %v683 = vld [vmem:[#allocation8 + $0x70] sm:$0xff]
        %v684 = vld [vmem:[#allocation8 + $0x78] sm:$0xff]
        %v685 = vld [vmem:[#allocation2 + $0x6] sm:$0xff]
        %v686 = vld [vmem:[#allocation2 + $0xe] sm:$0xff]
        %v687 = vld [vmem:[#allocation2 + $0x16] sm:$0xff]
        %v688 = vld [vmem:[#allocation2 + $0x1e] sm:$0xff]
        %v689 = vld [vmem:[#allocation2 + $0x26] sm:$0xff]
        %v690 = vld [vmem:[#allocation2 + $0x2e] sm:$0xff]
        %v691 = vld [vmem:[#allocation2 + $0x36] sm:$0xff]
        %v692 = vld [vmem:[#allocation2 + $0x3e] sm:$0xff]
        %v693 = vld [vmem:[#allocation2 + $0x46] sm:$0xff]
        %v694 = vld [vmem:[#allocation2 + $0x4e] sm:$0xff]
        %v695 = vld [vmem:[#allocation2 + $0x56] sm:$0xff]
        %v696 = vld [vmem:[#allocation2 + $0x5e] sm:$0xff]
        %v697 = vld [vmem:[#allocation2 + $0x66] sm:$0xff]
        %v698 = vld [vmem:[#allocation2 + $0x6e] sm:$0xff]
        %v699 = vld [vmem:[#allocation2 + $0x76] sm:$0xff]
        %v700 = vld [vmem:[#allocation2 + $0x7e] sm:$0xff]
        %v701 = vld [vmem:[#allocation2 + $0x86] sm:$0xff]
        %v702 = vld [vmem:[#allocation2 + $0x8e] sm:$0xff]
        %v703 = vld [vmem:[#allocation2 + $0x96] sm:$0xff]
        %v704 = vld [vmem:[#allocation2 + $0x9e] sm:$0xff]
        %v705 = vld [vmem:[#allocation2 + $0xa6] sm:$0xff]
        %v706 = vld [vmem:[#allocation2 + $0xae] sm:$0xff]
        %v707 = vld [vmem:[#allocation2 + $0xb6] sm:$0xff]
        %v708 = vld [vmem:[#allocation2 + $0xbe] sm:$0xff]
        %v709 = vld [vmem:[#allocation2 + $0xc6] sm:$0xff]
        %v710 = vld [vmem:[#allocation2 + $0xce] sm:$0xff]
        %v711 = vld [vmem:[#allocation2 + $0xd6] sm:$0xff]
        %v712 = vld [vmem:[#allocation2 + $0xde] sm:$0xff]
        %v713 = vld [vmem:[#allocation2 + $0xe6] sm:$0xff]
        %v714 = vld [vmem:[#allocation2 + $0xee] sm:$0xff]
        %v715 = vld [vmem:[#allocation2 + $0xf6] sm:$0xff]
        %v716 = vld [vmem:[#allocation2 + $0xfe] sm:$0xff]
        %v717 = vld [vmem:[#allocation2 + $0x106] sm:$0xff]
        %v718 = vld [vmem:[#allocation2 + $0x10e] sm:$0xff]
        %v719 = vld [vmem:[#allocation2 + $0x116] sm:$0xff]
        %v720 = vld [vmem:[#allocation2 + $0x11e] sm:$0xff]
        %s721 = scalar_lea.vmem [#allocation8], 128
        %v722 = vld [vmem:[%s721] sm:$0xff]
        %v723 = vld [vmem:[%s721 + $0x8] sm:$0xff]
        %v724 = vld [vmem:[%s721 + $0x10] sm:$0xff]
        %v725 = vld [vmem:[%s721 + $0x18] sm:$0xff]
        %v726 = vld [vmem:[%s721 + $0x20] sm:$0xff]
        %v727 = vld [vmem:[%s721 + $0x28] sm:$0xff]
        %v728 = vld [vmem:[%s721 + $0x30] sm:$0xff]
        %v729 = vld [vmem:[%s721 + $0x38] sm:$0xff]
        %v730 = vld [vmem:[%s721 + $0x40] sm:$0xff]
        %v731 = vld [vmem:[%s721 + $0x48] sm:$0xff]
        %v732 = vld [vmem:[%s721 + $0x50] sm:$0xff]
        %v733 = vld [vmem:[%s721 + $0x58] sm:$0xff]
        %v734 = vld [vmem:[%s721 + $0x60] sm:$0xff]
        %v735 = vld [vmem:[%s721 + $0x68] sm:$0xff]
        %v736 = vld [vmem:[%s721 + $0x70] sm:$0xff]
        %v737 = vld [vmem:[%s721 + $0x78] sm:$0xff]
        %738 = vmatprep.subr.mxu0 0.0
        %739 = vmatpush1.msra.mxu0 %v722
        %740 = vmatprep.subr.mxu0 0.0
        %741 = vmatpush1.msra.mxu0 %v723
        %742 = vmatprep.subr.mxu0 0.0
        %743 = vmatpush1.msra.mxu0 %v724
        %744 = vmatprep.subr.mxu0 0.0
        %745 = vmatpush1.msra.mxu0 %v725
        %746 = vmatprep.subr.mxu0 0.0
        %747 = vmatpush1.msra.mxu0 %v726
        %748 = vmatprep.subr.mxu0 0.0
        %749 = vmatpush1.msra.mxu0 %v727
        %750 = vmatprep.subr.mxu0 0.0
        %751 = vmatpush1.msra.mxu0 %v728
        %752 = vmatprep.subr.mxu0 0.0
        %753 = vmatpush1.msra.mxu0 %v729
        %754 = vmatprep.subr.mxu0 0.0
        %755 = vmatpush1.msra.mxu0 %v730
        %756 = vmatprep.subr.mxu0 0.0
        %757 = vmatpush1.msra.mxu0 %v731
        %758 = vmatprep.subr.mxu0 0.0
        %759 = vmatpush1.msra.mxu0 %v732
        %760 = vmatprep.subr.mxu0 0.0
        %761 = vmatpush1.msra.mxu0 %v733
        %762 = vmatprep.subr.mxu0 0.0
        %763 = vmatpush1.msra.mxu0 %v734
        %764 = vmatprep.subr.mxu0 0.0
        %765 = vmatpush1.msra.mxu0 %v735
        %766 = vmatprep.subr.mxu0 0.0
        %767 = vmatpush1.msra.mxu0 %v736
        %768 = vmatprep.subr.mxu0 0.0
        %769 = vmatpush1.msra.mxu0 %v737
        %770 = vmatprep.subr.mxu0 0.0
        %771 = vmatpush1.msra.mxu0 0.0
        %772 = vmatprep.subr.mxu0 0.0
        %773 = vmatpush1.msra.mxu0 0.0
        %774 = vmatprep.subr.mxu0 0.0
        %775 = vmatpush1.msra.mxu0 0.0
        %776 = vmatprep.subr.mxu0 0.0
        %777 = vmatpush1.msra.mxu0 0.0
        %778 = vmatprep.subr.mxu0 0.0
        %779 = vmatpush1.msra.mxu0 0.0
        %780 = vmatprep.subr.mxu0 0.0
        %781 = vmatpush1.msra.mxu0 0.0
        %782 = vmatprep.subr.mxu0 0.0
        %783 = vmatpush1.msra.mxu0 0.0
        %784 = vmatprep.subr.mxu0 0.0
        %785 = vmatpush1.msra.mxu0 0.0
        %786 = vmatprep.subr.mxu0 0.0
        %787 = vmatpush1.msra.mxu0 0.0
        %788 = vmatprep.subr.mxu0 0.0
        %789 = vmatpush1.msra.mxu0 0.0
        %790 = vmatprep.subr.mxu0 0.0
        %791 = vmatpush1.msra.mxu0 0.0
        %792 = vmatprep.subr.mxu0 0.0
        %793 = vmatpush1.msra.mxu0 0.0
        %794 = vmatprep.subr.mxu0 0.0
        %795 = vmatpush1.msra.mxu0 0.0
        %796 = vmatprep.subr.mxu0 0.0
        %797 = vmatpush1.msra.mxu0 0.0
        %798 = vmatprep.subr.mxu0 0.0
        %799 = vmatpush1.msra.mxu0 0.0
        %800 = vmatprep.subr.mxu0 0.0
        %801 = vmatpush1.msra.mxu0 0.0
        %802 = vmatprep.mubr.f32.mxu0 0.0
        %803 = vmatmul.mubr.f32.gmra.mrb[0].mxu0 %v685
        %v804 = vpop.f32.mrb[0].mxu0
        %v805 = vadd.f32 0.0, %v804
        %v806 = vpop.f32.mrb[0].mxu0
        %807 = vmatprep.mubr.f32.mxu0 0.0
        %808 = vmatmul.mubr.f32.gmra.mrb[0].mxu0 %v686
        %v809 = vpop.f32.mrb[0].mxu0
        %v810 = vadd.f32 0.0, %v809
        %v811 = vpop.f32.mrb[0].mxu0
        %812 = vmatprep.mubr.f32.mxu0 0.0
        %813 = vmatmul.mubr.f32.gmra.mrb[0].mxu0 %v687
        %v814 = vpop.f32.mrb[0].mxu0
        %v815 = vadd.f32 0.0, %v814
        %v816 = vpop.f32.mrb[0].mxu0
        %817 = vmatprep.mubr.f32.mxu0 0.0
        %818 = vmatmul.mubr.f32.gmra.mrb[0].mxu0 %v688
        %v819 = vpop.f32.mrb[0].mxu0
        %v820 = vadd.f32 0.0, %v819
        %v821 = vpop.f32.mrb[0].mxu0
        %822 = vmatprep.mubr.f32.mxu0 0.0
        %823 = vmatmul.mubr.f32.gmra.mrb[0].mxu0 %v689
        %v824 = vpop.f32.mrb[0].mxu0
        %v825 = vadd.f32 0.0, %v824
        %v826 = vpop.f32.mrb[0].mxu0
        %827 = vmatprep.mubr.f32.mxu0 0.0
        %828 = vmatmul.mubr.f32.gmra.mrb[0].mxu0 %v690
        %v829 = vpop.f32.mrb[0].mxu0
        %v830 = vadd.f32 0.0, %v829
        %v831 = vpop.f32.mrb[0].mxu0
        %832 = vmatprep.mubr.f32.mxu0 0.0
        %833 = vmatmul.mubr.f32.gmra.mrb[0].mxu0 %v691
        %v834 = vpop.f32.mrb[0].mxu0
        %v835 = vadd.f32 0.0, %v834
        %v836 = vpop.f32.mrb[0].mxu0
        %837 = vmatprep.mubr.f32.mxu0 0.0
        %838 = vmatmul.mubr.f32.gmra.mrb[0].mxu0 %v692
        %v839 = vpop.f32.mrb[0].mxu0
        %v840 = vadd.f32 0.0, %v839
        %v841 = vpop.f32.mrb[0].mxu0
        %842 = vmatprep.mubr.f32.mxu0 0.0
        %843 = vmatmul.mubr.f32.gmra.mrb[0].mxu0 %v693
        %v844 = vpop.f32.mrb[0].mxu0
        %v845 = vadd.f32 0.0, %v844
        %v846 = vpop.f32.mrb[0].mxu0
        %847 = vmatprep.mubr.f32.mxu0 0.0
        %848 = vmatmul.mubr.f32.gmra.mrb[0].mxu0 %v694
        %v849 = vpop.f32.mrb[0].mxu0
        %v850 = vadd.f32 0.0, %v849
        %v851 = vpop.f32.mrb[0].mxu0
        %852 = vmatprep.mubr.f32.mxu0 0.0
        %853 = vmatmul.mubr.f32.gmra.mrb[0].mxu0 %v695
        %v854 = vpop.f32.mrb[0].mxu0
        %v855 = vadd.f32 0.0, %v854
        %v856 = vpop.f32.mrb[0].mxu0
        %857 = vmatprep.mubr.f32.mxu0 0.0
        %858 = vmatmul.mubr.f32.gmra.mrb[0].mxu0 %v696
        %v859 = vpop.f32.mrb[0].mxu0
        %v860 = vadd.f32 0.0, %v859
        %v861 = vpop.f32.mrb[0].mxu0
        %862 = vmatprep.mubr.f32.mxu0 0.0
        %863 = vmatmul.mubr.f32.gmra.mrb[0].mxu0 %v697
        %v864 = vpop.f32.mrb[0].mxu0
        %v865 = vadd.f32 0.0, %v864
        %v866 = vpop.f32.mrb[0].mxu0
        %867 = vmatprep.mubr.f32.mxu0 0.0
        %868 = vmatmul.mubr.f32.gmra.mrb[0].mxu0 %v698
        %v869 = vpop.f32.mrb[0].mxu0
        %v870 = vadd.f32 0.0, %v869
        %v871 = vpop.f32.mrb[0].mxu0
        %872 = vmatprep.mubr.f32.mxu0 0.0
        %873 = vmatmul.mubr.f32.gmra.mrb[0].mxu0 %v699
        %v874 = vpop.f32.mrb[0].mxu0
        %v875 = vadd.f32 0.0, %v874
        %v876 = vpop.f32.mrb[0].mxu0
        %877 = vmatprep.mubr.f32.mxu0 0.0
        %878 = vmatmul.mubr.f32.gmra.mrb[0].mxu0 %v700
        %v879 = vpop.f32.mrb[0].mxu0
        %v880 = vadd.f32 0.0, %v879
        %v881 = vpop.f32.mrb[0].mxu0
        %882 = vmatprep.mubr.f32.mxu0 0.0
        %883 = vmatmul.mubr.f32.gmra.mrb[0].mxu0 %v701
        %v884 = vpop.f32.mrb[0].mxu0
        %v885 = vadd.f32 0.0, %v884
        %v886 = vpop.f32.mrb[0].mxu0
        %887 = vmatprep.mubr.f32.mxu0 0.0
        %888 = vmatmul.mubr.f32.gmra.mrb[0].mxu0 %v702
        %v889 = vpop.f32.mrb[0].mxu0
        %v890 = vadd.f32 0.0, %v889
        %v891 = vpop.f32.mrb[0].mxu0
        %892 = vmatprep.mubr.f32.mxu0 0.0
        %893 = vmatmul.mubr.f32.gmra.mrb[0].mxu0 %v703
        %v894 = vpop.f32.mrb[0].mxu0
        %v895 = vadd.f32 0.0, %v894
        %v896 = vpop.f32.mrb[0].mxu0
        %897 = vmatprep.mubr.f32.mxu0 0.0
        %898 = vmatmul.mubr.f32.gmra.mrb[0].mxu0 %v704
        %v899 = vpop.f32.mrb[0].mxu0
        %v900 = vadd.f32 0.0, %v899
        %v901 = vpop.f32.mrb[0].mxu0
        %902 = vmatprep.mubr.f32.mxu0 0.0
        %903 = vmatmul.mubr.f32.gmra.mrb[0].mxu0 %v705
        %v904 = vpop.f32.mrb[0].mxu0
        %v905 = vadd.f32 0.0, %v904
        %v906 = vpop.f32.mrb[0].mxu0
        %907 = vmatprep.mubr.f32.mxu0 0.0
        %908 = vmatmul.mubr.f32.gmra.mrb[0].mxu0 %v706
        %v909 = vpop.f32.mrb[0].mxu0
        %v910 = vadd.f32 0.0, %v909
        %v911 = vpop.f32.mrb[0].mxu0
        %912 = vmatprep.mubr.f32.mxu0 0.0
        %913 = vmatmul.mubr.f32.gmra.mrb[0].mxu0 %v707
        %v914 = vpop.f32.mrb[0].mxu0
        %v915 = vadd.f32 0.0, %v914
        %v916 = vpop.f32.mrb[0].mxu0
        %917 = vmatprep.mubr.f32.mxu0 0.0
        %918 = vmatmul.mubr.f32.gmra.mrb[0].mxu0 %v708
        %v919 = vpop.f32.mrb[0].mxu0
        %v920 = vadd.f32 0.0, %v919
        %v921 = vpop.f32.mrb[0].mxu0
        %922 = vmatprep.mubr.f32.mxu0 0.0
        %923 = vmatmul.mubr.f32.gmra.mrb[0].mxu0 %v709
        %v924 = vpop.f32.mrb[0].mxu0
        %v925 = vadd.f32 0.0, %v924
        %v926 = vpop.f32.mrb[0].mxu0
        %927 = vmatprep.mubr.f32.mxu0 0.0
        %928 = vmatmul.mubr.f32.gmra.mrb[0].mxu0 %v710
        %v929 = vpop.f32.mrb[0].mxu0
        %v930 = vadd.f32 0.0, %v929
        %v931 = vpop.f32.mrb[0].mxu0
        %932 = vmatprep.mubr.f32.mxu0 0.0
        %933 = vmatmul.mubr.f32.gmra.mrb[0].mxu0 %v711
        %v934 = vpop.f32.mrb[0].mxu0
        %v935 = vadd.f32 0.0, %v934
        %v936 = vpop.f32.mrb[0].mxu0
        %937 = vmatprep.mubr.f32.mxu0 0.0
        %938 = vmatmul.mubr.f32.gmra.mrb[0].mxu0 %v712
        %v939 = vpop.f32.mrb[0].mxu0
        %v940 = vadd.f32 0.0, %v939
        %v941 = vpop.f32.mrb[0].mxu0
        %942 = vmatprep.mubr.f32.mxu0 0.0
        %943 = vmatmul.mubr.f32.gmra.mrb[0].mxu0 %v713
        %v944 = vpop.f32.mrb[0].mxu0
        %v945 = vadd.f32 0.0, %v944
        %v946 = vpop.f32.mrb[0].mxu0
        %947 = vmatprep.mubr.f32.mxu0 0.0
        %948 = vmatmul.mubr.f32.gmra.mrb[0].mxu0 %v714
        %v949 = vpop.f32.mrb[0].mxu0
        %v950 = vadd.f32 0.0, %v949
        %v951 = vpop.f32.mrb[0].mxu0
        %952 = vmatprep.mubr.f32.mxu0 0.0
        %953 = vmatmul.mubr.f32.gmra.mrb[0].mxu0 %v715
        %v954 = vpop.f32.mrb[0].mxu0
        %v955 = vadd.f32 0.0, %v954
        %v956 = vpop.f32.mrb[0].mxu0
        %957 = vmatprep.mubr.f32.mxu0 0.0
        %958 = vmatmul.mubr.f32.gmra.mrb[0].mxu0 %v716
        %v959 = vpop.f32.mrb[0].mxu0
        %v960 = vadd.f32 0.0, %v959
        %v961 = vpop.f32.mrb[0].mxu0
        %962 = vmatprep.mubr.f32.mxu0 0.0
        %963 = vmatmul.mubr.f32.gmra.mrb[0].mxu0 %v717
        %v964 = vpop.f32.mrb[0].mxu0
        %v965 = vadd.f32 0.0, %v964
        %v966 = vpop.f32.mrb[0].mxu0
        %967 = vmatprep.mubr.f32.mxu0 0.0
        %968 = vmatmul.mubr.f32.gmra.mrb[0].mxu0 %v718
        %v969 = vpop.f32.mrb[0].mxu0
        %v970 = vadd.f32 0.0, %v969
        %v971 = vpop.f32.mrb[0].mxu0
        %972 = vmatprep.mubr.f32.mxu0 0.0
        %973 = vmatmul.mubr.f32.gmra.mrb[0].mxu0 %v719
        %v974 = vpop.f32.mrb[0].mxu0
        %v975 = vadd.f32 0.0, %v974
        %v976 = vpop.f32.mrb[0].mxu0
        %977 = vmatprep.mubr.f32.mxu0 0.0
        %978 = vmatmul.mubr.f32.gmra.mrb[0].mxu0 %v720
        %v979 = vpop.f32.mrb[0].mxu0
        %v980 = vadd.f32 0.0, %v979
        %v981 = vpop.f32.mrb[0].mxu0
        %982 = vdwg.mxu0
        %983 = vmatprep.subr.mxu0 0.0
        %984 = vmatpush1.msra.mxu0 %v669
        %985 = vmatprep.subr.mxu0 0.0
        %986 = vmatpush1.msra.mxu0 %v670
        %987 = vmatprep.subr.mxu0 0.0
        %988 = vmatpush1.msra.mxu0 %v671
        %989 = vmatprep.subr.mxu0 0.0
        %990 = vmatpush1.msra.mxu0 %v672
        %991 = vmatprep.subr.mxu0 0.0
        %992 = vmatpush1.msra.mxu0 %v673
        %993 = vmatprep.subr.mxu0 0.0
        %994 = vmatpush1.msra.mxu0 %v674
        %995 = vmatprep.subr.mxu0 0.0
        %996 = vmatpush1.msra.mxu0 %v675
        %997 = vmatprep.subr.mxu0 0.0
        %998 = vmatpush1.msra.mxu0 %v676
        %999 = vmatprep.subr.mxu0 0.0
        %1000 = vmatpush1.msra.mxu0 %v677
        %1001 = vmatprep.subr.mxu0 0.0
        %1002 = vmatpush1.msra.mxu0 %v678
        %1003 = vmatprep.subr.mxu0 0.0
        %1004 = vmatpush1.msra.mxu0 %v679
        %1005 = vmatprep.subr.mxu0 0.0
        %1006 = vmatpush1.msra.mxu0 %v680
        %1007 = vmatprep.subr.mxu0 0.0
        %1008 = vmatpush1.msra.mxu0 %v681
        %1009 = vmatprep.subr.mxu0 0.0
        %1010 = vmatpush1.msra.mxu0 %v682
        %1011 = vmatprep.subr.mxu0 0.0
        %1012 = vmatpush1.msra.mxu0 %v683
        %1013 = vmatprep.subr.mxu0 0.0
        %1014 = vmatpush1.msra.mxu0 %v684
        %1015 = vmatprep.subr.mxu0 0.0
        %1016 = vmatpush1.msra.mxu0 0.0
        %1017 = vmatprep.subr.mxu0 0.0
        %1018 = vmatpush1.msra.mxu0 0.0
        %1019 = vmatprep.subr.mxu0 0.0
        %1020 = vmatpush1.msra.mxu0 0.0
        %1021 = vmatprep.subr.mxu0 0.0
        %1022 = vmatpush1.msra.mxu0 0.0
        %1023 = vmatprep.subr.mxu0 0.0
        %1024 = vmatpush1.msra.mxu0 0.0
        %1025 = vmatprep.subr.mxu0 0.0
        %1026 = vmatpush1.msra.mxu0 0.0
        %1027 = vmatprep.subr.mxu0 0.0
        %1028 = vmatpush1.msra.mxu0 0.0
        %1029 = vmatprep.subr.mxu0 0.0
        %1030 = vmatpush1.msra.mxu0 0.0
        %1031 = vmatprep.subr.mxu0 0.0
        %1032 = vmatpush1.msra.mxu0 0.0
        %1033 = vmatprep.subr.mxu0 0.0
        %1034 = vmatpush1.msra.mxu0 0.0
        %1035 = vmatprep.subr.mxu0 0.0
        %1036 = vmatpush1.msra.mxu0 0.0
        %1037 = vmatprep.subr.mxu0 0.0
        %1038 = vmatpush1.msra.mxu0 0.0
        %1039 = vmatprep.subr.mxu0 0.0
        %1040 = vmatpush1.msra.mxu0 0.0
        %1041 = vmatprep.subr.mxu0 0.0
        %1042 = vmatpush1.msra.mxu0 0.0
        %1043 = vmatprep.subr.mxu0 0.0
        %1044 = vmatpush1.msra.mxu0 0.0
        %1045 = vmatprep.subr.mxu0 0.0
        %1046 = vmatpush1.msra.mxu0 0.0
        %1047 = vmatprep.mubr.f32.mxu0 0.0
        %1048 = vmatmul.mubr.f32.gmra.mrb[0].mxu0 %v633
        %v1049 = vpop.f32.mrb[0].mxu0
        %v1050 = vadd.f32 %v805, %v1049
        %v1051 = vpop.f32.mrb[0].mxu0
        %1052 = vmatprep.mubr.f32.mxu0 0.0
        %1053 = vmatmul.mubr.f32.gmra.mrb[0].mxu0 %v634
        %v1054 = vpop.f32.mrb[0].mxu0
        %v1055 = vadd.f32 %v810, %v1054
        %v1056 = vpop.f32.mrb[0].mxu0
        %1057 = vmatprep.mubr.f32.mxu0 0.0
        %1058 = vmatmul.mubr.f32.gmra.mrb[0].mxu0 %v635
        %v1059 = vpop.f32.mrb[0].mxu0
        %v1060 = vadd.f32 %v815, %v1059
        %v1061 = vpop.f32.mrb[0].mxu0
        %1062 = vmatprep.mubr.f32.mxu0 0.0
        %1063 = vmatmul.mubr.f32.gmra.mrb[0].mxu0 %v636
        %v1064 = vpop.f32.mrb[0].mxu0
        %v1065 = vadd.f32 %v820, %v1064
        %v1066 = vpop.f32.mrb[0].mxu0
        %1067 = vmatprep.mubr.f32.mxu0 0.0
        %1068 = vmatmul.mubr.f32.gmra.mrb[0].mxu0 %v637
        %v1069 = vpop.f32.mrb[0].mxu0
        %v1070 = vadd.f32 %v825, %v1069
        %v1071 = vpop.f32.mrb[0].mxu0
        %1072 = vmatprep.mubr.f32.mxu0 0.0
        %1073 = vmatmul.mubr.f32.gmra.mrb[0].mxu0 %v638
        %v1074 = vpop.f32.mrb[0].mxu0
        %v1075 = vadd.f32 %v830, %v1074
        %v1076 = vpop.f32.mrb[0].mxu0
        %1077 = vmatprep.mubr.f32.mxu0 0.0
        %1078 = vmatmul.mubr.f32.gmra.mrb[0].mxu0 %v639
        %v1079 = vpop.f32.mrb[0].mxu0
        %v1080 = vadd.f32 %v835, %v1079
        %v1081 = vpop.f32.mrb[0].mxu0
        %1082 = vmatprep.mubr.f32.mxu0 0.0
        %1083 = vmatmul.mubr.f32.gmra.mrb[0].mxu0 %v640
        %v1084 = vpop.f32.mrb[0].mxu0
        %v1085 = vadd.f32 %v840, %v1084
        %v1086 = vpop.f32.mrb[0].mxu0
        %1087 = vmatprep.mubr.f32.mxu0 0.0
        %1088 = vmatmul.mubr.f32.gmra.mrb[0].mxu0 %v641
        %v1089 = vpop.f32.mrb[0].mxu0
        %v1090 = vadd.f32 %v845, %v1089
        %v1091 = vpop.f32.mrb[0].mxu0
        %1092 = vmatprep.mubr.f32.mxu0 0.0
        %1093 = vmatmul.mubr.f32.gmra.mrb[0].mxu0 %v642
        %v1094 = vpop.f32.mrb[0].mxu0
        %v1095 = vadd.f32 %v850, %v1094
        %v1096 = vpop.f32.mrb[0].mxu0
        %1097 = vmatprep.mubr.f32.mxu0 0.0
        %1098 = vmatmul.mubr.f32.gmra.mrb[0].mxu0 %v643
        %v1099 = vpop.f32.mrb[0].mxu0
        %v1100 = vadd.f32 %v855, %v1099
        %v1101 = vpop.f32.mrb[0].mxu0
        %1102 = vmatprep.mubr.f32.mxu0 0.0
        %1103 = vmatmul.mubr.f32.gmra.mrb[0].mxu0 %v644
        %v1104 = vpop.f32.mrb[0].mxu0
        %v1105 = vadd.f32 %v860, %v1104
        %v1106 = vpop.f32.mrb[0].mxu0
        %1107 = vmatprep.mubr.f32.mxu0 0.0
        %1108 = vmatmul.mubr.f32.gmra.mrb[0].mxu0 %v645
        %v1109 = vpop.f32.mrb[0].mxu0
        %v1110 = vadd.f32 %v865, %v1109
        %v1111 = vpop.f32.mrb[0].mxu0
        %1112 = vmatprep.mubr.f32.mxu0 0.0
        %1113 = vmatmul.mubr.f32.gmra.mrb[0].mxu0 %v646
        %v1114 = vpop.f32.mrb[0].mxu0
        %v1115 = vadd.f32 %v870, %v1114
        %v1116 = vpop.f32.mrb[0].mxu0
        %1117 = vmatprep.mubr.f32.mxu0 0.0
        %1118 = vmatmul.mubr.f32.gmra.mrb[0].mxu0 %v647
        %v1119 = vpop.f32.mrb[0].mxu0
        %v1120 = vadd.f32 %v875, %v1119
        %v1121 = vpop.f32.mrb[0].mxu0
        %1122 = vmatprep.mubr.f32.mxu0 0.0
        %1123 = vmatmul.mubr.f32.gmra.mrb[0].mxu0 %v648
        %v1124 = vpop.f32.mrb[0].mxu0
        %v1125 = vadd.f32 %v880, %v1124
        %v1126 = vpop.f32.mrb[0].mxu0
        %1127 = vmatprep.mubr.f32.mxu0 0.0
        %1128 = vmatmul.mubr.f32.gmra.mrb[0].mxu0 %v649
        %v1129 = vpop.f32.mrb[0].mxu0
        %v1130 = vadd.f32 %v885, %v1129
        %v1131 = vpop.f32.mrb[0].mxu0
        %1132 = vmatprep.mubr.f32.mxu0 0.0
        %1133 = vmatmul.mubr.f32.gmra.mrb[0].mxu0 %v650
        %v1134 = vpop.f32.mrb[0].mxu0
        %v1135 = vadd.f32 %v890, %v1134
        %v1136 = vpop.f32.mrb[0].mxu0
        %1137 = vmatprep.mubr.f32.mxu0 0.0
        %1138 = vmatmul.mubr.f32.gmra.mrb[0].mxu0 %v651
        %v1139 = vpop.f32.mrb[0].mxu0
        %v1140 = vadd.f32 %v895, %v1139
        %v1141 = vpop.f32.mrb[0].mxu0
        %1142 = vmatprep.mubr.f32.mxu0 0.0
        %1143 = vmatmul.mubr.f32.gmra.mrb[0].mxu0 %v652
        %v1144 = vpop.f32.mrb[0].mxu0
        %v1145 = vadd.f32 %v900, %v1144
        %v1146 = vpop.f32.mrb[0].mxu0
        %1147 = vmatprep.mubr.f32.mxu0 0.0
        %1148 = vmatmul.mubr.f32.gmra.mrb[0].mxu0 %v653
        %v1149 = vpop.f32.mrb[0].mxu0
        %v1150 = vadd.f32 %v905, %v1149
        %v1151 = vpop.f32.mrb[0].mxu0
        %1152 = vmatprep.mubr.f32.mxu0 0.0
        %1153 = vmatmul.mubr.f32.gmra.mrb[0].mxu0 %v654
        %v1154 = vpop.f32.mrb[0].mxu0
        %v1155 = vadd.f32 %v910, %v1154
        %v1156 = vpop.f32.mrb[0].mxu0
        %1157 = vmatprep.mubr.f32.mxu0 0.0
        %1158 = vmatmul.mubr.f32.gmra.mrb[0].mxu0 %v655
        %v1159 = vpop.f32.mrb[0].mxu0
        %v1160 = vadd.f32 %v915, %v1159
        %v1161 = vpop.f32.mrb[0].mxu0
        %1162 = vmatprep.mubr.f32.mxu0 0.0
        %1163 = vmatmul.mubr.f32.gmra.mrb[0].mxu0 %v656
        %v1164 = vpop.f32.mrb[0].mxu0
        %v1165 = vadd.f32 %v920, %v1164
        %v1166 = vpop.f32.mrb[0].mxu0
        %1167 = vmatprep.mubr.f32.mxu0 0.0
        %1168 = vmatmul.mubr.f32.gmra.mrb[0].mxu0 %v657
        %v1169 = vpop.f32.mrb[0].mxu0
        %v1170 = vadd.f32 %v925, %v1169
        %v1171 = vpop.f32.mrb[0].mxu0
        %1172 = vmatprep.mubr.f32.mxu0 0.0
        %1173 = vmatmul.mubr.f32.gmra.mrb[0].mxu0 %v658
        %v1174 = vpop.f32.mrb[0].mxu0
        %v1175 = vadd.f32 %v930, %v1174
        %v1176 = vpop.f32.mrb[0].mxu0
        %1177 = vmatprep.mubr.f32.mxu0 0.0
        %1178 = vmatmul.mubr.f32.gmra.mrb[0].mxu0 %v659
        %v1179 = vpop.f32.mrb[0].mxu0
        %v1180 = vadd.f32 %v935, %v1179
        %v1181 = vpop.f32.mrb[0].mxu0
        %1182 = vmatprep.mubr.f32.mxu0 0.0
        %1183 = vmatmul.mubr.f32.gmra.mrb[0].mxu0 %v660
        %v1184 = vpop.f32.mrb[0].mxu0
        %v1185 = vadd.f32 %v940, %v1184
        %v1186 = vpop.f32.mrb[0].mxu0
        %1187 = vmatprep.mubr.f32.mxu0 0.0
        %1188 = vmatmul.mubr.f32.gmra.mrb[0].mxu0 %v661
        %v1189 = vpop.f32.mrb[0].mxu0
        %v1190 = vadd.f32 %v945, %v1189
        %v1191 = vpop.f32.mrb[0].mxu0
        %1192 = vmatprep.mubr.f32.mxu0 0.0
        %1193 = vmatmul.mubr.f32.gmra.mrb[0].mxu0 %v662
        %v1194 = vpop.f32.mrb[0].mxu0
        %v1195 = vadd.f32 %v950, %v1194
        %v1196 = vpop.f32.mrb[0].mxu0
        %1197 = vmatprep.mubr.f32.mxu0 0.0
        %1198 = vmatmul.mubr.f32.gmra.mrb[0].mxu0 %v663
        %v1199 = vpop.f32.mrb[0].mxu0
        %v1200 = vadd.f32 %v955, %v1199
        %v1201 = vpop.f32.mrb[0].mxu0
        %1202 = vmatprep.mubr.f32.mxu0 0.0
        %1203 = vmatmul.mubr.f32.gmra.mrb[0].mxu0 %v664
        %v1204 = vpop.f32.mrb[0].mxu0
        %v1205 = vadd.f32 %v960, %v1204
        %v1206 = vpop.f32.mrb[0].mxu0
        %1207 = vmatprep.mubr.f32.mxu0 0.0
        %1208 = vmatmul.mubr.f32.gmra.mrb[0].mxu0 %v665
        %v1209 = vpop.f32.mrb[0].mxu0
        %v1210 = vadd.f32 %v965, %v1209
        %v1211 = vpop.f32.mrb[0].mxu0
        %1212 = vmatprep.mubr.f32.mxu0 0.0
        %1213 = vmatmul.mubr.f32.gmra.mrb[0].mxu0 %v666
        %v1214 = vpop.f32.mrb[0].mxu0
        %v1215 = vadd.f32 %v970, %v1214
        %v1216 = vpop.f32.mrb[0].mxu0
        %1217 = vmatprep.mubr.f32.mxu0 0.0
        %1218 = vmatmul.mubr.f32.gmra.mrb[0].mxu0 %v667
        %v1219 = vpop.f32.mrb[0].mxu0
        %v1220 = vadd.f32 %v975, %v1219
        %v1221 = vpop.f32.mrb[0].mxu0
        %1222 = vmatprep.mubr.f32.mxu0 0.0
        %1223 = vmatmul.mubr.f32.gmra.mrb[0].mxu0 %v668
        %v1224 = vpop.f32.mrb[0].mxu0
        %v1225 = vadd.f32 %v980, %v1224
        %v1226 = vpop.f32.mrb[0].mxu0
        %1227 = vdwg.mxu0
        %v1228 = vld [vmem:[#allocation2 + $0x7] sm:$0xff]
        %v1229 = vld [vmem:[#allocation2 + $0xf] sm:$0xff]
        %v1230 = vld [vmem:[#allocation2 + $0x17] sm:$0xff]
        %v1231 = vld [vmem:[#allocation2 + $0x1f] sm:$0xff]
        %v1232 = vld [vmem:[#allocation2 + $0x27] sm:$0xff]
        %v1233 = vld [vmem:[#allocation2 + $0x2f] sm:$0xff]
        %v1234 = vld [vmem:[#allocation2 + $0x37] sm:$0xff]
        %v1235 = vld [vmem:[#allocation2 + $0x3f] sm:$0xff]
        %v1236 = vld [vmem:[#allocation2 + $0x47] sm:$0xff]
        %v1237 = vld [vmem:[#allocation2 + $0x4f] sm:$0xff]
        %v1238 = vld [vmem:[#allocation2 + $0x57] sm:$0xff]
        %v1239 = vld [vmem:[#allocation2 + $0x5f] sm:$0xff]
        %v1240 = vld [vmem:[#allocation2 + $0x67] sm:$0xff]
        %v1241 = vld [vmem:[#allocation2 + $0x6f] sm:$0xff]
        %v1242 = vld [vmem:[#allocation2 + $0x77] sm:$0xff]
        %v1243 = vld [vmem:[#allocation2 + $0x7f] sm:$0xff]
        %v1244 = vld [vmem:[#allocation2 + $0x87] sm:$0xff]
        %v1245 = vld [vmem:[#allocation2 + $0x8f] sm:$0xff]
        %v1246 = vld [vmem:[#allocation2 + $0x97] sm:$0xff]
        %v1247 = vld [vmem:[#allocation2 + $0x9f] sm:$0xff]
        %v1248 = vld [vmem:[#allocation2 + $0xa7] sm:$0xff]
        %v1249 = vld [vmem:[#allocation2 + $0xaf] sm:$0xff]
        %v1250 = vld [vmem:[#allocation2 + $0xb7] sm:$0xff]
        %v1251 = vld [vmem:[#allocation2 + $0xbf] sm:$0xff]
        %v1252 = vld [vmem:[#allocation2 + $0xc7] sm:$0xff]
        %v1253 = vld [vmem:[#allocation2 + $0xcf] sm:$0xff]
        %v1254 = vld [vmem:[#allocation2 + $0xd7] sm:$0xff]
        %v1255 = vld [vmem:[#allocation2 + $0xdf] sm:$0xff]
        %v1256 = vld [vmem:[#allocation2 + $0xe7] sm:$0xff]
        %v1257 = vld [vmem:[#allocation2 + $0xef] sm:$0xff]
        %v1258 = vld [vmem:[#allocation2 + $0xf7] sm:$0xff]
        %v1259 = vld [vmem:[#allocation2 + $0xff] sm:$0xff]
        %v1260 = vld [vmem:[#allocation2 + $0x107] sm:$0xff]
        %v1261 = vld [vmem:[#allocation2 + $0x10f] sm:$0xff]
        %v1262 = vld [vmem:[#allocation2 + $0x117] sm:$0xff]
        %v1263 = vld [vmem:[#allocation2 + $0x11f] sm:$0xff]
        %s1264 = scalar_lea.vmem [#allocation8], 256
        %v1265 = vld [vmem:[%s1264] sm:$0xff]
        %v1266 = vld [vmem:[%s1264 + $0x8] sm:$0xff]
        %v1267 = vld [vmem:[%s1264 + $0x10] sm:$0xff]
        %v1268 = vld [vmem:[%s1264 + $0x18] sm:$0xff]
        %v1269 = vld [vmem:[%s1264 + $0x20] sm:$0xff]
        %v1270 = vld [vmem:[%s1264 + $0x28] sm:$0xff]
        %v1271 = vld [vmem:[%s1264 + $0x30] sm:$0xff]
        %v1272 = vld [vmem:[%s1264 + $0x38] sm:$0xff]
        %v1273 = vld [vmem:[%s1264 + $0x40] sm:$0xff]
        %v1274 = vld [vmem:[%s1264 + $0x48] sm:$0xff]
        %v1275 = vld [vmem:[%s1264 + $0x50] sm:$0xff]
        %v1276 = vld [vmem:[%s1264 + $0x58] sm:$0xff]
        %v1277 = vld [vmem:[%s1264 + $0x60] sm:$0xff]
        %v1278 = vld [vmem:[%s1264 + $0x68] sm:$0xff]
        %v1279 = vld [vmem:[%s1264 + $0x70] sm:$0xff]
        %v1280 = vld [vmem:[%s1264 + $0x78] sm:$0xff]
        %1281 = vmatprep.subr.mxu0 0.0
        %1282 = vmatpush1.msra.mxu0 %v1265
        %1283 = vmatprep.subr.mxu0 0.0
        %1284 = vmatpush1.msra.mxu0 %v1266
        %1285 = vmatprep.subr.mxu0 0.0
        %1286 = vmatpush1.msra.mxu0 %v1267
        %1287 = vmatprep.subr.mxu0 0.0
        %1288 = vmatpush1.msra.mxu0 %v1268
        %1289 = vmatprep.subr.mxu0 0.0
        %1290 = vmatpush1.msra.mxu0 %v1269
        %1291 = vmatprep.subr.mxu0 0.0
        %1292 = vmatpush1.msra.mxu0 %v1270
        %1293 = vmatprep.subr.mxu0 0.0
        %1294 = vmatpush1.msra.mxu0 %v1271
        %1295 = vmatprep.subr.mxu0 0.0
        %1296 = vmatpush1.msra.mxu0 %v1272
        %1297 = vmatprep.subr.mxu0 0.0
        %1298 = vmatpush1.msra.mxu0 %v1273
        %1299 = vmatprep.subr.mxu0 0.0
        %1300 = vmatpush1.msra.mxu0 %v1274
        %1301 = vmatprep.subr.mxu0 0.0
        %1302 = vmatpush1.msra.mxu0 %v1275
        %1303 = vmatprep.subr.mxu0 0.0
        %1304 = vmatpush1.msra.mxu0 %v1276
        %1305 = vmatprep.subr.mxu0 0.0
        %1306 = vmatpush1.msra.mxu0 %v1277
        %1307 = vmatprep.subr.mxu0 0.0
        %1308 = vmatpush1.msra.mxu0 %v1278
        %1309 = vmatprep.subr.mxu0 0.0
        %1310 = vmatpush1.msra.mxu0 %v1279
        %1311 = vmatprep.subr.mxu0 0.0
        %1312 = vmatpush1.msra.mxu0 %v1280
        %1313 = vmatprep.subr.mxu0 0.0
        %1314 = vmatpush1.msra.mxu0 0.0
        %1315 = vmatprep.subr.mxu0 0.0
        %1316 = vmatpush1.msra.mxu0 0.0
        %1317 = vmatprep.subr.mxu0 0.0
        %1318 = vmatpush1.msra.mxu0 0.0
        %1319 = vmatprep.subr.mxu0 0.0
        %1320 = vmatpush1.msra.mxu0 0.0
        %1321 = vmatprep.subr.mxu0 0.0
        %1322 = vmatpush1.msra.mxu0 0.0
        %1323 = vmatprep.subr.mxu0 0.0
        %1324 = vmatpush1.msra.mxu0 0.0
        %1325 = vmatprep.subr.mxu0 0.0
        %1326 = vmatpush1.msra.mxu0 0.0
        %1327 = vmatprep.subr.mxu0 0.0
        %1328 = vmatpush1.msra.mxu0 0.0
        %1329 = vmatprep.subr.mxu0 0.0
        %1330 = vmatpush1.msra.mxu0 0.0
        %1331 = vmatprep.subr.mxu0 0.0
        %1332 = vmatpush1.msra.mxu0 0.0
        %1333 = vmatprep.subr.mxu0 0.0
        %1334 = vmatpush1.msra.mxu0 0.0
        %1335 = vmatprep.subr.mxu0 0.0
        %1336 = vmatpush1.msra.mxu0 0.0
        %1337 = vmatprep.subr.mxu0 0.0
        %1338 = vmatpush1.msra.mxu0 0.0
        %1339 = vmatprep.subr.mxu0 0.0
        %1340 = vmatpush1.msra.mxu0 0.0
        %1341 = vmatprep.subr.mxu0 0.0
        %1342 = vmatpush1.msra.mxu0 0.0
        %1343 = vmatprep.subr.mxu0 0.0
        %1344 = vmatpush1.msra.mxu0 0.0
        %1345 = vmatprep.mubr.f32.mxu0 0.0
        %1346 = vmatmul.mubr.f32.gmra.mrb[0].mxu0 %v1228
        %v1347 = vpop.f32.mrb[0].mxu0
        %v1348 = vadd.f32 0.0, %v1347
        %v1349 = vpop.f32.mrb[0].mxu0
        %1350 = vmatprep.mubr.f32.mxu0 0.0
        %1351 = vmatmul.mubr.f32.gmra.mrb[0].mxu0 %v1229
        %v1352 = vpop.f32.mrb[0].mxu0
        %v1353 = vadd.f32 0.0, %v1352
        %v1354 = vpop.f32.mrb[0].mxu0
        %1355 = vmatprep.mubr.f32.mxu0 0.0
        %1356 = vmatmul.mubr.f32.gmra.mrb[0].mxu0 %v1230
        %v1357 = vpop.f32.mrb[0].mxu0
        %v1358 = vadd.f32 0.0, %v1357
        %v1359 = vpop.f32.mrb[0].mxu0
        %1360 = vmatprep.mubr.f32.mxu0 0.0
        %1361 = vmatmul.mubr.f32.gmra.mrb[0].mxu0 %v1231
        %v1362 = vpop.f32.mrb[0].mxu0
        %v1363 = vadd.f32 0.0, %v1362
        %v1364 = vpop.f32.mrb[0].mxu0
        %1365 = vmatprep.mubr.f32.mxu0 0.0
        %1366 = vmatmul.mubr.f32.gmra.mrb[0].mxu0 %v1232
        %v1367 = vpop.f32.mrb[0].mxu0
        %v1368 = vadd.f32 0.0, %v1367
        %v1369 = vpop.f32.mrb[0].mxu0
        %1370 = vmatprep.mubr.f32.mxu0 0.0
        %1371 = vmatmul.mubr.f32.gmra.mrb[0].mxu0 %v1233
        %v1372 = vpop.f32.mrb[0].mxu0
        %v1373 = vadd.f32 0.0, %v1372
        %v1374 = vpop.f32.mrb[0].mxu0
        %1375 = vmatprep.mubr.f32.mxu0 0.0
        %1376 = vmatmul.mubr.f32.gmra.mrb[0].mxu0 %v1234
        %v1377 = vpop.f32.mrb[0].mxu0
        %v1378 = vadd.f32 0.0, %v1377
        %v1379 = vpop.f32.mrb[0].mxu0
        %1380 = vmatprep.mubr.f32.mxu0 0.0
        %1381 = vmatmul.mubr.f32.gmra.mrb[0].mxu0 %v1235
        %v1382 = vpop.f32.mrb[0].mxu0
        %v1383 = vadd.f32 0.0, %v1382
        %v1384 = vpop.f32.mrb[0].mxu0
        %1385 = vmatprep.mubr.f32.mxu0 0.0
        %1386 = vmatmul.mubr.f32.gmra.mrb[0].mxu0 %v1236
        %v1387 = vpop.f32.mrb[0].mxu0
        %v1388 = vadd.f32 0.0, %v1387
        %v1389 = vpop.f32.mrb[0].mxu0
        %1390 = vmatprep.mubr.f32.mxu0 0.0
        %1391 = vmatmul.mubr.f32.gmra.mrb[0].mxu0 %v1237
        %v1392 = vpop.f32.mrb[0].mxu0
        %v1393 = vadd.f32 0.0, %v1392
        %v1394 = vpop.f32.mrb[0].mxu0
        %1395 = vmatprep.mubr.f32.mxu0 0.0
        %1396 = vmatmul.mubr.f32.gmra.mrb[0].mxu0 %v1238
        %v1397 = vpop.f32.mrb[0].mxu0
        %v1398 = vadd.f32 0.0, %v1397
        %v1399 = vpop.f32.mrb[0].mxu0
        %1400 = vmatprep.mubr.f32.mxu0 0.0
        %1401 = vmatmul.mubr.f32.gmra.mrb[0].mxu0 %v1239
        %v1402 = vpop.f32.mrb[0].mxu0
        %v1403 = vadd.f32 0.0, %v1402
        %v1404 = vpop.f32.mrb[0].mxu0
        %1405 = vmatprep.mubr.f32.mxu0 0.0
        %1406 = vmatmul.mubr.f32.gmra.mrb[0].mxu0 %v1240
        %v1407 = vpop.f32.mrb[0].mxu0
        %v1408 = vadd.f32 0.0, %v1407
        %v1409 = vpop.f32.mrb[0].mxu0
        %1410 = vmatprep.mubr.f32.mxu0 0.0
        %1411 = vmatmul.mubr.f32.gmra.mrb[0].mxu0 %v1241
        %v1412 = vpop.f32.mrb[0].mxu0
        %v1413 = vadd.f32 0.0, %v1412
        %v1414 = vpop.f32.mrb[0].mxu0
        %1415 = vmatprep.mubr.f32.mxu0 0.0
        %1416 = vmatmul.mubr.f32.gmra.mrb[0].mxu0 %v1242
        %v1417 = vpop.f32.mrb[0].mxu0
        %v1418 = vadd.f32 0.0, %v1417
        %v1419 = vpop.f32.mrb[0].mxu0
        %1420 = vmatprep.mubr.f32.mxu0 0.0
        %1421 = vmatmul.mubr.f32.gmra.mrb[0].mxu0 %v1243
        %v1422 = vpop.f32.mrb[0].mxu0
        %v1423 = vadd.f32 0.0, %v1422
        %v1424 = vpop.f32.mrb[0].mxu0
        %1425 = vmatprep.mubr.f32.mxu0 0.0
        %1426 = vmatmul.mubr.f32.gmra.mrb[0].mxu0 %v1244
        %v1427 = vpop.f32.mrb[0].mxu0
        %v1428 = vadd.f32 0.0, %v1427
        %v1429 = vpop.f32.mrb[0].mxu0
        %1430 = vmatprep.mubr.f32.mxu0 0.0
        %1431 = vmatmul.mubr.f32.gmra.mrb[0].mxu0 %v1245
        %v1432 = vpop.f32.mrb[0].mxu0
        %v1433 = vadd.f32 0.0, %v1432
        %v1434 = vpop.f32.mrb[0].mxu0
        %1435 = vmatprep.mubr.f32.mxu0 0.0
        %1436 = vmatmul.mubr.f32.gmra.mrb[0].mxu0 %v1246
        %v1437 = vpop.f32.mrb[0].mxu0
        %v1438 = vadd.f32 0.0, %v1437
        %v1439 = vpop.f32.mrb[0].mxu0
        %1440 = vmatprep.mubr.f32.mxu0 0.0
        %1441 = vmatmul.mubr.f32.gmra.mrb[0].mxu0 %v1247
        %v1442 = vpop.f32.mrb[0].mxu0
        %v1443 = vadd.f32 0.0, %v1442
        %v1444 = vpop.f32.mrb[0].mxu0
        %1445 = vmatprep.mubr.f32.mxu0 0.0
        %1446 = vmatmul.mubr.f32.gmra.mrb[0].mxu0 %v1248
        %v1447 = vpop.f32.mrb[0].mxu0
        %v1448 = vadd.f32 0.0, %v1447
        %v1449 = vpop.f32.mrb[0].mxu0
        %1450 = vmatprep.mubr.f32.mxu0 0.0
        %1451 = vmatmul.mubr.f32.gmra.mrb[0].mxu0 %v1249
        %v1452 = vpop.f32.mrb[0].mxu0
        %v1453 = vadd.f32 0.0, %v1452
        %v1454 = vpop.f32.mrb[0].mxu0
        %1455 = vmatprep.mubr.f32.mxu0 0.0
        %1456 = vmatmul.mubr.f32.gmra.mrb[0].mxu0 %v1250
        %v1457 = vpop.f32.mrb[0].mxu0
        %v1458 = vadd.f32 0.0, %v1457
        %v1459 = vpop.f32.mrb[0].mxu0
        %1460 = vmatprep.mubr.f32.mxu0 0.0
        %1461 = vmatmul.mubr.f32.gmra.mrb[0].mxu0 %v1251
        %v1462 = vpop.f32.mrb[0].mxu0
        %v1463 = vadd.f32 0.0, %v1462
        %v1464 = vpop.f32.mrb[0].mxu0
        %1465 = vmatprep.mubr.f32.mxu0 0.0
        %1466 = vmatmul.mubr.f32.gmra.mrb[0].mxu0 %v1252
        %v1467 = vpop.f32.mrb[0].mxu0
        %v1468 = vadd.f32 0.0, %v1467
        %v1469 = vpop.f32.mrb[0].mxu0
        %1470 = vmatprep.mubr.f32.mxu0 0.0
        %1471 = vmatmul.mubr.f32.gmra.mrb[0].mxu0 %v1253
        %v1472 = vpop.f32.mrb[0].mxu0
        %v1473 = vadd.f32 0.0, %v1472
        %v1474 = vpop.f32.mrb[0].mxu0
        %1475 = vmatprep.mubr.f32.mxu0 0.0
        %1476 = vmatmul.mubr.f32.gmra.mrb[0].mxu0 %v1254
        %v1477 = vpop.f32.mrb[0].mxu0
        %v1478 = vadd.f32 0.0, %v1477
        %v1479 = vpop.f32.mrb[0].mxu0
        %1480 = vmatprep.mubr.f32.mxu0 0.0
        %1481 = vmatmul.mubr.f32.gmra.mrb[0].mxu0 %v1255
        %v1482 = vpop.f32.mrb[0].mxu0
        %v1483 = vadd.f32 0.0, %v1482
        %v1484 = vpop.f32.mrb[0].mxu0
        %1485 = vmatprep.mubr.f32.mxu0 0.0
        %1486 = vmatmul.mubr.f32.gmra.mrb[0].mxu0 %v1256
        %v1487 = vpop.f32.mrb[0].mxu0
        %v1488 = vadd.f32 0.0, %v1487
        %v1489 = vpop.f32.mrb[0].mxu0
        %1490 = vmatprep.mubr.f32.mxu0 0.0
        %1491 = vmatmul.mubr.f32.gmra.mrb[0].mxu0 %v1257
        %v1492 = vpop.f32.mrb[0].mxu0
        %v1493 = vadd.f32 0.0, %v1492
        %v1494 = vpop.f32.mrb[0].mxu0
        %1495 = vmatprep.mubr.f32.mxu0 0.0
        %1496 = vmatmul.mubr.f32.gmra.mrb[0].mxu0 %v1258
        %v1497 = vpop.f32.mrb[0].mxu0
        %v1498 = vadd.f32 0.0, %v1497
        %v1499 = vpop.f32.mrb[0].mxu0
        %1500 = vmatprep.mubr.f32.mxu0 0.0
        %1501 = vmatmul.mubr.f32.gmra.mrb[0].mxu0 %v1259
        %v1502 = vpop.f32.mrb[0].mxu0
        %v1503 = vadd.f32 0.0, %v1502
        %v1504 = vpop.f32.mrb[0].mxu0
        %1505 = vmatprep.mubr.f32.mxu0 0.0
        %1506 = vmatmul.mubr.f32.gmra.mrb[0].mxu0 %v1260
        %v1507 = vpop.f32.mrb[0].mxu0
        %v1508 = vadd.f32 0.0, %v1507
        %v1509 = vpop.f32.mrb[0].mxu0
        %1510 = vmatprep.mubr.f32.mxu0 0.0
        %1511 = vmatmul.mubr.f32.gmra.mrb[0].mxu0 %v1261
        %v1512 = vpop.f32.mrb[0].mxu0
        %v1513 = vadd.f32 0.0, %v1512
        %v1514 = vpop.f32.mrb[0].mxu0
        %1515 = vmatprep.mubr.f32.mxu0 0.0
        %1516 = vmatmul.mubr.f32.gmra.mrb[0].mxu0 %v1262
        %v1517 = vpop.f32.mrb[0].mxu0
        %v1518 = vadd.f32 0.0, %v1517
        %v1519 = vpop.f32.mrb[0].mxu0
        %1520 = vmatprep.mubr.f32.mxu0 0.0
        %1521 = vmatmul.mubr.f32.gmra.mrb[0].mxu0 %v1263
        %v1522 = vpop.f32.mrb[0].mxu0
        %v1523 = vadd.f32 0.0, %v1522
        %v1524 = vpop.f32.mrb[0].mxu0
        %1525 = vdwg.mxu0
        %v1526 = vadd.f32 %v1050, %v1348
        %v1527 = vadd.f32 %v1055, %v1353
        %v1528 = vadd.f32 %v1060, %v1358
        %v1529 = vadd.f32 %v1065, %v1363
        %v1530 = vadd.f32 %v1070, %v1368
        %v1531 = vadd.f32 %v1075, %v1373
        %v1532 = vadd.f32 %v1080, %v1378
        %v1533 = vadd.f32 %v1085, %v1383
        %v1534 = vadd.f32 %v1090, %v1388
        %v1535 = vadd.f32 %v1095, %v1393
        %v1536 = vadd.f32 %v1100, %v1398
        %v1537 = vadd.f32 %v1105, %v1403
        %v1538 = vadd.f32 %v1110, %v1408
        %v1539 = vadd.f32 %v1115, %v1413
        %v1540 = vadd.f32 %v1120, %v1418
        %v1541 = vadd.f32 %v1125, %v1423
        %v1542 = vadd.f32 %v1130, %v1428
        %v1543 = vadd.f32 %v1135, %v1433
        %v1544 = vadd.f32 %v1140, %v1438
        %v1545 = vadd.f32 %v1145, %v1443
        %v1546 = vadd.f32 %v1150, %v1448
        %v1547 = vadd.f32 %v1155, %v1453
        %v1548 = vadd.f32 %v1160, %v1458
        %v1549 = vadd.f32 %v1165, %v1463
        %v1550 = vadd.f32 %v1170, %v1468
        %v1551 = vadd.f32 %v1175, %v1473
        %v1552 = vadd.f32 %v1180, %v1478
        %v1553 = vadd.f32 %v1185, %v1483
        %v1554 = vadd.f32 %v1190, %v1488
        %v1555 = vadd.f32 %v1195, %v1493
        %v1556 = vadd.f32 %v1200, %v1498
        %v1557 = vadd.f32 %v1205, %v1503
        %v1558 = vadd.f32 %v1210, %v1508
        %v1559 = vadd.f32 %v1215, %v1513
        %v1560 = vadd.f32 %v1220, %v1518
        %v1561 = vadd.f32 %v1225, %v1523
        %v1562 = vld [vmem:[#allocation2 + $0x17] sm:$0xff]
        %v1563 = vld [vmem:[#allocation2 + $0x1f] sm:$0xff]
        %v1564 = vld [vmem:[#allocation2 + $0x27] sm:$0xff]
        %v1565 = vld [vmem:[#allocation2 + $0x2f] sm:$0xff]
        %v1566 = vld [vmem:[#allocation2 + $0x37] sm:$0xff]
        %v1567 = vld [vmem:[#allocation2 + $0x3f] sm:$0xff]
        %v1568 = vld [vmem:[#allocation2 + $0x47] sm:$0xff]
        %v1569 = vld [vmem:[#allocation2 + $0x4f] sm:$0xff]
        %v1570 = vld [vmem:[#allocation2 + $0x57] sm:$0xff]
        %v1571 = vld [vmem:[#allocation2 + $0x5f] sm:$0xff]
        %v1572 = vld [vmem:[#allocation2 + $0x67] sm:$0xff]
        %v1573 = vld [vmem:[#allocation2 + $0x6f] sm:$0xff]
        %v1574 = vld [vmem:[#allocation2 + $0x77] sm:$0xff]
        %v1575 = vld [vmem:[#allocation2 + $0x7f] sm:$0xff]
        %v1576 = vld [vmem:[#allocation2 + $0x87] sm:$0xff]
        %v1577 = vld [vmem:[#allocation2 + $0x8f] sm:$0xff]
        %v1578 = vld [vmem:[#allocation2 + $0x97] sm:$0xff]
        %v1579 = vld [vmem:[#allocation2 + $0x9f] sm:$0xff]
        %v1580 = vld [vmem:[#allocation2 + $0xa7] sm:$0xff]
        %v1581 = vld [vmem:[#allocation2 + $0xaf] sm:$0xff]
        %v1582 = vld [vmem:[#allocation2 + $0xb7] sm:$0xff]
        %v1583 = vld [vmem:[#allocation2 + $0xbf] sm:$0xff]
        %v1584 = vld [vmem:[#allocation2 + $0xc7] sm:$0xff]
        %v1585 = vld [vmem:[#allocation2 + $0xcf] sm:$0xff]
        %v1586 = vld [vmem:[#allocation2 + $0xd7] sm:$0xff]
        %v1587 = vld [vmem:[#allocation2 + $0xdf] sm:$0xff]
        %v1588 = vld [vmem:[#allocation2 + $0xe7] sm:$0xff]
        %v1589 = vld [vmem:[#allocation2 + $0xef] sm:$0xff]
        %v1590 = vld [vmem:[#allocation2 + $0xf7] sm:$0xff]
        %v1591 = vld [vmem:[#allocation2 + $0xff] sm:$0xff]
        %v1592 = vld [vmem:[#allocation2 + $0x107] sm:$0xff]
        %v1593 = vld [vmem:[#allocation2 + $0x10f] sm:$0xff]
        %v1594 = vld [vmem:[#allocation2 + $0x117] sm:$0xff]
        %v1595 = vld [vmem:[#allocation2 + $0x11f] sm:$0xff]
        %v1596 = vld [vmem:[#allocation2 + $0x127] sm:$0xff]
        %v1597 = vld [vmem:[#allocation2 + $0x12f] sm:$0xff]
        %s1598 = scalar_lea.vmem [#allocation8], 384
        %v1599 = vld [vmem:[%s1598] sm:$0xff]
        %v1600 = vld [vmem:[%s1598 + $0x8] sm:$0xff]
        %v1601 = vld [vmem:[%s1598 + $0x10] sm:$0xff]
        %v1602 = vld [vmem:[%s1598 + $0x18] sm:$0xff]
        %v1603 = vld [vmem:[%s1598 + $0x20] sm:$0xff]
        %v1604 = vld [vmem:[%s1598 + $0x28] sm:$0xff]
        %v1605 = vld [vmem:[%s1598 + $0x30] sm:$0xff]
        %v1606 = vld [vmem:[%s1598 + $0x38] sm:$0xff]
        %v1607 = vld [vmem:[%s1598 + $0x40] sm:$0xff]
        %v1608 = vld [vmem:[%s1598 + $0x48] sm:$0xff]
        %v1609 = vld [vmem:[%s1598 + $0x50] sm:$0xff]
        %v1610 = vld [vmem:[%s1598 + $0x58] sm:$0xff]
        %v1611 = vld [vmem:[%s1598 + $0x60] sm:$0xff]
        %v1612 = vld [vmem:[%s1598 + $0x68] sm:$0xff]
        %v1613 = vld [vmem:[%s1598 + $0x70] sm:$0xff]
        %v1614 = vld [vmem:[%s1598 + $0x78] sm:$0xff]
        %1615 = vmatprep.subr.mxu0 0.0
        %1616 = vmatpush1.msra.mxu0 %v1599
        %1617 = vmatprep.subr.mxu0 0.0
        %1618 = vmatpush1.msra.mxu0 %v1600
        %1619 = vmatprep.subr.mxu0 0.0
        %1620 = vmatpush1.msra.mxu0 %v1601
        %1621 = vmatprep.subr.mxu0 0.0
        %1622 = vmatpush1.msra.mxu0 %v1602
        %1623 = vmatprep.subr.mxu0 0.0
        %1624 = vmatpush1.msra.mxu0 %v1603
        %1625 = vmatprep.subr.mxu0 0.0
        %1626 = vmatpush1.msra.mxu0 %v1604
        %1627 = vmatprep.subr.mxu0 0.0
        %1628 = vmatpush1.msra.mxu0 %v1605
        %1629 = vmatprep.subr.mxu0 0.0
        %1630 = vmatpush1.msra.mxu0 %v1606
        %1631 = vmatprep.subr.mxu0 0.0
        %1632 = vmatpush1.msra.mxu0 %v1607
        %1633 = vmatprep.subr.mxu0 0.0
        %1634 = vmatpush1.msra.mxu0 %v1608
        %1635 = vmatprep.subr.mxu0 0.0
        %1636 = vmatpush1.msra.mxu0 %v1609
        %1637 = vmatprep.subr.mxu0 0.0
        %1638 = vmatpush1.msra.mxu0 %v1610
        %1639 = vmatprep.subr.mxu0 0.0
        %1640 = vmatpush1.msra.mxu0 %v1611
        %1641 = vmatprep.subr.mxu0 0.0
        %1642 = vmatpush1.msra.mxu0 %v1612
        %1643 = vmatprep.subr.mxu0 0.0
        %1644 = vmatpush1.msra.mxu0 %v1613
        %1645 = vmatprep.subr.mxu0 0.0
        %1646 = vmatpush1.msra.mxu0 %v1614
        %1647 = vmatprep.subr.mxu0 0.0
        %1648 = vmatpush1.msra.mxu0 0.0
        %1649 = vmatprep.subr.mxu0 0.0
        %1650 = vmatpush1.msra.mxu0 0.0
        %1651 = vmatprep.subr.mxu0 0.0
        %1652 = vmatpush1.msra.mxu0 0.0
        %1653 = vmatprep.subr.mxu0 0.0
        %1654 = vmatpush1.msra.mxu0 0.0
        %1655 = vmatprep.subr.mxu0 0.0
        %1656 = vmatpush1.msra.mxu0 0.0
        %1657 = vmatprep.subr.mxu0 0.0
        %1658 = vmatpush1.msra.mxu0 0.0
        %1659 = vmatprep.subr.mxu0 0.0
        %1660 = vmatpush1.msra.mxu0 0.0
        %1661 = vmatprep.subr.mxu0 0.0
        %1662 = vmatpush1.msra.mxu0 0.0
        %1663 = vmatprep.subr.mxu0 0.0
        %1664 = vmatpush1.msra.mxu0 0.0
        %1665 = vmatprep.subr.mxu0 0.0
        %1666 = vmatpush1.msra.mxu0 0.0
        %1667 = vmatprep.subr.mxu0 0.0
        %1668 = vmatpush1.msra.mxu0 0.0
        %1669 = vmatprep.subr.mxu0 0.0
        %1670 = vmatpush1.msra.mxu0 0.0
        %1671 = vmatprep.subr.mxu0 0.0
        %1672 = vmatpush1.msra.mxu0 0.0
        %1673 = vmatprep.subr.mxu0 0.0
        %1674 = vmatpush1.msra.mxu0 0.0
        %1675 = vmatprep.subr.mxu0 0.0
        %1676 = vmatpush1.msra.mxu0 0.0
        %1677 = vmatprep.subr.mxu0 0.0
        %1678 = vmatpush1.msra.mxu0 0.0
        %1679 = vmatprep.mubr.f32.mxu0 0.0
        %1680 = vmatmul.mubr.f32.gmra.mrb[0].mxu0 %v1562
        %v1681 = vpop.f32.mrb[0].mxu0
        %v1682 = vadd.f32 0.0, %v1681
        %v1683 = vpop.f32.mrb[0].mxu0
        %1684 = vmatprep.mubr.f32.mxu0 0.0
        %1685 = vmatmul.mubr.f32.gmra.mrb[0].mxu0 %v1563
        %v1686 = vpop.f32.mrb[0].mxu0
        %v1687 = vadd.f32 0.0, %v1686
        %v1688 = vpop.f32.mrb[0].mxu0
        %1689 = vmatprep.mubr.f32.mxu0 0.0
        %1690 = vmatmul.mubr.f32.gmra.mrb[0].mxu0 %v1564
        %v1691 = vpop.f32.mrb[0].mxu0
        %v1692 = vadd.f32 0.0, %v1691
        %v1693 = vpop.f32.mrb[0].mxu0
        %1694 = vmatprep.mubr.f32.mxu0 0.0
        %1695 = vmatmul.mubr.f32.gmra.mrb[0].mxu0 %v1565
        %v1696 = vpop.f32.mrb[0].mxu0
        %v1697 = vadd.f32 0.0, %v1696
        %v1698 = vpop.f32.mrb[0].mxu0
        %1699 = vmatprep.mubr.f32.mxu0 0.0
        %1700 = vmatmul.mubr.f32.gmra.mrb[0].mxu0 %v1566
        %v1701 = vpop.f32.mrb[0].mxu0
        %v1702 = vadd.f32 0.0, %v1701
        %v1703 = vpop.f32.mrb[0].mxu0
        %1704 = vmatprep.mubr.f32.mxu0 0.0
        %1705 = vmatmul.mubr.f32.gmra.mrb[0].mxu0 %v1567
        %v1706 = vpop.f32.mrb[0].mxu0
        %v1707 = vadd.f32 0.0, %v1706
        %v1708 = vpop.f32.mrb[0].mxu0
        %1709 = vmatprep.mubr.f32.mxu0 0.0
        %1710 = vmatmul.mubr.f32.gmra.mrb[0].mxu0 %v1568
        %v1711 = vpop.f32.mrb[0].mxu0
        %v1712 = vadd.f32 0.0, %v1711
        %v1713 = vpop.f32.mrb[0].mxu0
        %1714 = vmatprep.mubr.f32.mxu0 0.0
        %1715 = vmatmul.mubr.f32.gmra.mrb[0].mxu0 %v1569
        %v1716 = vpop.f32.mrb[0].mxu0
        %v1717 = vadd.f32 0.0, %v1716
        %v1718 = vpop.f32.mrb[0].mxu0
        %1719 = vmatprep.mubr.f32.mxu0 0.0
        %1720 = vmatmul.mubr.f32.gmra.mrb[0].mxu0 %v1570
        %v1721 = vpop.f32.mrb[0].mxu0
        %v1722 = vadd.f32 0.0, %v1721
        %v1723 = vpop.f32.mrb[0].mxu0
        %1724 = vmatprep.mubr.f32.mxu0 0.0
        %1725 = vmatmul.mubr.f32.gmra.mrb[0].mxu0 %v1571
        %v1726 = vpop.f32.mrb[0].mxu0
        %v1727 = vadd.f32 0.0, %v1726
        %v1728 = vpop.f32.mrb[0].mxu0
        %1729 = vmatprep.mubr.f32.mxu0 0.0
        %1730 = vmatmul.mubr.f32.gmra.mrb[0].mxu0 %v1572
        %v1731 = vpop.f32.mrb[0].mxu0
        %v1732 = vadd.f32 0.0, %v1731
        %v1733 = vpop.f32.mrb[0].mxu0
        %1734 = vmatprep.mubr.f32.mxu0 0.0
        %1735 = vmatmul.mubr.f32.gmra.mrb[0].mxu0 %v1573
        %v1736 = vpop.f32.mrb[0].mxu0
        %v1737 = vadd.f32 0.0, %v1736
        %v1738 = vpop.f32.mrb[0].mxu0
        %1739 = vmatprep.mubr.f32.mxu0 0.0
        %1740 = vmatmul.mubr.f32.gmra.mrb[0].mxu0 %v1574
        %v1741 = vpop.f32.mrb[0].mxu0
        %v1742 = vadd.f32 0.0, %v1741
        %v1743 = vpop.f32.mrb[0].mxu0
        %1744 = vmatprep.mubr.f32.mxu0 0.0
        %1745 = vmatmul.mubr.f32.gmra.mrb[0].mxu0 %v1575
        %v1746 = vpop.f32.mrb[0].mxu0
        %v1747 = vadd.f32 0.0, %v1746
        %v1748 = vpop.f32.mrb[0].mxu0
        %1749 = vmatprep.mubr.f32.mxu0 0.0
        %1750 = vmatmul.mubr.f32.gmra.mrb[0].mxu0 %v1576
        %v1751 = vpop.f32.mrb[0].mxu0
        %v1752 = vadd.f32 0.0, %v1751
        %v1753 = vpop.f32.mrb[0].mxu0
        %1754 = vmatprep.mubr.f32.mxu0 0.0
        %1755 = vmatmul.mubr.f32.gmra.mrb[0].mxu0 %v1577
        %v1756 = vpop.f32.mrb[0].mxu0
        %v1757 = vadd.f32 0.0, %v1756
        %v1758 = vpop.f32.mrb[0].mxu0
        %1759 = vmatprep.mubr.f32.mxu0 0.0
        %1760 = vmatmul.mubr.f32.gmra.mrb[0].mxu0 %v1578
        %v1761 = vpop.f32.mrb[0].mxu0
        %v1762 = vadd.f32 0.0, %v1761
        %v1763 = vpop.f32.mrb[0].mxu0
        %1764 = vmatprep.mubr.f32.mxu0 0.0
        %1765 = vmatmul.mubr.f32.gmra.mrb[0].mxu0 %v1579
        %v1766 = vpop.f32.mrb[0].mxu0
        %v1767 = vadd.f32 0.0, %v1766
        %v1768 = vpop.f32.mrb[0].mxu0
        %1769 = vmatprep.mubr.f32.mxu0 0.0
        %1770 = vmatmul.mubr.f32.gmra.mrb[0].mxu0 %v1580
        %v1771 = vpop.f32.mrb[0].mxu0
        %v1772 = vadd.f32 0.0, %v1771
        %v1773 = vpop.f32.mrb[0].mxu0
        %1774 = vmatprep.mubr.f32.mxu0 0.0
        %1775 = vmatmul.mubr.f32.gmra.mrb[0].mxu0 %v1581
        %v1776 = vpop.f32.mrb[0].mxu0
        %v1777 = vadd.f32 0.0, %v1776
        %v1778 = vpop.f32.mrb[0].mxu0
        %1779 = vmatprep.mubr.f32.mxu0 0.0
        %1780 = vmatmul.mubr.f32.gmra.mrb[0].mxu0 %v1582
        %v1781 = vpop.f32.mrb[0].mxu0
        %v1782 = vadd.f32 0.0, %v1781
        %v1783 = vpop.f32.mrb[0].mxu0
        %1784 = vmatprep.mubr.f32.mxu0 0.0
        %1785 = vmatmul.mubr.f32.gmra.mrb[0].mxu0 %v1583
        %v1786 = vpop.f32.mrb[0].mxu0
        %v1787 = vadd.f32 0.0, %v1786
        %v1788 = vpop.f32.mrb[0].mxu0
        %1789 = vmatprep.mubr.f32.mxu0 0.0
        %1790 = vmatmul.mubr.f32.gmra.mrb[0].mxu0 %v1584
        %v1791 = vpop.f32.mrb[0].mxu0
        %v1792 = vadd.f32 0.0, %v1791
        %v1793 = vpop.f32.mrb[0].mxu0
        %1794 = vmatprep.mubr.f32.mxu0 0.0
        %1795 = vmatmul.mubr.f32.gmra.mrb[0].mxu0 %v1585
        %v1796 = vpop.f32.mrb[0].mxu0
        %v1797 = vadd.f32 0.0, %v1796
        %v1798 = vpop.f32.mrb[0].mxu0
        %1799 = vmatprep.mubr.f32.mxu0 0.0
        %1800 = vmatmul.mubr.f32.gmra.mrb[0].mxu0 %v1586
        %v1801 = vpop.f32.mrb[0].mxu0
        %v1802 = vadd.f32 0.0, %v1801
        %v1803 = vpop.f32.mrb[0].mxu0
        %1804 = vmatprep.mubr.f32.mxu0 0.0
        %1805 = vmatmul.mubr.f32.gmra.mrb[0].mxu0 %v1587
        %v1806 = vpop.f32.mrb[0].mxu0
        %v1807 = vadd.f32 0.0, %v1806
        %v1808 = vpop.f32.mrb[0].mxu0
        %1809 = vmatprep.mubr.f32.mxu0 0.0
        %1810 = vmatmul.mubr.f32.gmra.mrb[0].mxu0 %v1588
        %v1811 = vpop.f32.mrb[0].mxu0
        %v1812 = vadd.f32 0.0, %v1811
        %v1813 = vpop.f32.mrb[0].mxu0
        %1814 = vmatprep.mubr.f32.mxu0 0.0
        %1815 = vmatmul.mubr.f32.gmra.mrb[0].mxu0 %v1589
        %v1816 = vpop.f32.mrb[0].mxu0
        %v1817 = vadd.f32 0.0, %v1816
        %v1818 = vpop.f32.mrb[0].mxu0
        %1819 = vmatprep.mubr.f32.mxu0 0.0
        %1820 = vmatmul.mubr.f32.gmra.mrb[0].mxu0 %v1590
        %v1821 = vpop.f32.mrb[0].mxu0
        %v1822 = vadd.f32 0.0, %v1821
        %v1823 = vpop.f32.mrb[0].mxu0
        %1824 = vmatprep.mubr.f32.mxu0 0.0
        %1825 = vmatmul.mubr.f32.gmra.mrb[0].mxu0 %v1591
        %v1826 = vpop.f32.mrb[0].mxu0
        %v1827 = vadd.f32 0.0, %v1826
        %v1828 = vpop.f32.mrb[0].mxu0
        %1829 = vmatprep.mubr.f32.mxu0 0.0
        %1830 = vmatmul.mubr.f32.gmra.mrb[0].mxu0 %v1592
        %v1831 = vpop.f32.mrb[0].mxu0
        %v1832 = vadd.f32 0.0, %v1831
        %v1833 = vpop.f32.mrb[0].mxu0
        %1834 = vmatprep.mubr.f32.mxu0 0.0
        %1835 = vmatmul.mubr.f32.gmra.mrb[0].mxu0 %v1593
        %v1836 = vpop.f32.mrb[0].mxu0
        %v1837 = vadd.f32 0.0, %v1836
        %v1838 = vpop.f32.mrb[0].mxu0
        %1839 = vmatprep.mubr.f32.mxu0 0.0
        %1840 = vmatmul.mubr.f32.gmra.mrb[0].mxu0 %v1594
        %v1841 = vpop.f32.mrb[0].mxu0
        %v1842 = vadd.f32 0.0, %v1841
        %v1843 = vpop.f32.mrb[0].mxu0
        %1844 = vmatprep.mubr.f32.mxu0 0.0
        %1845 = vmatmul.mubr.f32.gmra.mrb[0].mxu0 %v1595
        %v1846 = vpop.f32.mrb[0].mxu0
        %v1847 = vadd.f32 0.0, %v1846
        %v1848 = vpop.f32.mrb[0].mxu0
        %1849 = vmatprep.mubr.f32.mxu0 0.0
        %1850 = vmatmul.mubr.f32.gmra.mrb[0].mxu0 %v1596
        %v1851 = vpop.f32.mrb[0].mxu0
        %v1852 = vadd.f32 0.0, %v1851
        %v1853 = vpop.f32.mrb[0].mxu0
        %1854 = vmatprep.mubr.f32.mxu0 0.0
        %1855 = vmatmul.mubr.f32.gmra.mrb[0].mxu0 %v1597
        %v1856 = vpop.f32.mrb[0].mxu0
        %v1857 = vadd.f32 0.0, %v1856
        %v1858 = vpop.f32.mrb[0].mxu0
        %1859 = vdwg.mxu0
        %v1860 = vadd.f32 %v1526, %v1682
        %v1861 = vadd.f32 %v1527, %v1687
        %v1862 = vadd.f32 %v1528, %v1692
        %v1863 = vadd.f32 %v1529, %v1697
        %v1864 = vadd.f32 %v1530, %v1702
        %v1865 = vadd.f32 %v1531, %v1707
        %v1866 = vadd.f32 %v1532, %v1712
        %v1867 = vadd.f32 %v1533, %v1717
        %v1868 = vadd.f32 %v1534, %v1722
        %v1869 = vadd.f32 %v1535, %v1727
        %v1870 = vadd.f32 %v1536, %v1732
        %v1871 = vadd.f32 %v1537, %v1737
        %v1872 = vadd.f32 %v1538, %v1742
        %v1873 = vadd.f32 %v1539, %v1747
        %v1874 = vadd.f32 %v1540, %v1752
        %v1875 = vadd.f32 %v1541, %v1757
        %v1876 = vadd.f32 %v1542, %v1762
        %v1877 = vadd.f32 %v1543, %v1767
        %v1878 = vadd.f32 %v1544, %v1772
        %v1879 = vadd.f32 %v1545, %v1777
        %v1880 = vadd.f32 %v1546, %v1782
        %v1881 = vadd.f32 %v1547, %v1787
        %v1882 = vadd.f32 %v1548, %v1792
        %v1883 = vadd.f32 %v1549, %v1797
        %v1884 = vadd.f32 %v1550, %v1802
        %v1885 = vadd.f32 %v1551, %v1807
        %v1886 = vadd.f32 %v1552, %v1812
        %v1887 = vadd.f32 %v1553, %v1817
        %v1888 = vadd.f32 %v1554, %v1822
        %v1889 = vadd.f32 %v1555, %v1827
        %v1890 = vadd.f32 %v1556, %v1832
        %v1891 = vadd.f32 %v1557, %v1837
        %v1892 = vadd.f32 %v1558, %v1842
        %v1893 = vadd.f32 %v1559, %v1847
        %v1894 = vadd.f32 %v1560, %v1852
        %v1895 = vadd.f32 %v1561, %v1857
        %v1896 = vld [vmem:[#allocation2 + $0x18] sm:$0xff]
        %v1897 = vld [vmem:[#allocation2 + $0x20] sm:$0xff]
        %v1898 = vld [vmem:[#allocation2 + $0x28] sm:$0xff]
        %v1899 = vld [vmem:[#allocation2 + $0x30] sm:$0xff]
        %v1900 = vld [vmem:[#allocation2 + $0x38] sm:$0xff]
        %v1901 = vld [vmem:[#allocation2 + $0x40] sm:$0xff]
        %v1902 = vld [vmem:[#allocation2 + $0x48] sm:$0xff]
        %v1903 = vld [vmem:[#allocation2 + $0x50] sm:$0xff]
        %v1904 = vld [vmem:[#allocation2 + $0x58] sm:$0xff]
        %v1905 = vld [vmem:[#allocation2 + $0x60] sm:$0xff]
        %v1906 = vld [vmem:[#allocation2 + $0x68] sm:$0xff]
        %v1907 = vld [vmem:[#allocation2 + $0x70] sm:$0xff]
        %v1908 = vld [vmem:[#allocation2 + $0x78] sm:$0xff]
        %v1909 = vld [vmem:[#allocation2 + $0x80] sm:$0xff]
        %v1910 = vld [vmem:[#allocation2 + $0x88] sm:$0xff]
        %v1911 = vld [vmem:[#allocation2 + $0x90] sm:$0xff]
        %v1912 = vld [vmem:[#allocation2 + $0x98] sm:$0xff]
        %v1913 = vld [vmem:[#allocation2 + $0xa0] sm:$0xff]
        %v1914 = vld [vmem:[#allocation2 + $0xa8] sm:$0xff]
        %v1915 = vld [vmem:[#allocation2 + $0xb0] sm:$0xff]
        %v1916 = vld [vmem:[#allocation2 + $0xb8] sm:$0xff]
        %v1917 = vld [vmem:[#allocation2 + $0xc0] sm:$0xff]
        %v1918 = vld [vmem:[#allocation2 + $0xc8] sm:$0xff]
        %v1919 = vld [vmem:[#allocation2 + $0xd0] sm:$0xff]
        %v1920 = vld [vmem:[#allocation2 + $0xd8] sm:$0xff]
        %v1921 = vld [vmem:[#allocation2 + $0xe0] sm:$0xff]
        %v1922 = vld [vmem:[#allocation2 + $0xe8] sm:$0xff]
        %v1923 = vld [vmem:[#allocation2 + $0xf0] sm:$0xff]
        %v1924 = vld [vmem:[#allocation2 + $0xf8] sm:$0xff]
        %v1925 = vld [vmem:[#allocation2 + $0x100] sm:$0xff]
        %v1926 = vld [vmem:[#allocation2 + $0x108] sm:$0xff]
        %v1927 = vld [vmem:[#allocation2 + $0x110] sm:$0xff]
        %v1928 = vld [vmem:[#allocation2 + $0x118] sm:$0xff]
        %v1929 = vld [vmem:[#allocation2 + $0x120] sm:$0xff]
        %v1930 = vld [vmem:[#allocation2 + $0x128] sm:$0xff]
        %v1931 = vld [vmem:[#allocation2 + $0x130] sm:$0xff]
        %s1932 = scalar_lea.vmem [#allocation8], 512
        %v1933 = vld [vmem:[%s1932] sm:$0xff]
        %v1934 = vld [vmem:[%s1932 + $0x8] sm:$0xff]
        %v1935 = vld [vmem:[%s1932 + $0x10] sm:$0xff]
        %v1936 = vld [vmem:[%s1932 + $0x18] sm:$0xff]
        %v1937 = vld [vmem:[%s1932 + $0x20] sm:$0xff]
        %v1938 = vld [vmem:[%s1932 + $0x28] sm:$0xff]
        %v1939 = vld [vmem:[%s1932 + $0x30] sm:$0xff]
        %v1940 = vld [vmem:[%s1932 + $0x38] sm:$0xff]
        %v1941 = vld [vmem:[%s1932 + $0x40] sm:$0xff]
        %v1942 = vld [vmem:[%s1932 + $0x48] sm:$0xff]
        %v1943 = vld [vmem:[%s1932 + $0x50] sm:$0xff]
        %v1944 = vld [vmem:[%s1932 + $0x58] sm:$0xff]
        %v1945 = vld [vmem:[%s1932 + $0x60] sm:$0xff]
        %v1946 = vld [vmem:[%s1932 + $0x68] sm:$0xff]
        %v1947 = vld [vmem:[%s1932 + $0x70] sm:$0xff]
        %v1948 = vld [vmem:[%s1932 + $0x78] sm:$0xff]
        %1949 = vmatprep.subr.mxu0 0.0
        %1950 = vmatpush1.msra.mxu0 %v1933
        %1951 = vmatprep.subr.mxu0 0.0
        %1952 = vmatpush1.msra.mxu0 %v1934
        %1953 = vmatprep.subr.mxu0 0.0
        %1954 = vmatpush1.msra.mxu0 %v1935
        %1955 = vmatprep.subr.mxu0 0.0
        %1956 = vmatpush1.msra.mxu0 %v1936
        %1957 = vmatprep.subr.mxu0 0.0
        %1958 = vmatpush1.msra.mxu0 %v1937
        %1959 = vmatprep.subr.mxu0 0.0
        %1960 = vmatpush1.msra.mxu0 %v1938
        %1961 = vmatprep.subr.mxu0 0.0
        %1962 = vmatpush1.msra.mxu0 %v1939
        %1963 = vmatprep.subr.mxu0 0.0
        %1964 = vmatpush1.msra.mxu0 %v1940
        %1965 = vmatprep.subr.mxu0 0.0
        %1966 = vmatpush1.msra.mxu0 %v1941
        %1967 = vmatprep.subr.mxu0 0.0
        %1968 = vmatpush1.msra.mxu0 %v1942
        %1969 = vmatprep.subr.mxu0 0.0
        %1970 = vmatpush1.msra.mxu0 %v1943
        %1971 = vmatprep.subr.mxu0 0.0
        %1972 = vmatpush1.msra.mxu0 %v1944
        %1973 = vmatprep.subr.mxu0 0.0
        %1974 = vmatpush1.msra.mxu0 %v1945
        %1975 = vmatprep.subr.mxu0 0.0
        %1976 = vmatpush1.msra.mxu0 %v1946
        %1977 = vmatprep.subr.mxu0 0.0
        %1978 = vmatpush1.msra.mxu0 %v1947
        %1979 = vmatprep.subr.mxu0 0.0
        %1980 = vmatpush1.msra.mxu0 %v1948
        %1981 = vmatprep.subr.mxu0 0.0
        %1982 = vmatpush1.msra.mxu0 0.0
        %1983 = vmatprep.subr.mxu0 0.0
        %1984 = vmatpush1.msra.mxu0 0.0
        %1985 = vmatprep.subr.mxu0 0.0
        %1986 = vmatpush1.msra.mxu0 0.0
        %1987 = vmatprep.subr.mxu0 0.0
        %1988 = vmatpush1.msra.mxu0 0.0
        %1989 = vmatprep.subr.mxu0 0.0
        %1990 = vmatpush1.msra.mxu0 0.0
        %1991 = vmatprep.subr.mxu0 0.0
        %1992 = vmatpush1.msra.mxu0 0.0
        %1993 = vmatprep.subr.mxu0 0.0
        %1994 = vmatpush1.msra.mxu0 0.0
        %1995 = vmatprep.subr.mxu0 0.0
        %1996 = vmatpush1.msra.mxu0 0.0
        %1997 = vmatprep.subr.mxu0 0.0
        %1998 = vmatpush1.msra.mxu0 0.0
        %1999 = vmatprep.subr.mxu0 0.0
        %2000 = vmatpush1.msra.mxu0 0.0
        %2001 = vmatprep.subr.mxu0 0.0
        %2002 = vmatpush1.msra.mxu0 0.0
        %2003 = vmatprep.subr.mxu0 0.0
        %2004 = vmatpush1.msra.mxu0 0.0
        %2005 = vmatprep.subr.mxu0 0.0
        %2006 = vmatpush1.msra.mxu0 0.0
        %2007 = vmatprep.subr.mxu0 0.0
        %2008 = vmatpush1.msra.mxu0 0.0
        %2009 = vmatprep.subr.mxu0 0.0
        %2010 = vmatpush1.msra.mxu0 0.0
        %2011 = vmatprep.subr.mxu0 0.0
        %2012 = vmatpush1.msra.mxu0 0.0
        %2013 = vmatprep.mubr.f32.mxu0 0.0
        %2014 = vmatmul.mubr.f32.gmra.mrb[0].mxu0 %v1896
        %v2015 = vpop.f32.mrb[0].mxu0
        %v2016 = vadd.f32 0.0, %v2015
        %v2017 = vpop.f32.mrb[0].mxu0
        %2018 = vmatprep.mubr.f32.mxu0 0.0
        %2019 = vmatmul.mubr.f32.gmra.mrb[0].mxu0 %v1897
        %v2020 = vpop.f32.mrb[0].mxu0
        %v2021 = vadd.f32 0.0, %v2020
        %v2022 = vpop.f32.mrb[0].mxu0
        %2023 = vmatprep.mubr.f32.mxu0 0.0
        %2024 = vmatmul.mubr.f32.gmra.mrb[0].mxu0 %v1898
        %v2025 = vpop.f32.mrb[0].mxu0
        %v2026 = vadd.f32 0.0, %v2025
        %v2027 = vpop.f32.mrb[0].mxu0
        %2028 = vmatprep.mubr.f32.mxu0 0.0
        %2029 = vmatmul.mubr.f32.gmra.mrb[0].mxu0 %v1899
        %v2030 = vpop.f32.mrb[0].mxu0
        %v2031 = vadd.f32 0.0, %v2030
        %v2032 = vpop.f32.mrb[0].mxu0
        %2033 = vmatprep.mubr.f32.mxu0 0.0
        %2034 = vmatmul.mubr.f32.gmra.mrb[0].mxu0 %v1900
        %v2035 = vpop.f32.mrb[0].mxu0
        %v2036 = vadd.f32 0.0, %v2035
        %v2037 = vpop.f32.mrb[0].mxu0
        %2038 = vmatprep.mubr.f32.mxu0 0.0
        %2039 = vmatmul.mubr.f32.gmra.mrb[0].mxu0 %v1901
        %v2040 = vpop.f32.mrb[0].mxu0
        %v2041 = vadd.f32 0.0, %v2040
        %v2042 = vpop.f32.mrb[0].mxu0
        %2043 = vmatprep.mubr.f32.mxu0 0.0
        %2044 = vmatmul.mubr.f32.gmra.mrb[0].mxu0 %v1902
        %v2045 = vpop.f32.mrb[0].mxu0
        %v2046 = vadd.f32 0.0, %v2045
        %v2047 = vpop.f32.mrb[0].mxu0
        %2048 = vmatprep.mubr.f32.mxu0 0.0
        %2049 = vmatmul.mubr.f32.gmra.mrb[0].mxu0 %v1903
        %v2050 = vpop.f32.mrb[0].mxu0
        %v2051 = vadd.f32 0.0, %v2050
        %v2052 = vpop.f32.mrb[0].mxu0
        %2053 = vmatprep.mubr.f32.mxu0 0.0
        %2054 = vmatmul.mubr.f32.gmra.mrb[0].mxu0 %v1904
        %v2055 = vpop.f32.mrb[0].mxu0
        %v2056 = vadd.f32 0.0, %v2055
        %v2057 = vpop.f32.mrb[0].mxu0
        %2058 = vmatprep.mubr.f32.mxu0 0.0
        %2059 = vmatmul.mubr.f32.gmra.mrb[0].mxu0 %v1905
        %v2060 = vpop.f32.mrb[0].mxu0
        %v2061 = vadd.f32 0.0, %v2060
        %v2062 = vpop.f32.mrb[0].mxu0
        %2063 = vmatprep.mubr.f32.mxu0 0.0
        %2064 = vmatmul.mubr.f32.gmra.mrb[0].mxu0 %v1906
        %v2065 = vpop.f32.mrb[0].mxu0
        %v2066 = vadd.f32 0.0, %v2065
        %v2067 = vpop.f32.mrb[0].mxu0
        %2068 = vmatprep.mubr.f32.mxu0 0.0
        %2069 = vmatmul.mubr.f32.gmra.mrb[0].mxu0 %v1907
        %v2070 = vpop.f32.mrb[0].mxu0
        %v2071 = vadd.f32 0.0, %v2070
        %v2072 = vpop.f32.mrb[0].mxu0
        %2073 = vmatprep.mubr.f32.mxu0 0.0
        %2074 = vmatmul.mubr.f32.gmra.mrb[0].mxu0 %v1908
        %v2075 = vpop.f32.mrb[0].mxu0
        %v2076 = vadd.f32 0.0, %v2075
        %v2077 = vpop.f32.mrb[0].mxu0
        %2078 = vmatprep.mubr.f32.mxu0 0.0
        %2079 = vmatmul.mubr.f32.gmra.mrb[0].mxu0 %v1909
        %v2080 = vpop.f32.mrb[0].mxu0
        %v2081 = vadd.f32 0.0, %v2080
        %v2082 = vpop.f32.mrb[0].mxu0
        %2083 = vmatprep.mubr.f32.mxu0 0.0
        %2084 = vmatmul.mubr.f32.gmra.mrb[0].mxu0 %v1910
        %v2085 = vpop.f32.mrb[0].mxu0
        %v2086 = vadd.f32 0.0, %v2085
        %v2087 = vpop.f32.mrb[0].mxu0
        %2088 = vmatprep.mubr.f32.mxu0 0.0
        %2089 = vmatmul.mubr.f32.gmra.mrb[0].mxu0 %v1911
        %v2090 = vpop.f32.mrb[0].mxu0
        %v2091 = vadd.f32 0.0, %v2090
        %v2092 = vpop.f32.mrb[0].mxu0
        %2093 = vmatprep.mubr.f32.mxu0 0.0
        %2094 = vmatmul.mubr.f32.gmra.mrb[0].mxu0 %v1912
        %v2095 = vpop.f32.mrb[0].mxu0
        %v2096 = vadd.f32 0.0, %v2095
        %v2097 = vpop.f32.mrb[0].mxu0
        %2098 = vmatprep.mubr.f32.mxu0 0.0
        %2099 = vmatmul.mubr.f32.gmra.mrb[0].mxu0 %v1913
        %v2100 = vpop.f32.mrb[0].mxu0
        %v2101 = vadd.f32 0.0, %v2100
        %v2102 = vpop.f32.mrb[0].mxu0
        %2103 = vmatprep.mubr.f32.mxu0 0.0
        %2104 = vmatmul.mubr.f32.gmra.mrb[0].mxu0 %v1914
        %v2105 = vpop.f32.mrb[0].mxu0
        %v2106 = vadd.f32 0.0, %v2105
        %v2107 = vpop.f32.mrb[0].mxu0
        %2108 = vmatprep.mubr.f32.mxu0 0.0
        %2109 = vmatmul.mubr.f32.gmra.mrb[0].mxu0 %v1915
        %v2110 = vpop.f32.mrb[0].mxu0
        %v2111 = vadd.f32 0.0, %v2110
        %v2112 = vpop.f32.mrb[0].mxu0
        %2113 = vmatprep.mubr.f32.mxu0 0.0
        %2114 = vmatmul.mubr.f32.gmra.mrb[0].mxu0 %v1916
        %v2115 = vpop.f32.mrb[0].mxu0
        %v2116 = vadd.f32 0.0, %v2115
        %v2117 = vpop.f32.mrb[0].mxu0
        %2118 = vmatprep.mubr.f32.mxu0 0.0
        %2119 = vmatmul.mubr.f32.gmra.mrb[0].mxu0 %v1917
        %v2120 = vpop.f32.mrb[0].mxu0
        %v2121 = vadd.f32 0.0, %v2120
        %v2122 = vpop.f32.mrb[0].mxu0
        %2123 = vmatprep.mubr.f32.mxu0 0.0
        %2124 = vmatmul.mubr.f32.gmra.mrb[0].mxu0 %v1918
        %v2125 = vpop.f32.mrb[0].mxu0
        %v2126 = vadd.f32 0.0, %v2125
        %v2127 = vpop.f32.mrb[0].mxu0
        %2128 = vmatprep.mubr.f32.mxu0 0.0
        %2129 = vmatmul.mubr.f32.gmra.mrb[0].mxu0 %v1919
        %v2130 = vpop.f32.mrb[0].mxu0
        %v2131 = vadd.f32 0.0, %v2130
        %v2132 = vpop.f32.mrb[0].mxu0
        %2133 = vmatprep.mubr.f32.mxu0 0.0
        %2134 = vmatmul.mubr.f32.gmra.mrb[0].mxu0 %v1920
        %v2135 = vpop.f32.mrb[0].mxu0
        %v2136 = vadd.f32 0.0, %v2135
        %v2137 = vpop.f32.mrb[0].mxu0
        %2138 = vmatprep.mubr.f32.mxu0 0.0
        %2139 = vmatmul.mubr.f32.gmra.mrb[0].mxu0 %v1921
        %v2140 = vpop.f32.mrb[0].mxu0
        %v2141 = vadd.f32 0.0, %v2140
        %v2142 = vpop.f32.mrb[0].mxu0
        %2143 = vmatprep.mubr.f32.mxu0 0.0
        %2144 = vmatmul.mubr.f32.gmra.mrb[0].mxu0 %v1922
        %v2145 = vpop.f32.mrb[0].mxu0
        %v2146 = vadd.f32 0.0, %v2145
        %v2147 = vpop.f32.mrb[0].mxu0
        %2148 = vmatprep.mubr.f32.mxu0 0.0
        %2149 = vmatmul.mubr.f32.gmra.mrb[0].mxu0 %v1923
        %v2150 = vpop.f32.mrb[0].mxu0
        %v2151 = vadd.f32 0.0, %v2150
        %v2152 = vpop.f32.mrb[0].mxu0
        %2153 = vmatprep.mubr.f32.mxu0 0.0
        %2154 = vmatmul.mubr.f32.gmra.mrb[0].mxu0 %v1924
        %v2155 = vpop.f32.mrb[0].mxu0
        %v2156 = vadd.f32 0.0, %v2155
        %v2157 = vpop.f32.mrb[0].mxu0
        %2158 = vmatprep.mubr.f32.mxu0 0.0
        %2159 = vmatmul.mubr.f32.gmra.mrb[0].mxu0 %v1925
        %v2160 = vpop.f32.mrb[0].mxu0
        %v2161 = vadd.f32 0.0, %v2160
        %v2162 = vpop.f32.mrb[0].mxu0
        %2163 = vmatprep.mubr.f32.mxu0 0.0
        %2164 = vmatmul.mubr.f32.gmra.mrb[0].mxu0 %v1926
        %v2165 = vpop.f32.mrb[0].mxu0
        %v2166 = vadd.f32 0.0, %v2165
        %v2167 = vpop.f32.mrb[0].mxu0
        %2168 = vmatprep.mubr.f32.mxu0 0.0
        %2169 = vmatmul.mubr.f32.gmra.mrb[0].mxu0 %v1927
        %v2170 = vpop.f32.mrb[0].mxu0
        %v2171 = vadd.f32 0.0, %v2170
        %v2172 = vpop.f32.mrb[0].mxu0
        %2173 = vmatprep.mubr.f32.mxu0 0.0
        %2174 = vmatmul.mubr.f32.gmra.mrb[0].mxu0 %v1928
        %v2175 = vpop.f32.mrb[0].mxu0
        %v2176 = vadd.f32 0.0, %v2175
        %v2177 = vpop.f32.mrb[0].mxu0
        %2178 = vmatprep.mubr.f32.mxu0 0.0
        %2179 = vmatmul.mubr.f32.gmra.mrb[0].mxu0 %v1929
        %v2180 = vpop.f32.mrb[0].mxu0
        %v2181 = vadd.f32 0.0, %v2180
        %v2182 = vpop.f32.mrb[0].mxu0
        %2183 = vmatprep.mubr.f32.mxu0 0.0
        %2184 = vmatmul.mubr.f32.gmra.mrb[0].mxu0 %v1930
        %v2185 = vpop.f32.mrb[0].mxu0
        %v2186 = vadd.f32 0.0, %v2185
        %v2187 = vpop.f32.mrb[0].mxu0
        %2188 = vmatprep.mubr.f32.mxu0 0.0
        %2189 = vmatmul.mubr.f32.gmra.mrb[0].mxu0 %v1931
        %v2190 = vpop.f32.mrb[0].mxu0
        %v2191 = vadd.f32 0.0, %v2190
        %v2192 = vpop.f32.mrb[0].mxu0
        %2193 = vdwg.mxu0
        %v2194 = vadd.f32 %v1860, %v2016
        %v2195 = vadd.f32 %v1861, %v2021
        %v2196 = vadd.f32 %v1862, %v2026
        %v2197 = vadd.f32 %v1863, %v2031
        %v2198 = vadd.f32 %v1864, %v2036
        %v2199 = vadd.f32 %v1865, %v2041
        %v2200 = vadd.f32 %v1866, %v2046
        %v2201 = vadd.f32 %v1867, %v2051
        %v2202 = vadd.f32 %v1868, %v2056
        %v2203 = vadd.f32 %v1869, %v2061
        %v2204 = vadd.f32 %v1870, %v2066
        %v2205 = vadd.f32 %v1871, %v2071
        %v2206 = vadd.f32 %v1872, %v2076
        %v2207 = vadd.f32 %v1873, %v2081
        %v2208 = vadd.f32 %v1874, %v2086
        %v2209 = vadd.f32 %v1875, %v2091
        %v2210 = vadd.f32 %v1876, %v2096
        %v2211 = vadd.f32 %v1877, %v2101
        %v2212 = vadd.f32 %v1878, %v2106
        %v2213 = vadd.f32 %v1879, %v2111
        %v2214 = vadd.f32 %v1880, %v2116
        %v2215 = vadd.f32 %v1881, %v2121
        %v2216 = vadd.f32 %v1882, %v2126
        %v2217 = vadd.f32 %v1883, %v2131
        %v2218 = vadd.f32 %v1884, %v2136
        %v2219 = vadd.f32 %v1885, %v2141
        %v2220 = vadd.f32 %v1886, %v2146
        %v2221 = vadd.f32 %v1887, %v2151
        %v2222 = vadd.f32 %v1888, %v2156
        %v2223 = vadd.f32 %v1889, %v2161
        %v2224 = vadd.f32 %v1890, %v2166
        %v2225 = vadd.f32 %v1891, %v2171
        %v2226 = vadd.f32 %v1892, %v2176
        %v2227 = vadd.f32 %v1893, %v2181
        %v2228 = vadd.f32 %v1894, %v2186
        %v2229 = vadd.f32 %v1895, %v2191
        %v2230 = vld [vmem:[#allocation2 + $0x19] sm:$0xff]
        %v2231 = vld [vmem:[#allocation2 + $0x21] sm:$0xff]
        %v2232 = vld [vmem:[#allocation2 + $0x29] sm:$0xff]
        %v2233 = vld [vmem:[#allocation2 + $0x31] sm:$0xff]
        %v2234 = vld [vmem:[#allocation2 + $0x39] sm:$0xff]
        %v2235 = vld [vmem:[#allocation2 + $0x41] sm:$0xff]
        %v2236 = vld [vmem:[#allocation2 + $0x49] sm:$0xff]
        %v2237 = vld [vmem:[#allocation2 + $0x51] sm:$0xff]
        %v2238 = vld [vmem:[#allocation2 + $0x59] sm:$0xff]
        %v2239 = vld [vmem:[#allocation2 + $0x61] sm:$0xff]
        %v2240 = vld [vmem:[#allocation2 + $0x69] sm:$0xff]
        %v2241 = vld [vmem:[#allocation2 + $0x71] sm:$0xff]
        %v2242 = vld [vmem:[#allocation2 + $0x79] sm:$0xff]
        %v2243 = vld [vmem:[#allocation2 + $0x81] sm:$0xff]
        %v2244 = vld [vmem:[#allocation2 + $0x89] sm:$0xff]
        %v2245 = vld [vmem:[#allocation2 + $0x91] sm:$0xff]
        %v2246 = vld [vmem:[#allocation2 + $0x99] sm:$0xff]
        %v2247 = vld [vmem:[#allocation2 + $0xa1] sm:$0xff]
        %v2248 = vld [vmem:[#allocation2 + $0xa9] sm:$0xff]
        %v2249 = vld [vmem:[#allocation2 + $0xb1] sm:$0xff]
        %v2250 = vld [vmem:[#allocation2 + $0xb9] sm:$0xff]
        %v2251 = vld [vmem:[#allocation2 + $0xc1] sm:$0xff]
        %v2252 = vld [vmem:[#allocation2 + $0xc9] sm:$0xff]
        %v2253 = vld [vmem:[#allocation2 + $0xd1] sm:$0xff]
        %v2254 = vld [vmem:[#allocation2 + $0xd9] sm:$0xff]
        %v2255 = vld [vmem:[#allocation2 + $0xe1] sm:$0xff]
        %v2256 = vld [vmem:[#allocation2 + $0xe9] sm:$0xff]
        %v2257 = vld [vmem:[#allocation2 + $0xf1] sm:$0xff]
        %v2258 = vld [vmem:[#allocation2 + $0xf9] sm:$0xff]
        %v2259 = vld [vmem:[#allocation2 + $0x101] sm:$0xff]
        %v2260 = vld [vmem:[#allocation2 + $0x109] sm:$0xff]
        %v2261 = vld [vmem:[#allocation2 + $0x111] sm:$0xff]
        %v2262 = vld [vmem:[#allocation2 + $0x119] sm:$0xff]
        %v2263 = vld [vmem:[#allocation2 + $0x121] sm:$0xff]
        %v2264 = vld [vmem:[#allocation2 + $0x129] sm:$0xff]
        %v2265 = vld [vmem:[#allocation2 + $0x131] sm:$0xff]
        %s2266 = scalar_lea.vmem [#allocation8], 640
        %v2267 = vld [vmem:[%s2266] sm:$0xff]
        %v2268 = vld [vmem:[%s2266 + $0x8] sm:$0xff]
        %v2269 = vld [vmem:[%s2266 + $0x10] sm:$0xff]
        %v2270 = vld [vmem:[%s2266 + $0x18] sm:$0xff]
        %v2271 = vld [vmem:[%s2266 + $0x20] sm:$0xff]
        %v2272 = vld [vmem:[%s2266 + $0x28] sm:$0xff]
        %v2273 = vld [vmem:[%s2266 + $0x30] sm:$0xff]
        %v2274 = vld [vmem:[%s2266 + $0x38] sm:$0xff]
        %v2275 = vld [vmem:[%s2266 + $0x40] sm:$0xff]
        %v2276 = vld [vmem:[%s2266 + $0x48] sm:$0xff]
        %v2277 = vld [vmem:[%s2266 + $0x50] sm:$0xff]
        %v2278 = vld [vmem:[%s2266 + $0x58] sm:$0xff]
        %v2279 = vld [vmem:[%s2266 + $0x60] sm:$0xff]
        %v2280 = vld [vmem:[%s2266 + $0x68] sm:$0xff]
        %v2281 = vld [vmem:[%s2266 + $0x70] sm:$0xff]
        %v2282 = vld [vmem:[%s2266 + $0x78] sm:$0xff]
        %2283 = vmatprep.subr.mxu0 0.0
        %2284 = vmatpush1.msra.mxu0 %v2267
        %2285 = vmatprep.subr.mxu0 0.0
        %2286 = vmatpush1.msra.mxu0 %v2268
        %2287 = vmatprep.subr.mxu0 0.0
        %2288 = vmatpush1.msra.mxu0 %v2269
        %2289 = vmatprep.subr.mxu0 0.0
        %2290 = vmatpush1.msra.mxu0 %v2270
        %2291 = vmatprep.subr.mxu0 0.0
        %2292 = vmatpush1.msra.mxu0 %v2271
        %2293 = vmatprep.subr.mxu0 0.0
        %2294 = vmatpush1.msra.mxu0 %v2272
        %2295 = vmatprep.subr.mxu0 0.0
        %2296 = vmatpush1.msra.mxu0 %v2273
        %2297 = vmatprep.subr.mxu0 0.0
        %2298 = vmatpush1.msra.mxu0 %v2274
        %2299 = vmatprep.subr.mxu0 0.0
        %2300 = vmatpush1.msra.mxu0 %v2275
        %2301 = vmatprep.subr.mxu0 0.0
        %2302 = vmatpush1.msra.mxu0 %v2276
        %2303 = vmatprep.subr.mxu0 0.0
        %2304 = vmatpush1.msra.mxu0 %v2277
        %2305 = vmatprep.subr.mxu0 0.0
        %2306 = vmatpush1.msra.mxu0 %v2278
        %2307 = vmatprep.subr.mxu0 0.0
        %2308 = vmatpush1.msra.mxu0 %v2279
        %2309 = vmatprep.subr.mxu0 0.0
        %2310 = vmatpush1.msra.mxu0 %v2280
        %2311 = vmatprep.subr.mxu0 0.0
        %2312 = vmatpush1.msra.mxu0 %v2281
        %2313 = vmatprep.subr.mxu0 0.0
        %2314 = vmatpush1.msra.mxu0 %v2282
        %2315 = vmatprep.subr.mxu0 0.0
        %2316 = vmatpush1.msra.mxu0 0.0
        %2317 = vmatprep.subr.mxu0 0.0
        %2318 = vmatpush1.msra.mxu0 0.0
        %2319 = vmatprep.subr.mxu0 0.0
        %2320 = vmatpush1.msra.mxu0 0.0
        %2321 = vmatprep.subr.mxu0 0.0
        %2322 = vmatpush1.msra.mxu0 0.0
        %2323 = vmatprep.subr.mxu0 0.0
        %2324 = vmatpush1.msra.mxu0 0.0
        %2325 = vmatprep.subr.mxu0 0.0
        %2326 = vmatpush1.msra.mxu0 0.0
        %2327 = vmatprep.subr.mxu0 0.0
        %2328 = vmatpush1.msra.mxu0 0.0
        %2329 = vmatprep.subr.mxu0 0.0
        %2330 = vmatpush1.msra.mxu0 0.0
        %2331 = vmatprep.subr.mxu0 0.0
        %2332 = vmatpush1.msra.mxu0 0.0
        %2333 = vmatprep.subr.mxu0 0.0
        %2334 = vmatpush1.msra.mxu0 0.0
        %2335 = vmatprep.subr.mxu0 0.0
        %2336 = vmatpush1.msra.mxu0 0.0
        %2337 = vmatprep.subr.mxu0 0.0
        %2338 = vmatpush1.msra.mxu0 0.0
        %2339 = vmatprep.subr.mxu0 0.0
        %2340 = vmatpush1.msra.mxu0 0.0
        %2341 = vmatprep.subr.mxu0 0.0
        %2342 = vmatpush1.msra.mxu0 0.0
        %2343 = vmatprep.subr.mxu0 0.0
        %2344 = vmatpush1.msra.mxu0 0.0
        %2345 = vmatprep.subr.mxu0 0.0
        %2346 = vmatpush1.msra.mxu0 0.0
        %2347 = vmatprep.mubr.f32.mxu0 0.0
        %2348 = vmatmul.mubr.f32.gmra.mrb[0].mxu0 %v2230
        %v2349 = vpop.f32.mrb[0].mxu0
        %v2350 = vadd.f32 0.0, %v2349
        %v2351 = vpop.f32.mrb[0].mxu0
        %2352 = vmatprep.mubr.f32.mxu0 0.0
        %2353 = vmatmul.mubr.f32.gmra.mrb[0].mxu0 %v2231
        %v2354 = vpop.f32.mrb[0].mxu0
        %v2355 = vadd.f32 0.0, %v2354
        %v2356 = vpop.f32.mrb[0].mxu0
        %2357 = vmatprep.mubr.f32.mxu0 0.0
        %2358 = vmatmul.mubr.f32.gmra.mrb[0].mxu0 %v2232
        %v2359 = vpop.f32.mrb[0].mxu0
        %v2360 = vadd.f32 0.0, %v2359
        %v2361 = vpop.f32.mrb[0].mxu0
        %2362 = vmatprep.mubr.f32.mxu0 0.0
        %2363 = vmatmul.mubr.f32.gmra.mrb[0].mxu0 %v2233
        %v2364 = vpop.f32.mrb[0].mxu0
        %v2365 = vadd.f32 0.0, %v2364
        %v2366 = vpop.f32.mrb[0].mxu0
        %2367 = vmatprep.mubr.f32.mxu0 0.0
        %2368 = vmatmul.mubr.f32.gmra.mrb[0].mxu0 %v2234
        %v2369 = vpop.f32.mrb[0].mxu0
        %v2370 = vadd.f32 0.0, %v2369
        %v2371 = vpop.f32.mrb[0].mxu0
        %2372 = vmatprep.mubr.f32.mxu0 0.0
        %2373 = vmatmul.mubr.f32.gmra.mrb[0].mxu0 %v2235
        %v2374 = vpop.f32.mrb[0].mxu0
        %v2375 = vadd.f32 0.0, %v2374
        %v2376 = vpop.f32.mrb[0].mxu0
        %2377 = vmatprep.mubr.f32.mxu0 0.0
        %2378 = vmatmul.mubr.f32.gmra.mrb[0].mxu0 %v2236
        %v2379 = vpop.f32.mrb[0].mxu0
        %v2380 = vadd.f32 0.0, %v2379
        %v2381 = vpop.f32.mrb[0].mxu0
        %2382 = vmatprep.mubr.f32.mxu0 0.0
        %2383 = vmatmul.mubr.f32.gmra.mrb[0].mxu0 %v2237
        %v2384 = vpop.f32.mrb[0].mxu0
        %v2385 = vadd.f32 0.0, %v2384
        %v2386 = vpop.f32.mrb[0].mxu0
        %2387 = vmatprep.mubr.f32.mxu0 0.0
        %2388 = vmatmul.mubr.f32.gmra.mrb[0].mxu0 %v2238
        %v2389 = vpop.f32.mrb[0].mxu0
        %v2390 = vadd.f32 0.0, %v2389
        %v2391 = vpop.f32.mrb[0].mxu0
        %2392 = vmatprep.mubr.f32.mxu0 0.0
        %2393 = vmatmul.mubr.f32.gmra.mrb[0].mxu0 %v2239
        %v2394 = vpop.f32.mrb[0].mxu0
        %v2395 = vadd.f32 0.0, %v2394
        %v2396 = vpop.f32.mrb[0].mxu0
        %2397 = vmatprep.mubr.f32.mxu0 0.0
        %2398 = vmatmul.mubr.f32.gmra.mrb[0].mxu0 %v2240
        %v2399 = vpop.f32.mrb[0].mxu0
        %v2400 = vadd.f32 0.0, %v2399
        %v2401 = vpop.f32.mrb[0].mxu0
        %2402 = vmatprep.mubr.f32.mxu0 0.0
        %2403 = vmatmul.mubr.f32.gmra.mrb[0].mxu0 %v2241
        %v2404 = vpop.f32.mrb[0].mxu0
        %v2405 = vadd.f32 0.0, %v2404
        %v2406 = vpop.f32.mrb[0].mxu0
        %2407 = vmatprep.mubr.f32.mxu0 0.0
        %2408 = vmatmul.mubr.f32.gmra.mrb[0].mxu0 %v2242
        %v2409 = vpop.f32.mrb[0].mxu0
        %v2410 = vadd.f32 0.0, %v2409
        %v2411 = vpop.f32.mrb[0].mxu0
        %2412 = vmatprep.mubr.f32.mxu0 0.0
        %2413 = vmatmul.mubr.f32.gmra.mrb[0].mxu0 %v2243
        %v2414 = vpop.f32.mrb[0].mxu0
        %v2415 = vadd.f32 0.0, %v2414
        %v2416 = vpop.f32.mrb[0].mxu0
        %2417 = vmatprep.mubr.f32.mxu0 0.0
        %2418 = vmatmul.mubr.f32.gmra.mrb[0].mxu0 %v2244
        %v2419 = vpop.f32.mrb[0].mxu0
        %v2420 = vadd.f32 0.0, %v2419
        %v2421 = vpop.f32.mrb[0].mxu0
        %2422 = vmatprep.mubr.f32.mxu0 0.0
        %2423 = vmatmul.mubr.f32.gmra.mrb[0].mxu0 %v2245
        %v2424 = vpop.f32.mrb[0].mxu0
        %v2425 = vadd.f32 0.0, %v2424
        %v2426 = vpop.f32.mrb[0].mxu0
        %2427 = vmatprep.mubr.f32.mxu0 0.0
        %2428 = vmatmul.mubr.f32.gmra.mrb[0].mxu0 %v2246
        %v2429 = vpop.f32.mrb[0].mxu0
        %v2430 = vadd.f32 0.0, %v2429
        %v2431 = vpop.f32.mrb[0].mxu0
        %2432 = vmatprep.mubr.f32.mxu0 0.0
        %2433 = vmatmul.mubr.f32.gmra.mrb[0].mxu0 %v2247
        %v2434 = vpop.f32.mrb[0].mxu0
        %v2435 = vadd.f32 0.0, %v2434
        %v2436 = vpop.f32.mrb[0].mxu0
        %2437 = vmatprep.mubr.f32.mxu0 0.0
        %2438 = vmatmul.mubr.f32.gmra.mrb[0].mxu0 %v2248
        %v2439 = vpop.f32.mrb[0].mxu0
        %v2440 = vadd.f32 0.0, %v2439
        %v2441 = vpop.f32.mrb[0].mxu0
        %2442 = vmatprep.mubr.f32.mxu0 0.0
        %2443 = vmatmul.mubr.f32.gmra.mrb[0].mxu0 %v2249
        %v2444 = vpop.f32.mrb[0].mxu0
        %v2445 = vadd.f32 0.0, %v2444
        %v2446 = vpop.f32.mrb[0].mxu0
        %2447 = vmatprep.mubr.f32.mxu0 0.0
        %2448 = vmatmul.mubr.f32.gmra.mrb[0].mxu0 %v2250
        %v2449 = vpop.f32.mrb[0].mxu0
        %v2450 = vadd.f32 0.0, %v2449
        %v2451 = vpop.f32.mrb[0].mxu0
        %2452 = vmatprep.mubr.f32.mxu0 0.0
        %2453 = vmatmul.mubr.f32.gmra.mrb[0].mxu0 %v2251
        %v2454 = vpop.f32.mrb[0].mxu0
        %v2455 = vadd.f32 0.0, %v2454
        %v2456 = vpop.f32.mrb[0].mxu0
        %2457 = vmatprep.mubr.f32.mxu0 0.0
        %2458 = vmatmul.mubr.f32.gmra.mrb[0].mxu0 %v2252
        %v2459 = vpop.f32.mrb[0].mxu0
        %v2460 = vadd.f32 0.0, %v2459
        %v2461 = vpop.f32.mrb[0].mxu0
        %2462 = vmatprep.mubr.f32.mxu0 0.0
        %2463 = vmatmul.mubr.f32.gmra.mrb[0].mxu0 %v2253
        %v2464 = vpop.f32.mrb[0].mxu0
        %v2465 = vadd.f32 0.0, %v2464
        %v2466 = vpop.f32.mrb[0].mxu0
        %2467 = vmatprep.mubr.f32.mxu0 0.0
        %2468 = vmatmul.mubr.f32.gmra.mrb[0].mxu0 %v2254
        %v2469 = vpop.f32.mrb[0].mxu0
        %v2470 = vadd.f32 0.0, %v2469
        %v2471 = vpop.f32.mrb[0].mxu0
        %2472 = vmatprep.mubr.f32.mxu0 0.0
        %2473 = vmatmul.mubr.f32.gmra.mrb[0].mxu0 %v2255
        %v2474 = vpop.f32.mrb[0].mxu0
        %v2475 = vadd.f32 0.0, %v2474
        %v2476 = vpop.f32.mrb[0].mxu0
        %2477 = vmatprep.mubr.f32.mxu0 0.0
        %2478 = vmatmul.mubr.f32.gmra.mrb[0].mxu0 %v2256
        %v2479 = vpop.f32.mrb[0].mxu0
        %v2480 = vadd.f32 0.0, %v2479
        %v2481 = vpop.f32.mrb[0].mxu0
        %2482 = vmatprep.mubr.f32.mxu0 0.0
        %2483 = vmatmul.mubr.f32.gmra.mrb[0].mxu0 %v2257
        %v2484 = vpop.f32.mrb[0].mxu0
        %v2485 = vadd.f32 0.0, %v2484
        %v2486 = vpop.f32.mrb[0].mxu0
        %2487 = vmatprep.mubr.f32.mxu0 0.0
        %2488 = vmatmul.mubr.f32.gmra.mrb[0].mxu0 %v2258
        %v2489 = vpop.f32.mrb[0].mxu0
        %v2490 = vadd.f32 0.0, %v2489
        %v2491 = vpop.f32.mrb[0].mxu0
        %2492 = vmatprep.mubr.f32.mxu0 0.0
        %2493 = vmatmul.mubr.f32.gmra.mrb[0].mxu0 %v2259
        %v2494 = vpop.f32.mrb[0].mxu0
        %v2495 = vadd.f32 0.0, %v2494
        %v2496 = vpop.f32.mrb[0].mxu0
        %2497 = vmatprep.mubr.f32.mxu0 0.0
        %2498 = vmatmul.mubr.f32.gmra.mrb[0].mxu0 %v2260
        %v2499 = vpop.f32.mrb[0].mxu0
        %v2500 = vadd.f32 0.0, %v2499
        %v2501 = vpop.f32.mrb[0].mxu0
        %2502 = vmatprep.mubr.f32.mxu0 0.0
        %2503 = vmatmul.mubr.f32.gmra.mrb[0].mxu0 %v2261
        %v2504 = vpop.f32.mrb[0].mxu0
        %v2505 = vadd.f32 0.0, %v2504
        %v2506 = vpop.f32.mrb[0].mxu0
        %2507 = vmatprep.mubr.f32.mxu0 0.0
        %2508 = vmatmul.mubr.f32.gmra.mrb[0].mxu0 %v2262
        %v2509 = vpop.f32.mrb[0].mxu0
        %v2510 = vadd.f32 0.0, %v2509
        %v2511 = vpop.f32.mrb[0].mxu0
        %2512 = vmatprep.mubr.f32.mxu0 0.0
        %2513 = vmatmul.mubr.f32.gmra.mrb[0].mxu0 %v2263
        %v2514 = vpop.f32.mrb[0].mxu0
        %v2515 = vadd.f32 0.0, %v2514
        %v2516 = vpop.f32.mrb[0].mxu0
        %2517 = vmatprep.mubr.f32.mxu0 0.0
        %2518 = vmatmul.mubr.f32.gmra.mrb[0].mxu0 %v2264
        %v2519 = vpop.f32.mrb[0].mxu0
        %v2520 = vadd.f32 0.0, %v2519
        %v2521 = vpop.f32.mrb[0].mxu0
        %2522 = vmatprep.mubr.f32.mxu0 0.0
        %2523 = vmatmul.mubr.f32.gmra.mrb[0].mxu0 %v2265
        %v2524 = vpop.f32.mrb[0].mxu0
        %v2525 = vadd.f32 0.0, %v2524
        %v2526 = vpop.f32.mrb[0].mxu0
        %2527 = vdwg.mxu0
        %v2528 = vadd.f32 %v2194, %v2350
        %v2529 = vadd.f32 %v2195, %v2355
        %v2530 = vadd.f32 %v2196, %v2360
        %v2531 = vadd.f32 %v2197, %v2365
        %v2532 = vadd.f32 %v2198, %v2370
        %v2533 = vadd.f32 %v2199, %v2375
        %v2534 = vadd.f32 %v2200, %v2380
        %v2535 = vadd.f32 %v2201, %v2385
        %v2536 = vadd.f32 %v2202, %v2390
        %v2537 = vadd.f32 %v2203, %v2395
        %v2538 = vadd.f32 %v2204, %v2400
        %v2539 = vadd.f32 %v2205, %v2405
        %v2540 = vadd.f32 %v2206, %v2410
        %v2541 = vadd.f32 %v2207, %v2415
        %v2542 = vadd.f32 %v2208, %v2420
        %v2543 = vadd.f32 %v2209, %v2425
        %v2544 = vadd.f32 %v2210, %v2430
        %v2545 = vadd.f32 %v2211, %v2435
        %v2546 = vadd.f32 %v2212, %v2440
        %v2547 = vadd.f32 %v2213, %v2445
        %v2548 = vadd.f32 %v2214, %v2450
        %v2549 = vadd.f32 %v2215, %v2455
        %v2550 = vadd.f32 %v2216, %v2460
        %v2551 = vadd.f32 %v2217, %v2465
        %v2552 = vadd.f32 %v2218, %v2470
        %v2553 = vadd.f32 %v2219, %v2475
        %v2554 = vadd.f32 %v2220, %v2480
        %v2555 = vadd.f32 %v2221, %v2485
        %v2556 = vadd.f32 %v2222, %v2490
        %v2557 = vadd.f32 %v2223, %v2495
        %v2558 = vadd.f32 %v2224, %v2500
        %v2559 = vadd.f32 %v2225, %v2505
        %v2560 = vadd.f32 %v2226, %v2510
        %v2561 = vadd.f32 %v2227, %v2515
        %v2562 = vadd.f32 %v2228, %v2520
        %v2563 = vadd.f32 %v2229, %v2525
        %v2564 = vld [vmem:[#allocation2 + $0x29] sm:$0xff]
        %v2565 = vld [vmem:[#allocation2 + $0x31] sm:$0xff]
        %v2566 = vld [vmem:[#allocation2 + $0x39] sm:$0xff]
        %v2567 = vld [vmem:[#allocation2 + $0x41] sm:$0xff]
        %v2568 = vld [vmem:[#allocation2 + $0x49] sm:$0xff]
        %v2569 = vld [vmem:[#allocation2 + $0x51] sm:$0xff]
        %v2570 = vld [vmem:[#allocation2 + $0x59] sm:$0xff]
        %v2571 = vld [vmem:[#allocation2 + $0x61] sm:$0xff]
        %v2572 = vld [vmem:[#allocation2 + $0x69] sm:$0xff]
        %v2573 = vld [vmem:[#allocation2 + $0x71] sm:$0xff]
        %v2574 = vld [vmem:[#allocation2 + $0x79] sm:$0xff]
        %v2575 = vld [vmem:[#allocation2 + $0x81] sm:$0xff]
        %v2576 = vld [vmem:[#allocation2 + $0x89] sm:$0xff]
        %v2577 = vld [vmem:[#allocation2 + $0x91] sm:$0xff]
        %v2578 = vld [vmem:[#allocation2 + $0x99] sm:$0xff]
        %v2579 = vld [vmem:[#allocation2 + $0xa1] sm:$0xff]
        %v2580 = vld [vmem:[#allocation2 + $0xa9] sm:$0xff]
        %v2581 = vld [vmem:[#allocation2 + $0xb1] sm:$0xff]
        %v2582 = vld [vmem:[#allocation2 + $0xb9] sm:$0xff]
        %v2583 = vld [vmem:[#allocation2 + $0xc1] sm:$0xff]
        %v2584 = vld [vmem:[#allocation2 + $0xc9] sm:$0xff]
        %v2585 = vld [vmem:[#allocation2 + $0xd1] sm:$0xff]
        %v2586 = vld [vmem:[#allocation2 + $0xd9] sm:$0xff]
        %v2587 = vld [vmem:[#allocation2 + $0xe1] sm:$0xff]
        %v2588 = vld [vmem:[#allocation2 + $0xe9] sm:$0xff]
        %v2589 = vld [vmem:[#allocation2 + $0xf1] sm:$0xff]
        %v2590 = vld [vmem:[#allocation2 + $0xf9] sm:$0xff]
        %v2591 = vld [vmem:[#allocation2 + $0x101] sm:$0xff]
        %v2592 = vld [vmem:[#allocation2 + $0x109] sm:$0xff]
        %v2593 = vld [vmem:[#allocation2 + $0x111] sm:$0xff]
        %v2594 = vld [vmem:[#allocation2 + $0x119] sm:$0xff]
        %v2595 = vld [vmem:[#allocation2 + $0x121] sm:$0xff]
        %v2596 = vld [vmem:[#allocation2 + $0x129] sm:$0xff]
        %v2597 = vld [vmem:[#allocation2 + $0x131] sm:$0xff]
        %v2598 = vld [vmem:[#allocation2 + $0x139] sm:$0xff]
        %v2599 = vld [vmem:[#allocation2 + $0x141] sm:$0xff]
        %s2600 = scalar_lea.vmem [#allocation8], 768
        %v2601 = vld [vmem:[%s2600] sm:$0xff]
        %v2602 = vld [vmem:[%s2600 + $0x8] sm:$0xff]
        %v2603 = vld [vmem:[%s2600 + $0x10] sm:$0xff]
        %v2604 = vld [vmem:[%s2600 + $0x18] sm:$0xff]
        %v2605 = vld [vmem:[%s2600 + $0x20] sm:$0xff]
        %v2606 = vld [vmem:[%s2600 + $0x28] sm:$0xff]
        %v2607 = vld [vmem:[%s2600 + $0x30] sm:$0xff]
        %v2608 = vld [vmem:[%s2600 + $0x38] sm:$0xff]
        %v2609 = vld [vmem:[%s2600 + $0x40] sm:$0xff]
        %v2610 = vld [vmem:[%s2600 + $0x48] sm:$0xff]
        %v2611 = vld [vmem:[%s2600 + $0x50] sm:$0xff]
        %v2612 = vld [vmem:[%s2600 + $0x58] sm:$0xff]
        %v2613 = vld [vmem:[%s2600 + $0x60] sm:$0xff]
        %v2614 = vld [vmem:[%s2600 + $0x68] sm:$0xff]
        %v2615 = vld [vmem:[%s2600 + $0x70] sm:$0xff]
        %v2616 = vld [vmem:[%s2600 + $0x78] sm:$0xff]
        %2617 = vmatprep.subr.mxu0 0.0
        %2618 = vmatpush1.msra.mxu0 %v2601
        %2619 = vmatprep.subr.mxu0 0.0
        %2620 = vmatpush1.msra.mxu0 %v2602
        %2621 = vmatprep.subr.mxu0 0.0
        %2622 = vmatpush1.msra.mxu0 %v2603
        %2623 = vmatprep.subr.mxu0 0.0
        %2624 = vmatpush1.msra.mxu0 %v2604
        %2625 = vmatprep.subr.mxu0 0.0
        %2626 = vmatpush1.msra.mxu0 %v2605
        %2627 = vmatprep.subr.mxu0 0.0
        %2628 = vmatpush1.msra.mxu0 %v2606
        %2629 = vmatprep.subr.mxu0 0.0
        %2630 = vmatpush1.msra.mxu0 %v2607
        %2631 = vmatprep.subr.mxu0 0.0
        %2632 = vmatpush1.msra.mxu0 %v2608
        %2633 = vmatprep.subr.mxu0 0.0
        %2634 = vmatpush1.msra.mxu0 %v2609
        %2635 = vmatprep.subr.mxu0 0.0
        %2636 = vmatpush1.msra.mxu0 %v2610
        %2637 = vmatprep.subr.mxu0 0.0
        %2638 = vmatpush1.msra.mxu0 %v2611
        %2639 = vmatprep.subr.mxu0 0.0
        %2640 = vmatpush1.msra.mxu0 %v2612
        %2641 = vmatprep.subr.mxu0 0.0
        %2642 = vmatpush1.msra.mxu0 %v2613
        %2643 = vmatprep.subr.mxu0 0.0
        %2644 = vmatpush1.msra.mxu0 %v2614
        %2645 = vmatprep.subr.mxu0 0.0
        %2646 = vmatpush1.msra.mxu0 %v2615
        %2647 = vmatprep.subr.mxu0 0.0
        %2648 = vmatpush1.msra.mxu0 %v2616
        %2649 = vmatprep.subr.mxu0 0.0
        %2650 = vmatpush1.msra.mxu0 0.0
        %2651 = vmatprep.subr.mxu0 0.0
        %2652 = vmatpush1.msra.mxu0 0.0
        %2653 = vmatprep.subr.mxu0 0.0
        %2654 = vmatpush1.msra.mxu0 0.0
        %2655 = vmatprep.subr.mxu0 0.0
        %2656 = vmatpush1.msra.mxu0 0.0
        %2657 = vmatprep.subr.mxu0 0.0
        %2658 = vmatpush1.msra.mxu0 0.0
        %2659 = vmatprep.subr.mxu0 0.0
        %2660 = vmatpush1.msra.mxu0 0.0
        %2661 = vmatprep.subr.mxu0 0.0
        %2662 = vmatpush1.msra.mxu0 0.0
        %2663 = vmatprep.subr.mxu0 0.0
        %2664 = vmatpush1.msra.mxu0 0.0
        %2665 = vmatprep.subr.mxu0 0.0
        %2666 = vmatpush1.msra.mxu0 0.0
        %2667 = vmatprep.subr.mxu0 0.0
        %2668 = vmatpush1.msra.mxu0 0.0
        %2669 = vmatprep.subr.mxu0 0.0
        %2670 = vmatpush1.msra.mxu0 0.0
        %2671 = vmatprep.subr.mxu0 0.0
        %2672 = vmatpush1.msra.mxu0 0.0
        %2673 = vmatprep.subr.mxu0 0.0
        %2674 = vmatpush1.msra.mxu0 0.0
        %2675 = vmatprep.subr.mxu0 0.0
        %2676 = vmatpush1.msra.mxu0 0.0
        %2677 = vmatprep.subr.mxu0 0.0
        %2678 = vmatpush1.msra.mxu0 0.0
        %2679 = vmatprep.subr.mxu0 0.0
        %2680 = vmatpush1.msra.mxu0 0.0
        %2681 = vmatprep.mubr.f32.mxu0 0.0
        %2682 = vmatmul.mubr.f32.gmra.mrb[0].mxu0 %v2564
        %v2683 = vpop.f32.mrb[0].mxu0
        %v2684 = vadd.f32 0.0, %v2683
        %v2685 = vpop.f32.mrb[0].mxu0
        %2686 = vmatprep.mubr.f32.mxu0 0.0
        %2687 = vmatmul.mubr.f32.gmra.mrb[0].mxu0 %v2565
        %v2688 = vpop.f32.mrb[0].mxu0
        %v2689 = vadd.f32 0.0, %v2688
        %v2690 = vpop.f32.mrb[0].mxu0
        %2691 = vmatprep.mubr.f32.mxu0 0.0
        %2692 = vmatmul.mubr.f32.gmra.mrb[0].mxu0 %v2566
        %v2693 = vpop.f32.mrb[0].mxu0
        %v2694 = vadd.f32 0.0, %v2693
        %v2695 = vpop.f32.mrb[0].mxu0
        %2696 = vmatprep.mubr.f32.mxu0 0.0
        %2697 = vmatmul.mubr.f32.gmra.mrb[0].mxu0 %v2567
        %v2698 = vpop.f32.mrb[0].mxu0
        %v2699 = vadd.f32 0.0, %v2698
        %v2700 = vpop.f32.mrb[0].mxu0
        %2701 = vmatprep.mubr.f32.mxu0 0.0
        %2702 = vmatmul.mubr.f32.gmra.mrb[0].mxu0 %v2568
        %v2703 = vpop.f32.mrb[0].mxu0
        %v2704 = vadd.f32 0.0, %v2703
        %v2705 = vpop.f32.mrb[0].mxu0
        %2706 = vmatprep.mubr.f32.mxu0 0.0
        %2707 = vmatmul.mubr.f32.gmra.mrb[0].mxu0 %v2569
        %v2708 = vpop.f32.mrb[0].mxu0
        %v2709 = vadd.f32 0.0, %v2708
        %v2710 = vpop.f32.mrb[0].mxu0
        %2711 = vmatprep.mubr.f32.mxu0 0.0
        %2712 = vmatmul.mubr.f32.gmra.mrb[0].mxu0 %v2570
        %v2713 = vpop.f32.mrb[0].mxu0
        %v2714 = vadd.f32 0.0, %v2713
        %v2715 = vpop.f32.mrb[0].mxu0
        %2716 = vmatprep.mubr.f32.mxu0 0.0
        %2717 = vmatmul.mubr.f32.gmra.mrb[0].mxu0 %v2571
        %v2718 = vpop.f32.mrb[0].mxu0
        %v2719 = vadd.f32 0.0, %v2718
        %v2720 = vpop.f32.mrb[0].mxu0
        %2721 = vmatprep.mubr.f32.mxu0 0.0
        %2722 = vmatmul.mubr.f32.gmra.mrb[0].mxu0 %v2572
        %v2723 = vpop.f32.mrb[0].mxu0
        %v2724 = vadd.f32 0.0, %v2723
        %v2725 = vpop.f32.mrb[0].mxu0
        %2726 = vmatprep.mubr.f32.mxu0 0.0
        %2727 = vmatmul.mubr.f32.gmra.mrb[0].mxu0 %v2573
        %v2728 = vpop.f32.mrb[0].mxu0
        %v2729 = vadd.f32 0.0, %v2728
        %v2730 = vpop.f32.mrb[0].mxu0
        %2731 = vmatprep.mubr.f32.mxu0 0.0
        %2732 = vmatmul.mubr.f32.gmra.mrb[0].mxu0 %v2574
        %v2733 = vpop.f32.mrb[0].mxu0
        %v2734 = vadd.f32 0.0, %v2733
        %v2735 = vpop.f32.mrb[0].mxu0
        %2736 = vmatprep.mubr.f32.mxu0 0.0
        %2737 = vmatmul.mubr.f32.gmra.mrb[0].mxu0 %v2575
        %v2738 = vpop.f32.mrb[0].mxu0
        %v2739 = vadd.f32 0.0, %v2738
        %v2740 = vpop.f32.mrb[0].mxu0
        %2741 = vmatprep.mubr.f32.mxu0 0.0
        %2742 = vmatmul.mubr.f32.gmra.mrb[0].mxu0 %v2576
        %v2743 = vpop.f32.mrb[0].mxu0
        %v2744 = vadd.f32 0.0, %v2743
        %v2745 = vpop.f32.mrb[0].mxu0
        %2746 = vmatprep.mubr.f32.mxu0 0.0
        %2747 = vmatmul.mubr.f32.gmra.mrb[0].mxu0 %v2577
        %v2748 = vpop.f32.mrb[0].mxu0
        %v2749 = vadd.f32 0.0, %v2748
        %v2750 = vpop.f32.mrb[0].mxu0
        %2751 = vmatprep.mubr.f32.mxu0 0.0
        %2752 = vmatmul.mubr.f32.gmra.mrb[0].mxu0 %v2578
        %v2753 = vpop.f32.mrb[0].mxu0
        %v2754 = vadd.f32 0.0, %v2753
        %v2755 = vpop.f32.mrb[0].mxu0
        %2756 = vmatprep.mubr.f32.mxu0 0.0
        %2757 = vmatmul.mubr.f32.gmra.mrb[0].mxu0 %v2579
        %v2758 = vpop.f32.mrb[0].mxu0
        %v2759 = vadd.f32 0.0, %v2758
        %v2760 = vpop.f32.mrb[0].mxu0
        %2761 = vmatprep.mubr.f32.mxu0 0.0
        %2762 = vmatmul.mubr.f32.gmra.mrb[0].mxu0 %v2580
        %v2763 = vpop.f32.mrb[0].mxu0
        %v2764 = vadd.f32 0.0, %v2763
        %v2765 = vpop.f32.mrb[0].mxu0
        %2766 = vmatprep.mubr.f32.mxu0 0.0
        %2767 = vmatmul.mubr.f32.gmra.mrb[0].mxu0 %v2581
        %v2768 = vpop.f32.mrb[0].mxu0
        %v2769 = vadd.f32 0.0, %v2768
        %v2770 = vpop.f32.mrb[0].mxu0
        %2771 = vmatprep.mubr.f32.mxu0 0.0
        %2772 = vmatmul.mubr.f32.gmra.mrb[0].mxu0 %v2582
        %v2773 = vpop.f32.mrb[0].mxu0
        %v2774 = vadd.f32 0.0, %v2773
        %v2775 = vpop.f32.mrb[0].mxu0
        %2776 = vmatprep.mubr.f32.mxu0 0.0
        %2777 = vmatmul.mubr.f32.gmra.mrb[0].mxu0 %v2583
        %v2778 = vpop.f32.mrb[0].mxu0
        %v2779 = vadd.f32 0.0, %v2778
        %v2780 = vpop.f32.mrb[0].mxu0
        %2781 = vmatprep.mubr.f32.mxu0 0.0
        %2782 = vmatmul.mubr.f32.gmra.mrb[0].mxu0 %v2584
        %v2783 = vpop.f32.mrb[0].mxu0
        %v2784 = vadd.f32 0.0, %v2783
        %v2785 = vpop.f32.mrb[0].mxu0
        %2786 = vmatprep.mubr.f32.mxu0 0.0
        %2787 = vmatmul.mubr.f32.gmra.mrb[0].mxu0 %v2585
        %v2788 = vpop.f32.mrb[0].mxu0
        %v2789 = vadd.f32 0.0, %v2788
        %v2790 = vpop.f32.mrb[0].mxu0
        %2791 = vmatprep.mubr.f32.mxu0 0.0
        %2792 = vmatmul.mubr.f32.gmra.mrb[0].mxu0 %v2586
        %v2793 = vpop.f32.mrb[0].mxu0
        %v2794 = vadd.f32 0.0, %v2793
        %v2795 = vpop.f32.mrb[0].mxu0
        %2796 = vmatprep.mubr.f32.mxu0 0.0
        %2797 = vmatmul.mubr.f32.gmra.mrb[0].mxu0 %v2587
        %v2798 = vpop.f32.mrb[0].mxu0
        %v2799 = vadd.f32 0.0, %v2798
        %v2800 = vpop.f32.mrb[0].mxu0
        %2801 = vmatprep.mubr.f32.mxu0 0.0
        %2802 = vmatmul.mubr.f32.gmra.mrb[0].mxu0 %v2588
        %v2803 = vpop.f32.mrb[0].mxu0
        %v2804 = vadd.f32 0.0, %v2803
        %v2805 = vpop.f32.mrb[0].mxu0
        %2806 = vmatprep.mubr.f32.mxu0 0.0
        %2807 = vmatmul.mubr.f32.gmra.mrb[0].mxu0 %v2589
        %v2808 = vpop.f32.mrb[0].mxu0
        %v2809 = vadd.f32 0.0, %v2808
        %v2810 = vpop.f32.mrb[0].mxu0
        %2811 = vmatprep.mubr.f32.mxu0 0.0
        %2812 = vmatmul.mubr.f32.gmra.mrb[0].mxu0 %v2590
        %v2813 = vpop.f32.mrb[0].mxu0
        %v2814 = vadd.f32 0.0, %v2813
        %v2815 = vpop.f32.mrb[0].mxu0
        %2816 = vmatprep.mubr.f32.mxu0 0.0
        %2817 = vmatmul.mubr.f32.gmra.mrb[0].mxu0 %v2591
        %v2818 = vpop.f32.mrb[0].mxu0
        %v2819 = vadd.f32 0.0, %v2818
        %v2820 = vpop.f32.mrb[0].mxu0
        %2821 = vmatprep.mubr.f32.mxu0 0.0
        %2822 = vmatmul.mubr.f32.gmra.mrb[0].mxu0 %v2592
        %v2823 = vpop.f32.mrb[0].mxu0
        %v2824 = vadd.f32 0.0, %v2823
        %v2825 = vpop.f32.mrb[0].mxu0
        %2826 = vmatprep.mubr.f32.mxu0 0.0
        %2827 = vmatmul.mubr.f32.gmra.mrb[0].mxu0 %v2593
        %v2828 = vpop.f32.mrb[0].mxu0
        %v2829 = vadd.f32 0.0, %v2828
        %v2830 = vpop.f32.mrb[0].mxu0
        %2831 = vmatprep.mubr.f32.mxu0 0.0
        %2832 = vmatmul.mubr.f32.gmra.mrb[0].mxu0 %v2594
        %v2833 = vpop.f32.mrb[0].mxu0
        %v2834 = vadd.f32 0.0, %v2833
        %v2835 = vpop.f32.mrb[0].mxu0
        %2836 = vmatprep.mubr.f32.mxu0 0.0
        %2837 = vmatmul.mubr.f32.gmra.mrb[0].mxu0 %v2595
        %v2838 = vpop.f32.mrb[0].mxu0
        %v2839 = vadd.f32 0.0, %v2838
        %v2840 = vpop.f32.mrb[0].mxu0
        %2841 = vmatprep.mubr.f32.mxu0 0.0
        %2842 = vmatmul.mubr.f32.gmra.mrb[0].mxu0 %v2596
        %v2843 = vpop.f32.mrb[0].mxu0
        %v2844 = vadd.f32 0.0, %v2843
        %v2845 = vpop.f32.mrb[0].mxu0
        %2846 = vmatprep.mubr.f32.mxu0 0.0
        %2847 = vmatmul.mubr.f32.gmra.mrb[0].mxu0 %v2597
        %v2848 = vpop.f32.mrb[0].mxu0
        %v2849 = vadd.f32 0.0, %v2848
        %v2850 = vpop.f32.mrb[0].mxu0
        %2851 = vmatprep.mubr.f32.mxu0 0.0
        %2852 = vmatmul.mubr.f32.gmra.mrb[0].mxu0 %v2598
        %v2853 = vpop.f32.mrb[0].mxu0
        %v2854 = vadd.f32 0.0, %v2853
        %v2855 = vpop.f32.mrb[0].mxu0
        %2856 = vmatprep.mubr.f32.mxu0 0.0
        %2857 = vmatmul.mubr.f32.gmra.mrb[0].mxu0 %v2599
        %v2858 = vpop.f32.mrb[0].mxu0
        %v2859 = vadd.f32 0.0, %v2858
        %v2860 = vpop.f32.mrb[0].mxu0
        %2861 = vdwg.mxu0
        %v2862 = vadd.f32 %v2528, %v2684
        %v2863 = vadd.f32 %v2529, %v2689
        %v2864 = vadd.f32 %v2530, %v2694
        %v2865 = vadd.f32 %v2531, %v2699
        %v2866 = vadd.f32 %v2532, %v2704
        %v2867 = vadd.f32 %v2533, %v2709
        %v2868 = vadd.f32 %v2534, %v2714
        %v2869 = vadd.f32 %v2535, %v2719
        %v2870 = vadd.f32 %v2536, %v2724
        %v2871 = vadd.f32 %v2537, %v2729
        %v2872 = vadd.f32 %v2538, %v2734
        %v2873 = vadd.f32 %v2539, %v2739
        %v2874 = vadd.f32 %v2540, %v2744
        %v2875 = vadd.f32 %v2541, %v2749
        %v2876 = vadd.f32 %v2542, %v2754
        %v2877 = vadd.f32 %v2543, %v2759
        %v2878 = vadd.f32 %v2544, %v2764
        %v2879 = vadd.f32 %v2545, %v2769
        %v2880 = vadd.f32 %v2546, %v2774
        %v2881 = vadd.f32 %v2547, %v2779
        %v2882 = vadd.f32 %v2548, %v2784
        %v2883 = vadd.f32 %v2549, %v2789
        %v2884 = vadd.f32 %v2550, %v2794
        %v2885 = vadd.f32 %v2551, %v2799
        %v2886 = vadd.f32 %v2552, %v2804
        %v2887 = vadd.f32 %v2553, %v2809
        %v2888 = vadd.f32 %v2554, %v2814
        %v2889 = vadd.f32 %v2555, %v2819
        %v2890 = vadd.f32 %v2556, %v2824
        %v2891 = vadd.f32 %v2557, %v2829
        %v2892 = vadd.f32 %v2558, %v2834
        %v2893 = vadd.f32 %v2559, %v2839
        %v2894 = vadd.f32 %v2560, %v2844
        %v2895 = vadd.f32 %v2561, %v2849
        %v2896 = vadd.f32 %v2562, %v2854
        %v2897 = vadd.f32 %v2563, %v2859
        %v2898 = vld [vmem:[#allocation2 + $0x2a] sm:$0xff]
        %v2899 = vld [vmem:[#allocation2 + $0x32] sm:$0xff]
        %v2900 = vld [vmem:[#allocation2 + $0x3a] sm:$0xff]
        %v2901 = vld [vmem:[#allocation2 + $0x42] sm:$0xff]
        %v2902 = vld [vmem:[#allocation2 + $0x4a] sm:$0xff]
        %v2903 = vld [vmem:[#allocation2 + $0x52] sm:$0xff]
        %v2904 = vld [vmem:[#allocation2 + $0x5a] sm:$0xff]
        %v2905 = vld [vmem:[#allocation2 + $0x62] sm:$0xff]
        %v2906 = vld [vmem:[#allocation2 + $0x6a] sm:$0xff]
        %v2907 = vld [vmem:[#allocation2 + $0x72] sm:$0xff]
        %v2908 = vld [vmem:[#allocation2 + $0x7a] sm:$0xff]
        %v2909 = vld [vmem:[#allocation2 + $0x82] sm:$0xff]
        %v2910 = vld [vmem:[#allocation2 + $0x8a] sm:$0xff]
        %v2911 = vld [vmem:[#allocation2 + $0x92] sm:$0xff]
        %v2912 = vld [vmem:[#allocation2 + $0x9a] sm:$0xff]
        %v2913 = vld [vmem:[#allocation2 + $0xa2] sm:$0xff]
        %v2914 = vld [vmem:[#allocation2 + $0xaa] sm:$0xff]
        %v2915 = vld [vmem:[#allocation2 + $0xb2] sm:$0xff]
        %v2916 = vld [vmem:[#allocation2 + $0xba] sm:$0xff]
        %v2917 = vld [vmem:[#allocation2 + $0xc2] sm:$0xff]
        %v2918 = vld [vmem:[#allocation2 + $0xca] sm:$0xff]
        %v2919 = vld [vmem:[#allocation2 + $0xd2] sm:$0xff]
        %v2920 = vld [vmem:[#allocation2 + $0xda] sm:$0xff]
        %v2921 = vld [vmem:[#allocation2 + $0xe2] sm:$0xff]
        %v2922 = vld [vmem:[#allocation2 + $0xea] sm:$0xff]
        %v2923 = vld [vmem:[#allocation2 + $0xf2] sm:$0xff]
        %v2924 = vld [vmem:[#allocation2 + $0xfa] sm:$0xff]
        %v2925 = vld [vmem:[#allocation2 + $0x102] sm:$0xff]
        %v2926 = vld [vmem:[#allocation2 + $0x10a] sm:$0xff]
        %v2927 = vld [vmem:[#allocation2 + $0x112] sm:$0xff]
        %v2928 = vld [vmem:[#allocation2 + $0x11a] sm:$0xff]
        %v2929 = vld [vmem:[#allocation2 + $0x122] sm:$0xff]
        %v2930 = vld [vmem:[#allocation2 + $0x12a] sm:$0xff]
        %v2931 = vld [vmem:[#allocation2 + $0x132] sm:$0xff]
        %v2932 = vld [vmem:[#allocation2 + $0x13a] sm:$0xff]
        %v2933 = vld [vmem:[#allocation2 + $0x142] sm:$0xff]
        %s2934 = scalar_lea.vmem [#allocation8], 896
        %v2935 = vld [vmem:[%s2934] sm:$0xff]
        %v2936 = vld [vmem:[%s2934 + $0x8] sm:$0xff]
        %v2937 = vld [vmem:[%s2934 + $0x10] sm:$0xff]
        %v2938 = vld [vmem:[%s2934 + $0x18] sm:$0xff]
        %v2939 = vld [vmem:[%s2934 + $0x20] sm:$0xff]
        %v2940 = vld [vmem:[%s2934 + $0x28] sm:$0xff]
        %v2941 = vld [vmem:[%s2934 + $0x30] sm:$0xff]
        %v2942 = vld [vmem:[%s2934 + $0x38] sm:$0xff]
        %v2943 = vld [vmem:[%s2934 + $0x40] sm:$0xff]
        %v2944 = vld [vmem:[%s2934 + $0x48] sm:$0xff]
        %v2945 = vld [vmem:[%s2934 + $0x50] sm:$0xff]
        %v2946 = vld [vmem:[%s2934 + $0x58] sm:$0xff]
        %v2947 = vld [vmem:[%s2934 + $0x60] sm:$0xff]
        %v2948 = vld [vmem:[%s2934 + $0x68] sm:$0xff]
        %v2949 = vld [vmem:[%s2934 + $0x70] sm:$0xff]
        %v2950 = vld [vmem:[%s2934 + $0x78] sm:$0xff]
        %2951 = vmatprep.subr.mxu0 0.0
        %2952 = vmatpush1.msra.mxu0 %v2935
        %2953 = vmatprep.subr.mxu0 0.0
        %2954 = vmatpush1.msra.mxu0 %v2936
        %2955 = vmatprep.subr.mxu0 0.0
        %2956 = vmatpush1.msra.mxu0 %v2937
        %2957 = vmatprep.subr.mxu0 0.0
        %2958 = vmatpush1.msra.mxu0 %v2938
        %2959 = vmatprep.subr.mxu0 0.0
        %2960 = vmatpush1.msra.mxu0 %v2939
        %2961 = vmatprep.subr.mxu0 0.0
        %2962 = vmatpush1.msra.mxu0 %v2940
        %2963 = vmatprep.subr.mxu0 0.0
        %2964 = vmatpush1.msra.mxu0 %v2941
        %2965 = vmatprep.subr.mxu0 0.0
        %2966 = vmatpush1.msra.mxu0 %v2942
        %2967 = vmatprep.subr.mxu0 0.0
        %2968 = vmatpush1.msra.mxu0 %v2943
        %2969 = vmatprep.subr.mxu0 0.0
        %2970 = vmatpush1.msra.mxu0 %v2944
        %2971 = vmatprep.subr.mxu0 0.0
        %2972 = vmatpush1.msra.mxu0 %v2945
        %2973 = vmatprep.subr.mxu0 0.0
        %2974 = vmatpush1.msra.mxu0 %v2946
        %2975 = vmatprep.subr.mxu0 0.0
        %2976 = vmatpush1.msra.mxu0 %v2947
        %2977 = vmatprep.subr.mxu0 0.0
        %2978 = vmatpush1.msra.mxu0 %v2948
        %2979 = vmatprep.subr.mxu0 0.0
        %2980 = vmatpush1.msra.mxu0 %v2949
        %2981 = vmatprep.subr.mxu0 0.0
        %2982 = vmatpush1.msra.mxu0 %v2950
        %2983 = vmatprep.subr.mxu0 0.0
        %2984 = vmatpush1.msra.mxu0 0.0
        %2985 = vmatprep.subr.mxu0 0.0
        %2986 = vmatpush1.msra.mxu0 0.0
        %2987 = vmatprep.subr.mxu0 0.0
        %2988 = vmatpush1.msra.mxu0 0.0
        %2989 = vmatprep.subr.mxu0 0.0
        %2990 = vmatpush1.msra.mxu0 0.0
        %2991 = vmatprep.subr.mxu0 0.0
        %2992 = vmatpush1.msra.mxu0 0.0
        %2993 = vmatprep.subr.mxu0 0.0
        %2994 = vmatpush1.msra.mxu0 0.0
        %2995 = vmatprep.subr.mxu0 0.0
        %2996 = vmatpush1.msra.mxu0 0.0
        %2997 = vmatprep.subr.mxu0 0.0
        %2998 = vmatpush1.msra.mxu0 0.0
        %2999 = vmatprep.subr.mxu0 0.0
        %3000 = vmatpush1.msra.mxu0 0.0
        %3001 = vmatprep.subr.mxu0 0.0
        %3002 = vmatpush1.msra.mxu0 0.0
        %3003 = vmatprep.subr.mxu0 0.0
        %3004 = vmatpush1.msra.mxu0 0.0
        %3005 = vmatprep.subr.mxu0 0.0
        %3006 = vmatpush1.msra.mxu0 0.0
        %3007 = vmatprep.subr.mxu0 0.0
        %3008 = vmatpush1.msra.mxu0 0.0
        %3009 = vmatprep.subr.mxu0 0.0
        %3010 = vmatpush1.msra.mxu0 0.0
        %3011 = vmatprep.subr.mxu0 0.0
        %3012 = vmatpush1.msra.mxu0 0.0
        %3013 = vmatprep.subr.mxu0 0.0
        %3014 = vmatpush1.msra.mxu0 0.0
        %3015 = vmatprep.mubr.f32.mxu0 0.0
        %3016 = vmatmul.mubr.f32.gmra.mrb[0].mxu0 %v2898
        %v3017 = vpop.f32.mrb[0].mxu0
        %v3018 = vadd.f32 0.0, %v3017
        %v3019 = vpop.f32.mrb[0].mxu0
        %3020 = vmatprep.mubr.f32.mxu0 0.0
        %3021 = vmatmul.mubr.f32.gmra.mrb[0].mxu0 %v2899
        %v3022 = vpop.f32.mrb[0].mxu0
        %v3023 = vadd.f32 0.0, %v3022
        %v3024 = vpop.f32.mrb[0].mxu0
        %3025 = vmatprep.mubr.f32.mxu0 0.0
        %3026 = vmatmul.mubr.f32.gmra.mrb[0].mxu0 %v2900
        %v3027 = vpop.f32.mrb[0].mxu0
        %v3028 = vadd.f32 0.0, %v3027
        %v3029 = vpop.f32.mrb[0].mxu0
        %3030 = vmatprep.mubr.f32.mxu0 0.0
        %3031 = vmatmul.mubr.f32.gmra.mrb[0].mxu0 %v2901
        %v3032 = vpop.f32.mrb[0].mxu0
        %v3033 = vadd.f32 0.0, %v3032
        %v3034 = vpop.f32.mrb[0].mxu0
        %3035 = vmatprep.mubr.f32.mxu0 0.0
        %3036 = vmatmul.mubr.f32.gmra.mrb[0].mxu0 %v2902
        %v3037 = vpop.f32.mrb[0].mxu0
        %v3038 = vadd.f32 0.0, %v3037
        %v3039 = vpop.f32.mrb[0].mxu0
        %3040 = vmatprep.mubr.f32.mxu0 0.0
        %3041 = vmatmul.mubr.f32.gmra.mrb[0].mxu0 %v2903
        %v3042 = vpop.f32.mrb[0].mxu0
        %v3043 = vadd.f32 0.0, %v3042
        %v3044 = vpop.f32.mrb[0].mxu0
        %3045 = vmatprep.mubr.f32.mxu0 0.0
        %3046 = vmatmul.mubr.f32.gmra.mrb[0].mxu0 %v2904
        %v3047 = vpop.f32.mrb[0].mxu0
        %v3048 = vadd.f32 0.0, %v3047
        %v3049 = vpop.f32.mrb[0].mxu0
        %3050 = vmatprep.mubr.f32.mxu0 0.0
        %3051 = vmatmul.mubr.f32.gmra.mrb[0].mxu0 %v2905
        %v3052 = vpop.f32.mrb[0].mxu0
        %v3053 = vadd.f32 0.0, %v3052
        %v3054 = vpop.f32.mrb[0].mxu0
        %3055 = vmatprep.mubr.f32.mxu0 0.0
        %3056 = vmatmul.mubr.f32.gmra.mrb[0].mxu0 %v2906
        %v3057 = vpop.f32.mrb[0].mxu0
        %v3058 = vadd.f32 0.0, %v3057
        %v3059 = vpop.f32.mrb[0].mxu0
        %3060 = vmatprep.mubr.f32.mxu0 0.0
        %3061 = vmatmul.mubr.f32.gmra.mrb[0].mxu0 %v2907
        %v3062 = vpop.f32.mrb[0].mxu0
        %v3063 = vadd.f32 0.0, %v3062
        %v3064 = vpop.f32.mrb[0].mxu0
        %3065 = vmatprep.mubr.f32.mxu0 0.0
        %3066 = vmatmul.mubr.f32.gmra.mrb[0].mxu0 %v2908
        %v3067 = vpop.f32.mrb[0].mxu0
        %v3068 = vadd.f32 0.0, %v3067
        %v3069 = vpop.f32.mrb[0].mxu0
        %3070 = vmatprep.mubr.f32.mxu0 0.0
        %3071 = vmatmul.mubr.f32.gmra.mrb[0].mxu0 %v2909
        %v3072 = vpop.f32.mrb[0].mxu0
        %v3073 = vadd.f32 0.0, %v3072
        %v3074 = vpop.f32.mrb[0].mxu0
        %3075 = vmatprep.mubr.f32.mxu0 0.0
        %3076 = vmatmul.mubr.f32.gmra.mrb[0].mxu0 %v2910
        %v3077 = vpop.f32.mrb[0].mxu0
        %v3078 = vadd.f32 0.0, %v3077
        %v3079 = vpop.f32.mrb[0].mxu0
        %3080 = vmatprep.mubr.f32.mxu0 0.0
        %3081 = vmatmul.mubr.f32.gmra.mrb[0].mxu0 %v2911
        %v3082 = vpop.f32.mrb[0].mxu0
        %v3083 = vadd.f32 0.0, %v3082
        %v3084 = vpop.f32.mrb[0].mxu0
        %3085 = vmatprep.mubr.f32.mxu0 0.0
        %3086 = vmatmul.mubr.f32.gmra.mrb[0].mxu0 %v2912
        %v3087 = vpop.f32.mrb[0].mxu0
        %v3088 = vadd.f32 0.0, %v3087
        %v3089 = vpop.f32.mrb[0].mxu0
        %3090 = vmatprep.mubr.f32.mxu0 0.0
        %3091 = vmatmul.mubr.f32.gmra.mrb[0].mxu0 %v2913
        %v3092 = vpop.f32.mrb[0].mxu0
        %v3093 = vadd.f32 0.0, %v3092
        %v3094 = vpop.f32.mrb[0].mxu0
        %3095 = vmatprep.mubr.f32.mxu0 0.0
        %3096 = vmatmul.mubr.f32.gmra.mrb[0].mxu0 %v2914
        %v3097 = vpop.f32.mrb[0].mxu0
        %v3098 = vadd.f32 0.0, %v3097
        %v3099 = vpop.f32.mrb[0].mxu0
        %3100 = vmatprep.mubr.f32.mxu0 0.0
        %3101 = vmatmul.mubr.f32.gmra.mrb[0].mxu0 %v2915
        %v3102 = vpop.f32.mrb[0].mxu0
        %v3103 = vadd.f32 0.0, %v3102
        %v3104 = vpop.f32.mrb[0].mxu0
        %3105 = vmatprep.mubr.f32.mxu0 0.0
        %3106 = vmatmul.mubr.f32.gmra.mrb[0].mxu0 %v2916
        %v3107 = vpop.f32.mrb[0].mxu0
        %v3108 = vadd.f32 0.0, %v3107
        %v3109 = vpop.f32.mrb[0].mxu0
        %3110 = vmatprep.mubr.f32.mxu0 0.0
        %3111 = vmatmul.mubr.f32.gmra.mrb[0].mxu0 %v2917
        %v3112 = vpop.f32.mrb[0].mxu0
        %v3113 = vadd.f32 0.0, %v3112
        %v3114 = vpop.f32.mrb[0].mxu0
        %3115 = vmatprep.mubr.f32.mxu0 0.0
        %3116 = vmatmul.mubr.f32.gmra.mrb[0].mxu0 %v2918
        %v3117 = vpop.f32.mrb[0].mxu0
        %v3118 = vadd.f32 0.0, %v3117
        %v3119 = vpop.f32.mrb[0].mxu0
        %3120 = vmatprep.mubr.f32.mxu0 0.0
        %3121 = vmatmul.mubr.f32.gmra.mrb[0].mxu0 %v2919
        %v3122 = vpop.f32.mrb[0].mxu0
        %v3123 = vadd.f32 0.0, %v3122
        %v3124 = vpop.f32.mrb[0].mxu0
        %3125 = vmatprep.mubr.f32.mxu0 0.0
        %3126 = vmatmul.mubr.f32.gmra.mrb[0].mxu0 %v2920
        %v3127 = vpop.f32.mrb[0].mxu0
        %v3128 = vadd.f32 0.0, %v3127
        %v3129 = vpop.f32.mrb[0].mxu0
        %3130 = vmatprep.mubr.f32.mxu0 0.0
        %3131 = vmatmul.mubr.f32.gmra.mrb[0].mxu0 %v2921
        %v3132 = vpop.f32.mrb[0].mxu0
        %v3133 = vadd.f32 0.0, %v3132
        %v3134 = vpop.f32.mrb[0].mxu0
        %3135 = vmatprep.mubr.f32.mxu0 0.0
        %3136 = vmatmul.mubr.f32.gmra.mrb[0].mxu0 %v2922
        %v3137 = vpop.f32.mrb[0].mxu0
        %v3138 = vadd.f32 0.0, %v3137
        %v3139 = vpop.f32.mrb[0].mxu0
        %3140 = vmatprep.mubr.f32.mxu0 0.0
        %3141 = vmatmul.mubr.f32.gmra.mrb[0].mxu0 %v2923
        %v3142 = vpop.f32.mrb[0].mxu0
        %v3143 = vadd.f32 0.0, %v3142
        %v3144 = vpop.f32.mrb[0].mxu0
        %3145 = vmatprep.mubr.f32.mxu0 0.0
        %3146 = vmatmul.mubr.f32.gmra.mrb[0].mxu0 %v2924
        %v3147 = vpop.f32.mrb[0].mxu0
        %v3148 = vadd.f32 0.0, %v3147
        %v3149 = vpop.f32.mrb[0].mxu0
        %3150 = vmatprep.mubr.f32.mxu0 0.0
        %3151 = vmatmul.mubr.f32.gmra.mrb[0].mxu0 %v2925
        %v3152 = vpop.f32.mrb[0].mxu0
        %v3153 = vadd.f32 0.0, %v3152
        %v3154 = vpop.f32.mrb[0].mxu0
        %3155 = vmatprep.mubr.f32.mxu0 0.0
        %3156 = vmatmul.mubr.f32.gmra.mrb[0].mxu0 %v2926
        %v3157 = vpop.f32.mrb[0].mxu0
        %v3158 = vadd.f32 0.0, %v3157
        %v3159 = vpop.f32.mrb[0].mxu0
        %3160 = vmatprep.mubr.f32.mxu0 0.0
        %3161 = vmatmul.mubr.f32.gmra.mrb[0].mxu0 %v2927
        %v3162 = vpop.f32.mrb[0].mxu0
        %v3163 = vadd.f32 0.0, %v3162
        %v3164 = vpop.f32.mrb[0].mxu0
        %3165 = vmatprep.mubr.f32.mxu0 0.0
        %3166 = vmatmul.mubr.f32.gmra.mrb[0].mxu0 %v2928
        %v3167 = vpop.f32.mrb[0].mxu0
        %v3168 = vadd.f32 0.0, %v3167
        %v3169 = vpop.f32.mrb[0].mxu0
        %3170 = vmatprep.mubr.f32.mxu0 0.0
        %3171 = vmatmul.mubr.f32.gmra.mrb[0].mxu0 %v2929
        %v3172 = vpop.f32.mrb[0].mxu0
        %v3173 = vadd.f32 0.0, %v3172
        %v3174 = vpop.f32.mrb[0].mxu0
        %3175 = vmatprep.mubr.f32.mxu0 0.0
        %3176 = vmatmul.mubr.f32.gmra.mrb[0].mxu0 %v2930
        %v3177 = vpop.f32.mrb[0].mxu0
        %v3178 = vadd.f32 0.0, %v3177
        %v3179 = vpop.f32.mrb[0].mxu0
        %3180 = vmatprep.mubr.f32.mxu0 0.0
        %3181 = vmatmul.mubr.f32.gmra.mrb[0].mxu0 %v2931
        %v3182 = vpop.f32.mrb[0].mxu0
        %v3183 = vadd.f32 0.0, %v3182
        %v3184 = vpop.f32.mrb[0].mxu0
        %3185 = vmatprep.mubr.f32.mxu0 0.0
        %3186 = vmatmul.mubr.f32.gmra.mrb[0].mxu0 %v2932
        %v3187 = vpop.f32.mrb[0].mxu0
        %v3188 = vadd.f32 0.0, %v3187
        %v3189 = vpop.f32.mrb[0].mxu0
        %3190 = vmatprep.mubr.f32.mxu0 0.0
        %3191 = vmatmul.mubr.f32.gmra.mrb[0].mxu0 %v2933
        %v3192 = vpop.f32.mrb[0].mxu0
        %v3193 = vadd.f32 0.0, %v3192
        %v3194 = vpop.f32.mrb[0].mxu0
        %3195 = vdwg.mxu0
        %v3196 = vadd.f32 %v2862, %v3018
        %v3197 = vadd.f32 %v2863, %v3023
        %v3198 = vadd.f32 %v2864, %v3028
        %v3199 = vadd.f32 %v2865, %v3033
        %v3200 = vadd.f32 %v2866, %v3038
        %v3201 = vadd.f32 %v2867, %v3043
        %v3202 = vadd.f32 %v2868, %v3048
        %v3203 = vadd.f32 %v2869, %v3053
        %v3204 = vadd.f32 %v2870, %v3058
        %v3205 = vadd.f32 %v2871, %v3063
        %v3206 = vadd.f32 %v2872, %v3068
        %v3207 = vadd.f32 %v2873, %v3073
        %v3208 = vadd.f32 %v2874, %v3078
        %v3209 = vadd.f32 %v2875, %v3083
        %v3210 = vadd.f32 %v2876, %v3088
        %v3211 = vadd.f32 %v2877, %v3093
        %v3212 = vadd.f32 %v2878, %v3098
        %v3213 = vadd.f32 %v2879, %v3103
        %v3214 = vadd.f32 %v2880, %v3108
        %v3215 = vadd.f32 %v2881, %v3113
        %v3216 = vadd.f32 %v2882, %v3118
        %v3217 = vadd.f32 %v2883, %v3123
        %v3218 = vadd.f32 %v2884, %v3128
        %v3219 = vadd.f32 %v2885, %v3133
        %v3220 = vadd.f32 %v2886, %v3138
        %v3221 = vadd.f32 %v2887, %v3143
        %v3222 = vadd.f32 %v2888, %v3148
        %v3223 = vadd.f32 %v2889, %v3153
        %v3224 = vadd.f32 %v2890, %v3158
        %v3225 = vadd.f32 %v2891, %v3163
        %v3226 = vadd.f32 %v2892, %v3168
        %v3227 = vadd.f32 %v2893, %v3173
        %v3228 = vadd.f32 %v2894, %v3178
        %v3229 = vadd.f32 %v2895, %v3183
        %v3230 = vadd.f32 %v2896, %v3188
        %v3231 = vadd.f32 %v2897, %v3193
        %v3232 = vld [vmem:[#allocation2 + $0x2b] sm:$0xff]
        %v3233 = vld [vmem:[#allocation2 + $0x33] sm:$0xff]
        %v3234 = vld [vmem:[#allocation2 + $0x3b] sm:$0xff]
        %v3235 = vld [vmem:[#allocation2 + $0x43] sm:$0xff]
        %v3236 = vld [vmem:[#allocation2 + $0x4b] sm:$0xff]
        %v3237 = vld [vmem:[#allocation2 + $0x53] sm:$0xff]
        %v3238 = vld [vmem:[#allocation2 + $0x5b] sm:$0xff]
        %v3239 = vld [vmem:[#allocation2 + $0x63] sm:$0xff]
        %v3240 = vld [vmem:[#allocation2 + $0x6b] sm:$0xff]
        %v3241 = vld [vmem:[#allocation2 + $0x73] sm:$0xff]
        %v3242 = vld [vmem:[#allocation2 + $0x7b] sm:$0xff]
        %v3243 = vld [vmem:[#allocation2 + $0x83] sm:$0xff]
        %v3244 = vld [vmem:[#allocation2 + $0x8b] sm:$0xff]
        %v3245 = vld [vmem:[#allocation2 + $0x93] sm:$0xff]
        %v3246 = vld [vmem:[#allocation2 + $0x9b] sm:$0xff]
        %v3247 = vld [vmem:[#allocation2 + $0xa3] sm:$0xff]
        %v3248 = vld [vmem:[#allocation2 + $0xab] sm:$0xff]
        %v3249 = vld [vmem:[#allocation2 + $0xb3] sm:$0xff]
        %v3250 = vld [vmem:[#allocation2 + $0xbb] sm:$0xff]
        %v3251 = vld [vmem:[#allocation2 + $0xc3] sm:$0xff]
        %v3252 = vld [vmem:[#allocation2 + $0xcb] sm:$0xff]
        %v3253 = vld [vmem:[#allocation2 + $0xd3] sm:$0xff]
        %v3254 = vld [vmem:[#allocation2 + $0xdb] sm:$0xff]
        %v3255 = vld [vmem:[#allocation2 + $0xe3] sm:$0xff]
        %v3256 = vld [vmem:[#allocation2 + $0xeb] sm:$0xff]
        %v3257 = vld [vmem:[#allocation2 + $0xf3] sm:$0xff]
        %v3258 = vld [vmem:[#allocation2 + $0xfb] sm:$0xff]
        %v3259 = vld [vmem:[#allocation2 + $0x103] sm:$0xff]
        %v3260 = vld [vmem:[#allocation2 + $0x10b] sm:$0xff]
        %v3261 = vld [vmem:[#allocation2 + $0x113] sm:$0xff]
        %v3262 = vld [vmem:[#allocation2 + $0x11b] sm:$0xff]
        %v3263 = vld [vmem:[#allocation2 + $0x123] sm:$0xff]
        %v3264 = vld [vmem:[#allocation2 + $0x12b] sm:$0xff]
        %v3265 = vld [vmem:[#allocation2 + $0x133] sm:$0xff]
        %v3266 = vld [vmem:[#allocation2 + $0x13b] sm:$0xff]
        %v3267 = vld [vmem:[#allocation2 + $0x143] sm:$0xff]
        %s3268 = scalar_lea.vmem [#allocation8], 1024
        %v3269 = vld [vmem:[%s3268] sm:$0xff]
        %v3270 = vld [vmem:[%s3268 + $0x8] sm:$0xff]
        %v3271 = vld [vmem:[%s3268 + $0x10] sm:$0xff]
        %v3272 = vld [vmem:[%s3268 + $0x18] sm:$0xff]
        %v3273 = vld [vmem:[%s3268 + $0x20] sm:$0xff]
        %v3274 = vld [vmem:[%s3268 + $0x28] sm:$0xff]
        %v3275 = vld [vmem:[%s3268 + $0x30] sm:$0xff]
        %v3276 = vld [vmem:[%s3268 + $0x38] sm:$0xff]
        %v3277 = vld [vmem:[%s3268 + $0x40] sm:$0xff]
        %v3278 = vld [vmem:[%s3268 + $0x48] sm:$0xff]
        %v3279 = vld [vmem:[%s3268 + $0x50] sm:$0xff]
        %v3280 = vld [vmem:[%s3268 + $0x58] sm:$0xff]
        %v3281 = vld [vmem:[%s3268 + $0x60] sm:$0xff]
        %v3282 = vld [vmem:[%s3268 + $0x68] sm:$0xff]
        %v3283 = vld [vmem:[%s3268 + $0x70] sm:$0xff]
        %v3284 = vld [vmem:[%s3268 + $0x78] sm:$0xff]
        %3285 = vmatprep.subr.mxu0 0.0
        %3286 = vmatpush1.msra.mxu0 %v3269
        %3287 = vmatprep.subr.mxu0 0.0
        %3288 = vmatpush1.msra.mxu0 %v3270
        %3289 = vmatprep.subr.mxu0 0.0
        %3290 = vmatpush1.msra.mxu0 %v3271
        %3291 = vmatprep.subr.mxu0 0.0
        %3292 = vmatpush1.msra.mxu0 %v3272
        %3293 = vmatprep.subr.mxu0 0.0
        %3294 = vmatpush1.msra.mxu0 %v3273
        %3295 = vmatprep.subr.mxu0 0.0
        %3296 = vmatpush1.msra.mxu0 %v3274
        %3297 = vmatprep.subr.mxu0 0.0
        %3298 = vmatpush1.msra.mxu0 %v3275
        %3299 = vmatprep.subr.mxu0 0.0
        %3300 = vmatpush1.msra.mxu0 %v3276
        %3301 = vmatprep.subr.mxu0 0.0
        %3302 = vmatpush1.msra.mxu0 %v3277
        %3303 = vmatprep.subr.mxu0 0.0
        %3304 = vmatpush1.msra.mxu0 %v3278
        %3305 = vmatprep.subr.mxu0 0.0
        %3306 = vmatpush1.msra.mxu0 %v3279
        %3307 = vmatprep.subr.mxu0 0.0
        %3308 = vmatpush1.msra.mxu0 %v3280
        %3309 = vmatprep.subr.mxu0 0.0
        %3310 = vmatpush1.msra.mxu0 %v3281
        %3311 = vmatprep.subr.mxu0 0.0
        %3312 = vmatpush1.msra.mxu0 %v3282
        %3313 = vmatprep.subr.mxu0 0.0
        %3314 = vmatpush1.msra.mxu0 %v3283
        %3315 = vmatprep.subr.mxu0 0.0
        %3316 = vmatpush1.msra.mxu0 %v3284
        %3317 = vmatprep.subr.mxu0 0.0
        %3318 = vmatpush1.msra.mxu0 0.0
        %3319 = vmatprep.subr.mxu0 0.0
        %3320 = vmatpush1.msra.mxu0 0.0
        %3321 = vmatprep.subr.mxu0 0.0
        %3322 = vmatpush1.msra.mxu0 0.0
        %3323 = vmatprep.subr.mxu0 0.0
        %3324 = vmatpush1.msra.mxu0 0.0
        %3325 = vmatprep.subr.mxu0 0.0
        %3326 = vmatpush1.msra.mxu0 0.0
        %3327 = vmatprep.subr.mxu0 0.0
        %3328 = vmatpush1.msra.mxu0 0.0
        %3329 = vmatprep.subr.mxu0 0.0
        %3330 = vmatpush1.msra.mxu0 0.0
        %3331 = vmatprep.subr.mxu0 0.0
        %3332 = vmatpush1.msra.mxu0 0.0
        %3333 = vmatprep.subr.mxu0 0.0
        %3334 = vmatpush1.msra.mxu0 0.0
        %3335 = vmatprep.subr.mxu0 0.0
        %3336 = vmatpush1.msra.mxu0 0.0
        %3337 = vmatprep.subr.mxu0 0.0
        %3338 = vmatpush1.msra.mxu0 0.0
        %3339 = vmatprep.subr.mxu0 0.0
        %3340 = vmatpush1.msra.mxu0 0.0
        %3341 = vmatprep.subr.mxu0 0.0
        %3342 = vmatpush1.msra.mxu0 0.0
        %3343 = vmatprep.subr.mxu0 0.0
        %3344 = vmatpush1.msra.mxu0 0.0
        %3345 = vmatprep.subr.mxu0 0.0
        %3346 = vmatpush1.msra.mxu0 0.0
        %3347 = vmatprep.subr.mxu0 0.0
        %3348 = vmatpush1.msra.mxu0 0.0
        %3349 = vmatprep.mubr.f32.mxu0 0.0
        %3350 = vmatmul.mubr.f32.gmra.mrb[0].mxu0 %v3232
        %v3351 = vpop.f32.mrb[0].mxu0
        %v3352 = vadd.f32 0.0, %v3351
        %v3353 = vpop.f32.mrb[0].mxu0
        %3354 = vmatprep.mubr.f32.mxu0 0.0
        %3355 = vmatmul.mubr.f32.gmra.mrb[0].mxu0 %v3233
        %v3356 = vpop.f32.mrb[0].mxu0
        %v3357 = vadd.f32 0.0, %v3356
        %v3358 = vpop.f32.mrb[0].mxu0
        %3359 = vmatprep.mubr.f32.mxu0 0.0
        %3360 = vmatmul.mubr.f32.gmra.mrb[0].mxu0 %v3234
        %v3361 = vpop.f32.mrb[0].mxu0
        %v3362 = vadd.f32 0.0, %v3361
        %v3363 = vpop.f32.mrb[0].mxu0
        %3364 = vmatprep.mubr.f32.mxu0 0.0
        %3365 = vmatmul.mubr.f32.gmra.mrb[0].mxu0 %v3235
        %v3366 = vpop.f32.mrb[0].mxu0
        %v3367 = vadd.f32 0.0, %v3366
        %v3368 = vpop.f32.mrb[0].mxu0
        %3369 = vmatprep.mubr.f32.mxu0 0.0
        %3370 = vmatmul.mubr.f32.gmra.mrb[0].mxu0 %v3236
        %v3371 = vpop.f32.mrb[0].mxu0
        %v3372 = vadd.f32 0.0, %v3371
        %v3373 = vpop.f32.mrb[0].mxu0
        %3374 = vmatprep.mubr.f32.mxu0 0.0
        %3375 = vmatmul.mubr.f32.gmra.mrb[0].mxu0 %v3237
        %v3376 = vpop.f32.mrb[0].mxu0
        %v3377 = vadd.f32 0.0, %v3376
        %v3378 = vpop.f32.mrb[0].mxu0
        %3379 = vmatprep.mubr.f32.mxu0 0.0
        %3380 = vmatmul.mubr.f32.gmra.mrb[0].mxu0 %v3238
        %v3381 = vpop.f32.mrb[0].mxu0
        %v3382 = vadd.f32 0.0, %v3381
        %v3383 = vpop.f32.mrb[0].mxu0
        %3384 = vmatprep.mubr.f32.mxu0 0.0
        %3385 = vmatmul.mubr.f32.gmra.mrb[0].mxu0 %v3239
        %v3386 = vpop.f32.mrb[0].mxu0
        %v3387 = vadd.f32 0.0, %v3386
        %v3388 = vpop.f32.mrb[0].mxu0
        %3389 = vmatprep.mubr.f32.mxu0 0.0
        %3390 = vmatmul.mubr.f32.gmra.mrb[0].mxu0 %v3240
        %v3391 = vpop.f32.mrb[0].mxu0
        %v3392 = vadd.f32 0.0, %v3391
        %v3393 = vpop.f32.mrb[0].mxu0
        %3394 = vmatprep.mubr.f32.mxu0 0.0
        %3395 = vmatmul.mubr.f32.gmra.mrb[0].mxu0 %v3241
        %v3396 = vpop.f32.mrb[0].mxu0
        %v3397 = vadd.f32 0.0, %v3396
        %v3398 = vpop.f32.mrb[0].mxu0
        %3399 = vmatprep.mubr.f32.mxu0 0.0
        %3400 = vmatmul.mubr.f32.gmra.mrb[0].mxu0 %v3242
        %v3401 = vpop.f32.mrb[0].mxu0
        %v3402 = vadd.f32 0.0, %v3401
        %v3403 = vpop.f32.mrb[0].mxu0
        %3404 = vmatprep.mubr.f32.mxu0 0.0
        %3405 = vmatmul.mubr.f32.gmra.mrb[0].mxu0 %v3243
        %v3406 = vpop.f32.mrb[0].mxu0
        %v3407 = vadd.f32 0.0, %v3406
        %v3408 = vpop.f32.mrb[0].mxu0
        %3409 = vmatprep.mubr.f32.mxu0 0.0
        %3410 = vmatmul.mubr.f32.gmra.mrb[0].mxu0 %v3244
        %v3411 = vpop.f32.mrb[0].mxu0
        %v3412 = vadd.f32 0.0, %v3411
        %v3413 = vpop.f32.mrb[0].mxu0
        %3414 = vmatprep.mubr.f32.mxu0 0.0
        %3415 = vmatmul.mubr.f32.gmra.mrb[0].mxu0 %v3245
        %v3416 = vpop.f32.mrb[0].mxu0
        %v3417 = vadd.f32 0.0, %v3416
        %v3418 = vpop.f32.mrb[0].mxu0
        %3419 = vmatprep.mubr.f32.mxu0 0.0
        %3420 = vmatmul.mubr.f32.gmra.mrb[0].mxu0 %v3246
        %v3421 = vpop.f32.mrb[0].mxu0
        %v3422 = vadd.f32 0.0, %v3421
        %v3423 = vpop.f32.mrb[0].mxu0
        %3424 = vmatprep.mubr.f32.mxu0 0.0
        %3425 = vmatmul.mubr.f32.gmra.mrb[0].mxu0 %v3247
        %v3426 = vpop.f32.mrb[0].mxu0
        %v3427 = vadd.f32 0.0, %v3426
        %v3428 = vpop.f32.mrb[0].mxu0
        %3429 = vmatprep.mubr.f32.mxu0 0.0
        %3430 = vmatmul.mubr.f32.gmra.mrb[0].mxu0 %v3248
        %v3431 = vpop.f32.mrb[0].mxu0
        %v3432 = vadd.f32 0.0, %v3431
        %v3433 = vpop.f32.mrb[0].mxu0
        %3434 = vmatprep.mubr.f32.mxu0 0.0
        %3435 = vmatmul.mubr.f32.gmra.mrb[0].mxu0 %v3249
        %v3436 = vpop.f32.mrb[0].mxu0
        %v3437 = vadd.f32 0.0, %v3436
        %v3438 = vpop.f32.mrb[0].mxu0
        %3439 = vmatprep.mubr.f32.mxu0 0.0
        %3440 = vmatmul.mubr.f32.gmra.mrb[0].mxu0 %v3250
        %v3441 = vpop.f32.mrb[0].mxu0
        %v3442 = vadd.f32 0.0, %v3441
        %v3443 = vpop.f32.mrb[0].mxu0
        %3444 = vmatprep.mubr.f32.mxu0 0.0
        %3445 = vmatmul.mubr.f32.gmra.mrb[0].mxu0 %v3251
        %v3446 = vpop.f32.mrb[0].mxu0
        %v3447 = vadd.f32 0.0, %v3446
        %v3448 = vpop.f32.mrb[0].mxu0
        %3449 = vmatprep.mubr.f32.mxu0 0.0
        %3450 = vmatmul.mubr.f32.gmra.mrb[0].mxu0 %v3252
        %v3451 = vpop.f32.mrb[0].mxu0
        %v3452 = vadd.f32 0.0, %v3451
        %v3453 = vpop.f32.mrb[0].mxu0
        %3454 = vmatprep.mubr.f32.mxu0 0.0
        %3455 = vmatmul.mubr.f32.gmra.mrb[0].mxu0 %v3253
        %v3456 = vpop.f32.mrb[0].mxu0
        %v3457 = vadd.f32 0.0, %v3456
        %v3458 = vpop.f32.mrb[0].mxu0
        %3459 = vmatprep.mubr.f32.mxu0 0.0
        %3460 = vmatmul.mubr.f32.gmra.mrb[0].mxu0 %v3254
        %v3461 = vpop.f32.mrb[0].mxu0
        %v3462 = vadd.f32 0.0, %v3461
        %v3463 = vpop.f32.mrb[0].mxu0
        %3464 = vmatprep.mubr.f32.mxu0 0.0
        %3465 = vmatmul.mubr.f32.gmra.mrb[0].mxu0 %v3255
        %v3466 = vpop.f32.mrb[0].mxu0
        %v3467 = vadd.f32 0.0, %v3466
        %v3468 = vpop.f32.mrb[0].mxu0
        %3469 = vmatprep.mubr.f32.mxu0 0.0
        %3470 = vmatmul.mubr.f32.gmra.mrb[0].mxu0 %v3256
        %v3471 = vpop.f32.mrb[0].mxu0
        %v3472 = vadd.f32 0.0, %v3471
        %v3473 = vpop.f32.mrb[0].mxu0
        %3474 = vmatprep.mubr.f32.mxu0 0.0
        %3475 = vmatmul.mubr.f32.gmra.mrb[0].mxu0 %v3257
        %v3476 = vpop.f32.mrb[0].mxu0
        %v3477 = vadd.f32 0.0, %v3476
        %v3478 = vpop.f32.mrb[0].mxu0
        %3479 = vmatprep.mubr.f32.mxu0 0.0
        %3480 = vmatmul.mubr.f32.gmra.mrb[0].mxu0 %v3258
        %v3481 = vpop.f32.mrb[0].mxu0
        %v3482 = vadd.f32 0.0, %v3481
        %v3483 = vpop.f32.mrb[0].mxu0
        %3484 = vmatprep.mubr.f32.mxu0 0.0
        %3485 = vmatmul.mubr.f32.gmra.mrb[0].mxu0 %v3259
        %v3486 = vpop.f32.mrb[0].mxu0
        %v3487 = vadd.f32 0.0, %v3486
        %v3488 = vpop.f32.mrb[0].mxu0
        %3489 = vmatprep.mubr.f32.mxu0 0.0
        %3490 = vmatmul.mubr.f32.gmra.mrb[0].mxu0 %v3260
        %v3491 = vpop.f32.mrb[0].mxu0
        %v3492 = vadd.f32 0.0, %v3491
        %v3493 = vpop.f32.mrb[0].mxu0
        %3494 = vmatprep.mubr.f32.mxu0 0.0
        %3495 = vmatmul.mubr.f32.gmra.mrb[0].mxu0 %v3261
        %v3496 = vpop.f32.mrb[0].mxu0
        %v3497 = vadd.f32 0.0, %v3496
        %v3498 = vpop.f32.mrb[0].mxu0
        %3499 = vmatprep.mubr.f32.mxu0 0.0
        %3500 = vmatmul.mubr.f32.gmra.mrb[0].mxu0 %v3262
        %v3501 = vpop.f32.mrb[0].mxu0
        %v3502 = vadd.f32 0.0, %v3501
        %v3503 = vpop.f32.mrb[0].mxu0
        %3504 = vmatprep.mubr.f32.mxu0 0.0
        %3505 = vmatmul.mubr.f32.gmra.mrb[0].mxu0 %v3263
        %v3506 = vpop.f32.mrb[0].mxu0
        %v3507 = vadd.f32 0.0, %v3506
        %v3508 = vpop.f32.mrb[0].mxu0
        %3509 = vmatprep.mubr.f32.mxu0 0.0
        %3510 = vmatmul.mubr.f32.gmra.mrb[0].mxu0 %v3264
        %v3511 = vpop.f32.mrb[0].mxu0
        %v3512 = vadd.f32 0.0, %v3511
        %v3513 = vpop.f32.mrb[0].mxu0
        %3514 = vmatprep.mubr.f32.mxu0 0.0
        %3515 = vmatmul.mubr.f32.gmra.mrb[0].mxu0 %v3265
        %v3516 = vpop.f32.mrb[0].mxu0
        %v3517 = vadd.f32 0.0, %v3516
        %v3518 = vpop.f32.mrb[0].mxu0
        %3519 = vmatprep.mubr.f32.mxu0 0.0
        %3520 = vmatmul.mubr.f32.gmra.mrb[0].mxu0 %v3266
        %v3521 = vpop.f32.mrb[0].mxu0
        %v3522 = vadd.f32 0.0, %v3521
        %v3523 = vpop.f32.mrb[0].mxu0
        %3524 = vmatprep.mubr.f32.mxu0 0.0
        %3525 = vmatmul.mubr.f32.gmra.mrb[0].mxu0 %v3267
        %v3526 = vpop.f32.mrb[0].mxu0
        %v3527 = vadd.f32 0.0, %v3526
        %v3528 = vpop.f32.mrb[0].mxu0
        %3529 = vdwg.mxu0
        %v3530 = vadd.f32 %v3196, %v3352
        %v3531 = vadd.f32 %v3197, %v3357
        %v3532 = vadd.f32 %v3198, %v3362
        %v3533 = vadd.f32 %v3199, %v3367
        %v3534 = vadd.f32 %v3200, %v3372
        %v3535 = vadd.f32 %v3201, %v3377
        %v3536 = vadd.f32 %v3202, %v3382
        %v3537 = vadd.f32 %v3203, %v3387
        %v3538 = vadd.f32 %v3204, %v3392
        %v3539 = vadd.f32 %v3205, %v3397
        %v3540 = vadd.f32 %v3206, %v3402
        %v3541 = vadd.f32 %v3207, %v3407
        %v3542 = vadd.f32 %v3208, %v3412
        %v3543 = vadd.f32 %v3209, %v3417
        %v3544 = vadd.f32 %v3210, %v3422
        %v3545 = vadd.f32 %v3211, %v3427
        %v3546 = vadd.f32 %v3212, %v3432
        %v3547 = vadd.f32 %v3213, %v3437
        %v3548 = vadd.f32 %v3214, %v3442
        %v3549 = vadd.f32 %v3215, %v3447
        %v3550 = vadd.f32 %v3216, %v3452
        %v3551 = vadd.f32 %v3217, %v3457
        %v3552 = vadd.f32 %v3218, %v3462
        %v3553 = vadd.f32 %v3219, %v3467
        %v3554 = vadd.f32 %v3220, %v3472
        %v3555 = vadd.f32 %v3221, %v3477
        %v3556 = vadd.f32 %v3222, %v3482
        %v3557 = vadd.f32 %v3223, %v3487
        %v3558 = vadd.f32 %v3224, %v3492
        %v3559 = vadd.f32 %v3225, %v3497
        %v3560 = vadd.f32 %v3226, %v3502
        %v3561 = vadd.f32 %v3227, %v3507
        %v3562 = vadd.f32 %v3228, %v3512
        %v3563 = vadd.f32 %v3229, %v3517
        %v3564 = vadd.f32 %v3230, %v3522
        %v3565 = vadd.f32 %v3231, %v3527
        %v3566 = vld [vmem:[#allocation9] sm:$0x1]
        %v3568 = vlaneseq
        %v3569 = vshrl.u32 %v3568, 7
        %v3570 = vsub.s32 0, %v3569
        %v3571 = vrot.slane %v3566, %v3570
        %v3573 = vadd.f32 %v3530, %v3571
        %v3574 = vadd.f32 %v3531, %v3571
        %v3575 = vadd.f32 %v3532, %v3571
        %v3576 = vadd.f32 %v3533, %v3571
        %v3577 = vadd.f32 %v3534, %v3571
        %v3578 = vadd.f32 %v3535, %v3571
        %v3579 = vadd.f32 %v3536, %v3571
        %v3580 = vadd.f32 %v3537, %v3571
        %v3581 = vadd.f32 %v3538, %v3571
        %v3582 = vadd.f32 %v3539, %v3571
        %v3583 = vadd.f32 %v3540, %v3571
        %v3584 = vadd.f32 %v3541, %v3571
        %v3585 = vadd.f32 %v3542, %v3571
        %v3586 = vadd.f32 %v3543, %v3571
        %v3587 = vadd.f32 %v3544, %v3571
        %v3588 = vadd.f32 %v3545, %v3571
        %v3589 = vadd.f32 %v3546, %v3571
        %v3590 = vadd.f32 %v3547, %v3571
        %v3591 = vadd.f32 %v3548, %v3571
        %v3592 = vadd.f32 %v3549, %v3571
        %v3593 = vadd.f32 %v3550, %v3571
        %v3594 = vadd.f32 %v3551, %v3571
        %v3595 = vadd.f32 %v3552, %v3571
        %v3596 = vadd.f32 %v3553, %v3571
        %v3597 = vadd.f32 %v3554, %v3571
        %v3598 = vadd.f32 %v3555, %v3571
        %v3599 = vadd.f32 %v3556, %v3571
        %v3600 = vadd.f32 %v3557, %v3571
        %v3601 = vadd.f32 %v3558, %v3571
        %v3602 = vadd.f32 %v3559, %v3571
        %v3603 = vadd.f32 %v3560, %v3571
        %v3604 = vadd.f32 %v3561, %v3571
        %v3605 = vadd.f32 %v3562, %v3571
        %v3606 = vadd.f32 %v3563, %v3571
        %v3607 = vadd.f32 %v3564, %v3571
        %v3608 = vadd.f32 %v3565, %v3571
        %v3609 = vmax.f32 %v3573, 0.0
        %v3610 = vmax.f32 %v3574, 0.0
        %v3611 = vmax.f32 %v3575, 0.0
        %v3612 = vmax.f32 %v3576, 0.0
        %v3613 = vmax.f32 %v3577, 0.0
        %v3614 = vmax.f32 %v3578, 0.0
        %v3615 = vmax.f32 %v3579, 0.0
        %v3616 = vmax.f32 %v3580, 0.0
        %v3617 = vmax.f32 %v3581, 0.0
        %v3618 = vmax.f32 %v3582, 0.0
        %v3619 = vmax.f32 %v3583, 0.0
        %v3620 = vmax.f32 %v3584, 0.0
        %v3621 = vmax.f32 %v3585, 0.0
        %v3622 = vmax.f32 %v3586, 0.0
        %v3623 = vmax.f32 %v3587, 0.0
        %v3624 = vmax.f32 %v3588, 0.0
        %v3625 = vmax.f32 %v3589, 0.0
        %v3626 = vmax.f32 %v3590, 0.0
        %v3627 = vmax.f32 %v3591, 0.0
        %v3628 = vmax.f32 %v3592, 0.0
        %v3629 = vmax.f32 %v3593, 0.0
        %v3630 = vmax.f32 %v3594, 0.0
        %v3631 = vmax.f32 %v3595, 0.0
        %v3632 = vmax.f32 %v3596, 0.0
        %v3633 = vmax.f32 %v3597, 0.0
        %v3634 = vmax.f32 %v3598, 0.0
        %v3635 = vmax.f32 %v3599, 0.0
        %v3636 = vmax.f32 %v3600, 0.0
        %v3637 = vmax.f32 %v3601, 0.0
        %v3638 = vmax.f32 %v3602, 0.0
        %v3639 = vmax.f32 %v3603, 0.0
        %v3640 = vmax.f32 %v3604, 0.0
        %v3641 = vmax.f32 %v3605, 0.0
        %v3642 = vmax.f32 %v3606, 0.0
        %v3643 = vmax.f32 %v3607, 0.0
        %v3644 = vmax.f32 %v3608, 0.0
        %3645 = vst [vmem:[%s257] sm:$0xff] %v3609
        %3646 = vst [vmem:[%s257 + $0x8] sm:$0xff] %v3610
        %3647 = vst [vmem:[%s257 + $0x10] sm:$0xff] %v3611
        %3648 = vst [vmem:[%s257 + $0x18] sm:$0xff] %v3612
        %3649 = vst [vmem:[%s257 + $0x20] sm:$0xff] %v3613
        %3650 = vst [vmem:[%s257 + $0x28] sm:$0xff] %v3614
        %3651 = vst [vmem:[%s257 + $0x30] sm:$0xff] %v3615
        %3652 = vst [vmem:[%s257 + $0x38] sm:$0xff] %v3616
        %3653 = vst [vmem:[%s257 + $0x40] sm:$0xff] %v3617
        %3654 = vst [vmem:[%s257 + $0x48] sm:$0xff] %v3618
        %3655 = vst [vmem:[%s257 + $0x50] sm:$0xff] %v3619
        %3656 = vst [vmem:[%s257 + $0x58] sm:$0xff] %v3620
        %3657 = vst [vmem:[%s257 + $0x60] sm:$0xff] %v3621
        %3658 = vst [vmem:[%s257 + $0x68] sm:$0xff] %v3622
        %3659 = vst [vmem:[%s257 + $0x70] sm:$0xff] %v3623
        %3660 = vst [vmem:[%s257 + $0x78] sm:$0xff] %v3624
        %3661 = vst [vmem:[%s257 + $0x80] sm:$0xff] %v3625
        %3662 = vst [vmem:[%s257 + $0x88] sm:$0xff] %v3626
        %3663 = vst [vmem:[%s257 + $0x90] sm:$0xff] %v3627
        %3664 = vst [vmem:[%s257 + $0x98] sm:$0xff] %v3628
        %3665 = vst [vmem:[%s257 + $0xa0] sm:$0xff] %v3629
        %3666 = vst [vmem:[%s257 + $0xa8] sm:$0xff] %v3630
        %3667 = vst [vmem:[%s257 + $0xb0] sm:$0xff] %v3631
        %3668 = vst [vmem:[%s257 + $0xb8] sm:$0xff] %v3632
        %3669 = vst [vmem:[%s257 + $0xc0] sm:$0xff] %v3633
        %3670 = vst [vmem:[%s257 + $0xc8] sm:$0xff] %v3634
        %3671 = vst [vmem:[%s257 + $0xd0] sm:$0xff] %v3635
        %3672 = vst [vmem:[%s257 + $0xd8] sm:$0xff] %v3636
        %3673 = vst [vmem:[%s257 + $0xe0] sm:$0xff] %v3637
        %3674 = vst [vmem:[%s257 + $0xe8] sm:$0xff] %v3638
        %3675 = vst [vmem:[%s257 + $0xf0] sm:$0xff] %v3639
        %3676 = vst [vmem:[%s257 + $0xf8] sm:$0xff] %v3640
        %3677 = vst [vmem:[%s257 + $0x100] sm:$0xff] %v3641
        %3678 = vst [vmem:[%s257 + $0x108] sm:$0xff] %v3642
        %3679 = vst [vmem:[%s257 + $0x110] sm:$0xff] %v3643
        %3680 = vst [vmem:[%s257 + $0x118] sm:$0xff] %v3644
        %s3681 = sand.u32 %s120, 1
        %s3682 = scalar_lea.sflag [#allocation5], %s3681
        %s3683 = sand.u32 %s120, 1
        %s3684 = smul.addr %s3683, 288
        %s3685 = scalar_lea.vmem [#allocation11], %s3684
        // Predicated region
        $region53: #{_prep_and_call.1} parent=35 // pred_check
          %p3686 = pneg %p130
        $region54: #{_prep_and_call.1} parent=35 // pred_check_branch
          %3688 = sbr.rel (%p3686) target = $region56
        $region55: #{_prep_and_call.1} parent=35 // pred_region
          %s3690 = ssub.s32 4608, 4608
          %3691 = vsyncadd %s3682, %s3690
          %s3692 = smul.addr %s23, 36
          %s3693 = smul.addr %s3692, 128
          %s3694 = scalar_lea.hbm %s4, %s3693
          %s3695 = sshll.u32 %s3685, 4
          %s3696 = int_to_ptr.vmem [resolvable:$true] %s3695
          %3701 = dma.vmem_to_hbm [thread:$0]  %s3696, 4608, %s3694, %s3682, 128, 128, 8
        $region56: #{_prep_and_call.1} parent=35 // pred_fallthru
          _
      $region36: #{_prep_and_call.1} parent=5 // pred_fallthru
        _
      %p3702 = scmp.le.s32.totalorder 2, %s18
      // Predicated region
      $region57: #{_prep_and_call.1} parent=5 // pred_check
        %p3703 = pneg %p3702
      $region58: #{_prep_and_call.1} parent=5 // pred_check_branch
        %3705 = sbr.rel (%p3703) target = $region60
      $region59: #{_prep_and_call.1} parent=5 // pred_region
        %s3706 = ssub.s32 %s18, 2
        // Predicated region
        $region61: #{_prep_and_call.1} parent=59 // pred_check
          %p3707 = pneg %p136
        $region62: #{_prep_and_call.1} parent=59 // pred_check_branch
          %3709 = sbr.rel (%p3707) target = $region64
        $region63: #{_prep_and_call.1} parent=59 // pred_region
          %s3710 = sand.u32 %s121, 1
          %s3711 = scalar_lea.sflag [#allocation5], %s3710
          %s3712 = sand.u32 %s121, 1
          %s3713 = smul.addr %s3712, 288
          %s3714 = scalar_lea.vmem [#allocation11], %s3713
          %3715 = dma.done %s3711, 4608
        $region64: #{_prep_and_call.1} parent=59 // pred_fallthru
          _
      $region60: #{_prep_and_call.1} parent=5 // pred_fallthru
        _
    $region6: #{_prep_and_call.1} parent=1 // loop_footer
      %s22 = sadd.s32 1, %s18
    $region7: #{_prep_and_call.1} parent=1 // loop_footer_branch
      %17 = sbr.rel target = $region3
    $region8: #{_prep_and_call.1} parent=1 // loop_exit
      _
    %3716 = vsyncpa [#allocation4], 1
    %s3717 = scalar_lea.sflag [#allocation4], 1
    %3718 = vsyncpa %s3717, 1
    %3719 = vsyncpa [#allocation7], 1
    %3720 = vsyncpa [#allocation10], 1
    %3721 = vsyncpa [#allocation5], 1
    %s3722 = scalar_lea.sflag [#allocation5], 1
    %3723 = vsyncpa %s3722, 1

// kernel: _prep_and_call.1
$region0: #{_prep_and_call.1}
  #allocation0 [shape = 'u32[]', space=smem, size = 0x4, offset = 0x4, fixed_abs, tag = 'smem constant byte address 0x4 - core index']
  #allocation1 [shape = 'u32[144,128]{1,0:T(1,128)}', space=vmem, size = 0x12000, scoped, tag = 'internal scratch']
  #allocation2 [shape = 'f32[336,128]{1,0:T(8,128)}', space=vmem, size = 0x2a000, scoped, tag = 'scratch operand']
  %s0 = inlined_call_operand.hbm [shape: f32[2,288,128], index: 0, kind: input, shape index: {}]
  %s1 = inlined_call_operand.hbm [shape: f32[128,128], index: 1, kind: input, shape index: {}]
  %s2 = inlined_call_operand.hbm [shape: f32[9,128,128], index: 2, kind: input, shape index: {}]
  %s3 = inlined_call_operand.hbm [shape: f32[1,128], index: 3, kind: input, shape index: {}]
  %s4 = inlined_call_operand.hbm [shape: f32[2,288,128], index: 4, kind: output, shape index: {}]
  %s5 = sld [smem:[#allocation0]]
  $region65: #{_prep_and_call.1} parent=0
    _
  %s7 = ssub.s32 1, %s5
  %s8 = scalar_select 0, %s7, %s5
  $region1: #{_prep_and_call.1} parent=0
    #allocation3 [shape = 'u8[294912]{0}', space=vmem, size = 0x48000, scoped, tag = 'input window, operand 0']
    #allocation4 [shape = 's32[2]{0}', space=sflag, size = 0x8, scoped, tag = 'scoped memory for _prep_and_call.1']
    #allocation5 [shape = 's32[2]{0}', space=sflag, size = 0x8, scoped, tag = 'scoped memory for _prep_and_call.1']
    #allocation6 [shape = 'u8[65536]{0}', space=vmem, size = 0x10000, scoped, tag = 'input window, operand 1, single buffered']
    #allocation7 [shape = 's32[1]{0}', space=sflag, size = 0x4, scoped, tag = 'scoped memory for _prep_and_call.1']
    #allocation8 [shape = 'u8[589824]{0}', space=vmem, size = 0x90000, scoped, tag = 'input window, operand 2, single buffered']
    #allocation9 [shape = 'u8[512]{0}', space=vmem, size = 0x400, scoped, tag = 'input window, operand 3, single buffered']
    #allocation10 [shape = 's32[1]{0}', space=sflag, size = 0x4, scoped, tag = 'scoped memory for _prep_and_call.1']
    #allocation11 [shape = 'u8[294912]{0}', space=vmem, size = 0x48000, scoped, tag = 'output window, operand 0']
    %9 = vsyncpa [#allocation4], 0
    %s10 = scalar_lea.sflag [#allocation4], 1
    %11 = vsyncpa %s10, 0
    %12 = vsyncpa [#allocation7], 0
    %13 = vsyncpa [#allocation10], 0
    %14 = vsyncpa [#allocation5], 0
    %s15 = scalar_lea.sflag [#allocation5], 1
    %16 = vsyncpa %s15, 0
    loop: start=0, step=1, limit=4
    $region2: #{_prep_and_call.1} parent=1 // loop_pre_header
      _
    $region3: #{_prep_and_call.1} parent=1 // loop_header
      %s18 = sphi 0, %s22
      %p19 = scmp.ge.s32.totalorder %s18, 4
      %s28 = sphi 0, %s30
      %s31 = sphi 0, %s28
      %s32 = sphi 0, %s31
      %s48 = sphi 0, %s32
      %s52 = sphi 0, %s52
      %s54 = sphi 0, %s52
      %s55 = sphi 0, %s54
      %s69 = sphi 0, %s55
      %s73 = sphi 0, %s73
      %s75 = sphi 0, %s73
      %s76 = sphi 0, %s75
      %s90 = sphi 0, %s76
      %s94 = sphi 0, %s94
      %s96 = sphi 0, %s94
      %s97 = sphi 0, %s96
      %s111 = sphi 0, %s97
      %s117 = sphi 0, %s119
      %s120 = sphi 0, %s117
      %s121 = sphi 0, %s120
      %s137 = sphi 0, %s121
    $region4: #{_prep_and_call.1} parent=1 // loop_header_branch
      %21 = sbr.rel (%p19) target = $region8
    $region5: #{_prep_and_call.1} parent=1 // loop_body
      %s23 = ssub.s32 %s18, 1
      %s24 = ssub.s32 %s18, 2
      %s25 = sadd.s32 %s18, 1
      %s26 = ssub.s32 %s18, %s25
      %p27 = scmp.eq.s32.totalorder %s26, 0
      %s29 = sadd.s32 %s28, 1
      %s30 = scalar_select %p27, %s28, %s29
      %p33 = pneg %p27
      %p34 = scmp.eq.s32.totalorder %s18, 1
      %p35 = por %p33, %p34
      %p36 = scmp.ne.s32.totalorder %s28, %s31
      %p37 = scmp.eq.s32.totalorder %s18, 0
      %p38 = por %p36, %p37
      %p39 = scmp.ne.s32.totalorder %s28, %s31
      %p40 = scmp.eq.s32.totalorder %s23, 1
      %p41 = por %p39, %p40
      %p42 = scmp.ne.s32.totalorder %s31, %s32
      %p43 = scmp.eq.s32.totalorder %s23, 0
      %p44 = por %p42, %p43
      %p45 = scmp.ne.s32.totalorder %s31, %s32
      %p46 = scmp.eq.s32.totalorder %s24, 1
      %p47 = por %p45, %p46
      %p49 = scmp.ne.s32.totalorder %s32, %s48
      %p50 = scmp.eq.s32.totalorder %s24, 0
      %p51 = por %p49, %p50
      %s53 = sadd.s32 %s52, 1
      %p56 = scmp.eq.s32.totalorder %s18, 1
      %p57 = scmp.ne.s32.totalorder %s52, %s54
      %p58 = scmp.eq.s32.totalorder %s18, 0
      %p59 = por %p57, %p58
      %p60 = scmp.ne.s32.totalorder %s52, %s54
      %p61 = scmp.eq.s32.totalorder %s23, 1
      %p62 = por %p60, %p61
      %p63 = scmp.ne.s32.totalorder %s54, %s55
      %p64 = scmp.eq.s32.totalorder %s23, 0
      %p65 = por %p63, %p64
      %p66 = scmp.ne.s32.totalorder %s54, %s55
      %p67 = scmp.eq.s32.totalorder %s24, 1
      %p68 = por %p66, %p67
      %p70 = scmp.ne.s32.totalorder %s55, %s69
      %p71 = scmp.eq.s32.totalorder %s24, 0
      %p72 = por %p70, %p71
      %s74 = sadd.s32 %s73, 1
      %p77 = scmp.eq.s32.totalorder %s18, 1
      %p78 = scmp.ne.s32.totalorder %s73, %s75
      %p79 = scmp.eq.s32.totalorder %s18, 0
      %p80 = por %p78, %p79
      %p81 = scmp.ne.s32.totalorder %s73, %s75
      %p82 = scmp.eq.s32.totalorder %s23, 1
      %p83 = por %p81, %p82
      %p84 = scmp.ne.s32.totalorder %s75, %s76
      %p85 = scmp.eq.s32.totalorder %s23, 0
      %p86 = por %p84, %p85
      %p87 = scmp.ne.s32.totalorder %s75, %s76
      %p88 = scmp.eq.s32.totalorder %s24, 1
      %p89 = por %p87, %p88
      %p91 = scmp.ne.s32.totalorder %s76, %s90
      %p92 = scmp.eq.s32.totalorder %s24, 0
      %p93 = por %p91, %p92
      %s95 = sadd.s32 %s94, 1
      %p98 = scmp.eq.s32.totalorder %s18, 1
      %p99 = scmp.ne.s32.totalorder %s94, %s96
      %p100 = scmp.eq.s32.totalorder %s18, 0
      %p101 = por %p99, %p100
      %p102 = scmp.ne.s32.totalorder %s94, %s96
      %p103 = scmp.eq.s32.totalorder %s23, 1
      %p104 = por %p102, %p103
      %p105 = scmp.ne.s32.totalorder %s96, %s97
      %p106 = scmp.eq.s32.totalorder %s23, 0
      %p107 = por %p105, %p106
      %p108 = scmp.ne.s32.totalorder %s96, %s97
      %p109 = scmp.eq.s32.totalorder %s24, 1
      %p110 = por %p108, %p109
      %p112 = scmp.ne.s32.totalorder %s97, %s111
      %p113 = scmp.eq.s32.totalorder %s24, 0
      %p114 = por %p112, %p113
      %s115 = ssub.s32 %s18, %s25
      %p116 = scmp.eq.s32.totalorder %s115, 0
      %s118 = sadd.s32 %s117, 1
      %s119 = scalar_select %p116, %s117, %s118
      %p122 = pneg %p116
      %p123 = scmp.eq.s32.totalorder %s18, 1
      %p124 = por %p122, %p123
      %p125 = scmp.ne.s32.totalorder %s117, %s120
      %p126 = scmp.eq.s32.totalorder %s18, 0
      %p127 = por %p125, %p126
      %p128 = scmp.ne.s32.totalorder %s117, %s120
      %p129 = scmp.eq.s32.totalorder %s23, 1
      %p130 = por %p128, %p129
      %p131 = scmp.ne.s32.totalorder %s120, %s121
      %p132 = scmp.eq.s32.totalorder %s23, 0
      %p133 = por %p131, %p132
      %p134 = scmp.ne.s32.totalorder %s120, %s121
      %p135 = scmp.eq.s32.totalorder %s24, 1
      %p136 = por %p134, %p135
      %p138 = scmp.ne.s32.totalorder %s121, %s137
      %p139 = scmp.eq.s32.totalorder %s24, 0
      %p140 = por %p138, %p139
      %p141 = scmp.le.s32.totalorder 1, %s18
      %p142 = scmp.lt.s32.totalorder %s18, 3
      %p143 = pnand %p141, %p142
      %p144 = pneg %p143
      // Predicated region
      $region9: #{_prep_and_call.1} parent=5 // pred_check
        _
      $region10: #{_prep_and_call.1} parent=5 // pred_check_branch
        %146 = sbr.rel (%p143) target = $region12
      $region11: #{_prep_and_call.1} parent=5 // pred_region
        %s147 = ssub.s32 %s18, 1
        // Predicated region
        $region13: #{_prep_and_call.1} parent=11 // pred_check
          %p148 = pneg %p65
        $region14: #{_prep_and_call.1} parent=11 // pred_check_branch
          %150 = sbr.rel (%p148) target = $region16
        $region15: #{_prep_and_call.1} parent=11 // pred_region
          %s152 = ssub.s32 2048, 2048
          %153 = vsyncadd [#allocation7], %s152
          %s154 = sshll.u32 [#allocation6], 4
          %s155 = int_to_ptr.vmem [resolvable:$true] %s154
          %160 = dma.hbm_to_vmem [thread:$0]  %s1, 2048, %s155, [#allocation7], 128, 128, 8
        $region16: #{_prep_and_call.1} parent=11 // pred_fallthru
          _
        // Predicated region
        $region17: #{_prep_and_call.1} parent=11 // pred_check
          %p161 = pneg %p86
        $region18: #{_prep_and_call.1} parent=11 // pred_check_branch
          %163 = sbr.rel (%p161) target = $region20
        $region19: #{_prep_and_call.1} parent=11 // pred_region
          %s165 = ssub.s32 18432, 18432
          %166 = vsyncadd [#allocation7], %s165
          %s167 = sshll.u32 [#allocation8], 4
          %s168 = int_to_ptr.vmem [resolvable:$true] %s167
          %173 = dma.hbm_to_vmem [thread:$0]  %s2, 18432, %s168, [#allocation7], 128, 128, 8
        $region20: #{_prep_and_call.1} parent=11 // pred_fallthru
          _
        // Predicated region
        $region21: #{_prep_and_call.1} parent=11 // pred_check
          %p174 = pneg %p107
        $region22: #{_prep_and_call.1} parent=11 // pred_check_branch
          %176 = sbr.rel (%p174) target = $region24
        $region23: #{_prep_and_call.1} parent=11 // pred_region
          %s178 = ssub.s32 16, 16
          %179 = vsyncadd [#allocation10], %s178
          %s181 = sshll.u32 [#allocation9], 4
          %s182 = int_to_ptr.vmem [resolvable:$true] %s181
          %184 = dma.hbm_to_vmem [thread:$0]  %s3, 16, %s182, [#allocation10]
        $region24: #{_prep_and_call.1} parent=11 // pred_fallthru
          _
      $region12: #{_prep_and_call.1} parent=5 // pred_fallthru
        _
      %p185 = scmp.lt.s32.totalorder %s18, 2
      // Predicated region
      $region25: #{_prep_and_call.1} parent=5 // pred_check
        %p186 = pneg %p185
      $region26: #{_prep_and_call.1} parent=5 // pred_check_branch
        %188 = sbr.rel (%p186) target = $region28
      $region27: #{_prep_and_call.1} parent=5 // pred_region
        // Predicated region
        $region29: #{_prep_and_call.1} parent=27 // pred_check
          %p189 = pneg %p38
        $region30: #{_prep_and_call.1} parent=27 // pred_check_branch
          %191 = sbr.rel (%p189) target = $region32
        $region31: #{_prep_and_call.1} parent=27 // pred_region
          %s192 = sand.u32 %s28, 1
          %s193 = scalar_lea.sflag [#allocation4], %s192
          %s194 = sand.u32 %s28, 1
          %s195 = smul.addr %s194, 288
          %s196 = scalar_lea.vmem [#allocation3], %s195
          %s198 = ssub.s32 4608, 4608
          %199 = vsyncadd %s193, %s198
          %s200 = smul.addr %s18, 36
          %s201 = smul.addr %s200, 128
          %s202 = scalar_lea.hbm %s0, %s201
          %s203 = sshll.u32 %s196, 4
          %s204 = int_to_ptr.vmem [resolvable:$true] %s203
          %209 = dma.hbm_to_vmem [thread:$0]  %s202, 4608, %s204, %s193, 128, 128, 8
        $region32: #{_prep_and_call.1} parent=27 // pred_fallthru
          _
      $region28: #{_prep_and_call.1} parent=5 // pred_fallthru
        _
      %p210 = scmp.le.s32.totalorder 1, %s18
      %p211 = scmp.lt.s32.totalorder %s18, 3
      %p212 = pnand %p210, %p211
      %p213 = pneg %p212
      // Predicated region
      $region33: #{_prep_and_call.1} parent=5 // pred_check
        _
      $region34: #{_prep_and_call.1} parent=5 // pred_check_branch
        %215 = sbr.rel (%p212) target = $region36
      $region35: #{_prep_and_call.1} parent=5 // pred_region
        %s216 = ssub.s32 %s18, 1
        %s217 = sand.u32 %s31, 1
        %s218 = scalar_lea.sflag [#allocation4], %s217
        %s219 = sand.u32 %s31, 1
        %s220 = smul.addr %s219, 288
        %s221 = scalar_lea.vmem [#allocation3], %s220
        // Predicated region
        $region37: #{_prep_and_call.1} parent=35 // pred_check
          %p222 = pneg %p44
        $region38: #{_prep_and_call.1} parent=35 // pred_check_branch
          %224 = sbr.rel (%p222) target = $region40
        $region39: #{_prep_and_call.1} parent=35 // pred_region
          %225 = dma.done %s218, 4608
        $region40: #{_prep_and_call.1} parent=35 // pred_fallthru
          _
        // Predicated region
        $region41: #{_prep_and_call.1} parent=35 // pred_check
          %p226 = pneg %p65
        $region42: #{_prep_and_call.1} parent=35 // pred_check_branch
          %228 = sbr.rel (%p226) target = $region44
        $region43: #{_prep_and_call.1} parent=35 // pred_region
          %229 = dma.done [#allocation7], 2048
        $region44: #{_prep_and_call.1} parent=35 // pred_fallthru
          _
        // Predicated region
        $region45: #{_prep_and_call.1} parent=35 // pred_check
          %p230 = pneg %p86
        $region46: #{_prep_and_call.1} parent=35 // pred_check_branch
          %232 = sbr.rel (%p230) target = $region48
        $region47: #{_prep_and_call.1} parent=35 // pred_region
          %233 = dma.done [#allocation7], 18432
        $region48: #{_prep_and_call.1} parent=35 // pred_fallthru
          _
        // Predicated region
        $region49: #{_prep_and_call.1} parent=35 // pred_check
          %p234 = pneg %p107
        $region50: #{_prep_and_call.1} parent=35 // pred_check_branch
          %236 = sbr.rel (%p234) target = $region52
        $region51: #{_prep_and_call.1} parent=35 // pred_region
          %237 = dma.done [#allocation10], 16
        $region52: #{_prep_and_call.1} parent=35 // pred_fallthru
          _
        %s238 = sand.u32 %s31, 1
        %s239 = scalar_lea.sflag [#allocation4], %s238
        %s240 = sand.u32 %s31, 1
        %s241 = smul.addr %s240, 288
        %s242 = scalar_lea.vmem [#allocation3], %s241
        %p243 = pneg %p44
        %p244 = pneg %p41
        %p245 = pneg %p65
        %p246 = pneg %p62
        %p247 = pneg %p86
        %p248 = pneg %p83
        %p249 = pneg %p107
        %p250 = pneg %p104
        %p251 = pneg %p133
        %p252 = pneg %p130
        %s253 = sand.u32 %s120, 1
        %s254 = scalar_lea.sflag [#allocation5], %s253
        %s255 = sand.u32 %s120, 1
        %s256 = smul.addr %s255, 288
        %s257 = scalar_lea.vmem [#allocation11], %s256
        %258 = vst [vmem:[#allocation2] sm:$0xff] 0.0
        %259 = vst [vmem:[#allocation2 + $0x8] sm:$0xff] 0.0
        %260 = vst [vmem:[#allocation2 + $0x10] sm:$0xff] 0.0
        %261 = vst [vmem:[#allocation2 + $0x138] sm:$0xff] 0.0
        %262 = vst [vmem:[#allocation2 + $0x140] sm:$0xff] 0.0
        %263 = vst [vmem:[#allocation2 + $0x148] sm:$0xff] 0.0
        %v264 = vld [vmem:[%s221] sm:$0xff]
        %v265 = vld [vmem:[%s221 + $0x8] sm:$0xff]
        %v266 = vld [vmem:[%s221 + $0x10] sm:$0xff]
        %v267 = vld [vmem:[%s221 + $0x18] sm:$0xff]
        %v268 = vld [vmem:[%s221 + $0x20] sm:$0xff]
        %v269 = vld [vmem:[%s221 + $0x28] sm:$0xff]
        %v270 = vld [vmem:[%s221 + $0x30] sm:$0xff]
        %v271 = vld [vmem:[%s221 + $0x38] sm:$0xff]
        %v272 = vld [vmem:[%s221 + $0x40] sm:$0xff]
        %v273 = vld [vmem:[%s221 + $0x48] sm:$0xff]
        %v274 = vld [vmem:[%s221 + $0x50] sm:$0xff]
        %v275 = vld [vmem:[%s221 + $0x58] sm:$0xff]
        %v276 = vld [vmem:[%s221 + $0x60] sm:$0xff]
        %v277 = vld [vmem:[%s221 + $0x68] sm:$0xff]
        %v278 = vld [vmem:[%s221 + $0x70] sm:$0xff]
        %v279 = vld [vmem:[%s221 + $0x78] sm:$0xff]
        %v280 = vld [vmem:[%s221 + $0x80] sm:$0xff]
        %v281 = vld [vmem:[%s221 + $0x88] sm:$0xff]
        %v282 = vld [vmem:[%s221 + $0x90] sm:$0xff]
        %v283 = vld [vmem:[%s221 + $0x98] sm:$0xff]
        %v284 = vld [vmem:[%s221 + $0xa0] sm:$0xff]
        %v285 = vld [vmem:[%s221 + $0xa8] sm:$0xff]
        %v286 = vld [vmem:[%s221 + $0xb0] sm:$0xff]
        %v287 = vld [vmem:[%s221 + $0xb8] sm:$0xff]
        %v288 = vld [vmem:[%s221 + $0xc0] sm:$0xff]
        %v289 = vld [vmem:[%s221 + $0xc8] sm:$0xff]
        %v290 = vld [vmem:[%s221 + $0xd0] sm:$0xff]
        %v291 = vld [vmem:[%s221 + $0xd8] sm:$0xff]
        %v292 = vld [vmem:[%s221 + $0xe0] sm:$0xff]
        %v293 = vld [vmem:[%s221 + $0xe8] sm:$0xff]
        %v294 = vld [vmem:[%s221 + $0xf0] sm:$0xff]
        %v295 = vld [vmem:[%s221 + $0xf8] sm:$0xff]
        %v296 = vld [vmem:[%s221 + $0x100] sm:$0xff]
        %v297 = vld [vmem:[%s221 + $0x108] sm:$0xff]
        %v298 = vld [vmem:[%s221 + $0x110] sm:$0xff]
        %v299 = vld [vmem:[%s221 + $0x118] sm:$0xff]
        %v300 = vld [vmem:[#allocation6] sm:$0xff]
        %v301 = vld [vmem:[#allocation6 + $0x8] sm:$0xff]
        %v302 = vld [vmem:[#allocation6 + $0x10] sm:$0xff]
        %v303 = vld [vmem:[#allocation6 + $0x18] sm:$0xff]
        %v304 = vld [vmem:[#allocation6 + $0x20] sm:$0xff]
        %v305 = vld [vmem:[#allocation6 + $0x28] sm:$0xff]
        %v306 = vld [vmem:[#allocation6 + $0x30] sm:$0xff]
        %v307 = vld [vmem:[#allocation6 + $0x38] sm:$0xff]
        %v308 = vld [vmem:[#allocation6 + $0x40] sm:$0xff]
        %v309 = vld [vmem:[#allocation6 + $0x48] sm:$0xff]
        %v310 = vld [vmem:[#allocation6 + $0x50] sm:$0xff]
        %v311 = vld [vmem:[#allocation6 + $0x58] sm:$0xff]
        %v312 = vld [vmem:[#allocation6 + $0x60] sm:$0xff]
        %v313 = vld [vmem:[#allocation6 + $0x68] sm:$0xff]
        %v314 = vld [vmem:[#allocation6 + $0x70] sm:$0xff]
        %v315 = vld [vmem:[#allocation6 + $0x78] sm:$0xff]
        %316 = vmatprep.subr.mxu0 0.0
        %317 = vmatpush1.msra.mxu0 %v300
        %318 = vmatprep.subr.mxu0 0.0
        %319 = vmatpush1.msra.mxu0 %v301
        %320 = vmatprep.subr.mxu0 0.0
        %321 = vmatpush1.msra.mxu0 %v302
        %322 = vmatprep.subr.mxu0 0.0
        %323 = vmatpush1.msra.mxu0 %v303
        %324 = vmatprep.subr.mxu0 0.0
        %325 = vmatpush1.msra.mxu0 %v304
        %326 = vmatprep.subr.mxu0 0.0
        %327 = vmatpush1.msra.mxu0 %v305
        %328 = vmatprep.subr.mxu0 0.0
        %329 = vmatpush1.msra.mxu0 %v306
        %330 = vmatprep.subr.mxu0 0.0
        %331 = vmatpush1.msra.mxu0 %v307
        %332 = vmatprep.subr.mxu0 0.0
        %333 = vmatpush1.msra.mxu0 %v308
        %334 = vmatprep.subr.mxu0 0.0
        %335 = vmatpush1.msra.mxu0 %v309
        %336 = vmatprep.subr.mxu0 0.0
        %337 = vmatpush1.msra.mxu0 %v310
        %338 = vmatprep.subr.mxu0 0.0
        %339 = vmatpush1.msra.mxu0 %v311
        %340 = vmatprep.subr.mxu0 0.0
        %341 = vmatpush1.msra.mxu0 %v312
        %342 = vmatprep.subr.mxu0 0.0
        %343 = vmatpush1.msra.mxu0 %v313
        %344 = vmatprep.subr.mxu0 0.0
        %345 = vmatpush1.msra.mxu0 %v314
        %346 = vmatprep.subr.mxu0 0.0
        %347 = vmatpush1.msra.mxu0 %v315
        %348 = vmatprep.subr.mxu0 0.0
        %349 = vmatpush1.msra.mxu0 0.0
        %350 = vmatprep.subr.mxu0 0.0
        %351 = vmatpush1.msra.mxu0 0.0
        %352 = vmatprep.subr.mxu0 0.0
        %353 = vmatpush1.msra.mxu0 0.0
        %354 = vmatprep.subr.mxu0 0.0
        %355 = vmatpush1.msra.mxu0 0.0
        %356 = vmatprep.subr.mxu0 0.0
        %357 = vmatpush1.msra.mxu0 0.0
        %358 = vmatprep.subr.mxu0 0.0
        %359 = vmatpush1.msra.mxu0 0.0
        %360 = vmatprep.subr.mxu0 0.0
        %361 = vmatpush1.msra.mxu0 0.0
        %362 = vmatprep.subr.mxu0 0.0
        %363 = vmatpush1.msra.mxu0 0.0
        %364 = vmatprep.subr.mxu0 0.0
        %365 = vmatpush1.msra.mxu0 0.0
        %366 = vmatprep.subr.mxu0 0.0
        %367 = vmatpush1.msra.mxu0 0.0
        %368 = vmatprep.subr.mxu0 0.0
        %369 = vmatpush1.msra.mxu0 0.0
        %370 = vmatprep.subr.mxu0 0.0
        %371 = vmatpush1.msra.mxu0 0.0
        %372 = vmatprep.subr.mxu0 0.0
        %373 = vmatpush1.msra.mxu0 0.0
        %374 = vmatprep.subr.mxu0 0.0
        %375 = vmatpush1.msra.mxu0 0.0
        %376 = vmatprep.subr.mxu0 0.0
        %377 = vmatpush1.msra.mxu0 0.0
        %378 = vmatprep.subr.mxu0 0.0
        %379 = vmatpush1.msra.mxu0 0.0
        %380 = vmatprep.mubr.f32.mxu0 0.0
        %381 = vmatmul.mubr.f32.gmra.mrb[0].mxu0 %v264
        %v382 = vpop.f32.mrb[0].mxu0
        %v383 = vadd.f32 0.0, %v382
        %v384 = vpop.f32.mrb[0].mxu0
        %385 = vmatprep.mubr.f32.mxu0 0.0
        %386 = vmatmul.mubr.f32.gmra.mrb[0].mxu0 %v265
        %v387 = vpop.f32.mrb[0].mxu0
        %v388 = vadd.f32 0.0, %v387
        %v389 = vpop.f32.mrb[0].mxu0
        %390 = vmatprep.mubr.f32.mxu0 0.0
        %391 = vmatmul.mubr.f32.gmra.mrb[0].mxu0 %v266
        %v392 = vpop.f32.mrb[0].mxu0
        %v393 = vadd.f32 0.0, %v392
        %v394 = vpop.f32.mrb[0].mxu0
        %395 = vmatprep.mubr.f32.mxu0 0.0
        %396 = vmatmul.mubr.f32.gmra.mrb[0].mxu0 %v267
        %v397 = vpop.f32.mrb[0].mxu0
        %v398 = vadd.f32 0.0, %v397
        %v399 = vpop.f32.mrb[0].mxu0
        %400 = vmatprep.mubr.f32.mxu0 0.0
        %401 = vmatmul.mubr.f32.gmra.mrb[0].mxu0 %v268
        %v402 = vpop.f32.mrb[0].mxu0
        %v403 = vadd.f32 0.0, %v402
        %v404 = vpop.f32.mrb[0].mxu0
        %405 = vmatprep.mubr.f32.mxu0 0.0
        %406 = vmatmul.mubr.f32.gmra.mrb[0].mxu0 %v269
        %v407 = vpop.f32.mrb[0].mxu0
        %v408 = vadd.f32 0.0, %v407
        %v409 = vpop.f32.mrb[0].mxu0
        %410 = vmatprep.mubr.f32.mxu0 0.0
        %411 = vmatmul.mubr.f32.gmra.mrb[0].mxu0 %v270
        %v412 = vpop.f32.mrb[0].mxu0
        %v413 = vadd.f32 0.0, %v412
        %v414 = vpop.f32.mrb[0].mxu0
        %415 = vmatprep.mubr.f32.mxu0 0.0
        %416 = vmatmul.mubr.f32.gmra.mrb[0].mxu0 %v271
        %v417 = vpop.f32.mrb[0].mxu0
        %v418 = vadd.f32 0.0, %v417
        %v419 = vpop.f32.mrb[0].mxu0
        %420 = vmatprep.mubr.f32.mxu0 0.0
        %421 = vmatmul.mubr.f32.gmra.mrb[0].mxu0 %v272
        %v422 = vpop.f32.mrb[0].mxu0
        %v423 = vadd.f32 0.0, %v422
        %v424 = vpop.f32.mrb[0].mxu0
        %425 = vmatprep.mubr.f32.mxu0 0.0
        %426 = vmatmul.mubr.f32.gmra.mrb[0].mxu0 %v273
        %v427 = vpop.f32.mrb[0].mxu0
        %v428 = vadd.f32 0.0, %v427
        %v429 = vpop.f32.mrb[0].mxu0
        %430 = vmatprep.mubr.f32.mxu0 0.0
        %431 = vmatmul.mubr.f32.gmra.mrb[0].mxu0 %v274
        %v432 = vpop.f32.mrb[0].mxu0
        %v433 = vadd.f32 0.0, %v432
        %v434 = vpop.f32.mrb[0].mxu0
        %435 = vmatprep.mubr.f32.mxu0 0.0
        %436 = vmatmul.mubr.f32.gmra.mrb[0].mxu0 %v275
        %v437 = vpop.f32.mrb[0].mxu0
        %v438 = vadd.f32 0.0, %v437
        %v439 = vpop.f32.mrb[0].mxu0
        %440 = vmatprep.mubr.f32.mxu0 0.0
        %441 = vmatmul.mubr.f32.gmra.mrb[0].mxu0 %v276
        %v442 = vpop.f32.mrb[0].mxu0
        %v443 = vadd.f32 0.0, %v442
        %v444 = vpop.f32.mrb[0].mxu0
        %445 = vmatprep.mubr.f32.mxu0 0.0
        %446 = vmatmul.mubr.f32.gmra.mrb[0].mxu0 %v277
        %v447 = vpop.f32.mrb[0].mxu0
        %v448 = vadd.f32 0.0, %v447
        %v449 = vpop.f32.mrb[0].mxu0
        %450 = vmatprep.mubr.f32.mxu0 0.0
        %451 = vmatmul.mubr.f32.gmra.mrb[0].mxu0 %v278
        %v452 = vpop.f32.mrb[0].mxu0
        %v453 = vadd.f32 0.0, %v452
        %v454 = vpop.f32.mrb[0].mxu0
        %455 = vmatprep.mubr.f32.mxu0 0.0
        %456 = vmatmul.mubr.f32.gmra.mrb[0].mxu0 %v279
        %v457 = vpop.f32.mrb[0].mxu0
        %v458 = vadd.f32 0.0, %v457
        %v459 = vpop.f32.mrb[0].mxu0
        %460 = vmatprep.mubr.f32.mxu0 0.0
        %461 = vmatmul.mubr.f32.gmra.mrb[0].mxu0 %v280
        %v462 = vpop.f32.mrb[0].mxu0
        %v463 = vadd.f32 0.0, %v462
        %v464 = vpop.f32.mrb[0].mxu0
        %465 = vmatprep.mubr.f32.mxu0 0.0
        %466 = vmatmul.mubr.f32.gmra.mrb[0].mxu0 %v281
        %v467 = vpop.f32.mrb[0].mxu0
        %v468 = vadd.f32 0.0, %v467
        %v469 = vpop.f32.mrb[0].mxu0
        %470 = vmatprep.mubr.f32.mxu0 0.0
        %471 = vmatmul.mubr.f32.gmra.mrb[0].mxu0 %v282
        %v472 = vpop.f32.mrb[0].mxu0
        %v473 = vadd.f32 0.0, %v472
        %v474 = vpop.f32.mrb[0].mxu0
        %475 = vmatprep.mubr.f32.mxu0 0.0
        %476 = vmatmul.mubr.f32.gmra.mrb[0].mxu0 %v283
        %v477 = vpop.f32.mrb[0].mxu0
        %v478 = vadd.f32 0.0, %v477
        %v479 = vpop.f32.mrb[0].mxu0
        %480 = vmatprep.mubr.f32.mxu0 0.0
        %481 = vmatmul.mubr.f32.gmra.mrb[0].mxu0 %v284
        %v482 = vpop.f32.mrb[0].mxu0
        %v483 = vadd.f32 0.0, %v482
        %v484 = vpop.f32.mrb[0].mxu0
        %485 = vmatprep.mubr.f32.mxu0 0.0
        %486 = vmatmul.mubr.f32.gmra.mrb[0].mxu0 %v285
        %v487 = vpop.f32.mrb[0].mxu0
        %v488 = vadd.f32 0.0, %v487
        %v489 = vpop.f32.mrb[0].mxu0
        %490 = vmatprep.mubr.f32.mxu0 0.0
        %491 = vmatmul.mubr.f32.gmra.mrb[0].mxu0 %v286
        %v492 = vpop.f32.mrb[0].mxu0
        %v493 = vadd.f32 0.0, %v492
        %v494 = vpop.f32.mrb[0].mxu0
        %495 = vmatprep.mubr.f32.mxu0 0.0
        %496 = vmatmul.mubr.f32.gmra.mrb[0].mxu0 %v287
        %v497 = vpop.f32.mrb[0].mxu0
        %v498 = vadd.f32 0.0, %v497
        %v499 = vpop.f32.mrb[0].mxu0
        %500 = vmatprep.mubr.f32.mxu0 0.0
        %501 = vmatmul.mubr.f32.gmra.mrb[0].mxu0 %v288
        %v502 = vpop.f32.mrb[0].mxu0
        %v503 = vadd.f32 0.0, %v502
        %v504 = vpop.f32.mrb[0].mxu0
        %505 = vmatprep.mubr.f32.mxu0 0.0
        %506 = vmatmul.mubr.f32.gmra.mrb[0].mxu0 %v289
        %v507 = vpop.f32.mrb[0].mxu0
        %v508 = vadd.f32 0.0, %v507
        %v509 = vpop.f32.mrb[0].mxu0
        %510 = vmatprep.mubr.f32.mxu0 0.0
        %511 = vmatmul.mubr.f32.gmra.mrb[0].mxu0 %v290
        %v512 = vpop.f32.mrb[0].mxu0
        %v513 = vadd.f32 0.0, %v512
        %v514 = vpop.f32.mrb[0].mxu0
        %515 = vmatprep.mubr.f32.mxu0 0.0
        %516 = vmatmul.mubr.f32.gmra.mrb[0].mxu0 %v291
        %v517 = vpop.f32.mrb[0].mxu0
        %v518 = vadd.f32 0.0, %v517
        %v519 = vpop.f32.mrb[0].mxu0
        %520 = vmatprep.mubr.f32.mxu0 0.0
        %521 = vmatmul.mubr.f32.gmra.mrb[0].mxu0 %v292
        %v522 = vpop.f32.mrb[0].mxu0
        %v523 = vadd.f32 0.0, %v522
        %v524 = vpop.f32.mrb[0].mxu0
        %525 = vmatprep.mubr.f32.mxu0 0.0
        %526 = vmatmul.mubr.f32.gmra.mrb[0].mxu0 %v293
        %v527 = vpop.f32.mrb[0].mxu0
        %v528 = vadd.f32 0.0, %v527
        %v529 = vpop.f32.mrb[0].mxu0
        %530 = vmatprep.mubr.f32.mxu0 0.0
        %531 = vmatmul.mubr.f32.gmra.mrb[0].mxu0 %v294
        %v532 = vpop.f32.mrb[0].mxu0
        %v533 = vadd.f32 0.0, %v532
        %v534 = vpop.f32.mrb[0].mxu0
        %535 = vmatprep.mubr.f32.mxu0 0.0
        %536 = vmatmul.mubr.f32.gmra.mrb[0].mxu0 %v295
        %v537 = vpop.f32.mrb[0].mxu0
        %v538 = vadd.f32 0.0, %v537
        %v539 = vpop.f32.mrb[0].mxu0
        %540 = vmatprep.mubr.f32.mxu0 0.0
        %541 = vmatmul.mubr.f32.gmra.mrb[0].mxu0 %v296
        %v542 = vpop.f32.mrb[0].mxu0
        %v543 = vadd.f32 0.0, %v542
        %v544 = vpop.f32.mrb[0].mxu0
        %545 = vmatprep.mubr.f32.mxu0 0.0
        %546 = vmatmul.mubr.f32.gmra.mrb[0].mxu0 %v297
        %v547 = vpop.f32.mrb[0].mxu0
        %v548 = vadd.f32 0.0, %v547
        %v549 = vpop.f32.mrb[0].mxu0
        %550 = vmatprep.mubr.f32.mxu0 0.0
        %551 = vmatmul.mubr.f32.gmra.mrb[0].mxu0 %v298
        %v552 = vpop.f32.mrb[0].mxu0
        %v553 = vadd.f32 0.0, %v552
        %v554 = vpop.f32.mrb[0].mxu0
        %555 = vmatprep.mubr.f32.mxu0 0.0
        %556 = vmatmul.mubr.f32.gmra.mrb[0].mxu0 %v299
        %v557 = vpop.f32.mrb[0].mxu0
        %v558 = vadd.f32 0.0, %v557
        %v559 = vpop.f32.mrb[0].mxu0
        %560 = vdwg.mxu0
        %v561 = vmax.f32 %v383, 0.0
        %v562 = vmax.f32 %v388, 0.0
        %v563 = vmax.f32 %v393, 0.0
        %v564 = vmax.f32 %v398, 0.0
        %v565 = vmax.f32 %v403, 0.0
        %v566 = vmax.f32 %v408, 0.0
        %v567 = vmax.f32 %v413, 0.0
        %v568 = vmax.f32 %v418, 0.0
        %v569 = vmax.f32 %v423, 0.0
        %v570 = vmax.f32 %v428, 0.0
        %v571 = vmax.f32 %v433, 0.0
        %v572 = vmax.f32 %v438, 0.0
        %v573 = vmax.f32 %v443, 0.0
        %v574 = vmax.f32 %v448, 0.0
        %v575 = vmax.f32 %v453, 0.0
        %v576 = vmax.f32 %v458, 0.0
        %v577 = vmax.f32 %v463, 0.0
        %v578 = vmax.f32 %v468, 0.0
        %v579 = vmax.f32 %v473, 0.0
        %v580 = vmax.f32 %v478, 0.0
        %v581 = vmax.f32 %v483, 0.0
        %v582 = vmax.f32 %v488, 0.0
        %v583 = vmax.f32 %v493, 0.0
        %v584 = vmax.f32 %v498, 0.0
        %v585 = vmax.f32 %v503, 0.0
        %v586 = vmax.f32 %v508, 0.0
        %v587 = vmax.f32 %v513, 0.0
        %v588 = vmax.f32 %v518, 0.0
        %v589 = vmax.f32 %v523, 0.0
        %v590 = vmax.f32 %v528, 0.0
        %v591 = vmax.f32 %v533, 0.0
        %v592 = vmax.f32 %v538, 0.0
        %v593 = vmax.f32 %v543, 0.0
        %v594 = vmax.f32 %v548, 0.0
        %v595 = vmax.f32 %v553, 0.0
        %v596 = vmax.f32 %v558, 0.0
        %597 = vst [vmem:[#allocation2 + $0x18] sm:$0xff] %v561
        %598 = vst [vmem:[#allocation2 + $0x20] sm:$0xff] %v562
        %599 = vst [vmem:[#allocation2 + $0x28] sm:$0xff] %v563
        %600 = vst [vmem:[#allocation2 + $0x30] sm:$0xff] %v564
        %601 = vst [vmem:[#allocation2 + $0x38] sm:$0xff] %v565
        %602 = vst [vmem:[#allocation2 + $0x40] sm:$0xff] %v566
        %603 = vst [vmem:[#allocation2 + $0x48] sm:$0xff] %v567
        %604 = vst [vmem:[#allocation2 + $0x50] sm:$0xff] %v568
        %605 = vst [vmem:[#allocation2 + $0x58] sm:$0xff] %v569
        %606 = vst [vmem:[#allocation2 + $0x60] sm:$0xff] %v570
        %607 = vst [vmem:[#allocation2 + $0x68] sm:$0xff] %v571
        %608 = vst [vmem:[#allocation2 + $0x70] sm:$0xff] %v572
        %609 = vst [vmem:[#allocation2 + $0x78] sm:$0xff] %v573
        %610 = vst [vmem:[#allocation2 + $0x80] sm:$0xff] %v574
        %611 = vst [vmem:[#allocation2 + $0x88] sm:$0xff] %v575
        %612 = vst [vmem:[#allocation2 + $0x90] sm:$0xff] %v576
        %613 = vst [vmem:[#allocation2 + $0x98] sm:$0xff] %v577
        %614 = vst [vmem:[#allocation2 + $0xa0] sm:$0xff] %v578
        %615 = vst [vmem:[#allocation2 + $0xa8] sm:$0xff] %v579
        %616 = vst [vmem:[#allocation2 + $0xb0] sm:$0xff] %v580
        %617 = vst [vmem:[#allocation2 + $0xb8] sm:$0xff] %v581
        %618 = vst [vmem:[#allocation2 + $0xc0] sm:$0xff] %v582
        %619 = vst [vmem:[#allocation2 + $0xc8] sm:$0xff] %v583
        %620 = vst [vmem:[#allocation2 + $0xd0] sm:$0xff] %v584
        %621 = vst [vmem:[#allocation2 + $0xd8] sm:$0xff] %v585
        %622 = vst [vmem:[#allocation2 + $0xe0] sm:$0xff] %v586
        %623 = vst [vmem:[#allocation2 + $0xe8] sm:$0xff] %v587
        %624 = vst [vmem:[#allocation2 + $0xf0] sm:$0xff] %v588
        %625 = vst [vmem:[#allocation2 + $0xf8] sm:$0xff] %v589
        %626 = vst [vmem:[#allocation2 + $0x100] sm:$0xff] %v590
        %627 = vst [vmem:[#allocation2 + $0x108] sm:$0xff] %v591
        %628 = vst [vmem:[#allocation2 + $0x110] sm:$0xff] %v592
        %629 = vst [vmem:[#allocation2 + $0x118] sm:$0xff] %v593
        %630 = vst [vmem:[#allocation2 + $0x120] sm:$0xff] %v594
        %631 = vst [vmem:[#allocation2 + $0x128] sm:$0xff] %v595
        %632 = vst [vmem:[#allocation2 + $0x130] sm:$0xff] %v596
        %v633 = vld [vmem:[#allocation2 + $0x5] sm:$0xff]
        %v634 = vld [vmem:[#allocation2 + $0xd] sm:$0xff]
        %v635 = vld [vmem:[#allocation2 + $0x15] sm:$0xff]
        %v636 = vld [vmem:[#allocation2 + $0x1d] sm:$0xff]
        %v637 = vld [vmem:[#allocation2 + $0x25] sm:$0xff]
        %v638 = vld [vmem:[#allocation2 + $0x2d] sm:$0xff]
        %v639 = vld [vmem:[#allocation2 + $0x35] sm:$0xff]
        %v640 = vld [vmem:[#allocation2 + $0x3d] sm:$0xff]
        %v641 = vld [vmem:[#allocation2 + $0x45] sm:$0xff]
        %v642 = vld [vmem:[#allocation2 + $0x4d] sm:$0xff]
        %v643 = vld [vmem:[#allocation2 + $0x55] sm:$0xff]
        %v644 = vld [vmem:[#allocation2 + $0x5d] sm:$0xff]
        %v645 = vld [vmem:[#allocation2 + $0x65] sm:$0xff]
        %v646 = vld [vmem:[#allocation2 + $0x6d] sm:$0xff]
        %v647 = vld [vmem:[#allocation2 + $0x75] sm:$0xff]
        %v648 = vld [vmem:[#allocation2 + $0x7d] sm:$0xff]
        %v649 = vld [vmem:[#allocation2 + $0x85] sm:$0xff]
        %v650 = vld [vmem:[#allocation2 + $0x8d] sm:$0xff]
        %v651 = vld [vmem:[#allocation2 + $0x95] sm:$0xff]
        %v652 = vld [vmem:[#allocation2 + $0x9d] sm:$0xff]
        %v653 = vld [vmem:[#allocation2 + $0xa5] sm:$0xff]
        %v654 = vld [vmem:[#allocation2 + $0xad] sm:$0xff]
        %v655 = vld [vmem:[#allocation2 + $0xb5] sm:$0xff]
        %v656 = vld [vmem:[#allocation2 + $0xbd] sm:$0xff]
        %v657 = vld [vmem:[#allocation2 + $0xc5] sm:$0xff]
        %v658 = vld [vmem:[#allocation2 + $0xcd] sm:$0xff]
        %v659 = vld [vmem:[#allocation2 + $0xd5] sm:$0xff]
        %v660 = vld [vmem:[#allocation2 + $0xdd] sm:$0xff]
        %v661 = vld [vmem:[#allocation2 + $0xe5] sm:$0xff]
        %v662 = vld [vmem:[#allocation2 + $0xed] sm:$0xff]
        %v663 = vld [vmem:[#allocation2 + $0xf5] sm:$0xff]
        %v664 = vld [vmem:[#allocation2 + $0xfd] sm:$0xff]
        %v665 = vld [vmem:[#allocation2 + $0x105] sm:$0xff]
        %v666 = vld [vmem:[#allocation2 + $0x10d] sm:$0xff]
        %v667 = vld [vmem:[#allocation2 + $0x115] sm:$0xff]
        %v668 = vld [vmem:[#allocation2 + $0x11d] sm:$0xff]
        %v669 = vld [vmem:[#allocation8] sm:$0xff]
        %v670 = vld [vmem:[#allocation8 + $0x8] sm:$0xff]
        %v671 = vld [vmem:[#allocation8 + $0x10] sm:$0xff]
        %v672 = vld [vmem:[#allocation8 + $0x18] sm:$0xff]
        %v673 = vld [vmem:[#allocation8 + $0x20] sm:$0xff]
        %v674 = vld [vmem:[#allocation8 + $0x28] sm:$0xff]
        %v675 = vld [vmem:[#allocation8 + $0x30] sm:$0xff]
        %v676 = vld [vmem:[#allocation8 + $0x38] sm:$0xff]
        %v677 = vld [vmem:[#allocation8 + $0x40] sm:$0xff]
        %v678 = vld [vmem:[#allocation8 + $0x48] sm:$0xff]
        %v679 = vld [vmem:[#allocation8 + $0x50] sm:$0xff]
        %v680 = vld [vmem:[#allocation8 + $0x58] sm:$0xff]
        %v681 = vld [vmem:[#allocation8 + $0x60] sm:$0xff]
        %v682 = vld [vmem:[#allocation8 + $0x68] sm:$0xff]
        %v683 = vld [vmem:[#allocation8 + $0x70] sm:$0xff]
        %v684 = vld [vmem:[#allocation8 + $0x78] sm:$0xff]
        %v685 = vld [vmem:[#allocation2 + $0x6] sm:$0xff]
        %v686 = vld [vmem:[#allocation2 + $0xe] sm:$0xff]
        %v687 = vld [vmem:[#allocation2 + $0x16] sm:$0xff]
        %v688 = vld [vmem:[#allocation2 + $0x1e] sm:$0xff]
        %v689 = vld [vmem:[#allocation2 + $0x26] sm:$0xff]
        %v690 = vld [vmem:[#allocation2 + $0x2e] sm:$0xff]
        %v691 = vld [vmem:[#allocation2 + $0x36] sm:$0xff]
        %v692 = vld [vmem:[#allocation2 + $0x3e] sm:$0xff]
        %v693 = vld [vmem:[#allocation2 + $0x46] sm:$0xff]
        %v694 = vld [vmem:[#allocation2 + $0x4e] sm:$0xff]
        %v695 = vld [vmem:[#allocation2 + $0x56] sm:$0xff]
        %v696 = vld [vmem:[#allocation2 + $0x5e] sm:$0xff]
        %v697 = vld [vmem:[#allocation2 + $0x66] sm:$0xff]
        %v698 = vld [vmem:[#allocation2 + $0x6e] sm:$0xff]
        %v699 = vld [vmem:[#allocation2 + $0x76] sm:$0xff]
        %v700 = vld [vmem:[#allocation2 + $0x7e] sm:$0xff]
        %v701 = vld [vmem:[#allocation2 + $0x86] sm:$0xff]
        %v702 = vld [vmem:[#allocation2 + $0x8e] sm:$0xff]
        %v703 = vld [vmem:[#allocation2 + $0x96] sm:$0xff]
        %v704 = vld [vmem:[#allocation2 + $0x9e] sm:$0xff]
        %v705 = vld [vmem:[#allocation2 + $0xa6] sm:$0xff]
        %v706 = vld [vmem:[#allocation2 + $0xae] sm:$0xff]
        %v707 = vld [vmem:[#allocation2 + $0xb6] sm:$0xff]
        %v708 = vld [vmem:[#allocation2 + $0xbe] sm:$0xff]
        %v709 = vld [vmem:[#allocation2 + $0xc6] sm:$0xff]
        %v710 = vld [vmem:[#allocation2 + $0xce] sm:$0xff]
        %v711 = vld [vmem:[#allocation2 + $0xd6] sm:$0xff]
        %v712 = vld [vmem:[#allocation2 + $0xde] sm:$0xff]
        %v713 = vld [vmem:[#allocation2 + $0xe6] sm:$0xff]
        %v714 = vld [vmem:[#allocation2 + $0xee] sm:$0xff]
        %v715 = vld [vmem:[#allocation2 + $0xf6] sm:$0xff]
        %v716 = vld [vmem:[#allocation2 + $0xfe] sm:$0xff]
        %v717 = vld [vmem:[#allocation2 + $0x106] sm:$0xff]
        %v718 = vld [vmem:[#allocation2 + $0x10e] sm:$0xff]
        %v719 = vld [vmem:[#allocation2 + $0x116] sm:$0xff]
        %v720 = vld [vmem:[#allocation2 + $0x11e] sm:$0xff]
        %s721 = scalar_lea.vmem [#allocation8], 128
        %v722 = vld [vmem:[%s721] sm:$0xff]
        %v723 = vld [vmem:[%s721 + $0x8] sm:$0xff]
        %v724 = vld [vmem:[%s721 + $0x10] sm:$0xff]
        %v725 = vld [vmem:[%s721 + $0x18] sm:$0xff]
        %v726 = vld [vmem:[%s721 + $0x20] sm:$0xff]
        %v727 = vld [vmem:[%s721 + $0x28] sm:$0xff]
        %v728 = vld [vmem:[%s721 + $0x30] sm:$0xff]
        %v729 = vld [vmem:[%s721 + $0x38] sm:$0xff]
        %v730 = vld [vmem:[%s721 + $0x40] sm:$0xff]
        %v731 = vld [vmem:[%s721 + $0x48] sm:$0xff]
        %v732 = vld [vmem:[%s721 + $0x50] sm:$0xff]
        %v733 = vld [vmem:[%s721 + $0x58] sm:$0xff]
        %v734 = vld [vmem:[%s721 + $0x60] sm:$0xff]
        %v735 = vld [vmem:[%s721 + $0x68] sm:$0xff]
        %v736 = vld [vmem:[%s721 + $0x70] sm:$0xff]
        %v737 = vld [vmem:[%s721 + $0x78] sm:$0xff]
        %738 = vmatprep.subr.mxu0 0.0
        %739 = vmatpush1.msra.mxu0 %v722
        %740 = vmatprep.subr.mxu0 0.0
        %741 = vmatpush1.msra.mxu0 %v723
        %742 = vmatprep.subr.mxu0 0.0
        %743 = vmatpush1.msra.mxu0 %v724
        %744 = vmatprep.subr.mxu0 0.0
        %745 = vmatpush1.msra.mxu0 %v725
        %746 = vmatprep.subr.mxu0 0.0
        %747 = vmatpush1.msra.mxu0 %v726
        %748 = vmatprep.subr.mxu0 0.0
        %749 = vmatpush1.msra.mxu0 %v727
        %750 = vmatprep.subr.mxu0 0.0
        %751 = vmatpush1.msra.mxu0 %v728
        %752 = vmatprep.subr.mxu0 0.0
        %753 = vmatpush1.msra.mxu0 %v729
        %754 = vmatprep.subr.mxu0 0.0
        %755 = vmatpush1.msra.mxu0 %v730
        %756 = vmatprep.subr.mxu0 0.0
        %757 = vmatpush1.msra.mxu0 %v731
        %758 = vmatprep.subr.mxu0 0.0
        %759 = vmatpush1.msra.mxu0 %v732
        %760 = vmatprep.subr.mxu0 0.0
        %761 = vmatpush1.msra.mxu0 %v733
        %762 = vmatprep.subr.mxu0 0.0
        %763 = vmatpush1.msra.mxu0 %v734
        %764 = vmatprep.subr.mxu0 0.0
        %765 = vmatpush1.msra.mxu0 %v735
        %766 = vmatprep.subr.mxu0 0.0
        %767 = vmatpush1.msra.mxu0 %v736
        %768 = vmatprep.subr.mxu0 0.0
        %769 = vmatpush1.msra.mxu0 %v737
        %770 = vmatprep.subr.mxu0 0.0
        %771 = vmatpush1.msra.mxu0 0.0
        %772 = vmatprep.subr.mxu0 0.0
        %773 = vmatpush1.msra.mxu0 0.0
        %774 = vmatprep.subr.mxu0 0.0
        %775 = vmatpush1.msra.mxu0 0.0
        %776 = vmatprep.subr.mxu0 0.0
        %777 = vmatpush1.msra.mxu0 0.0
        %778 = vmatprep.subr.mxu0 0.0
        %779 = vmatpush1.msra.mxu0 0.0
        %780 = vmatprep.subr.mxu0 0.0
        %781 = vmatpush1.msra.mxu0 0.0
        %782 = vmatprep.subr.mxu0 0.0
        %783 = vmatpush1.msra.mxu0 0.0
        %784 = vmatprep.subr.mxu0 0.0
        %785 = vmatpush1.msra.mxu0 0.0
        %786 = vmatprep.subr.mxu0 0.0
        %787 = vmatpush1.msra.mxu0 0.0
        %788 = vmatprep.subr.mxu0 0.0
        %789 = vmatpush1.msra.mxu0 0.0
        %790 = vmatprep.subr.mxu0 0.0
        %791 = vmatpush1.msra.mxu0 0.0
        %792 = vmatprep.subr.mxu0 0.0
        %793 = vmatpush1.msra.mxu0 0.0
        %794 = vmatprep.subr.mxu0 0.0
        %795 = vmatpush1.msra.mxu0 0.0
        %796 = vmatprep.subr.mxu0 0.0
        %797 = vmatpush1.msra.mxu0 0.0
        %798 = vmatprep.subr.mxu0 0.0
        %799 = vmatpush1.msra.mxu0 0.0
        %800 = vmatprep.subr.mxu0 0.0
        %801 = vmatpush1.msra.mxu0 0.0
        %802 = vmatprep.mubr.f32.mxu0 0.0
        %803 = vmatmul.mubr.f32.gmra.mrb[0].mxu0 %v685
        %v804 = vpop.f32.mrb[0].mxu0
        %v805 = vadd.f32 0.0, %v804
        %v806 = vpop.f32.mrb[0].mxu0
        %807 = vmatprep.mubr.f32.mxu0 0.0
        %808 = vmatmul.mubr.f32.gmra.mrb[0].mxu0 %v686
        %v809 = vpop.f32.mrb[0].mxu0
        %v810 = vadd.f32 0.0, %v809
        %v811 = vpop.f32.mrb[0].mxu0
        %812 = vmatprep.mubr.f32.mxu0 0.0
        %813 = vmatmul.mubr.f32.gmra.mrb[0].mxu0 %v687
        %v814 = vpop.f32.mrb[0].mxu0
        %v815 = vadd.f32 0.0, %v814
        %v816 = vpop.f32.mrb[0].mxu0
        %817 = vmatprep.mubr.f32.mxu0 0.0
        %818 = vmatmul.mubr.f32.gmra.mrb[0].mxu0 %v688
        %v819 = vpop.f32.mrb[0].mxu0
        %v820 = vadd.f32 0.0, %v819
        %v821 = vpop.f32.mrb[0].mxu0
        %822 = vmatprep.mubr.f32.mxu0 0.0
        %823 = vmatmul.mubr.f32.gmra.mrb[0].mxu0 %v689
        %v824 = vpop.f32.mrb[0].mxu0
        %v825 = vadd.f32 0.0, %v824
        %v826 = vpop.f32.mrb[0].mxu0
        %827 = vmatprep.mubr.f32.mxu0 0.0
        %828 = vmatmul.mubr.f32.gmra.mrb[0].mxu0 %v690
        %v829 = vpop.f32.mrb[0].mxu0
        %v830 = vadd.f32 0.0, %v829
        %v831 = vpop.f32.mrb[0].mxu0
        %832 = vmatprep.mubr.f32.mxu0 0.0
        %833 = vmatmul.mubr.f32.gmra.mrb[0].mxu0 %v691
        %v834 = vpop.f32.mrb[0].mxu0
        %v835 = vadd.f32 0.0, %v834
        %v836 = vpop.f32.mrb[0].mxu0
        %837 = vmatprep.mubr.f32.mxu0 0.0
        %838 = vmatmul.mubr.f32.gmra.mrb[0].mxu0 %v692
        %v839 = vpop.f32.mrb[0].mxu0
        %v840 = vadd.f32 0.0, %v839
        %v841 = vpop.f32.mrb[0].mxu0
        %842 = vmatprep.mubr.f32.mxu0 0.0
        %843 = vmatmul.mubr.f32.gmra.mrb[0].mxu0 %v693
        %v844 = vpop.f32.mrb[0].mxu0
        %v845 = vadd.f32 0.0, %v844
        %v846 = vpop.f32.mrb[0].mxu0
        %847 = vmatprep.mubr.f32.mxu0 0.0
        %848 = vmatmul.mubr.f32.gmra.mrb[0].mxu0 %v694
        %v849 = vpop.f32.mrb[0].mxu0
        %v850 = vadd.f32 0.0, %v849
        %v851 = vpop.f32.mrb[0].mxu0
        %852 = vmatprep.mubr.f32.mxu0 0.0
        %853 = vmatmul.mubr.f32.gmra.mrb[0].mxu0 %v695
        %v854 = vpop.f32.mrb[0].mxu0
        %v855 = vadd.f32 0.0, %v854
        %v856 = vpop.f32.mrb[0].mxu0
        %857 = vmatprep.mubr.f32.mxu0 0.0
        %858 = vmatmul.mubr.f32.gmra.mrb[0].mxu0 %v696
        %v859 = vpop.f32.mrb[0].mxu0
        %v860 = vadd.f32 0.0, %v859
        %v861 = vpop.f32.mrb[0].mxu0
        %862 = vmatprep.mubr.f32.mxu0 0.0
        %863 = vmatmul.mubr.f32.gmra.mrb[0].mxu0 %v697
        %v864 = vpop.f32.mrb[0].mxu0
        %v865 = vadd.f32 0.0, %v864
        %v866 = vpop.f32.mrb[0].mxu0
        %867 = vmatprep.mubr.f32.mxu0 0.0
        %868 = vmatmul.mubr.f32.gmra.mrb[0].mxu0 %v698
        %v869 = vpop.f32.mrb[0].mxu0
        %v870 = vadd.f32 0.0, %v869
        %v871 = vpop.f32.mrb[0].mxu0
        %872 = vmatprep.mubr.f32.mxu0 0.0
        %873 = vmatmul.mubr.f32.gmra.mrb[0].mxu0 %v699
        %v874 = vpop.f32.mrb[0].mxu0
        %v875 = vadd.f32 0.0, %v874
        %v876 = vpop.f32.mrb[0].mxu0
        %877 = vmatprep.mubr.f32.mxu0 0.0
        %878 = vmatmul.mubr.f32.gmra.mrb[0].mxu0 %v700
        %v879 = vpop.f32.mrb[0].mxu0
        %v880 = vadd.f32 0.0, %v879
        %v881 = vpop.f32.mrb[0].mxu0
        %882 = vmatprep.mubr.f32.mxu0 0.0
        %883 = vmatmul.mubr.f32.gmra.mrb[0].mxu0 %v701
        %v884 = vpop.f32.mrb[0].mxu0
        %v885 = vadd.f32 0.0, %v884
        %v886 = vpop.f32.mrb[0].mxu0
        %887 = vmatprep.mubr.f32.mxu0 0.0
        %888 = vmatmul.mubr.f32.gmra.mrb[0].mxu0 %v702
        %v889 = vpop.f32.mrb[0].mxu0
        %v890 = vadd.f32 0.0, %v889
        %v891 = vpop.f32.mrb[0].mxu0
        %892 = vmatprep.mubr.f32.mxu0 0.0
        %893 = vmatmul.mubr.f32.gmra.mrb[0].mxu0 %v703
        %v894 = vpop.f32.mrb[0].mxu0
        %v895 = vadd.f32 0.0, %v894
        %v896 = vpop.f32.mrb[0].mxu0
        %897 = vmatprep.mubr.f32.mxu0 0.0
        %898 = vmatmul.mubr.f32.gmra.mrb[0].mxu0 %v704
        %v899 = vpop.f32.mrb[0].mxu0
        %v900 = vadd.f32 0.0, %v899
        %v901 = vpop.f32.mrb[0].mxu0
        %902 = vmatprep.mubr.f32.mxu0 0.0
        %903 = vmatmul.mubr.f32.gmra.mrb[0].mxu0 %v705
        %v904 = vpop.f32.mrb[0].mxu0
        %v905 = vadd.f32 0.0, %v904
        %v906 = vpop.f32.mrb[0].mxu0
        %907 = vmatprep.mubr.f32.mxu0 0.0
        %908 = vmatmul.mubr.f32.gmra.mrb[0].mxu0 %v706
        %v909 = vpop.f32.mrb[0].mxu0
        %v910 = vadd.f32 0.0, %v909
        %v911 = vpop.f32.mrb[0].mxu0
        %912 = vmatprep.mubr.f32.mxu0 0.0
        %913 = vmatmul.mubr.f32.gmra.mrb[0].mxu0 %v707
        %v914 = vpop.f32.mrb[0].mxu0
        %v915 = vadd.f32 0.0, %v914
        %v916 = vpop.f32.mrb[0].mxu0
        %917 = vmatprep.mubr.f32.mxu0 0.0
        %918 = vmatmul.mubr.f32.gmra.mrb[0].mxu0 %v708
        %v919 = vpop.f32.mrb[0].mxu0
        %v920 = vadd.f32 0.0, %v919
        %v921 = vpop.f32.mrb[0].mxu0
        %922 = vmatprep.mubr.f32.mxu0 0.0
        %923 = vmatmul.mubr.f32.gmra.mrb[0].mxu0 %v709
        %v924 = vpop.f32.mrb[0].mxu0
        %v925 = vadd.f32 0.0, %v924
        %v926 = vpop.f32.mrb[0].mxu0
        %927 = vmatprep.mubr.f32.mxu0 0.0
        %928 = vmatmul.mubr.f32.gmra.mrb[0].mxu0 %v710
        %v929 = vpop.f32.mrb[0].mxu0
        %v930 = vadd.f32 0.0, %v929
        %v931 = vpop.f32.mrb[0].mxu0
        %932 = vmatprep.mubr.f32.mxu0 0.0
        %933 = vmatmul.mubr.f32.gmra.mrb[0].mxu0 %v711
        %v934 = vpop.f32.mrb[0].mxu0
        %v935 = vadd.f32 0.0, %v934
        %v936 = vpop.f32.mrb[0].mxu0
        %937 = vmatprep.mubr.f32.mxu0 0.0
        %938 = vmatmul.mubr.f32.gmra.mrb[0].mxu0 %v712
        %v939 = vpop.f32.mrb[0].mxu0
        %v940 = vadd.f32 0.0, %v939
        %v941 = vpop.f32.mrb[0].mxu0
        %942 = vmatprep.mubr.f32.mxu0 0.0
        %943 = vmatmul.mubr.f32.gmra.mrb[0].mxu0 %v713
        %v944 = vpop.f32.mrb[0].mxu0
        %v945 = vadd.f32 0.0, %v944
        %v946 = vpop.f32.mrb[0].mxu0
        %947 = vmatprep.mubr.f32.mxu0 0.0
        %948 = vmatmul.mubr.f32.gmra.mrb[0].mxu0 %v714
        %v949 = vpop.f32.mrb[0].mxu0
        %v950 = vadd.f32 0.0, %v949
        %v951 = vpop.f32.mrb[0].mxu0
        %952 = vmatprep.mubr.f32.mxu0 0.0
        %953 = vmatmul.mubr.f32.gmra.mrb[0].mxu0 %v715
        %v954 = vpop.f32.mrb[0].mxu0
        %v955 = vadd.f32 0.0, %v954
        %v956 = vpop.f32.mrb[0].mxu0
        %957 = vmatprep.mubr.f32.mxu0 0.0
        %958 = vmatmul.mubr.f32.gmra.mrb[0].mxu0 %v716
        %v959 = vpop.f32.mrb[0].mxu0
        %v960 = vadd.f32 0.0, %v959
        %v961 = vpop.f32.mrb[0].mxu0
        %962 = vmatprep.mubr.f32.mxu0 0.0
        %963 = vmatmul.mubr.f32.gmra.mrb[0].mxu0 %v717
        %v964 = vpop.f32.mrb[0].mxu0
        %v965 = vadd.f32 0.0, %v964
        %v966 = vpop.f32.mrb[0].mxu0
        %967 = vmatprep.mubr.f32.mxu0 0.0
        %968 = vmatmul.mubr.f32.gmra.mrb[0].mxu0 %v718
        %v969 = vpop.f32.mrb[0].mxu0
        %v970 = vadd.f32 0.0, %v969
        %v971 = vpop.f32.mrb[0].mxu0
        %972 = vmatprep.mubr.f32.mxu0 0.0
        %973 = vmatmul.mubr.f32.gmra.mrb[0].mxu0 %v719
        %v974 = vpop.f32.mrb[0].mxu0
        %v975 = vadd.f32 0.0, %v974
        %v976 = vpop.f32.mrb[0].mxu0
        %977 = vmatprep.mubr.f32.mxu0 0.0
        %978 = vmatmul.mubr.f32.gmra.mrb[0].mxu0 %v720
        %v979 = vpop.f32.mrb[0].mxu0
        %v980 = vadd.f32 0.0, %v979
        %v981 = vpop.f32.mrb[0].mxu0
        %982 = vdwg.mxu0
        %983 = vmatprep.subr.mxu0 0.0
        %984 = vmatpush1.msra.mxu0 %v669
        %985 = vmatprep.subr.mxu0 0.0
        %986 = vmatpush1.msra.mxu0 %v670
        %987 = vmatprep.subr.mxu0 0.0
        %988 = vmatpush1.msra.mxu0 %v671
        %989 = vmatprep.subr.mxu0 0.0
        %990 = vmatpush1.msra.mxu0 %v672
        %991 = vmatprep.subr.mxu0 0.0
        %992 = vmatpush1.msra.mxu0 %v673
        %993 = vmatprep.subr.mxu0 0.0
        %994 = vmatpush1.msra.mxu0 %v674
        %995 = vmatprep.subr.mxu0 0.0
        %996 = vmatpush1.msra.mxu0 %v675
        %997 = vmatprep.subr.mxu0 0.0
        %998 = vmatpush1.msra.mxu0 %v676
        %999 = vmatprep.subr.mxu0 0.0
        %1000 = vmatpush1.msra.mxu0 %v677
        %1001 = vmatprep.subr.mxu0 0.0
        %1002 = vmatpush1.msra.mxu0 %v678
        %1003 = vmatprep.subr.mxu0 0.0
        %1004 = vmatpush1.msra.mxu0 %v679
        %1005 = vmatprep.subr.mxu0 0.0
        %1006 = vmatpush1.msra.mxu0 %v680
        %1007 = vmatprep.subr.mxu0 0.0
        %1008 = vmatpush1.msra.mxu0 %v681
        %1009 = vmatprep.subr.mxu0 0.0
        %1010 = vmatpush1.msra.mxu0 %v682
        %1011 = vmatprep.subr.mxu0 0.0
        %1012 = vmatpush1.msra.mxu0 %v683
        %1013 = vmatprep.subr.mxu0 0.0
        %1014 = vmatpush1.msra.mxu0 %v684
        %1015 = vmatprep.subr.mxu0 0.0
        %1016 = vmatpush1.msra.mxu0 0.0
        %1017 = vmatprep.subr.mxu0 0.0
        %1018 = vmatpush1.msra.mxu0 0.0
        %1019 = vmatprep.subr.mxu0 0.0
        %1020 = vmatpush1.msra.mxu0 0.0
        %1021 = vmatprep.subr.mxu0 0.0
        %1022 = vmatpush1.msra.mxu0 0.0
        %1023 = vmatprep.subr.mxu0 0.0
        %1024 = vmatpush1.msra.mxu0 0.0
        %1025 = vmatprep.subr.mxu0 0.0
        %1026 = vmatpush1.msra.mxu0 0.0
        %1027 = vmatprep.subr.mxu0 0.0
        %1028 = vmatpush1.msra.mxu0 0.0
        %1029 = vmatprep.subr.mxu0 0.0
        %1030 = vmatpush1.msra.mxu0 0.0
        %1031 = vmatprep.subr.mxu0 0.0
        %1032 = vmatpush1.msra.mxu0 0.0
        %1033 = vmatprep.subr.mxu0 0.0
        %1034 = vmatpush1.msra.mxu0 0.0
        %1035 = vmatprep.subr.mxu0 0.0
        %1036 = vmatpush1.msra.mxu0 0.0
        %1037 = vmatprep.subr.mxu0 0.0
        %1038 = vmatpush1.msra.mxu0 0.0
        %1039 = vmatprep.subr.mxu0 0.0
        %1040 = vmatpush1.msra.mxu0 0.0
        %1041 = vmatprep.subr.mxu0 0.0
        %1042 = vmatpush1.msra.mxu0 0.0
        %1043 = vmatprep.subr.mxu0 0.0
        %1044 = vmatpush1.msra.mxu0 0.0
        %1045 = vmatprep.subr.mxu0 0.0
        %1046 = vmatpush1.msra.mxu0 0.0
        %1047 = vmatprep.mubr.f32.mxu0 0.0
        %1048 = vmatmul.mubr.f32.gmra.mrb[0].mxu0 %v633
        %v1049 = vpop.f32.mrb[0].mxu0
        %v1050 = vadd.f32 %v805, %v1049
        %v1051 = vpop.f32.mrb[0].mxu0
        %1052 = vmatprep.mubr.f32.mxu0 0.0
        %1053 = vmatmul.mubr.f32.gmra.mrb[0].mxu0 %v634
        %v1054 = vpop.f32.mrb[0].mxu0
        %v1055 = vadd.f32 %v810, %v1054
        %v1056 = vpop.f32.mrb[0].mxu0
        %1057 = vmatprep.mubr.f32.mxu0 0.0
        %1058 = vmatmul.mubr.f32.gmra.mrb[0].mxu0 %v635
        %v1059 = vpop.f32.mrb[0].mxu0
        %v1060 = vadd.f32 %v815, %v1059
        %v1061 = vpop.f32.mrb[0].mxu0
        %1062 = vmatprep.mubr.f32.mxu0 0.0
        %1063 = vmatmul.mubr.f32.gmra.mrb[0].mxu0 %v636
        %v1064 = vpop.f32.mrb[0].mxu0
        %v1065 = vadd.f32 %v820, %v1064
        %v1066 = vpop.f32.mrb[0].mxu0
        %1067 = vmatprep.mubr.f32.mxu0 0.0
        %1068 = vmatmul.mubr.f32.gmra.mrb[0].mxu0 %v637
        %v1069 = vpop.f32.mrb[0].mxu0
        %v1070 = vadd.f32 %v825, %v1069
        %v1071 = vpop.f32.mrb[0].mxu0
        %1072 = vmatprep.mubr.f32.mxu0 0.0
        %1073 = vmatmul.mubr.f32.gmra.mrb[0].mxu0 %v638
        %v1074 = vpop.f32.mrb[0].mxu0
        %v1075 = vadd.f32 %v830, %v1074
        %v1076 = vpop.f32.mrb[0].mxu0
        %1077 = vmatprep.mubr.f32.mxu0 0.0
        %1078 = vmatmul.mubr.f32.gmra.mrb[0].mxu0 %v639
        %v1079 = vpop.f32.mrb[0].mxu0
        %v1080 = vadd.f32 %v835, %v1079
        %v1081 = vpop.f32.mrb[0].mxu0
        %1082 = vmatprep.mubr.f32.mxu0 0.0
        %1083 = vmatmul.mubr.f32.gmra.mrb[0].mxu0 %v640
        %v1084 = vpop.f32.mrb[0].mxu0
        %v1085 = vadd.f32 %v840, %v1084
        %v1086 = vpop.f32.mrb[0].mxu0
        %1087 = vmatprep.mubr.f32.mxu0 0.0
        %1088 = vmatmul.mubr.f32.gmra.mrb[0].mxu0 %v641
        %v1089 = vpop.f32.mrb[0].mxu0
        %v1090 = vadd.f32 %v845, %v1089
        %v1091 = vpop.f32.mrb[0].mxu0
        %1092 = vmatprep.mubr.f32.mxu0 0.0
        %1093 = vmatmul.mubr.f32.gmra.mrb[0].mxu0 %v642
        %v1094 = vpop.f32.mrb[0].mxu0
        %v1095 = vadd.f32 %v850, %v1094
        %v1096 = vpop.f32.mrb[0].mxu0
        %1097 = vmatprep.mubr.f32.mxu0 0.0
        %1098 = vmatmul.mubr.f32.gmra.mrb[0].mxu0 %v643
        %v1099 = vpop.f32.mrb[0].mxu0
        %v1100 = vadd.f32 %v855, %v1099
        %v1101 = vpop.f32.mrb[0].mxu0
        %1102 = vmatprep.mubr.f32.mxu0 0.0
        %1103 = vmatmul.mubr.f32.gmra.mrb[0].mxu0 %v644
        %v1104 = vpop.f32.mrb[0].mxu0
        %v1105 = vadd.f32 %v860, %v1104
        %v1106 = vpop.f32.mrb[0].mxu0
        %1107 = vmatprep.mubr.f32.mxu0 0.0
        %1108 = vmatmul.mubr.f32.gmra.mrb[0].mxu0 %v645
        %v1109 = vpop.f32.mrb[0].mxu0
        %v1110 = vadd.f32 %v865, %v1109
        %v1111 = vpop.f32.mrb[0].mxu0
        %1112 = vmatprep.mubr.f32.mxu0 0.0
        %1113 = vmatmul.mubr.f32.gmra.mrb[0].mxu0 %v646
        %v1114 = vpop.f32.mrb[0].mxu0
        %v1115 = vadd.f32 %v870, %v1114
        %v1116 = vpop.f32.mrb[0].mxu0
        %1117 = vmatprep.mubr.f32.mxu0 0.0
        %1118 = vmatmul.mubr.f32.gmra.mrb[0].mxu0 %v647
        %v1119 = vpop.f32.mrb[0].mxu0
        %v1120 = vadd.f32 %v875, %v1119
        %v1121 = vpop.f32.mrb[0].mxu0
        %1122 = vmatprep.mubr.f32.mxu0 0.0
        %1123 = vmatmul.mubr.f32.gmra.mrb[0].mxu0 %v648
        %v1124 = vpop.f32.mrb[0].mxu0
        %v1125 = vadd.f32 %v880, %v1124
        %v1126 = vpop.f32.mrb[0].mxu0
        %1127 = vmatprep.mubr.f32.mxu0 0.0
        %1128 = vmatmul.mubr.f32.gmra.mrb[0].mxu0 %v649
        %v1129 = vpop.f32.mrb[0].mxu0
        %v1130 = vadd.f32 %v885, %v1129
        %v1131 = vpop.f32.mrb[0].mxu0
        %1132 = vmatprep.mubr.f32.mxu0 0.0
        %1133 = vmatmul.mubr.f32.gmra.mrb[0].mxu0 %v650
        %v1134 = vpop.f32.mrb[0].mxu0
        %v1135 = vadd.f32 %v890, %v1134
        %v1136 = vpop.f32.mrb[0].mxu0
        %1137 = vmatprep.mubr.f32.mxu0 0.0
        %1138 = vmatmul.mubr.f32.gmra.mrb[0].mxu0 %v651
        %v1139 = vpop.f32.mrb[0].mxu0
        %v1140 = vadd.f32 %v895, %v1139
        %v1141 = vpop.f32.mrb[0].mxu0
        %1142 = vmatprep.mubr.f32.mxu0 0.0
        %1143 = vmatmul.mubr.f32.gmra.mrb[0].mxu0 %v652
        %v1144 = vpop.f32.mrb[0].mxu0
        %v1145 = vadd.f32 %v900, %v1144
        %v1146 = vpop.f32.mrb[0].mxu0
        %1147 = vmatprep.mubr.f32.mxu0 0.0
        %1148 = vmatmul.mubr.f32.gmra.mrb[0].mxu0 %v653
        %v1149 = vpop.f32.mrb[0].mxu0
        %v1150 = vadd.f32 %v905, %v1149
        %v1151 = vpop.f32.mrb[0].mxu0
        %1152 = vmatprep.mubr.f32.mxu0 0.0
        %1153 = vmatmul.mubr.f32.gmra.mrb[0].mxu0 %v654
        %v1154 = vpop.f32.mrb[0].mxu0
        %v1155 = vadd.f32 %v910, %v1154
        %v1156 = vpop.f32.mrb[0].mxu0
        %1157 = vmatprep.mubr.f32.mxu0 0.0
        %1158 = vmatmul.mubr.f32.gmra.mrb[0].mxu0 %v655
        %v1159 = vpop.f32.mrb[0].mxu0
        %v1160 = vadd.f32 %v915, %v1159
        %v1161 = vpop.f32.mrb[0].mxu0
        %1162 = vmatprep.mubr.f32.mxu0 0.0
        %1163 = vmatmul.mubr.f32.gmra.mrb[0].mxu0 %v656
        %v1164 = vpop.f32.mrb[0].mxu0
        %v1165 = vadd.f32 %v920, %v1164
        %v1166 = vpop.f32.mrb[0].mxu0
        %1167 = vmatprep.mubr.f32.mxu0 0.0
        %1168 = vmatmul.mubr.f32.gmra.mrb[0].mxu0 %v657
        %v1169 = vpop.f32.mrb[0].mxu0
        %v1170 = vadd.f32 %v925, %v1169
        %v1171 = vpop.f32.mrb[0].mxu0
        %1172 = vmatprep.mubr.f32.mxu0 0.0
        %1173 = vmatmul.mubr.f32.gmra.mrb[0].mxu0 %v658
        %v1174 = vpop.f32.mrb[0].mxu0
        %v1175 = vadd.f32 %v930, %v1174
        %v1176 = vpop.f32.mrb[0].mxu0
        %1177 = vmatprep.mubr.f32.mxu0 0.0
        %1178 = vmatmul.mubr.f32.gmra.mrb[0].mxu0 %v659
        %v1179 = vpop.f32.mrb[0].mxu0
        %v1180 = vadd.f32 %v935, %v1179
        %v1181 = vpop.f32.mrb[0].mxu0
        %1182 = vmatprep.mubr.f32.mxu0 0.0
        %1183 = vmatmul.mubr.f32.gmra.mrb[0].mxu0 %v660
        %v1184 = vpop.f32.mrb[0].mxu0
        %v1185 = vadd.f32 %v940, %v1184
        %v1186 = vpop.f32.mrb[0].mxu0
        %1187 = vmatprep.mubr.f32.mxu0 0.0
        %1188 = vmatmul.mubr.f32.gmra.mrb[0].mxu0 %v661
        %v1189 = vpop.f32.mrb[0].mxu0
        %v1190 = vadd.f32 %v945, %v1189
        %v1191 = vpop.f32.mrb[0].mxu0
        %1192 = vmatprep.mubr.f32.mxu0 0.0
        %1193 = vmatmul.mubr.f32.gmra.mrb[0].mxu0 %v662
        %v1194 = vpop.f32.mrb[0].mxu0
        %v1195 = vadd.f32 %v950, %v1194
        %v1196 = vpop.f32.mrb[0].mxu0
        %1197 = vmatprep.mubr.f32.mxu0 0.0
        %1198 = vmatmul.mubr.f32.gmra.mrb[0].mxu0 %v663
        %v1199 = vpop.f32.mrb[0].mxu0
        %v1200 = vadd.f32 %v955, %v1199
        %v1201 = vpop.f32.mrb[0].mxu0
        %1202 = vmatprep.mubr.f32.mxu0 0.0
        %1203 = vmatmul.mubr.f32.gmra.mrb[0].mxu0 %v664
        %v1204 = vpop.f32.mrb[0].mxu0
        %v1205 = vadd.f32 %v960, %v1204
        %v1206 = vpop.f32.mrb[0].mxu0
        %1207 = vmatprep.mubr.f32.mxu0 0.0
        %1208 = vmatmul.mubr.f32.gmra.mrb[0].mxu0 %v665
        %v1209 = vpop.f32.mrb[0].mxu0
        %v1210 = vadd.f32 %v965, %v1209
        %v1211 = vpop.f32.mrb[0].mxu0
        %1212 = vmatprep.mubr.f32.mxu0 0.0
        %1213 = vmatmul.mubr.f32.gmra.mrb[0].mxu0 %v666
        %v1214 = vpop.f32.mrb[0].mxu0
        %v1215 = vadd.f32 %v970, %v1214
        %v1216 = vpop.f32.mrb[0].mxu0
        %1217 = vmatprep.mubr.f32.mxu0 0.0
        %1218 = vmatmul.mubr.f32.gmra.mrb[0].mxu0 %v667
        %v1219 = vpop.f32.mrb[0].mxu0
        %v1220 = vadd.f32 %v975, %v1219
        %v1221 = vpop.f32.mrb[0].mxu0
        %1222 = vmatprep.mubr.f32.mxu0 0.0
        %1223 = vmatmul.mubr.f32.gmra.mrb[0].mxu0 %v668
        %v1224 = vpop.f32.mrb[0].mxu0
        %v1225 = vadd.f32 %v980, %v1224
        %v1226 = vpop.f32.mrb[0].mxu0
        %1227 = vdwg.mxu0
        %v1228 = vld [vmem:[#allocation2 + $0x7] sm:$0xff]
        %v1229 = vld [vmem:[#allocation2 + $0xf] sm:$0xff]
        %v1230 = vld [vmem:[#allocation2 + $0x17] sm:$0xff]
        %v1231 = vld [vmem:[#allocation2 + $0x1f] sm:$0xff]
        %v1232 = vld [vmem:[#allocation2 + $0x27] sm:$0xff]
        %v1233 = vld [vmem:[#allocation2 + $0x2f] sm:$0xff]
        %v1234 = vld [vmem:[#allocation2 + $0x37] sm:$0xff]
        %v1235 = vld [vmem:[#allocation2 + $0x3f] sm:$0xff]
        %v1236 = vld [vmem:[#allocation2 + $0x47] sm:$0xff]
        %v1237 = vld [vmem:[#allocation2 + $0x4f] sm:$0xff]
        %v1238 = vld [vmem:[#allocation2 + $0x57] sm:$0xff]
        %v1239 = vld [vmem:[#allocation2 + $0x5f] sm:$0xff]
        %v1240 = vld [vmem:[#allocation2 + $0x67] sm:$0xff]
        %v1241 = vld [vmem:[#allocation2 + $0x6f] sm:$0xff]
        %v1242 = vld [vmem:[#allocation2 + $0x77] sm:$0xff]
        %v1243 = vld [vmem:[#allocation2 + $0x7f] sm:$0xff]
        %v1244 = vld [vmem:[#allocation2 + $0x87] sm:$0xff]
        %v1245 = vld [vmem:[#allocation2 + $0x8f] sm:$0xff]
        %v1246 = vld [vmem:[#allocation2 + $0x97] sm:$0xff]
        %v1247 = vld [vmem:[#allocation2 + $0x9f] sm:$0xff]
        %v1248 = vld [vmem:[#allocation2 + $0xa7] sm:$0xff]
        %v1249 = vld [vmem:[#allocation2 + $0xaf] sm:$0xff]
        %v1250 = vld [vmem:[#allocation2 + $0xb7] sm:$0xff]
        %v1251 = vld [vmem:[#allocation2 + $0xbf] sm:$0xff]
        %v1252 = vld [vmem:[#allocation2 + $0xc7] sm:$0xff]
        %v1253 = vld [vmem:[#allocation2 + $0xcf] sm:$0xff]
        %v1254 = vld [vmem:[#allocation2 + $0xd7] sm:$0xff]
        %v1255 = vld [vmem:[#allocation2 + $0xdf] sm:$0xff]
        %v1256 = vld [vmem:[#allocation2 + $0xe7] sm:$0xff]
        %v1257 = vld [vmem:[#allocation2 + $0xef] sm:$0xff]
        %v1258 = vld [vmem:[#allocation2 + $0xf7] sm:$0xff]
        %v1259 = vld [vmem:[#allocation2 + $0xff] sm:$0xff]
        %v1260 = vld [vmem:[#allocation2 + $0x107] sm:$0xff]
        %v1261 = vld [vmem:[#allocation2 + $0x10f] sm:$0xff]
        %v1262 = vld [vmem:[#allocation2 + $0x117] sm:$0xff]
        %v1263 = vld [vmem:[#allocation2 + $0x11f] sm:$0xff]
        %s1264 = scalar_lea.vmem [#allocation8], 256
        %v1265 = vld [vmem:[%s1264] sm:$0xff]
        %v1266 = vld [vmem:[%s1264 + $0x8] sm:$0xff]
        %v1267 = vld [vmem:[%s1264 + $0x10] sm:$0xff]
        %v1268 = vld [vmem:[%s1264 + $0x18] sm:$0xff]
        %v1269 = vld [vmem:[%s1264 + $0x20] sm:$0xff]
        %v1270 = vld [vmem:[%s1264 + $0x28] sm:$0xff]
        %v1271 = vld [vmem:[%s1264 + $0x30] sm:$0xff]
        %v1272 = vld [vmem:[%s1264 + $0x38] sm:$0xff]
        %v1273 = vld [vmem:[%s1264 + $0x40] sm:$0xff]
        %v1274 = vld [vmem:[%s1264 + $0x48] sm:$0xff]
        %v1275 = vld [vmem:[%s1264 + $0x50] sm:$0xff]
        %v1276 = vld [vmem:[%s1264 + $0x58] sm:$0xff]
        %v1277 = vld [vmem:[%s1264 + $0x60] sm:$0xff]
        %v1278 = vld [vmem:[%s1264 + $0x68] sm:$0xff]
        %v1279 = vld [vmem:[%s1264 + $0x70] sm:$0xff]
        %v1280 = vld [vmem:[%s1264 + $0x78] sm:$0xff]
        %1281 = vmatprep.subr.mxu0 0.0
        %1282 = vmatpush1.msra.mxu0 %v1265
        %1283 = vmatprep.subr.mxu0 0.0
        %1284 = vmatpush1.msra.mxu0 %v1266
        %1285 = vmatprep.subr.mxu0 0.0
        %1286 = vmatpush1.msra.mxu0 %v1267
        %1287 = vmatprep.subr.mxu0 0.0
        %1288 = vmatpush1.msra.mxu0 %v1268
        %1289 = vmatprep.subr.mxu0 0.0
        %1290 = vmatpush1.msra.mxu0 %v1269
        %1291 = vmatprep.subr.mxu0 0.0
        %1292 = vmatpush1.msra.mxu0 %v1270
        %1293 = vmatprep.subr.mxu0 0.0
        %1294 = vmatpush1.msra.mxu0 %v1271
        %1295 = vmatprep.subr.mxu0 0.0
        %1296 = vmatpush1.msra.mxu0 %v1272
        %1297 = vmatprep.subr.mxu0 0.0
        %1298 = vmatpush1.msra.mxu0 %v1273
        %1299 = vmatprep.subr.mxu0 0.0
        %1300 = vmatpush1.msra.mxu0 %v1274
        %1301 = vmatprep.subr.mxu0 0.0
        %1302 = vmatpush1.msra.mxu0 %v1275
        %1303 = vmatprep.subr.mxu0 0.0
        %1304 = vmatpush1.msra.mxu0 %v1276
        %1305 = vmatprep.subr.mxu0 0.0
        %1306 = vmatpush1.msra.mxu0 %v1277
        %1307 = vmatprep.subr.mxu0 0.0
        %1308 = vmatpush1.msra.mxu0 %v1278
        %1309 = vmatprep.subr.mxu0 0.0
        %1310 = vmatpush1.msra.mxu0 %v1279
        %1311 = vmatprep.subr.mxu0 0.0
        %1312 = vmatpush1.msra.mxu0 %v1280
        %1313 = vmatprep.subr.mxu0 0.0
        %1314 = vmatpush1.msra.mxu0 0.0
        %1315 = vmatprep.subr.mxu0 0.0
        %1316 = vmatpush1.msra.mxu0 0.0
        %1317 = vmatprep.subr.mxu0 0.0
        %1318 = vmatpush1.msra.mxu0 0.0
        %1319 = vmatprep.subr.mxu0 0.0
        %1320 = vmatpush1.msra.mxu0 0.0
        %1321 = vmatprep.subr.mxu0 0.0
        %1322 = vmatpush1.msra.mxu0 0.0
        %1323 = vmatprep.subr.mxu0 0.0
        %1324 = vmatpush1.msra.mxu0 0.0
        %1325 = vmatprep.subr.mxu0 0.0
        %1326 = vmatpush1.msra.mxu0 0.0
        %1327 = vmatprep.subr.mxu0 0.0
        %1328 = vmatpush1.msra.mxu0 0.0
        %1329 = vmatprep.subr.mxu0 0.0
        %1330 = vmatpush1.msra.mxu0 0.0
        %1331 = vmatprep.subr.mxu0 0.0
        %1332 = vmatpush1.msra.mxu0 0.0
        %1333 = vmatprep.subr.mxu0 0.0
        %1334 = vmatpush1.msra.mxu0 0.0
        %1335 = vmatprep.subr.mxu0 0.0
        %1336 = vmatpush1.msra.mxu0 0.0
        %1337 = vmatprep.subr.mxu0 0.0
        %1338 = vmatpush1.msra.mxu0 0.0
        %1339 = vmatprep.subr.mxu0 0.0
        %1340 = vmatpush1.msra.mxu0 0.0
        %1341 = vmatprep.subr.mxu0 0.0
        %1342 = vmatpush1.msra.mxu0 0.0
        %1343 = vmatprep.subr.mxu0 0.0
        %1344 = vmatpush1.msra.mxu0 0.0
        %1345 = vmatprep.mubr.f32.mxu0 0.0
        %1346 = vmatmul.mubr.f32.gmra.mrb[0].mxu0 %v1228
        %v1347 = vpop.f32.mrb[0].mxu0
        %v1348 = vadd.f32 0.0, %v1347
        %v1349 = vpop.f32.mrb[0].mxu0
        %1350 = vmatprep.mubr.f32.mxu0 0.0
        %1351 = vmatmul.mubr.f32.gmra.mrb[0].mxu0 %v1229
        %v1352 = vpop.f32.mrb[0].mxu0
        %v1353 = vadd.f32 0.0, %v1352
        %v1354 = vpop.f32.mrb[0].mxu0
        %1355 = vmatprep.mubr.f32.mxu0 0.0
        %1356 = vmatmul.mubr.f32.gmra.mrb[0].mxu0 %v1230
        %v1357 = vpop.f32.mrb[0].mxu0
        %v1358 = vadd.f32 0.0, %v1357
        %v1359 = vpop.f32.mrb[0].mxu0
        %1360 = vmatprep.mubr.f32.mxu0 0.0
        %1361 = vmatmul.mubr.f32.gmra.mrb[0].mxu0 %v1231
        %v1362 = vpop.f32.mrb[0].mxu0
        %v1363 = vadd.f32 0.0, %v1362
        %v1364 = vpop.f32.mrb[0].mxu0
        %1365 = vmatprep.mubr.f32.mxu0 0.0
        %1366 = vmatmul.mubr.f32.gmra.mrb[0].mxu0 %v1232
        %v1367 = vpop.f32.mrb[0].mxu0
        %v1368 = vadd.f32 0.0, %v1367
        %v1369 = vpop.f32.mrb[0].mxu0
        %1370 = vmatprep.mubr.f32.mxu0 0.0
        %1371 = vmatmul.mubr.f32.gmra.mrb[0].mxu0 %v1233
        %v1372 = vpop.f32.mrb[0].mxu0
        %v1373 = vadd.f32 0.0, %v1372
        %v1374 = vpop.f32.mrb[0].mxu0
        %1375 = vmatprep.mubr.f32.mxu0 0.0
        %1376 = vmatmul.mubr.f32.gmra.mrb[0].mxu0 %v1234
        %v1377 = vpop.f32.mrb[0].mxu0
        %v1378 = vadd.f32 0.0, %v1377
        %v1379 = vpop.f32.mrb[0].mxu0
        %1380 = vmatprep.mubr.f32.mxu0 0.0
        %1381 = vmatmul.mubr.f32.gmra.mrb[0].mxu0 %v1235
        %v1382 = vpop.f32.mrb[0].mxu0
        %v1383 = vadd.f32 0.0, %v1382
        %v1384 = vpop.f32.mrb[0].mxu0
        %1385 = vmatprep.mubr.f32.mxu0 0.0
        %1386 = vmatmul.mubr.f32.gmra.mrb[0].mxu0 %v1236
        %v1387 = vpop.f32.mrb[0].mxu0
        %v1388 = vadd.f32 0.0, %v1387
        %v1389 = vpop.f32.mrb[0].mxu0
        %1390 = vmatprep.mubr.f32.mxu0 0.0
        %1391 = vmatmul.mubr.f32.gmra.mrb[0].mxu0 %v1237
        %v1392 = vpop.f32.mrb[0].mxu0
        %v1393 = vadd.f32 0.0, %v1392
        %v1394 = vpop.f32.mrb[0].mxu0
        %1395 = vmatprep.mubr.f32.mxu0 0.0
        %1396 = vmatmul.mubr.f32.gmra.mrb[0].mxu0 %v1238
        %v1397 = vpop.f32.mrb[0].mxu0
        %v1398 = vadd.f32 0.0, %v1397
        %v1399 = vpop.f32.mrb[0].mxu0
        %1400 = vmatprep.mubr.f32.mxu0 0.0
        %1401 = vmatmul.mubr.f32.gmra.mrb[0].mxu0 %v1239
        %v1402 = vpop.f32.mrb[0].mxu0
        %v1403 = vadd.f32 0.0, %v1402
        %v1404 = vpop.f32.mrb[0].mxu0
        %1405 = vmatprep.mubr.f32.mxu0 0.0
        %1406 = vmatmul.mubr.f32.gmra.mrb[0].mxu0 %v1240
        %v1407 = vpop.f32.mrb[0].mxu0
        %v1408 = vadd.f32 0.0, %v1407
        %v1409 = vpop.f32.mrb[0].mxu0
        %1410 = vmatprep.mubr.f32.mxu0 0.0
        %1411 = vmatmul.mubr.f32.gmra.mrb[0].mxu0 %v1241
        %v1412 = vpop.f32.mrb[0].mxu0
        %v1413 = vadd.f32 0.0, %v1412
        %v1414 = vpop.f32.mrb[0].mxu0
        %1415 = vmatprep.mubr.f32.mxu0 0.0
        %1416 = vmatmul.mubr.f32.gmra.mrb[0].mxu0 %v1242
        %v1417 = vpop.f32.mrb[0].mxu0
        %v1418 = vadd.f32 0.0, %v1417
        %v1419 = vpop.f32.mrb[0].mxu0
        %1420 = vmatprep.mubr.f32.mxu0 0.0
        %1421 = vmatmul.mubr.f32.gmra.mrb[0].mxu0 %v1243
        %v1422 = vpop.f32.mrb[0].mxu0
        %v1423 = vadd.f32 0.0, %v1422
        %v1424 = vpop.f32.mrb[0].mxu0
        %1425 = vmatprep.mubr.f32.mxu0 0.0
        %1426 = vmatmul.mubr.f32.gmra.mrb[0].mxu0 %v1244
        %v1427 = vpop.f32.mrb[0].mxu0
        %v1428 = vadd.f32 0.0, %v1427
        %v1429 = vpop.f32.mrb[0].mxu0
        %1430 = vmatprep.mubr.f32.mxu0 0.0
        %1431 = vmatmul.mubr.f32.gmra.mrb[0].mxu0 %v1245
        %v1432 = vpop.f32.mrb[0].mxu0
        %v1433 = vadd.f32 0.0, %v1432
        %v1434 = vpop.f32.mrb[0].mxu0
        %1435 = vmatprep.mubr.f32.mxu0 0.0
        %1436 = vmatmul.mubr.f32.gmra.mrb[0].mxu0 %v1246
        %v1437 = vpop.f32.mrb[0].mxu0
        %v1438 = vadd.f32 0.0, %v1437
        %v1439 = vpop.f32.mrb[0].mxu0
        %1440 = vmatprep.mubr.f32.mxu0 0.0
        %1441 = vmatmul.mubr.f32.gmra.mrb[0].mxu0 %v1247
        %v1442 = vpop.f32.mrb[0].mxu0
        %v1443 = vadd.f32 0.0, %v1442
        %v1444 = vpop.f32.mrb[0].mxu0
        %1445 = vmatprep.mubr.f32.mxu0 0.0
        %1446 = vmatmul.mubr.f32.gmra.mrb[0].mxu0 %v1248
        %v1447 = vpop.f32.mrb[0].mxu0
        %v1448 = vadd.f32 0.0, %v1447
        %v1449 = vpop.f32.mrb[0].mxu0
        %1450 = vmatprep.mubr.f32.mxu0 0.0
        %1451 = vmatmul.mubr.f32.gmra.mrb[0].mxu0 %v1249
        %v1452 = vpop.f32.mrb[0].mxu0
        %v1453 = vadd.f32 0.0, %v1452
        %v1454 = vpop.f32.mrb[0].mxu0
        %1455 = vmatprep.mubr.f32.mxu0 0.0
        %1456 = vmatmul.mubr.f32.gmra.mrb[0].mxu0 %v1250
        %v1457 = vpop.f32.mrb[0].mxu0
        %v1458 = vadd.f32 0.0, %v1457
        %v1459 = vpop.f32.mrb[0].mxu0
        %1460 = vmatprep.mubr.f32.mxu0 0.0
        %1461 = vmatmul.mubr.f32.gmra.mrb[0].mxu0 %v1251
        %v1462 = vpop.f32.mrb[0].mxu0
        %v1463 = vadd.f32 0.0, %v1462
        %v1464 = vpop.f32.mrb[0].mxu0
        %1465 = vmatprep.mubr.f32.mxu0 0.0
        %1466 = vmatmul.mubr.f32.gmra.mrb[0].mxu0 %v1252
        %v1467 = vpop.f32.mrb[0].mxu0
        %v1468 = vadd.f32 0.0, %v1467
        %v1469 = vpop.f32.mrb[0].mxu0
        %1470 = vmatprep.mubr.f32.mxu0 0.0
        %1471 = vmatmul.mubr.f32.gmra.mrb[0].mxu0 %v1253
        %v1472 = vpop.f32.mrb[0].mxu0
        %v1473 = vadd.f32 0.0, %v1472
        %v1474 = vpop.f32.mrb[0].mxu0
        %1475 = vmatprep.mubr.f32.mxu0 0.0
        %1476 = vmatmul.mubr.f32.gmra.mrb[0].mxu0 %v1254
        %v1477 = vpop.f32.mrb[0].mxu0
        %v1478 = vadd.f32 0.0, %v1477
        %v1479 = vpop.f32.mrb[0].mxu0
        %1480 = vmatprep.mubr.f32.mxu0 0.0
        %1481 = vmatmul.mubr.f32.gmra.mrb[0].mxu0 %v1255
        %v1482 = vpop.f32.mrb[0].mxu0
        %v1483 = vadd.f32 0.0, %v1482
        %v1484 = vpop.f32.mrb[0].mxu0
        %1485 = vmatprep.mubr.f32.mxu0 0.0
        %1486 = vmatmul.mubr.f32.gmra.mrb[0].mxu0 %v1256
        %v1487 = vpop.f32.mrb[0].mxu0
        %v1488 = vadd.f32 0.0, %v1487
        %v1489 = vpop.f32.mrb[0].mxu0
        %1490 = vmatprep.mubr.f32.mxu0 0.0
        %1491 = vmatmul.mubr.f32.gmra.mrb[0].mxu0 %v1257
        %v1492 = vpop.f32.mrb[0].mxu0
        %v1493 = vadd.f32 0.0, %v1492
        %v1494 = vpop.f32.mrb[0].mxu0
        %1495 = vmatprep.mubr.f32.mxu0 0.0
        %1496 = vmatmul.mubr.f32.gmra.mrb[0].mxu0 %v1258
        %v1497 = vpop.f32.mrb[0].mxu0
        %v1498 = vadd.f32 0.0, %v1497
        %v1499 = vpop.f32.mrb[0].mxu0
        %1500 = vmatprep.mubr.f32.mxu0 0.0
        %1501 = vmatmul.mubr.f32.gmra.mrb[0].mxu0 %v1259
        %v1502 = vpop.f32.mrb[0].mxu0
        %v1503 = vadd.f32 0.0, %v1502
        %v1504 = vpop.f32.mrb[0].mxu0
        %1505 = vmatprep.mubr.f32.mxu0 0.0
        %1506 = vmatmul.mubr.f32.gmra.mrb[0].mxu0 %v1260
        %v1507 = vpop.f32.mrb[0].mxu0
        %v1508 = vadd.f32 0.0, %v1507
        %v1509 = vpop.f32.mrb[0].mxu0
        %1510 = vmatprep.mubr.f32.mxu0 0.0
        %1511 = vmatmul.mubr.f32.gmra.mrb[0].mxu0 %v1261
        %v1512 = vpop.f32.mrb[0].mxu0
        %v1513 = vadd.f32 0.0, %v1512
        %v1514 = vpop.f32.mrb[0].mxu0
        %1515 = vmatprep.mubr.f32.mxu0 0.0
        %1516 = vmatmul.mubr.f32.gmra.mrb[0].mxu0 %v1262
        %v1517 = vpop.f32.mrb[0].mxu0
        %v1518 = vadd.f32 0.0, %v1517
        %v1519 = vpop.f32.mrb[0].mxu0
        %1520 = vmatprep.mubr.f32.mxu0 0.0
        %1521 = vmatmul.mubr.f32.gmra.mrb[0].mxu0 %v1263
        %v1522 = vpop.f32.mrb[0].mxu0
        %v1523 = vadd.f32 0.0, %v1522
        %v1524 = vpop.f32.mrb[0].mxu0
        %1525 = vdwg.mxu0
        %v1526 = vadd.f32 %v1050, %v1348
        %v1527 = vadd.f32 %v1055, %v1353
        %v1528 = vadd.f32 %v1060, %v1358
        %v1529 = vadd.f32 %v1065, %v1363
        %v1530 = vadd.f32 %v1070, %v1368
        %v1531 = vadd.f32 %v1075, %v1373
        %v1532 = vadd.f32 %v1080, %v1378
        %v1533 = vadd.f32 %v1085, %v1383
        %v1534 = vadd.f32 %v1090, %v1388
        %v1535 = vadd.f32 %v1095, %v1393
        %v1536 = vadd.f32 %v1100, %v1398
        %v1537 = vadd.f32 %v1105, %v1403
        %v1538 = vadd.f32 %v1110, %v1408
        %v1539 = vadd.f32 %v1115, %v1413
        %v1540 = vadd.f32 %v1120, %v1418
        %v1541 = vadd.f32 %v1125, %v1423
        %v1542 = vadd.f32 %v1130, %v1428
        %v1543 = vadd.f32 %v1135, %v1433
        %v1544 = vadd.f32 %v1140, %v1438
        %v1545 = vadd.f32 %v1145, %v1443
        %v1546 = vadd.f32 %v1150, %v1448
        %v1547 = vadd.f32 %v1155, %v1453
        %v1548 = vadd.f32 %v1160, %v1458
        %v1549 = vadd.f32 %v1165, %v1463
        %v1550 = vadd.f32 %v1170, %v1468
        %v1551 = vadd.f32 %v1175, %v1473
        %v1552 = vadd.f32 %v1180, %v1478
        %v1553 = vadd.f32 %v1185, %v1483
        %v1554 = vadd.f32 %v1190, %v1488
        %v1555 = vadd.f32 %v1195, %v1493
        %v1556 = vadd.f32 %v1200, %v1498
        %v1557 = vadd.f32 %v1205, %v1503
        %v1558 = vadd.f32 %v1210, %v1508
        %v1559 = vadd.f32 %v1215, %v1513
        %v1560 = vadd.f32 %v1220, %v1518
        %v1561 = vadd.f32 %v1225, %v1523
        %v1562 = vld [vmem:[#allocation2 + $0x17] sm:$0xff]
        %v1563 = vld [vmem:[#allocation2 + $0x1f] sm:$0xff]
        %v1564 = vld [vmem:[#allocation2 + $0x27] sm:$0xff]
        %v1565 = vld [vmem:[#allocation2 + $0x2f] sm:$0xff]
        %v1566 = vld [vmem:[#allocation2 + $0x37] sm:$0xff]
        %v1567 = vld [vmem:[#allocation2 + $0x3f] sm:$0xff]
        %v1568 = vld [vmem:[#allocation2 + $0x47] sm:$0xff]
        %v1569 = vld [vmem:[#allocation2 + $0x4f] sm:$0xff]
        %v1570 = vld [vmem:[#allocation2 + $0x57] sm:$0xff]
        %v1571 = vld [vmem:[#allocation2 + $0x5f] sm:$0xff]
        %v1572 = vld [vmem:[#allocation2 + $0x67] sm:$0xff]
        %v1573 = vld [vmem:[#allocation2 + $0x6f] sm:$0xff]
        %v1574 = vld [vmem:[#allocation2 + $0x77] sm:$0xff]
        %v1575 = vld [vmem:[#allocation2 + $0x7f] sm:$0xff]
        %v1576 = vld [vmem:[#allocation2 + $0x87] sm:$0xff]
        %v1577 = vld [vmem:[#allocation2 + $0x8f] sm:$0xff]
        %v1578 = vld [vmem:[#allocation2 + $0x97] sm:$0xff]
        %v1579 = vld [vmem:[#allocation2 + $0x9f] sm:$0xff]
        %v1580 = vld [vmem:[#allocation2 + $0xa7] sm:$0xff]
        %v1581 = vld [vmem:[#allocation2 + $0xaf] sm:$0xff]
        %v1582 = vld [vmem:[#allocation2 + $0xb7] sm:$0xff]
        %v1583 = vld [vmem:[#allocation2 + $0xbf] sm:$0xff]
        %v1584 = vld [vmem:[#allocation2 + $0xc7] sm:$0xff]
        %v1585 = vld [vmem:[#allocation2 + $0xcf] sm:$0xff]
        %v1586 = vld [vmem:[#allocation2 + $0xd7] sm:$0xff]
        %v1587 = vld [vmem:[#allocation2 + $0xdf] sm:$0xff]
        %v1588 = vld [vmem:[#allocation2 + $0xe7] sm:$0xff]
        %v1589 = vld [vmem:[#allocation2 + $0xef] sm:$0xff]
        %v1590 = vld [vmem:[#allocation2 + $0xf7] sm:$0xff]
        %v1591 = vld [vmem:[#allocation2 + $0xff] sm:$0xff]
        %v1592 = vld [vmem:[#allocation2 + $0x107] sm:$0xff]
        %v1593 = vld [vmem:[#allocation2 + $0x10f] sm:$0xff]
        %v1594 = vld [vmem:[#allocation2 + $0x117] sm:$0xff]
        %v1595 = vld [vmem:[#allocation2 + $0x11f] sm:$0xff]
        %v1596 = vld [vmem:[#allocation2 + $0x127] sm:$0xff]
        %v1597 = vld [vmem:[#allocation2 + $0x12f] sm:$0xff]
        %s1598 = scalar_lea.vmem [#allocation8], 384
        %v1599 = vld [vmem:[%s1598] sm:$0xff]
        %v1600 = vld [vmem:[%s1598 + $0x8] sm:$0xff]
        %v1601 = vld [vmem:[%s1598 + $0x10] sm:$0xff]
        %v1602 = vld [vmem:[%s1598 + $0x18] sm:$0xff]
        %v1603 = vld [vmem:[%s1598 + $0x20] sm:$0xff]
        %v1604 = vld [vmem:[%s1598 + $0x28] sm:$0xff]
        %v1605 = vld [vmem:[%s1598 + $0x30] sm:$0xff]
        %v1606 = vld [vmem:[%s1598 + $0x38] sm:$0xff]
        %v1607 = vld [vmem:[%s1598 + $0x40] sm:$0xff]
        %v1608 = vld [vmem:[%s1598 + $0x48] sm:$0xff]
        %v1609 = vld [vmem:[%s1598 + $0x50] sm:$0xff]
        %v1610 = vld [vmem:[%s1598 + $0x58] sm:$0xff]
        %v1611 = vld [vmem:[%s1598 + $0x60] sm:$0xff]
        %v1612 = vld [vmem:[%s1598 + $0x68] sm:$0xff]
        %v1613 = vld [vmem:[%s1598 + $0x70] sm:$0xff]
        %v1614 = vld [vmem:[%s1598 + $0x78] sm:$0xff]
        %1615 = vmatprep.subr.mxu0 0.0
        %1616 = vmatpush1.msra.mxu0 %v1599
        %1617 = vmatprep.subr.mxu0 0.0
        %1618 = vmatpush1.msra.mxu0 %v1600
        %1619 = vmatprep.subr.mxu0 0.0
        %1620 = vmatpush1.msra.mxu0 %v1601
        %1621 = vmatprep.subr.mxu0 0.0
        %1622 = vmatpush1.msra.mxu0 %v1602
        %1623 = vmatprep.subr.mxu0 0.0
        %1624 = vmatpush1.msra.mxu0 %v1603
        %1625 = vmatprep.subr.mxu0 0.0
        %1626 = vmatpush1.msra.mxu0 %v1604
        %1627 = vmatprep.subr.mxu0 0.0
        %1628 = vmatpush1.msra.mxu0 %v1605
        %1629 = vmatprep.subr.mxu0 0.0
        %1630 = vmatpush1.msra.mxu0 %v1606
        %1631 = vmatprep.subr.mxu0 0.0
        %1632 = vmatpush1.msra.mxu0 %v1607
        %1633 = vmatprep.subr.mxu0 0.0
        %1634 = vmatpush1.msra.mxu0 %v1608
        %1635 = vmatprep.subr.mxu0 0.0
        %1636 = vmatpush1.msra.mxu0 %v1609
        %1637 = vmatprep.subr.mxu0 0.0
        %1638 = vmatpush1.msra.mxu0 %v1610
        %1639 = vmatprep.subr.mxu0 0.0
        %1640 = vmatpush1.msra.mxu0 %v1611
        %1641 = vmatprep.subr.mxu0 0.0
        %1642 = vmatpush1.msra.mxu0 %v1612
        %1643 = vmatprep.subr.mxu0 0.0
        %1644 = vmatpush1.msra.mxu0 %v1613
        %1645 = vmatprep.subr.mxu0 0.0
        %1646 = vmatpush1.msra.mxu0 %v1614
        %1647 = vmatprep.subr.mxu0 0.0
        %1648 = vmatpush1.msra.mxu0 0.0
        %1649 = vmatprep.subr.mxu0 0.0
        %1650 = vmatpush1.msra.mxu0 0.0
        %1651 = vmatprep.subr.mxu0 0.0
        %1652 = vmatpush1.msra.mxu0 0.0
        %1653 = vmatprep.subr.mxu0 0.0
        %1654 = vmatpush1.msra.mxu0 0.0
        %1655 = vmatprep.subr.mxu0 0.0
        %1656 = vmatpush1.msra.mxu0 0.0
        %1657 = vmatprep.subr.mxu0 0.0
        %1658 = vmatpush1.msra.mxu0 0.0
        %1659 = vmatprep.subr.mxu0 0.0
        %1660 = vmatpush1.msra.mxu0 0.0
        %1661 = vmatprep.subr.mxu0 0.0
        %1662 = vmatpush1.msra.mxu0 0.0
        %1663 = vmatprep.subr.mxu0 0.0
        %1664 = vmatpush1.msra.mxu0 0.0
        %1665 = vmatprep.subr.mxu0 0.0
        %1666 = vmatpush1.msra.mxu0 0.0
        %1667 = vmatprep.subr.mxu0 0.0
        %1668 = vmatpush1.msra.mxu0 0.0
        %1669 = vmatprep.subr.mxu0 0.0
        %1670 = vmatpush1.msra.mxu0 0.0
        %1671 = vmatprep.subr.mxu0 0.0
        %1672 = vmatpush1.msra.mxu0 0.0
        %1673 = vmatprep.subr.mxu0 0.0
        %1674 = vmatpush1.msra.mxu0 0.0
        %1675 = vmatprep.subr.mxu0 0.0
        %1676 = vmatpush1.msra.mxu0 0.0
        %1677 = vmatprep.subr.mxu0 0.0
        %1678 = vmatpush1.msra.mxu0 0.0
        %1679 = vmatprep.mubr.f32.mxu0 0.0
        %1680 = vmatmul.mubr.f32.gmra.mrb[0].mxu0 %v1562
        %v1681 = vpop.f32.mrb[0].mxu0
        %v1682 = vadd.f32 0.0, %v1681
        %v1683 = vpop.f32.mrb[0].mxu0
        %1684 = vmatprep.mubr.f32.mxu0 0.0
        %1685 = vmatmul.mubr.f32.gmra.mrb[0].mxu0 %v1563
        %v1686 = vpop.f32.mrb[0].mxu0
        %v1687 = vadd.f32 0.0, %v1686
        %v1688 = vpop.f32.mrb[0].mxu0
        %1689 = vmatprep.mubr.f32.mxu0 0.0
        %1690 = vmatmul.mubr.f32.gmra.mrb[0].mxu0 %v1564
        %v1691 = vpop.f32.mrb[0].mxu0
        %v1692 = vadd.f32 0.0, %v1691
        %v1693 = vpop.f32.mrb[0].mxu0
        %1694 = vmatprep.mubr.f32.mxu0 0.0
        %1695 = vmatmul.mubr.f32.gmra.mrb[0].mxu0 %v1565
        %v1696 = vpop.f32.mrb[0].mxu0
        %v1697 = vadd.f32 0.0, %v1696
        %v1698 = vpop.f32.mrb[0].mxu0
        %1699 = vmatprep.mubr.f32.mxu0 0.0
        %1700 = vmatmul.mubr.f32.gmra.mrb[0].mxu0 %v1566
        %v1701 = vpop.f32.mrb[0].mxu0
        %v1702 = vadd.f32 0.0, %v1701
        %v1703 = vpop.f32.mrb[0].mxu0
        %1704 = vmatprep.mubr.f32.mxu0 0.0
        %1705 = vmatmul.mubr.f32.gmra.mrb[0].mxu0 %v1567
        %v1706 = vpop.f32.mrb[0].mxu0
        %v1707 = vadd.f32 0.0, %v1706
        %v1708 = vpop.f32.mrb[0].mxu0
        %1709 = vmatprep.mubr.f32.mxu0 0.0
        %1710 = vmatmul.mubr.f32.gmra.mrb[0].mxu0 %v1568
        %v1711 = vpop.f32.mrb[0].mxu0
        %v1712 = vadd.f32 0.0, %v1711
        %v1713 = vpop.f32.mrb[0].mxu0
        %1714 = vmatprep.mubr.f32.mxu0 0.0
        %1715 = vmatmul.mubr.f32.gmra.mrb[0].mxu0 %v1569
        %v1716 = vpop.f32.mrb[0].mxu0
        %v1717 = vadd.f32 0.0, %v1716
        %v1718 = vpop.f32.mrb[0].mxu0
        %1719 = vmatprep.mubr.f32.mxu0 0.0
        %1720 = vmatmul.mubr.f32.gmra.mrb[0].mxu0 %v1570
        %v1721 = vpop.f32.mrb[0].mxu0
        %v1722 = vadd.f32 0.0, %v1721
        %v1723 = vpop.f32.mrb[0].mxu0
        %1724 = vmatprep.mubr.f32.mxu0 0.0
        %1725 = vmatmul.mubr.f32.gmra.mrb[0].mxu0 %v1571
        %v1726 = vpop.f32.mrb[0].mxu0
        %v1727 = vadd.f32 0.0, %v1726
        %v1728 = vpop.f32.mrb[0].mxu0
        %1729 = vmatprep.mubr.f32.mxu0 0.0
        %1730 = vmatmul.mubr.f32.gmra.mrb[0].mxu0 %v1572
        %v1731 = vpop.f32.mrb[0].mxu0
        %v1732 = vadd.f32 0.0, %v1731
        %v1733 = vpop.f32.mrb[0].mxu0
        %1734 = vmatprep.mubr.f32.mxu0 0.0
        %1735 = vmatmul.mubr.f32.gmra.mrb[0].mxu0 %v1573
        %v1736 = vpop.f32.mrb[0].mxu0
        %v1737 = vadd.f32 0.0, %v1736
        %v1738 = vpop.f32.mrb[0].mxu0
        %1739 = vmatprep.mubr.f32.mxu0 0.0
        %1740 = vmatmul.mubr.f32.gmra.mrb[0].mxu0 %v1574
        %v1741 = vpop.f32.mrb[0].mxu0
        %v1742 = vadd.f32 0.0, %v1741
        %v1743 = vpop.f32.mrb[0].mxu0
        %1744 = vmatprep.mubr.f32.mxu0 0.0
        %1745 = vmatmul.mubr.f32.gmra.mrb[0].mxu0 %v1575
        %v1746 = vpop.f32.mrb[0].mxu0
        %v1747 = vadd.f32 0.0, %v1746
        %v1748 = vpop.f32.mrb[0].mxu0
        %1749 = vmatprep.mubr.f32.mxu0 0.0
        %1750 = vmatmul.mubr.f32.gmra.mrb[0].mxu0 %v1576
        %v1751 = vpop.f32.mrb[0].mxu0
        %v1752 = vadd.f32 0.0, %v1751
        %v1753 = vpop.f32.mrb[0].mxu0
        %1754 = vmatprep.mubr.f32.mxu0 0.0
        %1755 = vmatmul.mubr.f32.gmra.mrb[0].mxu0 %v1577
        %v1756 = vpop.f32.mrb[0].mxu0
        %v1757 = vadd.f32 0.0, %v1756
        %v1758 = vpop.f32.mrb[0].mxu0
        %1759 = vmatprep.mubr.f32.mxu0 0.0
        %1760 = vmatmul.mubr.f32.gmra.mrb[0].mxu0 %v1578
        %v1761 = vpop.f32.mrb[0].mxu0
        %v1762 = vadd.f32 0.0, %v1761
        %v1763 = vpop.f32.mrb[0].mxu0
        %1764 = vmatprep.mubr.f32.mxu0 0.0
        %1765 = vmatmul.mubr.f32.gmra.mrb[0].mxu0 %v1579
        %v1766 = vpop.f32.mrb[0].mxu0
        %v1767 = vadd.f32 0.0, %v1766
        %v1768 = vpop.f32.mrb[0].mxu0
        %1769 = vmatprep.mubr.f32.mxu0 0.0
        %1770 = vmatmul.mubr.f32.gmra.mrb[0].mxu0 %v1580
        %v1771 = vpop.f32.mrb[0].mxu0
        %v1772 = vadd.f32 0.0, %v1771
        %v1773 = vpop.f32.mrb[0].mxu0
        %1774 = vmatprep.mubr.f32.mxu0 0.0
        %1775 = vmatmul.mubr.f32.gmra.mrb[0].mxu0 %v1581
        %v1776 = vpop.f32.mrb[0].mxu0
        %v1777 = vadd.f32 0.0, %v1776
        %v1778 = vpop.f32.mrb[0].mxu0
        %1779 = vmatprep.mubr.f32.mxu0 0.0
        %1780 = vmatmul.mubr.f32.gmra.mrb[0].mxu0 %v1582
        %v1781 = vpop.f32.mrb[0].mxu0
        %v1782 = vadd.f32 0.0, %v1781
        %v1783 = vpop.f32.mrb[0].mxu0
        %1784 = vmatprep.mubr.f32.mxu0 0.0
        %1785 = vmatmul.mubr.f32.gmra.mrb[0].mxu0 %v1583
        %v1786 = vpop.f32.mrb[0].mxu0
        %v1787 = vadd.f32 0.0, %v1786
        %v1788 = vpop.f32.mrb[0].mxu0
        %1789 = vmatprep.mubr.f32.mxu0 0.0
        %1790 = vmatmul.mubr.f32.gmra.mrb[0].mxu0 %v1584
        %v1791 = vpop.f32.mrb[0].mxu0
        %v1792 = vadd.f32 0.0, %v1791
        %v1793 = vpop.f32.mrb[0].mxu0
        %1794 = vmatprep.mubr.f32.mxu0 0.0
        %1795 = vmatmul.mubr.f32.gmra.mrb[0].mxu0 %v1585
        %v1796 = vpop.f32.mrb[0].mxu0
        %v1797 = vadd.f32 0.0, %v1796
        %v1798 = vpop.f32.mrb[0].mxu0
        %1799 = vmatprep.mubr.f32.mxu0 0.0
        %1800 = vmatmul.mubr.f32.gmra.mrb[0].mxu0 %v1586
        %v1801 = vpop.f32.mrb[0].mxu0
        %v1802 = vadd.f32 0.0, %v1801
        %v1803 = vpop.f32.mrb[0].mxu0
        %1804 = vmatprep.mubr.f32.mxu0 0.0
        %1805 = vmatmul.mubr.f32.gmra.mrb[0].mxu0 %v1587
        %v1806 = vpop.f32.mrb[0].mxu0
        %v1807 = vadd.f32 0.0, %v1806
        %v1808 = vpop.f32.mrb[0].mxu0
        %1809 = vmatprep.mubr.f32.mxu0 0.0
        %1810 = vmatmul.mubr.f32.gmra.mrb[0].mxu0 %v1588
        %v1811 = vpop.f32.mrb[0].mxu0
        %v1812 = vadd.f32 0.0, %v1811
        %v1813 = vpop.f32.mrb[0].mxu0
        %1814 = vmatprep.mubr.f32.mxu0 0.0
        %1815 = vmatmul.mubr.f32.gmra.mrb[0].mxu0 %v1589
        %v1816 = vpop.f32.mrb[0].mxu0
        %v1817 = vadd.f32 0.0, %v1816
        %v1818 = vpop.f32.mrb[0].mxu0
        %1819 = vmatprep.mubr.f32.mxu0 0.0
        %1820 = vmatmul.mubr.f32.gmra.mrb[0].mxu0 %v1590
        %v1821 = vpop.f32.mrb[0].mxu0
        %v1822 = vadd.f32 0.0, %v1821
        %v1823 = vpop.f32.mrb[0].mxu0
        %1824 = vmatprep.mubr.f32.mxu0 0.0
        %1825 = vmatmul.mubr.f32.gmra.mrb[0].mxu0 %v1591
        %v1826 = vpop.f32.mrb[0].mxu0
        %v1827 = vadd.f32 0.0, %v1826
        %v1828 = vpop.f32.mrb[0].mxu0
        %1829 = vmatprep.mubr.f32.mxu0 0.0
        %1830 = vmatmul.mubr.f32.gmra.mrb[0].mxu0 %v1592
        %v1831 = vpop.f32.mrb[0].mxu0
        %v1832 = vadd.f32 0.0, %v1831
        %v1833 = vpop.f32.mrb[0].mxu0
        %1834 = vmatprep.mubr.f32.mxu0 0.0
        %1835 = vmatmul.mubr.f32.gmra.mrb[0].mxu0 %v1593
        %v1836 = vpop.f32.mrb[0].mxu0
        %v1837 = vadd.f32 0.0, %v1836
        %v1838 = vpop.f32.mrb[0].mxu0
        %1839 = vmatprep.mubr.f32.mxu0 0.0
        %1840 = vmatmul.mubr.f32.gmra.mrb[0].mxu0 %v1594
        %v1841 = vpop.f32.mrb[0].mxu0
        %v1842 = vadd.f32 0.0, %v1841
        %v1843 = vpop.f32.mrb[0].mxu0
        %1844 = vmatprep.mubr.f32.mxu0 0.0
        %1845 = vmatmul.mubr.f32.gmra.mrb[0].mxu0 %v1595
        %v1846 = vpop.f32.mrb[0].mxu0
        %v1847 = vadd.f32 0.0, %v1846
        %v1848 = vpop.f32.mrb[0].mxu0
        %1849 = vmatprep.mubr.f32.mxu0 0.0
        %1850 = vmatmul.mubr.f32.gmra.mrb[0].mxu0 %v1596
        %v1851 = vpop.f32.mrb[0].mxu0
        %v1852 = vadd.f32 0.0, %v1851
        %v1853 = vpop.f32.mrb[0].mxu0
        %1854 = vmatprep.mubr.f32.mxu0 0.0
        %1855 = vmatmul.mubr.f32.gmra.mrb[0].mxu0 %v1597
        %v1856 = vpop.f32.mrb[0].mxu0
        %v1857 = vadd.f32 0.0, %v1856
        %v1858 = vpop.f32.mrb[0].mxu0
        %1859 = vdwg.mxu0
        %v1860 = vadd.f32 %v1526, %v1682
        %v1861 = vadd.f32 %v1527, %v1687
        %v1862 = vadd.f32 %v1528, %v1692
        %v1863 = vadd.f32 %v1529, %v1697
        %v1864 = vadd.f32 %v1530, %v1702
        %v1865 = vadd.f32 %v1531, %v1707
        %v1866 = vadd.f32 %v1532, %v1712
        %v1867 = vadd.f32 %v1533, %v1717
        %v1868 = vadd.f32 %v1534, %v1722
        %v1869 = vadd.f32 %v1535, %v1727
        %v1870 = vadd.f32 %v1536, %v1732
        %v1871 = vadd.f32 %v1537, %v1737
        %v1872 = vadd.f32 %v1538, %v1742
        %v1873 = vadd.f32 %v1539, %v1747
        %v1874 = vadd.f32 %v1540, %v1752
        %v1875 = vadd.f32 %v1541, %v1757
        %v1876 = vadd.f32 %v1542, %v1762
        %v1877 = vadd.f32 %v1543, %v1767
        %v1878 = vadd.f32 %v1544, %v1772
        %v1879 = vadd.f32 %v1545, %v1777
        %v1880 = vadd.f32 %v1546, %v1782
        %v1881 = vadd.f32 %v1547, %v1787
        %v1882 = vadd.f32 %v1548, %v1792
        %v1883 = vadd.f32 %v1549, %v1797
        %v1884 = vadd.f32 %v1550, %v1802
        %v1885 = vadd.f32 %v1551, %v1807
        %v1886 = vadd.f32 %v1552, %v1812
        %v1887 = vadd.f32 %v1553, %v1817
        %v1888 = vadd.f32 %v1554, %v1822
        %v1889 = vadd.f32 %v1555, %v1827
        %v1890 = vadd.f32 %v1556, %v1832
        %v1891 = vadd.f32 %v1557, %v1837
        %v1892 = vadd.f32 %v1558, %v1842
        %v1893 = vadd.f32 %v1559, %v1847
        %v1894 = vadd.f32 %v1560, %v1852
        %v1895 = vadd.f32 %v1561, %v1857
        %v1896 = vld [vmem:[#allocation2 + $0x18] sm:$0xff]
        %v1897 = vld [vmem:[#allocation2 + $0x20] sm:$0xff]
        %v1898 = vld [vmem:[#allocation2 + $0x28] sm:$0xff]
        %v1899 = vld [vmem:[#allocation2 + $0x30] sm:$0xff]
        %v1900 = vld [vmem:[#allocation2 + $0x38] sm:$0xff]
        %v1901 = vld [vmem:[#allocation2 + $0x40] sm:$0xff]
        %v1902 = vld [vmem:[#allocation2 + $0x48] sm:$0xff]
        %v1903 = vld [vmem:[#allocation2 + $0x50] sm:$0xff]
        %v1904 = vld [vmem:[#allocation2 + $0x58] sm:$0xff]
        %v1905 = vld [vmem:[#allocation2 + $0x60] sm:$0xff]
        %v1906 = vld [vmem:[#allocation2 + $0x68] sm:$0xff]
        %v1907 = vld [vmem:[#allocation2 + $0x70] sm:$0xff]
        %v1908 = vld [vmem:[#allocation2 + $0x78] sm:$0xff]
        %v1909 = vld [vmem:[#allocation2 + $0x80] sm:$0xff]
        %v1910 = vld [vmem:[#allocation2 + $0x88] sm:$0xff]
        %v1911 = vld [vmem:[#allocation2 + $0x90] sm:$0xff]
        %v1912 = vld [vmem:[#allocation2 + $0x98] sm:$0xff]
        %v1913 = vld [vmem:[#allocation2 + $0xa0] sm:$0xff]
        %v1914 = vld [vmem:[#allocation2 + $0xa8] sm:$0xff]
        %v1915 = vld [vmem:[#allocation2 + $0xb0] sm:$0xff]
        %v1916 = vld [vmem:[#allocation2 + $0xb8] sm:$0xff]
        %v1917 = vld [vmem:[#allocation2 + $0xc0] sm:$0xff]
        %v1918 = vld [vmem:[#allocation2 + $0xc8] sm:$0xff]
        %v1919 = vld [vmem:[#allocation2 + $0xd0] sm:$0xff]
        %v1920 = vld [vmem:[#allocation2 + $0xd8] sm:$0xff]
        %v1921 = vld [vmem:[#allocation2 + $0xe0] sm:$0xff]
        %v1922 = vld [vmem:[#allocation2 + $0xe8] sm:$0xff]
        %v1923 = vld [vmem:[#allocation2 + $0xf0] sm:$0xff]
        %v1924 = vld [vmem:[#allocation2 + $0xf8] sm:$0xff]
        %v1925 = vld [vmem:[#allocation2 + $0x100] sm:$0xff]
        %v1926 = vld [vmem:[#allocation2 + $0x108] sm:$0xff]
        %v1927 = vld [vmem:[#allocation2 + $0x110] sm:$0xff]
        %v1928 = vld [vmem:[#allocation2 + $0x118] sm:$0xff]
        %v1929 = vld [vmem:[#allocation2 + $0x120] sm:$0xff]
        %v1930 = vld [vmem:[#allocation2 + $0x128] sm:$0xff]
        %v1931 = vld [vmem:[#allocation2 + $0x130] sm:$0xff]
        %s1932 = scalar_lea.vmem [#allocation8], 512
        %v1933 = vld [vmem:[%s1932] sm:$0xff]
        %v1934 = vld [vmem:[%s1932 + $0x8] sm:$0xff]
        %v1935 = vld [vmem:[%s1932 + $0x10] sm:$0xff]
        %v1936 = vld [vmem:[%s1932 + $0x18] sm:$0xff]
        %v1937 = vld [vmem:[%s1932 + $0x20] sm:$0xff]
        %v1938 = vld [vmem:[%s1932 + $0x28] sm:$0xff]
        %v1939 = vld [vmem:[%s1932 + $0x30] sm:$0xff]
        %v1940 = vld [vmem:[%s1932 + $0x38] sm:$0xff]
        %v1941 = vld [vmem:[%s1932 + $0x40] sm:$0xff]
        %v1942 = vld [vmem:[%s1932 + $0x48] sm:$0xff]
        %v1943 = vld [vmem:[%s1932 + $0x50] sm:$0xff]
        %v1944 = vld [vmem:[%s1932 + $0x58] sm:$0xff]
        %v1945 = vld [vmem:[%s1932 + $0x60] sm:$0xff]
        %v1946 = vld [vmem:[%s1932 + $0x68] sm:$0xff]
        %v1947 = vld [vmem:[%s1932 + $0x70] sm:$0xff]
        %v1948 = vld [vmem:[%s1932 + $0x78] sm:$0xff]
        %1949 = vmatprep.subr.mxu0 0.0
        %1950 = vmatpush1.msra.mxu0 %v1933
        %1951 = vmatprep.subr.mxu0 0.0
        %1952 = vmatpush1.msra.mxu0 %v1934
        %1953 = vmatprep.subr.mxu0 0.0
        %1954 = vmatpush1.msra.mxu0 %v1935
        %1955 = vmatprep.subr.mxu0 0.0
        %1956 = vmatpush1.msra.mxu0 %v1936
        %1957 = vmatprep.subr.mxu0 0.0
        %1958 = vmatpush1.msra.mxu0 %v1937
        %1959 = vmatprep.subr.mxu0 0.0
        %1960 = vmatpush1.msra.mxu0 %v1938
        %1961 = vmatprep.subr.mxu0 0.0
        %1962 = vmatpush1.msra.mxu0 %v1939
        %1963 = vmatprep.subr.mxu0 0.0
        %1964 = vmatpush1.msra.mxu0 %v1940
        %1965 = vmatprep.subr.mxu0 0.0
        %1966 = vmatpush1.msra.mxu0 %v1941
        %1967 = vmatprep.subr.mxu0 0.0
        %1968 = vmatpush1.msra.mxu0 %v1942
        %1969 = vmatprep.subr.mxu0 0.0
        %1970 = vmatpush1.msra.mxu0 %v1943
        %1971 = vmatprep.subr.mxu0 0.0
        %1972 = vmatpush1.msra.mxu0 %v1944
        %1973 = vmatprep.subr.mxu0 0.0
        %1974 = vmatpush1.msra.mxu0 %v1945
        %1975 = vmatprep.subr.mxu0 0.0
        %1976 = vmatpush1.msra.mxu0 %v1946
        %1977 = vmatprep.subr.mxu0 0.0
        %1978 = vmatpush1.msra.mxu0 %v1947
        %1979 = vmatprep.subr.mxu0 0.0
        %1980 = vmatpush1.msra.mxu0 %v1948
        %1981 = vmatprep.subr.mxu0 0.0
        %1982 = vmatpush1.msra.mxu0 0.0
        %1983 = vmatprep.subr.mxu0 0.0
        %1984 = vmatpush1.msra.mxu0 0.0
        %1985 = vmatprep.subr.mxu0 0.0
        %1986 = vmatpush1.msra.mxu0 0.0
        %1987 = vmatprep.subr.mxu0 0.0
        %1988 = vmatpush1.msra.mxu0 0.0
        %1989 = vmatprep.subr.mxu0 0.0
        %1990 = vmatpush1.msra.mxu0 0.0
        %1991 = vmatprep.subr.mxu0 0.0
        %1992 = vmatpush1.msra.mxu0 0.0
        %1993 = vmatprep.subr.mxu0 0.0
        %1994 = vmatpush1.msra.mxu0 0.0
        %1995 = vmatprep.subr.mxu0 0.0
        %1996 = vmatpush1.msra.mxu0 0.0
        %1997 = vmatprep.subr.mxu0 0.0
        %1998 = vmatpush1.msra.mxu0 0.0
        %1999 = vmatprep.subr.mxu0 0.0
        %2000 = vmatpush1.msra.mxu0 0.0
        %2001 = vmatprep.subr.mxu0 0.0
        %2002 = vmatpush1.msra.mxu0 0.0
        %2003 = vmatprep.subr.mxu0 0.0
        %2004 = vmatpush1.msra.mxu0 0.0
        %2005 = vmatprep.subr.mxu0 0.0
        %2006 = vmatpush1.msra.mxu0 0.0
        %2007 = vmatprep.subr.mxu0 0.0
        %2008 = vmatpush1.msra.mxu0 0.0
        %2009 = vmatprep.subr.mxu0 0.0
        %2010 = vmatpush1.msra.mxu0 0.0
        %2011 = vmatprep.subr.mxu0 0.0
        %2012 = vmatpush1.msra.mxu0 0.0
        %2013 = vmatprep.mubr.f32.mxu0 0.0
        %2014 = vmatmul.mubr.f32.gmra.mrb[0].mxu0 %v1896
        %v2015 = vpop.f32.mrb[0].mxu0
        %v2016 = vadd.f32 0.0, %v2015
        %v2017 = vpop.f32.mrb[0].mxu0
        %2018 = vmatprep.mubr.f32.mxu0 0.0
        %2019 = vmatmul.mubr.f32.gmra.mrb[0].mxu0 %v1897
        %v2020 = vpop.f32.mrb[0].mxu0
        %v2021 = vadd.f32 0.0, %v2020
        %v2022 = vpop.f32.mrb[0].mxu0
        %2023 = vmatprep.mubr.f32.mxu0 0.0
        %2024 = vmatmul.mubr.f32.gmra.mrb[0].mxu0 %v1898
        %v2025 = vpop.f32.mrb[0].mxu0
        %v2026 = vadd.f32 0.0, %v2025
        %v2027 = vpop.f32.mrb[0].mxu0
        %2028 = vmatprep.mubr.f32.mxu0 0.0
        %2029 = vmatmul.mubr.f32.gmra.mrb[0].mxu0 %v1899
        %v2030 = vpop.f32.mrb[0].mxu0
        %v2031 = vadd.f32 0.0, %v2030
        %v2032 = vpop.f32.mrb[0].mxu0
        %2033 = vmatprep.mubr.f32.mxu0 0.0
        %2034 = vmatmul.mubr.f32.gmra.mrb[0].mxu0 %v1900
        %v2035 = vpop.f32.mrb[0].mxu0
        %v2036 = vadd.f32 0.0, %v2035
        %v2037 = vpop.f32.mrb[0].mxu0
        %2038 = vmatprep.mubr.f32.mxu0 0.0
        %2039 = vmatmul.mubr.f32.gmra.mrb[0].mxu0 %v1901
        %v2040 = vpop.f32.mrb[0].mxu0
        %v2041 = vadd.f32 0.0, %v2040
        %v2042 = vpop.f32.mrb[0].mxu0
        %2043 = vmatprep.mubr.f32.mxu0 0.0
        %2044 = vmatmul.mubr.f32.gmra.mrb[0].mxu0 %v1902
        %v2045 = vpop.f32.mrb[0].mxu0
        %v2046 = vadd.f32 0.0, %v2045
        %v2047 = vpop.f32.mrb[0].mxu0
        %2048 = vmatprep.mubr.f32.mxu0 0.0
        %2049 = vmatmul.mubr.f32.gmra.mrb[0].mxu0 %v1903
        %v2050 = vpop.f32.mrb[0].mxu0
        %v2051 = vadd.f32 0.0, %v2050
        %v2052 = vpop.f32.mrb[0].mxu0
        %2053 = vmatprep.mubr.f32.mxu0 0.0
        %2054 = vmatmul.mubr.f32.gmra.mrb[0].mxu0 %v1904
        %v2055 = vpop.f32.mrb[0].mxu0
        %v2056 = vadd.f32 0.0, %v2055
        %v2057 = vpop.f32.mrb[0].mxu0
        %2058 = vmatprep.mubr.f32.mxu0 0.0
        %2059 = vmatmul.mubr.f32.gmra.mrb[0].mxu0 %v1905
        %v2060 = vpop.f32.mrb[0].mxu0
        %v2061 = vadd.f32 0.0, %v2060
        %v2062 = vpop.f32.mrb[0].mxu0
        %2063 = vmatprep.mubr.f32.mxu0 0.0
        %2064 = vmatmul.mubr.f32.gmra.mrb[0].mxu0 %v1906
        %v2065 = vpop.f32.mrb[0].mxu0
        %v2066 = vadd.f32 0.0, %v2065
        %v2067 = vpop.f32.mrb[0].mxu0
        %2068 = vmatprep.mubr.f32.mxu0 0.0
        %2069 = vmatmul.mubr.f32.gmra.mrb[0].mxu0 %v1907
        %v2070 = vpop.f32.mrb[0].mxu0
        %v2071 = vadd.f32 0.0, %v2070
        %v2072 = vpop.f32.mrb[0].mxu0
        %2073 = vmatprep.mubr.f32.mxu0 0.0
        %2074 = vmatmul.mubr.f32.gmra.mrb[0].mxu0 %v1908
        %v2075 = vpop.f32.mrb[0].mxu0
        %v2076 = vadd.f32 0.0, %v2075
        %v2077 = vpop.f32.mrb[0].mxu0
        %2078 = vmatprep.mubr.f32.mxu0 0.0
        %2079 = vmatmul.mubr.f32.gmra.mrb[0].mxu0 %v1909
        %v2080 = vpop.f32.mrb[0].mxu0
        %v2081 = vadd.f32 0.0, %v2080
        %v2082 = vpop.f32.mrb[0].mxu0
        %2083 = vmatprep.mubr.f32.mxu0 0.0
        %2084 = vmatmul.mubr.f32.gmra.mrb[0].mxu0 %v1910
        %v2085 = vpop.f32.mrb[0].mxu0
        %v2086 = vadd.f32 0.0, %v2085
        %v2087 = vpop.f32.mrb[0].mxu0
        %2088 = vmatprep.mubr.f32.mxu0 0.0
        %2089 = vmatmul.mubr.f32.gmra.mrb[0].mxu0 %v1911
        %v2090 = vpop.f32.mrb[0].mxu0
        %v2091 = vadd.f32 0.0, %v2090
        %v2092 = vpop.f32.mrb[0].mxu0
        %2093 = vmatprep.mubr.f32.mxu0 0.0
        %2094 = vmatmul.mubr.f32.gmra.mrb[0].mxu0 %v1912
        %v2095 = vpop.f32.mrb[0].mxu0
        %v2096 = vadd.f32 0.0, %v2095
        %v2097 = vpop.f32.mrb[0].mxu0
        %2098 = vmatprep.mubr.f32.mxu0 0.0
        %2099 = vmatmul.mubr.f32.gmra.mrb[0].mxu0 %v1913
        %v2100 = vpop.f32.mrb[0].mxu0
        %v2101 = vadd.f32 0.0, %v2100
        %v2102 = vpop.f32.mrb[0].mxu0
        %2103 = vmatprep.mubr.f32.mxu0 0.0
        %2104 = vmatmul.mubr.f32.gmra.mrb[0].mxu0 %v1914
        %v2105 = vpop.f32.mrb[0].mxu0
        %v2106 = vadd.f32 0.0, %v2105
        %v2107 = vpop.f32.mrb[0].mxu0
        %2108 = vmatprep.mubr.f32.mxu0 0.0
        %2109 = vmatmul.mubr.f32.gmra.mrb[0].mxu0 %v1915
        %v2110 = vpop.f32.mrb[0].mxu0
        %v2111 = vadd.f32 0.0, %v2110
        %v2112 = vpop.f32.mrb[0].mxu0
        %2113 = vmatprep.mubr.f32.mxu0 0.0
        %2114 = vmatmul.mubr.f32.gmra.mrb[0].mxu0 %v1916
        %v2115 = vpop.f32.mrb[0].mxu0
        %v2116 = vadd.f32 0.0, %v2115
        %v2117 = vpop.f32.mrb[0].mxu0
        %2118 = vmatprep.mubr.f32.mxu0 0.0
        %2119 = vmatmul.mubr.f32.gmra.mrb[0].mxu0 %v1917
        %v2120 = vpop.f32.mrb[0].mxu0
        %v2121 = vadd.f32 0.0, %v2120
        %v2122 = vpop.f32.mrb[0].mxu0
        %2123 = vmatprep.mubr.f32.mxu0 0.0
        %2124 = vmatmul.mubr.f32.gmra.mrb[0].mxu0 %v1918
        %v2125 = vpop.f32.mrb[0].mxu0
        %v2126 = vadd.f32 0.0, %v2125
        %v2127 = vpop.f32.mrb[0].mxu0
        %2128 = vmatprep.mubr.f32.mxu0 0.0
        %2129 = vmatmul.mubr.f32.gmra.mrb[0].mxu0 %v1919
        %v2130 = vpop.f32.mrb[0].mxu0
        %v2131 = vadd.f32 0.0, %v2130
        %v2132 = vpop.f32.mrb[0].mxu0
        %2133 = vmatprep.mubr.f32.mxu0 0.0
        %2134 = vmatmul.mubr.f32.gmra.mrb[0].mxu0 %v1920
        %v2135 = vpop.f32.mrb[0].mxu0
        %v2136 = vadd.f32 0.0, %v2135
        %v2137 = vpop.f32.mrb[0].mxu0
        %2138 = vmatprep.mubr.f32.mxu0 0.0
        %2139 = vmatmul.mubr.f32.gmra.mrb[0].mxu0 %v1921
        %v2140 = vpop.f32.mrb[0].mxu0
        %v2141 = vadd.f32 0.0, %v2140
        %v2142 = vpop.f32.mrb[0].mxu0
        %2143 = vmatprep.mubr.f32.mxu0 0.0
        %2144 = vmatmul.mubr.f32.gmra.mrb[0].mxu0 %v1922
        %v2145 = vpop.f32.mrb[0].mxu0
        %v2146 = vadd.f32 0.0, %v2145
        %v2147 = vpop.f32.mrb[0].mxu0
        %2148 = vmatprep.mubr.f32.mxu0 0.0
        %2149 = vmatmul.mubr.f32.gmra.mrb[0].mxu0 %v1923
        %v2150 = vpop.f32.mrb[0].mxu0
        %v2151 = vadd.f32 0.0, %v2150
        %v2152 = vpop.f32.mrb[0].mxu0
        %2153 = vmatprep.mubr.f32.mxu0 0.0
        %2154 = vmatmul.mubr.f32.gmra.mrb[0].mxu0 %v1924
        %v2155 = vpop.f32.mrb[0].mxu0
        %v2156 = vadd.f32 0.0, %v2155
        %v2157 = vpop.f32.mrb[0].mxu0
        %2158 = vmatprep.mubr.f32.mxu0 0.0
        %2159 = vmatmul.mubr.f32.gmra.mrb[0].mxu0 %v1925
        %v2160 = vpop.f32.mrb[0].mxu0
        %v2161 = vadd.f32 0.0, %v2160
        %v2162 = vpop.f32.mrb[0].mxu0
        %2163 = vmatprep.mubr.f32.mxu0 0.0
        %2164 = vmatmul.mubr.f32.gmra.mrb[0].mxu0 %v1926
        %v2165 = vpop.f32.mrb[0].mxu0
        %v2166 = vadd.f32 0.0, %v2165
        %v2167 = vpop.f32.mrb[0].mxu0
        %2168 = vmatprep.mubr.f32.mxu0 0.0
        %2169 = vmatmul.mubr.f32.gmra.mrb[0].mxu0 %v1927
        %v2170 = vpop.f32.mrb[0].mxu0
        %v2171 = vadd.f32 0.0, %v2170
        %v2172 = vpop.f32.mrb[0].mxu0
        %2173 = vmatprep.mubr.f32.mxu0 0.0
        %2174 = vmatmul.mubr.f32.gmra.mrb[0].mxu0 %v1928
        %v2175 = vpop.f32.mrb[0].mxu0
        %v2176 = vadd.f32 0.0, %v2175
        %v2177 = vpop.f32.mrb[0].mxu0
        %2178 = vmatprep.mubr.f32.mxu0 0.0
        %2179 = vmatmul.mubr.f32.gmra.mrb[0].mxu0 %v1929
        %v2180 = vpop.f32.mrb[0].mxu0
        %v2181 = vadd.f32 0.0, %v2180
        %v2182 = vpop.f32.mrb[0].mxu0
        %2183 = vmatprep.mubr.f32.mxu0 0.0
        %2184 = vmatmul.mubr.f32.gmra.mrb[0].mxu0 %v1930
        %v2185 = vpop.f32.mrb[0].mxu0
        %v2186 = vadd.f32 0.0, %v2185
        %v2187 = vpop.f32.mrb[0].mxu0
        %2188 = vmatprep.mubr.f32.mxu0 0.0
        %2189 = vmatmul.mubr.f32.gmra.mrb[0].mxu0 %v1931
        %v2190 = vpop.f32.mrb[0].mxu0
        %v2191 = vadd.f32 0.0, %v2190
        %v2192 = vpop.f32.mrb[0].mxu0
        %2193 = vdwg.mxu0
        %v2194 = vadd.f32 %v1860, %v2016
        %v2195 = vadd.f32 %v1861, %v2021
        %v2196 = vadd.f32 %v1862, %v2026
        %v2197 = vadd.f32 %v1863, %v2031
        %v2198 = vadd.f32 %v1864, %v2036
        %v2199 = vadd.f32 %v1865, %v2041
        %v2200 = vadd.f32 %v1866, %v2046
        %v2201 = vadd.f32 %v1867, %v2051
        %v2202 = vadd.f32 %v1868, %v2056
        %v2203 = vadd.f32 %v1869, %v2061
        %v2204 = vadd.f32 %v1870, %v2066
        %v2205 = vadd.f32 %v1871, %v2071
        %v2206 = vadd.f32 %v1872, %v2076
        %v2207 = vadd.f32 %v1873, %v2081
        %v2208 = vadd.f32 %v1874, %v2086
        %v2209 = vadd.f32 %v1875, %v2091
        %v2210 = vadd.f32 %v1876, %v2096
        %v2211 = vadd.f32 %v1877, %v2101
        %v2212 = vadd.f32 %v1878, %v2106
        %v2213 = vadd.f32 %v1879, %v2111
        %v2214 = vadd.f32 %v1880, %v2116
        %v2215 = vadd.f32 %v1881, %v2121
        %v2216 = vadd.f32 %v1882, %v2126
        %v2217 = vadd.f32 %v1883, %v2131
        %v2218 = vadd.f32 %v1884, %v2136
        %v2219 = vadd.f32 %v1885, %v2141
        %v2220 = vadd.f32 %v1886, %v2146
        %v2221 = vadd.f32 %v1887, %v2151
        %v2222 = vadd.f32 %v1888, %v2156
        %v2223 = vadd.f32 %v1889, %v2161
        %v2224 = vadd.f32 %v1890, %v2166
        %v2225 = vadd.f32 %v1891, %v2171
        %v2226 = vadd.f32 %v1892, %v2176
        %v2227 = vadd.f32 %v1893, %v2181
        %v2228 = vadd.f32 %v1894, %v2186
        %v2229 = vadd.f32 %v1895, %v2191
        %v2230 = vld [vmem:[#allocation2 + $0x19] sm:$0xff]
        %v2231 = vld [vmem:[#allocation2 + $0x21] sm:$0xff]
        %v2232 = vld [vmem:[#allocation2 + $0x29] sm:$0xff]
        %v2233 = vld [vmem:[#allocation2 + $0x31] sm:$0xff]
        %v2234 = vld [vmem:[#allocation2 + $0x39] sm:$0xff]
        %v2235 = vld [vmem:[#allocation2 + $0x41] sm:$0xff]
        %v2236 = vld [vmem:[#allocation2 + $0x49] sm:$0xff]
        %v2237 = vld [vmem:[#allocation2 + $0x51] sm:$0xff]
        %v2238 = vld [vmem:[#allocation2 + $0x59] sm:$0xff]
        %v2239 = vld [vmem:[#allocation2 + $0x61] sm:$0xff]
        %v2240 = vld [vmem:[#allocation2 + $0x69] sm:$0xff]
        %v2241 = vld [vmem:[#allocation2 + $0x71] sm:$0xff]
        %v2242 = vld [vmem:[#allocation2 + $0x79] sm:$0xff]
        %v2243 = vld [vmem:[#allocation2 + $0x81] sm:$0xff]
        %v2244 = vld [vmem:[#allocation2 + $0x89] sm:$0xff]
        %v2245 = vld [vmem:[#allocation2 + $0x91] sm:$0xff]
        %v2246 = vld [vmem:[#allocation2 + $0x99] sm:$0xff]
        %v2247 = vld [vmem:[#allocation2 + $0xa1] sm:$0xff]
        %v2248 = vld [vmem:[#allocation2 + $0xa9] sm:$0xff]
        %v2249 = vld [vmem:[#allocation2 + $0xb1] sm:$0xff]
        %v2250 = vld [vmem:[#allocation2 + $0xb9] sm:$0xff]
        %v2251 = vld [vmem:[#allocation2 + $0xc1] sm:$0xff]
        %v2252 = vld [vmem:[#allocation2 + $0xc9] sm:$0xff]
        %v2253 = vld [vmem:[#allocation2 + $0xd1] sm:$0xff]
        %v2254 = vld [vmem:[#allocation2 + $0xd9] sm:$0xff]
        %v2255 = vld [vmem:[#allocation2 + $0xe1] sm:$0xff]
        %v2256 = vld [vmem:[#allocation2 + $0xe9] sm:$0xff]
        %v2257 = vld [vmem:[#allocation2 + $0xf1] sm:$0xff]
        %v2258 = vld [vmem:[#allocation2 + $0xf9] sm:$0xff]
        %v2259 = vld [vmem:[#allocation2 + $0x101] sm:$0xff]
        %v2260 = vld [vmem:[#allocation2 + $0x109] sm:$0xff]
        %v2261 = vld [vmem:[#allocation2 + $0x111] sm:$0xff]
        %v2262 = vld [vmem:[#allocation2 + $0x119] sm:$0xff]
        %v2263 = vld [vmem:[#allocation2 + $0x121] sm:$0xff]
        %v2264 = vld [vmem:[#allocation2 + $0x129] sm:$0xff]
        %v2265 = vld [vmem:[#allocation2 + $0x131] sm:$0xff]
        %s2266 = scalar_lea.vmem [#allocation8], 640
        %v2267 = vld [vmem:[%s2266] sm:$0xff]
        %v2268 = vld [vmem:[%s2266 + $0x8] sm:$0xff]
        %v2269 = vld [vmem:[%s2266 + $0x10] sm:$0xff]
        %v2270 = vld [vmem:[%s2266 + $0x18] sm:$0xff]
        %v2271 = vld [vmem:[%s2266 + $0x20] sm:$0xff]
        %v2272 = vld [vmem:[%s2266 + $0x28] sm:$0xff]
        %v2273 = vld [vmem:[%s2266 + $0x30] sm:$0xff]
        %v2274 = vld [vmem:[%s2266 + $0x38] sm:$0xff]
        %v2275 = vld [vmem:[%s2266 + $0x40] sm:$0xff]
        %v2276 = vld [vmem:[%s2266 + $0x48] sm:$0xff]
        %v2277 = vld [vmem:[%s2266 + $0x50] sm:$0xff]
        %v2278 = vld [vmem:[%s2266 + $0x58] sm:$0xff]
        %v2279 = vld [vmem:[%s2266 + $0x60] sm:$0xff]
        %v2280 = vld [vmem:[%s2266 + $0x68] sm:$0xff]
        %v2281 = vld [vmem:[%s2266 + $0x70] sm:$0xff]
        %v2282 = vld [vmem:[%s2266 + $0x78] sm:$0xff]
        %2283 = vmatprep.subr.mxu0 0.0
        %2284 = vmatpush1.msra.mxu0 %v2267
        %2285 = vmatprep.subr.mxu0 0.0
        %2286 = vmatpush1.msra.mxu0 %v2268
        %2287 = vmatprep.subr.mxu0 0.0
        %2288 = vmatpush1.msra.mxu0 %v2269
        %2289 = vmatprep.subr.mxu0 0.0
        %2290 = vmatpush1.msra.mxu0 %v2270
        %2291 = vmatprep.subr.mxu0 0.0
        %2292 = vmatpush1.msra.mxu0 %v2271
        %2293 = vmatprep.subr.mxu0 0.0
        %2294 = vmatpush1.msra.mxu0 %v2272
        %2295 = vmatprep.subr.mxu0 0.0
        %2296 = vmatpush1.msra.mxu0 %v2273
        %2297 = vmatprep.subr.mxu0 0.0
        %2298 = vmatpush1.msra.mxu0 %v2274
        %2299 = vmatprep.subr.mxu0 0.0
        %2300 = vmatpush1.msra.mxu0 %v2275
        %2301 = vmatprep.subr.mxu0 0.0
        %2302 = vmatpush1.msra.mxu0 %v2276
        %2303 = vmatprep.subr.mxu0 0.0
        %2304 = vmatpush1.msra.mxu0 %v2277
        %2305 = vmatprep.subr.mxu0 0.0
        %2306 = vmatpush1.msra.mxu0 %v2278
        %2307 = vmatprep.subr.mxu0 0.0
        %2308 = vmatpush1.msra.mxu0 %v2279
        %2309 = vmatprep.subr.mxu0 0.0
        %2310 = vmatpush1.msra.mxu0 %v2280
        %2311 = vmatprep.subr.mxu0 0.0
        %2312 = vmatpush1.msra.mxu0 %v2281
        %2313 = vmatprep.subr.mxu0 0.0
        %2314 = vmatpush1.msra.mxu0 %v2282
        %2315 = vmatprep.subr.mxu0 0.0
        %2316 = vmatpush1.msra.mxu0 0.0
        %2317 = vmatprep.subr.mxu0 0.0
        %2318 = vmatpush1.msra.mxu0 0.0
        %2319 = vmatprep.subr.mxu0 0.0
        %2320 = vmatpush1.msra.mxu0 0.0
        %2321 = vmatprep.subr.mxu0 0.0
        %2322 = vmatpush1.msra.mxu0 0.0
        %2323 = vmatprep.subr.mxu0 0.0
        %2324 = vmatpush1.msra.mxu0 0.0
        %2325 = vmatprep.subr.mxu0 0.0
        %2326 = vmatpush1.msra.mxu0 0.0
        %2327 = vmatprep.subr.mxu0 0.0
        %2328 = vmatpush1.msra.mxu0 0.0
        %2329 = vmatprep.subr.mxu0 0.0
        %2330 = vmatpush1.msra.mxu0 0.0
        %2331 = vmatprep.subr.mxu0 0.0
        %2332 = vmatpush1.msra.mxu0 0.0
        %2333 = vmatprep.subr.mxu0 0.0
        %2334 = vmatpush1.msra.mxu0 0.0
        %2335 = vmatprep.subr.mxu0 0.0
        %2336 = vmatpush1.msra.mxu0 0.0
        %2337 = vmatprep.subr.mxu0 0.0
        %2338 = vmatpush1.msra.mxu0 0.0
        %2339 = vmatprep.subr.mxu0 0.0
        %2340 = vmatpush1.msra.mxu0 0.0
        %2341 = vmatprep.subr.mxu0 0.0
        %2342 = vmatpush1.msra.mxu0 0.0
        %2343 = vmatprep.subr.mxu0 0.0
        %2344 = vmatpush1.msra.mxu0 0.0
        %2345 = vmatprep.subr.mxu0 0.0
        %2346 = vmatpush1.msra.mxu0 0.0
        %2347 = vmatprep.mubr.f32.mxu0 0.0
        %2348 = vmatmul.mubr.f32.gmra.mrb[0].mxu0 %v2230
        %v2349 = vpop.f32.mrb[0].mxu0
        %v2350 = vadd.f32 0.0, %v2349
        %v2351 = vpop.f32.mrb[0].mxu0
        %2352 = vmatprep.mubr.f32.mxu0 0.0
        %2353 = vmatmul.mubr.f32.gmra.mrb[0].mxu0 %v2231
        %v2354 = vpop.f32.mrb[0].mxu0
        %v2355 = vadd.f32 0.0, %v2354
        %v2356 = vpop.f32.mrb[0].mxu0
        %2357 = vmatprep.mubr.f32.mxu0 0.0
        %2358 = vmatmul.mubr.f32.gmra.mrb[0].mxu0 %v2232
        %v2359 = vpop.f32.mrb[0].mxu0
        %v2360 = vadd.f32 0.0, %v2359
        %v2361 = vpop.f32.mrb[0].mxu0
        %2362 = vmatprep.mubr.f32.mxu0 0.0
        %2363 = vmatmul.mubr.f32.gmra.mrb[0].mxu0 %v2233
        %v2364 = vpop.f32.mrb[0].mxu0
        %v2365 = vadd.f32 0.0, %v2364
        %v2366 = vpop.f32.mrb[0].mxu0
        %2367 = vmatprep.mubr.f32.mxu0 0.0
        %2368 = vmatmul.mubr.f32.gmra.mrb[0].mxu0 %v2234
        %v2369 = vpop.f32.mrb[0].mxu0
        %v2370 = vadd.f32 0.0, %v2369
        %v2371 = vpop.f32.mrb[0].mxu0
        %2372 = vmatprep.mubr.f32.mxu0 0.0
        %2373 = vmatmul.mubr.f32.gmra.mrb[0].mxu0 %v2235
        %v2374 = vpop.f32.mrb[0].mxu0
        %v2375 = vadd.f32 0.0, %v2374
        %v2376 = vpop.f32.mrb[0].mxu0
        %2377 = vmatprep.mubr.f32.mxu0 0.0
        %2378 = vmatmul.mubr.f32.gmra.mrb[0].mxu0 %v2236
        %v2379 = vpop.f32.mrb[0].mxu0
        %v2380 = vadd.f32 0.0, %v2379
        %v2381 = vpop.f32.mrb[0].mxu0
        %2382 = vmatprep.mubr.f32.mxu0 0.0
        %2383 = vmatmul.mubr.f32.gmra.mrb[0].mxu0 %v2237
        %v2384 = vpop.f32.mrb[0].mxu0
        %v2385 = vadd.f32 0.0, %v2384
        %v2386 = vpop.f32.mrb[0].mxu0
        %2387 = vmatprep.mubr.f32.mxu0 0.0
        %2388 = vmatmul.mubr.f32.gmra.mrb[0].mxu0 %v2238
        %v2389 = vpop.f32.mrb[0].mxu0
        %v2390 = vadd.f32 0.0, %v2389
        %v2391 = vpop.f32.mrb[0].mxu0
        %2392 = vmatprep.mubr.f32.mxu0 0.0
        %2393 = vmatmul.mubr.f32.gmra.mrb[0].mxu0 %v2239
        %v2394 = vpop.f32.mrb[0].mxu0
        %v2395 = vadd.f32 0.0, %v2394
        %v2396 = vpop.f32.mrb[0].mxu0
        %2397 = vmatprep.mubr.f32.mxu0 0.0
        %2398 = vmatmul.mubr.f32.gmra.mrb[0].mxu0 %v2240
        %v2399 = vpop.f32.mrb[0].mxu0
        %v2400 = vadd.f32 0.0, %v2399
        %v2401 = vpop.f32.mrb[0].mxu0
        %2402 = vmatprep.mubr.f32.mxu0 0.0
        %2403 = vmatmul.mubr.f32.gmra.mrb[0].mxu0 %v2241
        %v2404 = vpop.f32.mrb[0].mxu0
        %v2405 = vadd.f32 0.0, %v2404
        %v2406 = vpop.f32.mrb[0].mxu0
        %2407 = vmatprep.mubr.f32.mxu0 0.0
        %2408 = vmatmul.mubr.f32.gmra.mrb[0].mxu0 %v2242
        %v2409 = vpop.f32.mrb[0].mxu0
        %v2410 = vadd.f32 0.0, %v2409
        %v2411 = vpop.f32.mrb[0].mxu0
        %2412 = vmatprep.mubr.f32.mxu0 0.0
        %2413 = vmatmul.mubr.f32.gmra.mrb[0].mxu0 %v2243
        %v2414 = vpop.f32.mrb[0].mxu0
        %v2415 = vadd.f32 0.0, %v2414
        %v2416 = vpop.f32.mrb[0].mxu0
        %2417 = vmatprep.mubr.f32.mxu0 0.0
        %2418 = vmatmul.mubr.f32.gmra.mrb[0].mxu0 %v2244
        %v2419 = vpop.f32.mrb[0].mxu0
        %v2420 = vadd.f32 0.0, %v2419
        %v2421 = vpop.f32.mrb[0].mxu0
        %2422 = vmatprep.mubr.f32.mxu0 0.0
        %2423 = vmatmul.mubr.f32.gmra.mrb[0].mxu0 %v2245
        %v2424 = vpop.f32.mrb[0].mxu0
        %v2425 = vadd.f32 0.0, %v2424
        %v2426 = vpop.f32.mrb[0].mxu0
        %2427 = vmatprep.mubr.f32.mxu0 0.0
        %2428 = vmatmul.mubr.f32.gmra.mrb[0].mxu0 %v2246
        %v2429 = vpop.f32.mrb[0].mxu0
        %v2430 = vadd.f32 0.0, %v2429
        %v2431 = vpop.f32.mrb[0].mxu0
        %2432 = vmatprep.mubr.f32.mxu0 0.0
        %2433 = vmatmul.mubr.f32.gmra.mrb[0].mxu0 %v2247
        %v2434 = vpop.f32.mrb[0].mxu0
        %v2435 = vadd.f32 0.0, %v2434
        %v2436 = vpop.f32.mrb[0].mxu0
        %2437 = vmatprep.mubr.f32.mxu0 0.0
        %2438 = vmatmul.mubr.f32.gmra.mrb[0].mxu0 %v2248
        %v2439 = vpop.f32.mrb[0].mxu0
        %v2440 = vadd.f32 0.0, %v2439
        %v2441 = vpop.f32.mrb[0].mxu0
        %2442 = vmatprep.mubr.f32.mxu0 0.0
        %2443 = vmatmul.mubr.f32.gmra.mrb[0].mxu0 %v2249
        %v2444 = vpop.f32.mrb[0].mxu0
        %v2445 = vadd.f32 0.0, %v2444
        %v2446 = vpop.f32.mrb[0].mxu0
        %2447 = vmatprep.mubr.f32.mxu0 0.0
        %2448 = vmatmul.mubr.f32.gmra.mrb[0].mxu0 %v2250
        %v2449 = vpop.f32.mrb[0].mxu0
        %v2450 = vadd.f32 0.0, %v2449
        %v2451 = vpop.f32.mrb[0].mxu0
        %2452 = vmatprep.mubr.f32.mxu0 0.0
        %2453 = vmatmul.mubr.f32.gmra.mrb[0].mxu0 %v2251
        %v2454 = vpop.f32.mrb[0].mxu0
        %v2455 = vadd.f32 0.0, %v2454
        %v2456 = vpop.f32.mrb[0].mxu0
        %2457 = vmatprep.mubr.f32.mxu0 0.0
        %2458 = vmatmul.mubr.f32.gmra.mrb[0].mxu0 %v2252
        %v2459 = vpop.f32.mrb[0].mxu0
        %v2460 = vadd.f32 0.0, %v2459
        %v2461 = vpop.f32.mrb[0].mxu0
        %2462 = vmatprep.mubr.f32.mxu0 0.0
        %2463 = vmatmul.mubr.f32.gmra.mrb[0].mxu0 %v2253
        %v2464 = vpop.f32.mrb[0].mxu0
        %v2465 = vadd.f32 0.0, %v2464
        %v2466 = vpop.f32.mrb[0].mxu0
        %2467 = vmatprep.mubr.f32.mxu0 0.0
        %2468 = vmatmul.mubr.f32.gmra.mrb[0].mxu0 %v2254
        %v2469 = vpop.f32.mrb[0].mxu0
        %v2470 = vadd.f32 0.0, %v2469
        %v2471 = vpop.f32.mrb[0].mxu0
        %2472 = vmatprep.mubr.f32.mxu0 0.0
        %2473 = vmatmul.mubr.f32.gmra.mrb[0].mxu0 %v2255
        %v2474 = vpop.f32.mrb[0].mxu0
        %v2475 = vadd.f32 0.0, %v2474
        %v2476 = vpop.f32.mrb[0].mxu0
        %2477 = vmatprep.mubr.f32.mxu0 0.0
        %2478 = vmatmul.mubr.f32.gmra.mrb[0].mxu0 %v2256
        %v2479 = vpop.f32.mrb[0].mxu0
        %v2480 = vadd.f32 0.0, %v2479
        %v2481 = vpop.f32.mrb[0].mxu0
        %2482 = vmatprep.mubr.f32.mxu0 0.0
        %2483 = vmatmul.mubr.f32.gmra.mrb[0].mxu0 %v2257
        %v2484 = vpop.f32.mrb[0].mxu0
        %v2485 = vadd.f32 0.0, %v2484
        %v2486 = vpop.f32.mrb[0].mxu0
        %2487 = vmatprep.mubr.f32.mxu0 0.0
        %2488 = vmatmul.mubr.f32.gmra.mrb[0].mxu0 %v2258
        %v2489 = vpop.f32.mrb[0].mxu0
        %v2490 = vadd.f32 0.0, %v2489
        %v2491 = vpop.f32.mrb[0].mxu0
        %2492 = vmatprep.mubr.f32.mxu0 0.0
        %2493 = vmatmul.mubr.f32.gmra.mrb[0].mxu0 %v2259
        %v2494 = vpop.f32.mrb[0].mxu0
        %v2495 = vadd.f32 0.0, %v2494
        %v2496 = vpop.f32.mrb[0].mxu0
        %2497 = vmatprep.mubr.f32.mxu0 0.0
        %2498 = vmatmul.mubr.f32.gmra.mrb[0].mxu0 %v2260
        %v2499 = vpop.f32.mrb[0].mxu0
        %v2500 = vadd.f32 0.0, %v2499
        %v2501 = vpop.f32.mrb[0].mxu0
        %2502 = vmatprep.mubr.f32.mxu0 0.0
        %2503 = vmatmul.mubr.f32.gmra.mrb[0].mxu0 %v2261
        %v2504 = vpop.f32.mrb[0].mxu0
        %v2505 = vadd.f32 0.0, %v2504
        %v2506 = vpop.f32.mrb[0].mxu0
        %2507 = vmatprep.mubr.f32.mxu0 0.0
        %2508 = vmatmul.mubr.f32.gmra.mrb[0].mxu0 %v2262
        %v2509 = vpop.f32.mrb[0].mxu0
        %v2510 = vadd.f32 0.0, %v2509
        %v2511 = vpop.f32.mrb[0].mxu0
        %2512 = vmatprep.mubr.f32.mxu0 0.0
        %2513 = vmatmul.mubr.f32.gmra.mrb[0].mxu0 %v2263
        %v2514 = vpop.f32.mrb[0].mxu0
        %v2515 = vadd.f32 0.0, %v2514
        %v2516 = vpop.f32.mrb[0].mxu0
        %2517 = vmatprep.mubr.f32.mxu0 0.0
        %2518 = vmatmul.mubr.f32.gmra.mrb[0].mxu0 %v2264
        %v2519 = vpop.f32.mrb[0].mxu0
        %v2520 = vadd.f32 0.0, %v2519
        %v2521 = vpop.f32.mrb[0].mxu0
        %2522 = vmatprep.mubr.f32.mxu0 0.0
        %2523 = vmatmul.mubr.f32.gmra.mrb[0].mxu0 %v2265
        %v2524 = vpop.f32.mrb[0].mxu0
        %v2525 = vadd.f32 0.0, %v2524
        %v2526 = vpop.f32.mrb[0].mxu0
        %2527 = vdwg.mxu0
        %v2528 = vadd.f32 %v2194, %v2350
        %v2529 = vadd.f32 %v2195, %v2355
        %v2530 = vadd.f32 %v2196, %v2360
        %v2531 = vadd.f32 %v2197, %v2365
        %v2532 = vadd.f32 %v2198, %v2370
        %v2533 = vadd.f32 %v2199, %v2375
        %v2534 = vadd.f32 %v2200, %v2380
        %v2535 = vadd.f32 %v2201, %v2385
        %v2536 = vadd.f32 %v2202, %v2390
        %v2537 = vadd.f32 %v2203, %v2395
        %v2538 = vadd.f32 %v2204, %v2400
        %v2539 = vadd.f32 %v2205, %v2405
        %v2540 = vadd.f32 %v2206, %v2410
        %v2541 = vadd.f32 %v2207, %v2415
        %v2542 = vadd.f32 %v2208, %v2420
        %v2543 = vadd.f32 %v2209, %v2425
        %v2544 = vadd.f32 %v2210, %v2430
        %v2545 = vadd.f32 %v2211, %v2435
        %v2546 = vadd.f32 %v2212, %v2440
        %v2547 = vadd.f32 %v2213, %v2445
        %v2548 = vadd.f32 %v2214, %v2450
        %v2549 = vadd.f32 %v2215, %v2455
        %v2550 = vadd.f32 %v2216, %v2460
        %v2551 = vadd.f32 %v2217, %v2465
        %v2552 = vadd.f32 %v2218, %v2470
        %v2553 = vadd.f32 %v2219, %v2475
        %v2554 = vadd.f32 %v2220, %v2480
        %v2555 = vadd.f32 %v2221, %v2485
        %v2556 = vadd.f32 %v2222, %v2490
        %v2557 = vadd.f32 %v2223, %v2495
        %v2558 = vadd.f32 %v2224, %v2500
        %v2559 = vadd.f32 %v2225, %v2505
        %v2560 = vadd.f32 %v2226, %v2510
        %v2561 = vadd.f32 %v2227, %v2515
        %v2562 = vadd.f32 %v2228, %v2520
        %v2563 = vadd.f32 %v2229, %v2525
        %v2564 = vld [vmem:[#allocation2 + $0x29] sm:$0xff]
        %v2565 = vld [vmem:[#allocation2 + $0x31] sm:$0xff]
        %v2566 = vld [vmem:[#allocation2 + $0x39] sm:$0xff]
        %v2567 = vld [vmem:[#allocation2 + $0x41] sm:$0xff]
        %v2568 = vld [vmem:[#allocation2 + $0x49] sm:$0xff]
        %v2569 = vld [vmem:[#allocation2 + $0x51] sm:$0xff]
        %v2570 = vld [vmem:[#allocation2 + $0x59] sm:$0xff]
        %v2571 = vld [vmem:[#allocation2 + $0x61] sm:$0xff]
        %v2572 = vld [vmem:[#allocation2 + $0x69] sm:$0xff]
        %v2573 = vld [vmem:[#allocation2 + $0x71] sm:$0xff]
        %v2574 = vld [vmem:[#allocation2 + $0x79] sm:$0xff]
        %v2575 = vld [vmem:[#allocation2 + $0x81] sm:$0xff]
        %v2576 = vld [vmem:[#allocation2 + $0x89] sm:$0xff]
        %v2577 = vld [vmem:[#allocation2 + $0x91] sm:$0xff]
        %v2578 = vld [vmem:[#allocation2 + $0x99] sm:$0xff]
        %v2579 = vld [vmem:[#allocation2 + $0xa1] sm:$0xff]
        %v2580 = vld [vmem:[#allocation2 + $0xa9] sm:$0xff]
        %v2581 = vld [vmem:[#allocation2 + $0xb1] sm:$0xff]
        %v2582 = vld [vmem:[#allocation2 + $0xb9] sm:$0xff]
        %v2583 = vld [vmem:[#allocation2 + $0xc1] sm:$0xff]
        %v2584 = vld [vmem:[#allocation2 + $0xc9] sm:$0xff]
        %v2585 = vld [vmem:[#allocation2 + $0xd1] sm:$0xff]
        %v2586 = vld [vmem:[#allocation2 + $0xd9] sm:$0xff]
        %v2587 = vld [vmem:[#allocation2 + $0xe1] sm:$0xff]
        %v2588 = vld [vmem:[#allocation2 + $0xe9] sm:$0xff]
        %v2589 = vld [vmem:[#allocation2 + $0xf1] sm:$0xff]
        %v2590 = vld [vmem:[#allocation2 + $0xf9] sm:$0xff]
        %v2591 = vld [vmem:[#allocation2 + $0x101] sm:$0xff]
        %v2592 = vld [vmem:[#allocation2 + $0x109] sm:$0xff]
        %v2593 = vld [vmem:[#allocation2 + $0x111] sm:$0xff]
        %v2594 = vld [vmem:[#allocation2 + $0x119] sm:$0xff]
        %v2595 = vld [vmem:[#allocation2 + $0x121] sm:$0xff]
        %v2596 = vld [vmem:[#allocation2 + $0x129] sm:$0xff]
        %v2597 = vld [vmem:[#allocation2 + $0x131] sm:$0xff]
        %v2598 = vld [vmem:[#allocation2 + $0x139] sm:$0xff]
        %v2599 = vld [vmem:[#allocation2 + $0x141] sm:$0xff]
        %s2600 = scalar_lea.vmem [#allocation8], 768
        %v2601 = vld [vmem:[%s2600] sm:$0xff]
        %v2602 = vld [vmem:[%s2600 + $0x8] sm:$0xff]
        %v2603 = vld [vmem:[%s2600 + $0x10] sm:$0xff]
        %v2604 = vld [vmem:[%s2600 + $0x18] sm:$0xff]
        %v2605 = vld [vmem:[%s2600 + $0x20] sm:$0xff]
        %v2606 = vld [vmem:[%s2600 + $0x28] sm:$0xff]
        %v2607 = vld [vmem:[%s2600 + $0x30] sm:$0xff]
        %v2608 = vld [vmem:[%s2600 + $0x38] sm:$0xff]
        %v2609 = vld [vmem:[%s2600 + $0x40] sm:$0xff]
        %v2610 = vld [vmem:[%s2600 + $0x48] sm:$0xff]
        %v2611 = vld [vmem:[%s2600 + $0x50] sm:$0xff]
        %v2612 = vld [vmem:[%s2600 + $0x58] sm:$0xff]
        %v2613 = vld [vmem:[%s2600 + $0x60] sm:$0xff]
        %v2614 = vld [vmem:[%s2600 + $0x68] sm:$0xff]
        %v2615 = vld [vmem:[%s2600 + $0x70] sm:$0xff]
        %v2616 = vld [vmem:[%s2600 + $0x78] sm:$0xff]
        %2617 = vmatprep.subr.mxu0 0.0
        %2618 = vmatpush1.msra.mxu0 %v2601
        %2619 = vmatprep.subr.mxu0 0.0
        %2620 = vmatpush1.msra.mxu0 %v2602
        %2621 = vmatprep.subr.mxu0 0.0
        %2622 = vmatpush1.msra.mxu0 %v2603
        %2623 = vmatprep.subr.mxu0 0.0
        %2624 = vmatpush1.msra.mxu0 %v2604
        %2625 = vmatprep.subr.mxu0 0.0
        %2626 = vmatpush1.msra.mxu0 %v2605
        %2627 = vmatprep.subr.mxu0 0.0
        %2628 = vmatpush1.msra.mxu0 %v2606
        %2629 = vmatprep.subr.mxu0 0.0
        %2630 = vmatpush1.msra.mxu0 %v2607
        %2631 = vmatprep.subr.mxu0 0.0
        %2632 = vmatpush1.msra.mxu0 %v2608
        %2633 = vmatprep.subr.mxu0 0.0
        %2634 = vmatpush1.msra.mxu0 %v2609
        %2635 = vmatprep.subr.mxu0 0.0
        %2636 = vmatpush1.msra.mxu0 %v2610
        %2637 = vmatprep.subr.mxu0 0.0
        %2638 = vmatpush1.msra.mxu0 %v2611
        %2639 = vmatprep.subr.mxu0 0.0
        %2640 = vmatpush1.msra.mxu0 %v2612
        %2641 = vmatprep.subr.mxu0 0.0
        %2642 = vmatpush1.msra.mxu0 %v2613
        %2643 = vmatprep.subr.mxu0 0.0
        %2644 = vmatpush1.msra.mxu0 %v2614
        %2645 = vmatprep.subr.mxu0 0.0
        %2646 = vmatpush1.msra.mxu0 %v2615
        %2647 = vmatprep.subr.mxu0 0.0
        %2648 = vmatpush1.msra.mxu0 %v2616
        %2649 = vmatprep.subr.mxu0 0.0
        %2650 = vmatpush1.msra.mxu0 0.0
        %2651 = vmatprep.subr.mxu0 0.0
        %2652 = vmatpush1.msra.mxu0 0.0
        %2653 = vmatprep.subr.mxu0 0.0
        %2654 = vmatpush1.msra.mxu0 0.0
        %2655 = vmatprep.subr.mxu0 0.0
        %2656 = vmatpush1.msra.mxu0 0.0
        %2657 = vmatprep.subr.mxu0 0.0
        %2658 = vmatpush1.msra.mxu0 0.0
        %2659 = vmatprep.subr.mxu0 0.0
        %2660 = vmatpush1.msra.mxu0 0.0
        %2661 = vmatprep.subr.mxu0 0.0
        %2662 = vmatpush1.msra.mxu0 0.0
        %2663 = vmatprep.subr.mxu0 0.0
        %2664 = vmatpush1.msra.mxu0 0.0
        %2665 = vmatprep.subr.mxu0 0.0
        %2666 = vmatpush1.msra.mxu0 0.0
        %2667 = vmatprep.subr.mxu0 0.0
        %2668 = vmatpush1.msra.mxu0 0.0
        %2669 = vmatprep.subr.mxu0 0.0
        %2670 = vmatpush1.msra.mxu0 0.0
        %2671 = vmatprep.subr.mxu0 0.0
        %2672 = vmatpush1.msra.mxu0 0.0
        %2673 = vmatprep.subr.mxu0 0.0
        %2674 = vmatpush1.msra.mxu0 0.0
        %2675 = vmatprep.subr.mxu0 0.0
        %2676 = vmatpush1.msra.mxu0 0.0
        %2677 = vmatprep.subr.mxu0 0.0
        %2678 = vmatpush1.msra.mxu0 0.0
        %2679 = vmatprep.subr.mxu0 0.0
        %2680 = vmatpush1.msra.mxu0 0.0
        %2681 = vmatprep.mubr.f32.mxu0 0.0
        %2682 = vmatmul.mubr.f32.gmra.mrb[0].mxu0 %v2564
        %v2683 = vpop.f32.mrb[0].mxu0
        %v2684 = vadd.f32 0.0, %v2683
        %v2685 = vpop.f32.mrb[0].mxu0
        %2686 = vmatprep.mubr.f32.mxu0 0.0
        %2687 = vmatmul.mubr.f32.gmra.mrb[0].mxu0 %v2565
        %v2688 = vpop.f32.mrb[0].mxu0
        %v2689 = vadd.f32 0.0, %v2688
        %v2690 = vpop.f32.mrb[0].mxu0
        %2691 = vmatprep.mubr.f32.mxu0 0.0
        %2692 = vmatmul.mubr.f32.gmra.mrb[0].mxu0 %v2566
        %v2693 = vpop.f32.mrb[0].mxu0
        %v2694 = vadd.f32 0.0, %v2693
        %v2695 = vpop.f32.mrb[0].mxu0
        %2696 = vmatprep.mubr.f32.mxu0 0.0
        %2697 = vmatmul.mubr.f32.gmra.mrb[0].mxu0 %v2567
        %v2698 = vpop.f32.mrb[0].mxu0
        %v2699 = vadd.f32 0.0, %v2698
        %v2700 = vpop.f32.mrb[0].mxu0
        %2701 = vmatprep.mubr.f32.mxu0 0.0
        %2702 = vmatmul.mubr.f32.gmra.mrb[0].mxu0 %v2568
        %v2703 = vpop.f32.mrb[0].mxu0
        %v2704 = vadd.f32 0.0, %v2703
        %v2705 = vpop.f32.mrb[0].mxu0
        %2706 = vmatprep.mubr.f32.mxu0 0.0
        %2707 = vmatmul.mubr.f32.gmra.mrb[0].mxu0 %v2569
        %v2708 = vpop.f32.mrb[0].mxu0
        %v2709 = vadd.f32 0.0, %v2708
        %v2710 = vpop.f32.mrb[0].mxu0
        %2711 = vmatprep.mubr.f32.mxu0 0.0
        %2712 = vmatmul.mubr.f32.gmra.mrb[0].mxu0 %v2570
        %v2713 = vpop.f32.mrb[0].mxu0
        %v2714 = vadd.f32 0.0, %v2713
        %v2715 = vpop.f32.mrb[0].mxu0
        %2716 = vmatprep.mubr.f32.mxu0 0.0
        %2717 = vmatmul.mubr.f32.gmra.mrb[0].mxu0 %v2571
        %v2718 = vpop.f32.mrb[0].mxu0
        %v2719 = vadd.f32 0.0, %v2718
        %v2720 = vpop.f32.mrb[0].mxu0
        %2721 = vmatprep.mubr.f32.mxu0 0.0
        %2722 = vmatmul.mubr.f32.gmra.mrb[0].mxu0 %v2572
        %v2723 = vpop.f32.mrb[0].mxu0
        %v2724 = vadd.f32 0.0, %v2723
        %v2725 = vpop.f32.mrb[0].mxu0
        %2726 = vmatprep.mubr.f32.mxu0 0.0
        %2727 = vmatmul.mubr.f32.gmra.mrb[0].mxu0 %v2573
        %v2728 = vpop.f32.mrb[0].mxu0
        %v2729 = vadd.f32 0.0, %v2728
        %v2730 = vpop.f32.mrb[0].mxu0
        %2731 = vmatprep.mubr.f32.mxu0 0.0
        %2732 = vmatmul.mubr.f32.gmra.mrb[0].mxu0 %v2574
        %v2733 = vpop.f32.mrb[0].mxu0
        %v2734 = vadd.f32 0.0, %v2733
        %v2735 = vpop.f32.mrb[0].mxu0
        %2736 = vmatprep.mubr.f32.mxu0 0.0
        %2737 = vmatmul.mubr.f32.gmra.mrb[0].mxu0 %v2575
        %v2738 = vpop.f32.mrb[0].mxu0
        %v2739 = vadd.f32 0.0, %v2738
        %v2740 = vpop.f32.mrb[0].mxu0
        %2741 = vmatprep.mubr.f32.mxu0 0.0
        %2742 = vmatmul.mubr.f32.gmra.mrb[0].mxu0 %v2576
        %v2743 = vpop.f32.mrb[0].mxu0
        %v2744 = vadd.f32 0.0, %v2743
        %v2745 = vpop.f32.mrb[0].mxu0
        %2746 = vmatprep.mubr.f32.mxu0 0.0
        %2747 = vmatmul.mubr.f32.gmra.mrb[0].mxu0 %v2577
        %v2748 = vpop.f32.mrb[0].mxu0
        %v2749 = vadd.f32 0.0, %v2748
        %v2750 = vpop.f32.mrb[0].mxu0
        %2751 = vmatprep.mubr.f32.mxu0 0.0
        %2752 = vmatmul.mubr.f32.gmra.mrb[0].mxu0 %v2578
        %v2753 = vpop.f32.mrb[0].mxu0
        %v2754 = vadd.f32 0.0, %v2753
        %v2755 = vpop.f32.mrb[0].mxu0
        %2756 = vmatprep.mubr.f32.mxu0 0.0
        %2757 = vmatmul.mubr.f32.gmra.mrb[0].mxu0 %v2579
        %v2758 = vpop.f32.mrb[0].mxu0
        %v2759 = vadd.f32 0.0, %v2758
        %v2760 = vpop.f32.mrb[0].mxu0
        %2761 = vmatprep.mubr.f32.mxu0 0.0
        %2762 = vmatmul.mubr.f32.gmra.mrb[0].mxu0 %v2580
        %v2763 = vpop.f32.mrb[0].mxu0
        %v2764 = vadd.f32 0.0, %v2763
        %v2765 = vpop.f32.mrb[0].mxu0
        %2766 = vmatprep.mubr.f32.mxu0 0.0
        %2767 = vmatmul.mubr.f32.gmra.mrb[0].mxu0 %v2581
        %v2768 = vpop.f32.mrb[0].mxu0
        %v2769 = vadd.f32 0.0, %v2768
        %v2770 = vpop.f32.mrb[0].mxu0
        %2771 = vmatprep.mubr.f32.mxu0 0.0
        %2772 = vmatmul.mubr.f32.gmra.mrb[0].mxu0 %v2582
        %v2773 = vpop.f32.mrb[0].mxu0
        %v2774 = vadd.f32 0.0, %v2773
        %v2775 = vpop.f32.mrb[0].mxu0
        %2776 = vmatprep.mubr.f32.mxu0 0.0
        %2777 = vmatmul.mubr.f32.gmra.mrb[0].mxu0 %v2583
        %v2778 = vpop.f32.mrb[0].mxu0
        %v2779 = vadd.f32 0.0, %v2778
        %v2780 = vpop.f32.mrb[0].mxu0
        %2781 = vmatprep.mubr.f32.mxu0 0.0
        %2782 = vmatmul.mubr.f32.gmra.mrb[0].mxu0 %v2584
        %v2783 = vpop.f32.mrb[0].mxu0
        %v2784 = vadd.f32 0.0, %v2783
        %v2785 = vpop.f32.mrb[0].mxu0
        %2786 = vmatprep.mubr.f32.mxu0 0.0
        %2787 = vmatmul.mubr.f32.gmra.mrb[0].mxu0 %v2585
        %v2788 = vpop.f32.mrb[0].mxu0
        %v2789 = vadd.f32 0.0, %v2788
        %v2790 = vpop.f32.mrb[0].mxu0
        %2791 = vmatprep.mubr.f32.mxu0 0.0
        %2792 = vmatmul.mubr.f32.gmra.mrb[0].mxu0 %v2586
        %v2793 = vpop.f32.mrb[0].mxu0
        %v2794 = vadd.f32 0.0, %v2793
        %v2795 = vpop.f32.mrb[0].mxu0
        %2796 = vmatprep.mubr.f32.mxu0 0.0
        %2797 = vmatmul.mubr.f32.gmra.mrb[0].mxu0 %v2587
        %v2798 = vpop.f32.mrb[0].mxu0
        %v2799 = vadd.f32 0.0, %v2798
        %v2800 = vpop.f32.mrb[0].mxu0
        %2801 = vmatprep.mubr.f32.mxu0 0.0
        %2802 = vmatmul.mubr.f32.gmra.mrb[0].mxu0 %v2588
        %v2803 = vpop.f32.mrb[0].mxu0
        %v2804 = vadd.f32 0.0, %v2803
        %v2805 = vpop.f32.mrb[0].mxu0
        %2806 = vmatprep.mubr.f32.mxu0 0.0
        %2807 = vmatmul.mubr.f32.gmra.mrb[0].mxu0 %v2589
        %v2808 = vpop.f32.mrb[0].mxu0
        %v2809 = vadd.f32 0.0, %v2808
        %v2810 = vpop.f32.mrb[0].mxu0
        %2811 = vmatprep.mubr.f32.mxu0 0.0
        %2812 = vmatmul.mubr.f32.gmra.mrb[0].mxu0 %v2590
        %v2813 = vpop.f32.mrb[0].mxu0
        %v2814 = vadd.f32 0.0, %v2813
        %v2815 = vpop.f32.mrb[0].mxu0
        %2816 = vmatprep.mubr.f32.mxu0 0.0
        %2817 = vmatmul.mubr.f32.gmra.mrb[0].mxu0 %v2591
        %v2818 = vpop.f32.mrb[0].mxu0
        %v2819 = vadd.f32 0.0, %v2818
        %v2820 = vpop.f32.mrb[0].mxu0
        %2821 = vmatprep.mubr.f32.mxu0 0.0
        %2822 = vmatmul.mubr.f32.gmra.mrb[0].mxu0 %v2592
        %v2823 = vpop.f32.mrb[0].mxu0
        %v2824 = vadd.f32 0.0, %v2823
        %v2825 = vpop.f32.mrb[0].mxu0
        %2826 = vmatprep.mubr.f32.mxu0 0.0
        %2827 = vmatmul.mubr.f32.gmra.mrb[0].mxu0 %v2593
        %v2828 = vpop.f32.mrb[0].mxu0
        %v2829 = vadd.f32 0.0, %v2828
        %v2830 = vpop.f32.mrb[0].mxu0
        %2831 = vmatprep.mubr.f32.mxu0 0.0
        %2832 = vmatmul.mubr.f32.gmra.mrb[0].mxu0 %v2594
        %v2833 = vpop.f32.mrb[0].mxu0
        %v2834 = vadd.f32 0.0, %v2833
        %v2835 = vpop.f32.mrb[0].mxu0
        %2836 = vmatprep.mubr.f32.mxu0 0.0
        %2837 = vmatmul.mubr.f32.gmra.mrb[0].mxu0 %v2595
        %v2838 = vpop.f32.mrb[0].mxu0
        %v2839 = vadd.f32 0.0, %v2838
        %v2840 = vpop.f32.mrb[0].mxu0
        %2841 = vmatprep.mubr.f32.mxu0 0.0
        %2842 = vmatmul.mubr.f32.gmra.mrb[0].mxu0 %v2596
        %v2843 = vpop.f32.mrb[0].mxu0
        %v2844 = vadd.f32 0.0, %v2843
        %v2845 = vpop.f32.mrb[0].mxu0
        %2846 = vmatprep.mubr.f32.mxu0 0.0
        %2847 = vmatmul.mubr.f32.gmra.mrb[0].mxu0 %v2597
        %v2848 = vpop.f32.mrb[0].mxu0
        %v2849 = vadd.f32 0.0, %v2848
        %v2850 = vpop.f32.mrb[0].mxu0
        %2851 = vmatprep.mubr.f32.mxu0 0.0
        %2852 = vmatmul.mubr.f32.gmra.mrb[0].mxu0 %v2598
        %v2853 = vpop.f32.mrb[0].mxu0
        %v2854 = vadd.f32 0.0, %v2853
        %v2855 = vpop.f32.mrb[0].mxu0
        %2856 = vmatprep.mubr.f32.mxu0 0.0
        %2857 = vmatmul.mubr.f32.gmra.mrb[0].mxu0 %v2599
        %v2858 = vpop.f32.mrb[0].mxu0
        %v2859 = vadd.f32 0.0, %v2858
        %v2860 = vpop.f32.mrb[0].mxu0
        %2861 = vdwg.mxu0
        %v2862 = vadd.f32 %v2528, %v2684
        %v2863 = vadd.f32 %v2529, %v2689
        %v2864 = vadd.f32 %v2530, %v2694
        %v2865 = vadd.f32 %v2531, %v2699
        %v2866 = vadd.f32 %v2532, %v2704
        %v2867 = vadd.f32 %v2533, %v2709
        %v2868 = vadd.f32 %v2534, %v2714
        %v2869 = vadd.f32 %v2535, %v2719
        %v2870 = vadd.f32 %v2536, %v2724
        %v2871 = vadd.f32 %v2537, %v2729
        %v2872 = vadd.f32 %v2538, %v2734
        %v2873 = vadd.f32 %v2539, %v2739
        %v2874 = vadd.f32 %v2540, %v2744
        %v2875 = vadd.f32 %v2541, %v2749
        %v2876 = vadd.f32 %v2542, %v2754
        %v2877 = vadd.f32 %v2543, %v2759
        %v2878 = vadd.f32 %v2544, %v2764
        %v2879 = vadd.f32 %v2545, %v2769
        %v2880 = vadd.f32 %v2546, %v2774
        %v2881 = vadd.f32 %v2547, %v2779
        %v2882 = vadd.f32 %v2548, %v2784
        %v2883 = vadd.f32 %v2549, %v2789
        %v2884 = vadd.f32 %v2550, %v2794
        %v2885 = vadd.f32 %v2551, %v2799
        %v2886 = vadd.f32 %v2552, %v2804
        %v2887 = vadd.f32 %v2553, %v2809
        %v2888 = vadd.f32 %v2554, %v2814
        %v2889 = vadd.f32 %v2555, %v2819
        %v2890 = vadd.f32 %v2556, %v2824
        %v2891 = vadd.f32 %v2557, %v2829
        %v2892 = vadd.f32 %v2558, %v2834
        %v2893 = vadd.f32 %v2559, %v2839
        %v2894 = vadd.f32 %v2560, %v2844
        %v2895 = vadd.f32 %v2561, %v2849
        %v2896 = vadd.f32 %v2562, %v2854
        %v2897 = vadd.f32 %v2563, %v2859
        %v2898 = vld [vmem:[#allocation2 + $0x2a] sm:$0xff]
        %v2899 = vld [vmem:[#allocation2 + $0x32] sm:$0xff]
        %v2900 = vld [vmem:[#allocation2 + $0x3a] sm:$0xff]
        %v2901 = vld [vmem:[#allocation2 + $0x42] sm:$0xff]
        %v2902 = vld [vmem:[#allocation2 + $0x4a] sm:$0xff]
        %v2903 = vld [vmem:[#allocation2 + $0x52] sm:$0xff]
        %v2904 = vld [vmem:[#allocation2 + $0x5a] sm:$0xff]
        %v2905 = vld [vmem:[#allocation2 + $0x62] sm:$0xff]
        %v2906 = vld [vmem:[#allocation2 + $0x6a] sm:$0xff]
        %v2907 = vld [vmem:[#allocation2 + $0x72] sm:$0xff]
        %v2908 = vld [vmem:[#allocation2 + $0x7a] sm:$0xff]
        %v2909 = vld [vmem:[#allocation2 + $0x82] sm:$0xff]
        %v2910 = vld [vmem:[#allocation2 + $0x8a] sm:$0xff]
        %v2911 = vld [vmem:[#allocation2 + $0x92] sm:$0xff]
        %v2912 = vld [vmem:[#allocation2 + $0x9a] sm:$0xff]
        %v2913 = vld [vmem:[#allocation2 + $0xa2] sm:$0xff]
        %v2914 = vld [vmem:[#allocation2 + $0xaa] sm:$0xff]
        %v2915 = vld [vmem:[#allocation2 + $0xb2] sm:$0xff]
        %v2916 = vld [vmem:[#allocation2 + $0xba] sm:$0xff]
        %v2917 = vld [vmem:[#allocation2 + $0xc2] sm:$0xff]
        %v2918 = vld [vmem:[#allocation2 + $0xca] sm:$0xff]
        %v2919 = vld [vmem:[#allocation2 + $0xd2] sm:$0xff]
        %v2920 = vld [vmem:[#allocation2 + $0xda] sm:$0xff]
        %v2921 = vld [vmem:[#allocation2 + $0xe2] sm:$0xff]
        %v2922 = vld [vmem:[#allocation2 + $0xea] sm:$0xff]
        %v2923 = vld [vmem:[#allocation2 + $0xf2] sm:$0xff]
        %v2924 = vld [vmem:[#allocation2 + $0xfa] sm:$0xff]
        %v2925 = vld [vmem:[#allocation2 + $0x102] sm:$0xff]
        %v2926 = vld [vmem:[#allocation2 + $0x10a] sm:$0xff]
        %v2927 = vld [vmem:[#allocation2 + $0x112] sm:$0xff]
        %v2928 = vld [vmem:[#allocation2 + $0x11a] sm:$0xff]
        %v2929 = vld [vmem:[#allocation2 + $0x122] sm:$0xff]
        %v2930 = vld [vmem:[#allocation2 + $0x12a] sm:$0xff]
        %v2931 = vld [vmem:[#allocation2 + $0x132] sm:$0xff]
        %v2932 = vld [vmem:[#allocation2 + $0x13a] sm:$0xff]
        %v2933 = vld [vmem:[#allocation2 + $0x142] sm:$0xff]
        %s2934 = scalar_lea.vmem [#allocation8], 896
        %v2935 = vld [vmem:[%s2934] sm:$0xff]
        %v2936 = vld [vmem:[%s2934 + $0x8] sm:$0xff]
        %v2937 = vld [vmem:[%s2934 + $0x10] sm:$0xff]
        %v2938 = vld [vmem:[%s2934 + $0x18] sm:$0xff]
        %v2939 = vld [vmem:[%s2934 + $0x20] sm:$0xff]
        %v2940 = vld [vmem:[%s2934 + $0x28] sm:$0xff]
        %v2941 = vld [vmem:[%s2934 + $0x30] sm:$0xff]
        %v2942 = vld [vmem:[%s2934 + $0x38] sm:$0xff]
        %v2943 = vld [vmem:[%s2934 + $0x40] sm:$0xff]
        %v2944 = vld [vmem:[%s2934 + $0x48] sm:$0xff]
        %v2945 = vld [vmem:[%s2934 + $0x50] sm:$0xff]
        %v2946 = vld [vmem:[%s2934 + $0x58] sm:$0xff]
        %v2947 = vld [vmem:[%s2934 + $0x60] sm:$0xff]
        %v2948 = vld [vmem:[%s2934 + $0x68] sm:$0xff]
        %v2949 = vld [vmem:[%s2934 + $0x70] sm:$0xff]
        %v2950 = vld [vmem:[%s2934 + $0x78] sm:$0xff]
        %2951 = vmatprep.subr.mxu0 0.0
        %2952 = vmatpush1.msra.mxu0 %v2935
        %2953 = vmatprep.subr.mxu0 0.0
        %2954 = vmatpush1.msra.mxu0 %v2936
        %2955 = vmatprep.subr.mxu0 0.0
        %2956 = vmatpush1.msra.mxu0 %v2937
        %2957 = vmatprep.subr.mxu0 0.0
        %2958 = vmatpush1.msra.mxu0 %v2938
        %2959 = vmatprep.subr.mxu0 0.0
        %2960 = vmatpush1.msra.mxu0 %v2939
        %2961 = vmatprep.subr.mxu0 0.0
        %2962 = vmatpush1.msra.mxu0 %v2940
        %2963 = vmatprep.subr.mxu0 0.0
        %2964 = vmatpush1.msra.mxu0 %v2941
        %2965 = vmatprep.subr.mxu0 0.0
        %2966 = vmatpush1.msra.mxu0 %v2942
        %2967 = vmatprep.subr.mxu0 0.0
        %2968 = vmatpush1.msra.mxu0 %v2943
        %2969 = vmatprep.subr.mxu0 0.0
        %2970 = vmatpush1.msra.mxu0 %v2944
        %2971 = vmatprep.subr.mxu0 0.0
        %2972 = vmatpush1.msra.mxu0 %v2945
        %2973 = vmatprep.subr.mxu0 0.0
        %2974 = vmatpush1.msra.mxu0 %v2946
        %2975 = vmatprep.subr.mxu0 0.0
        %2976 = vmatpush1.msra.mxu0 %v2947
        %2977 = vmatprep.subr.mxu0 0.0
        %2978 = vmatpush1.msra.mxu0 %v2948
        %2979 = vmatprep.subr.mxu0 0.0
        %2980 = vmatpush1.msra.mxu0 %v2949
        %2981 = vmatprep.subr.mxu0 0.0
        %2982 = vmatpush1.msra.mxu0 %v2950
        %2983 = vmatprep.subr.mxu0 0.0
        %2984 = vmatpush1.msra.mxu0 0.0
        %2985 = vmatprep.subr.mxu0 0.0
        %2986 = vmatpush1.msra.mxu0 0.0
        %2987 = vmatprep.subr.mxu0 0.0
        %2988 = vmatpush1.msra.mxu0 0.0
        %2989 = vmatprep.subr.mxu0 0.0
        %2990 = vmatpush1.msra.mxu0 0.0
        %2991 = vmatprep.subr.mxu0 0.0
        %2992 = vmatpush1.msra.mxu0 0.0
        %2993 = vmatprep.subr.mxu0 0.0
        %2994 = vmatpush1.msra.mxu0 0.0
        %2995 = vmatprep.subr.mxu0 0.0
        %2996 = vmatpush1.msra.mxu0 0.0
        %2997 = vmatprep.subr.mxu0 0.0
        %2998 = vmatpush1.msra.mxu0 0.0
        %2999 = vmatprep.subr.mxu0 0.0
        %3000 = vmatpush1.msra.mxu0 0.0
        %3001 = vmatprep.subr.mxu0 0.0
        %3002 = vmatpush1.msra.mxu0 0.0
        %3003 = vmatprep.subr.mxu0 0.0
        %3004 = vmatpush1.msra.mxu0 0.0
        %3005 = vmatprep.subr.mxu0 0.0
        %3006 = vmatpush1.msra.mxu0 0.0
        %3007 = vmatprep.subr.mxu0 0.0
        %3008 = vmatpush1.msra.mxu0 0.0
        %3009 = vmatprep.subr.mxu0 0.0
        %3010 = vmatpush1.msra.mxu0 0.0
        %3011 = vmatprep.subr.mxu0 0.0
        %3012 = vmatpush1.msra.mxu0 0.0
        %3013 = vmatprep.subr.mxu0 0.0
        %3014 = vmatpush1.msra.mxu0 0.0
        %3015 = vmatprep.mubr.f32.mxu0 0.0
        %3016 = vmatmul.mubr.f32.gmra.mrb[0].mxu0 %v2898
        %v3017 = vpop.f32.mrb[0].mxu0
        %v3018 = vadd.f32 0.0, %v3017
        %v3019 = vpop.f32.mrb[0].mxu0
        %3020 = vmatprep.mubr.f32.mxu0 0.0
        %3021 = vmatmul.mubr.f32.gmra.mrb[0].mxu0 %v2899
        %v3022 = vpop.f32.mrb[0].mxu0
        %v3023 = vadd.f32 0.0, %v3022
        %v3024 = vpop.f32.mrb[0].mxu0
        %3025 = vmatprep.mubr.f32.mxu0 0.0
        %3026 = vmatmul.mubr.f32.gmra.mrb[0].mxu0 %v2900
        %v3027 = vpop.f32.mrb[0].mxu0
        %v3028 = vadd.f32 0.0, %v3027
        %v3029 = vpop.f32.mrb[0].mxu0
        %3030 = vmatprep.mubr.f32.mxu0 0.0
        %3031 = vmatmul.mubr.f32.gmra.mrb[0].mxu0 %v2901
        %v3032 = vpop.f32.mrb[0].mxu0
        %v3033 = vadd.f32 0.0, %v3032
        %v3034 = vpop.f32.mrb[0].mxu0
        %3035 = vmatprep.mubr.f32.mxu0 0.0
        %3036 = vmatmul.mubr.f32.gmra.mrb[0].mxu0 %v2902
        %v3037 = vpop.f32.mrb[0].mxu0
        %v3038 = vadd.f32 0.0, %v3037
        %v3039 = vpop.f32.mrb[0].mxu0
        %3040 = vmatprep.mubr.f32.mxu0 0.0
        %3041 = vmatmul.mubr.f32.gmra.mrb[0].mxu0 %v2903
        %v3042 = vpop.f32.mrb[0].mxu0
        %v3043 = vadd.f32 0.0, %v3042
        %v3044 = vpop.f32.mrb[0].mxu0
        %3045 = vmatprep.mubr.f32.mxu0 0.0
        %3046 = vmatmul.mubr.f32.gmra.mrb[0].mxu0 %v2904
        %v3047 = vpop.f32.mrb[0].mxu0
        %v3048 = vadd.f32 0.0, %v3047
        %v3049 = vpop.f32.mrb[0].mxu0
        %3050 = vmatprep.mubr.f32.mxu0 0.0
        %3051 = vmatmul.mubr.f32.gmra.mrb[0].mxu0 %v2905
        %v3052 = vpop.f32.mrb[0].mxu0
        %v3053 = vadd.f32 0.0, %v3052
        %v3054 = vpop.f32.mrb[0].mxu0
        %3055 = vmatprep.mubr.f32.mxu0 0.0
        %3056 = vmatmul.mubr.f32.gmra.mrb[0].mxu0 %v2906
        %v3057 = vpop.f32.mrb[0].mxu0
        %v3058 = vadd.f32 0.0, %v3057
        %v3059 = vpop.f32.mrb[0].mxu0
        %3060 = vmatprep.mubr.f32.mxu0 0.0
        %3061 = vmatmul.mubr.f32.gmra.mrb[0].mxu0 %v2907
        %v3062 = vpop.f32.mrb[0].mxu0
        %v3063 = vadd.f32 0.0, %v3062
        %v3064 = vpop.f32.mrb[0].mxu0
        %3065 = vmatprep.mubr.f32.mxu0 0.0
        %3066 = vmatmul.mubr.f32.gmra.mrb[0].mxu0 %v2908
        %v3067 = vpop.f32.mrb[0].mxu0
        %v3068 = vadd.f32 0.0, %v3067
        %v3069 = vpop.f32.mrb[0].mxu0
        %3070 = vmatprep.mubr.f32.mxu0 0.0
        %3071 = vmatmul.mubr.f32.gmra.mrb[0].mxu0 %v2909
        %v3072 = vpop.f32.mrb[0].mxu0
        %v3073 = vadd.f32 0.0, %v3072
        %v3074 = vpop.f32.mrb[0].mxu0
        %3075 = vmatprep.mubr.f32.mxu0 0.0
        %3076 = vmatmul.mubr.f32.gmra.mrb[0].mxu0 %v2910
        %v3077 = vpop.f32.mrb[0].mxu0
        %v3078 = vadd.f32 0.0, %v3077
        %v3079 = vpop.f32.mrb[0].mxu0
        %3080 = vmatprep.mubr.f32.mxu0 0.0
        %3081 = vmatmul.mubr.f32.gmra.mrb[0].mxu0 %v2911
        %v3082 = vpop.f32.mrb[0].mxu0
        %v3083 = vadd.f32 0.0, %v3082
        %v3084 = vpop.f32.mrb[0].mxu0
        %3085 = vmatprep.mubr.f32.mxu0 0.0
        %3086 = vmatmul.mubr.f32.gmra.mrb[0].mxu0 %v2912
        %v3087 = vpop.f32.mrb[0].mxu0
        %v3088 = vadd.f32 0.0, %v3087
        %v3089 = vpop.f32.mrb[0].mxu0
        %3090 = vmatprep.mubr.f32.mxu0 0.0
        %3091 = vmatmul.mubr.f32.gmra.mrb[0].mxu0 %v2913
        %v3092 = vpop.f32.mrb[0].mxu0
        %v3093 = vadd.f32 0.0, %v3092
        %v3094 = vpop.f32.mrb[0].mxu0
        %3095 = vmatprep.mubr.f32.mxu0 0.0
        %3096 = vmatmul.mubr.f32.gmra.mrb[0].mxu0 %v2914
        %v3097 = vpop.f32.mrb[0].mxu0
        %v3098 = vadd.f32 0.0, %v3097
        %v3099 = vpop.f32.mrb[0].mxu0
        %3100 = vmatprep.mubr.f32.mxu0 0.0
        %3101 = vmatmul.mubr.f32.gmra.mrb[0].mxu0 %v2915
        %v3102 = vpop.f32.mrb[0].mxu0
        %v3103 = vadd.f32 0.0, %v3102
        %v3104 = vpop.f32.mrb[0].mxu0
        %3105 = vmatprep.mubr.f32.mxu0 0.0
        %3106 = vmatmul.mubr.f32.gmra.mrb[0].mxu0 %v2916
        %v3107 = vpop.f32.mrb[0].mxu0
        %v3108 = vadd.f32 0.0, %v3107
        %v3109 = vpop.f32.mrb[0].mxu0
        %3110 = vmatprep.mubr.f32.mxu0 0.0
        %3111 = vmatmul.mubr.f32.gmra.mrb[0].mxu0 %v2917
        %v3112 = vpop.f32.mrb[0].mxu0
        %v3113 = vadd.f32 0.0, %v3112
        %v3114 = vpop.f32.mrb[0].mxu0
        %3115 = vmatprep.mubr.f32.mxu0 0.0
        %3116 = vmatmul.mubr.f32.gmra.mrb[0].mxu0 %v2918
        %v3117 = vpop.f32.mrb[0].mxu0
        %v3118 = vadd.f32 0.0, %v3117
        %v3119 = vpop.f32.mrb[0].mxu0
        %3120 = vmatprep.mubr.f32.mxu0 0.0
        %3121 = vmatmul.mubr.f32.gmra.mrb[0].mxu0 %v2919
        %v3122 = vpop.f32.mrb[0].mxu0
        %v3123 = vadd.f32 0.0, %v3122
        %v3124 = vpop.f32.mrb[0].mxu0
        %3125 = vmatprep.mubr.f32.mxu0 0.0
        %3126 = vmatmul.mubr.f32.gmra.mrb[0].mxu0 %v2920
        %v3127 = vpop.f32.mrb[0].mxu0
        %v3128 = vadd.f32 0.0, %v3127
        %v3129 = vpop.f32.mrb[0].mxu0
        %3130 = vmatprep.mubr.f32.mxu0 0.0
        %3131 = vmatmul.mubr.f32.gmra.mrb[0].mxu0 %v2921
        %v3132 = vpop.f32.mrb[0].mxu0
        %v3133 = vadd.f32 0.0, %v3132
        %v3134 = vpop.f32.mrb[0].mxu0
        %3135 = vmatprep.mubr.f32.mxu0 0.0
        %3136 = vmatmul.mubr.f32.gmra.mrb[0].mxu0 %v2922
        %v3137 = vpop.f32.mrb[0].mxu0
        %v3138 = vadd.f32 0.0, %v3137
        %v3139 = vpop.f32.mrb[0].mxu0
        %3140 = vmatprep.mubr.f32.mxu0 0.0
        %3141 = vmatmul.mubr.f32.gmra.mrb[0].mxu0 %v2923
        %v3142 = vpop.f32.mrb[0].mxu0
        %v3143 = vadd.f32 0.0, %v3142
        %v3144 = vpop.f32.mrb[0].mxu0
        %3145 = vmatprep.mubr.f32.mxu0 0.0
        %3146 = vmatmul.mubr.f32.gmra.mrb[0].mxu0 %v2924
        %v3147 = vpop.f32.mrb[0].mxu0
        %v3148 = vadd.f32 0.0, %v3147
        %v3149 = vpop.f32.mrb[0].mxu0
        %3150 = vmatprep.mubr.f32.mxu0 0.0
        %3151 = vmatmul.mubr.f32.gmra.mrb[0].mxu0 %v2925
        %v3152 = vpop.f32.mrb[0].mxu0
        %v3153 = vadd.f32 0.0, %v3152
        %v3154 = vpop.f32.mrb[0].mxu0
        %3155 = vmatprep.mubr.f32.mxu0 0.0
        %3156 = vmatmul.mubr.f32.gmra.mrb[0].mxu0 %v2926
        %v3157 = vpop.f32.mrb[0].mxu0
        %v3158 = vadd.f32 0.0, %v3157
        %v3159 = vpop.f32.mrb[0].mxu0
        %3160 = vmatprep.mubr.f32.mxu0 0.0
        %3161 = vmatmul.mubr.f32.gmra.mrb[0].mxu0 %v2927
        %v3162 = vpop.f32.mrb[0].mxu0
        %v3163 = vadd.f32 0.0, %v3162
        %v3164 = vpop.f32.mrb[0].mxu0
        %3165 = vmatprep.mubr.f32.mxu0 0.0
        %3166 = vmatmul.mubr.f32.gmra.mrb[0].mxu0 %v2928
        %v3167 = vpop.f32.mrb[0].mxu0
        %v3168 = vadd.f32 0.0, %v3167
        %v3169 = vpop.f32.mrb[0].mxu0
        %3170 = vmatprep.mubr.f32.mxu0 0.0
        %3171 = vmatmul.mubr.f32.gmra.mrb[0].mxu0 %v2929
        %v3172 = vpop.f32.mrb[0].mxu0
        %v3173 = vadd.f32 0.0, %v3172
        %v3174 = vpop.f32.mrb[0].mxu0
        %3175 = vmatprep.mubr.f32.mxu0 0.0
        %3176 = vmatmul.mubr.f32.gmra.mrb[0].mxu0 %v2930
        %v3177 = vpop.f32.mrb[0].mxu0
        %v3178 = vadd.f32 0.0, %v3177
        %v3179 = vpop.f32.mrb[0].mxu0
        %3180 = vmatprep.mubr.f32.mxu0 0.0
        %3181 = vmatmul.mubr.f32.gmra.mrb[0].mxu0 %v2931
        %v3182 = vpop.f32.mrb[0].mxu0
        %v3183 = vadd.f32 0.0, %v3182
        %v3184 = vpop.f32.mrb[0].mxu0
        %3185 = vmatprep.mubr.f32.mxu0 0.0
        %3186 = vmatmul.mubr.f32.gmra.mrb[0].mxu0 %v2932
        %v3187 = vpop.f32.mrb[0].mxu0
        %v3188 = vadd.f32 0.0, %v3187
        %v3189 = vpop.f32.mrb[0].mxu0
        %3190 = vmatprep.mubr.f32.mxu0 0.0
        %3191 = vmatmul.mubr.f32.gmra.mrb[0].mxu0 %v2933
        %v3192 = vpop.f32.mrb[0].mxu0
        %v3193 = vadd.f32 0.0, %v3192
        %v3194 = vpop.f32.mrb[0].mxu0
        %3195 = vdwg.mxu0
        %v3196 = vadd.f32 %v2862, %v3018
        %v3197 = vadd.f32 %v2863, %v3023
        %v3198 = vadd.f32 %v2864, %v3028
        %v3199 = vadd.f32 %v2865, %v3033
        %v3200 = vadd.f32 %v2866, %v3038
        %v3201 = vadd.f32 %v2867, %v3043
        %v3202 = vadd.f32 %v2868, %v3048
        %v3203 = vadd.f32 %v2869, %v3053
        %v3204 = vadd.f32 %v2870, %v3058
        %v3205 = vadd.f32 %v2871, %v3063
        %v3206 = vadd.f32 %v2872, %v3068
        %v3207 = vadd.f32 %v2873, %v3073
        %v3208 = vadd.f32 %v2874, %v3078
        %v3209 = vadd.f32 %v2875, %v3083
        %v3210 = vadd.f32 %v2876, %v3088
        %v3211 = vadd.f32 %v2877, %v3093
        %v3212 = vadd.f32 %v2878, %v3098
        %v3213 = vadd.f32 %v2879, %v3103
        %v3214 = vadd.f32 %v2880, %v3108
        %v3215 = vadd.f32 %v2881, %v3113
        %v3216 = vadd.f32 %v2882, %v3118
        %v3217 = vadd.f32 %v2883, %v3123
        %v3218 = vadd.f32 %v2884, %v3128
        %v3219 = vadd.f32 %v2885, %v3133
        %v3220 = vadd.f32 %v2886, %v3138
        %v3221 = vadd.f32 %v2887, %v3143
        %v3222 = vadd.f32 %v2888, %v3148
        %v3223 = vadd.f32 %v2889, %v3153
        %v3224 = vadd.f32 %v2890, %v3158
        %v3225 = vadd.f32 %v2891, %v3163
        %v3226 = vadd.f32 %v2892, %v3168
        %v3227 = vadd.f32 %v2893, %v3173
        %v3228 = vadd.f32 %v2894, %v3178
        %v3229 = vadd.f32 %v2895, %v3183
        %v3230 = vadd.f32 %v2896, %v3188
        %v3231 = vadd.f32 %v2897, %v3193
        %v3232 = vld [vmem:[#allocation2 + $0x2b] sm:$0xff]
        %v3233 = vld [vmem:[#allocation2 + $0x33] sm:$0xff]
        %v3234 = vld [vmem:[#allocation2 + $0x3b] sm:$0xff]
        %v3235 = vld [vmem:[#allocation2 + $0x43] sm:$0xff]
        %v3236 = vld [vmem:[#allocation2 + $0x4b] sm:$0xff]
        %v3237 = vld [vmem:[#allocation2 + $0x53] sm:$0xff]
        %v3238 = vld [vmem:[#allocation2 + $0x5b] sm:$0xff]
        %v3239 = vld [vmem:[#allocation2 + $0x63] sm:$0xff]
        %v3240 = vld [vmem:[#allocation2 + $0x6b] sm:$0xff]
        %v3241 = vld [vmem:[#allocation2 + $0x73] sm:$0xff]
        %v3242 = vld [vmem:[#allocation2 + $0x7b] sm:$0xff]
        %v3243 = vld [vmem:[#allocation2 + $0x83] sm:$0xff]
        %v3244 = vld [vmem:[#allocation2 + $0x8b] sm:$0xff]
        %v3245 = vld [vmem:[#allocation2 + $0x93] sm:$0xff]
        %v3246 = vld [vmem:[#allocation2 + $0x9b] sm:$0xff]
        %v3247 = vld [vmem:[#allocation2 + $0xa3] sm:$0xff]
        %v3248 = vld [vmem:[#allocation2 + $0xab] sm:$0xff]
        %v3249 = vld [vmem:[#allocation2 + $0xb3] sm:$0xff]
        %v3250 = vld [vmem:[#allocation2 + $0xbb] sm:$0xff]
        %v3251 = vld [vmem:[#allocation2 + $0xc3] sm:$0xff]
        %v3252 = vld [vmem:[#allocation2 + $0xcb] sm:$0xff]
        %v3253 = vld [vmem:[#allocation2 + $0xd3] sm:$0xff]
        %v3254 = vld [vmem:[#allocation2 + $0xdb] sm:$0xff]
        %v3255 = vld [vmem:[#allocation2 + $0xe3] sm:$0xff]
        %v3256 = vld [vmem:[#allocation2 + $0xeb] sm:$0xff]
        %v3257 = vld [vmem:[#allocation2 + $0xf3] sm:$0xff]
        %v3258 = vld [vmem:[#allocation2 + $0xfb] sm:$0xff]
        %v3259 = vld [vmem:[#allocation2 + $0x103] sm:$0xff]
        %v3260 = vld [vmem:[#allocation2 + $0x10b] sm:$0xff]
        %v3261 = vld [vmem:[#allocation2 + $0x113] sm:$0xff]
        %v3262 = vld [vmem:[#allocation2 + $0x11b] sm:$0xff]
        %v3263 = vld [vmem:[#allocation2 + $0x123] sm:$0xff]
        %v3264 = vld [vmem:[#allocation2 + $0x12b] sm:$0xff]
        %v3265 = vld [vmem:[#allocation2 + $0x133] sm:$0xff]
        %v3266 = vld [vmem:[#allocation2 + $0x13b] sm:$0xff]
        %v3267 = vld [vmem:[#allocation2 + $0x143] sm:$0xff]
        %s3268 = scalar_lea.vmem [#allocation8], 1024
        %v3269 = vld [vmem:[%s3268] sm:$0xff]
        %v3270 = vld [vmem:[%s3268 + $0x8] sm:$0xff]
        %v3271 = vld [vmem:[%s3268 + $0x10] sm:$0xff]
        %v3272 = vld [vmem:[%s3268 + $0x18] sm:$0xff]
        %v3273 = vld [vmem:[%s3268 + $0x20] sm:$0xff]
        %v3274 = vld [vmem:[%s3268 + $0x28] sm:$0xff]
        %v3275 = vld [vmem:[%s3268 + $0x30] sm:$0xff]
        %v3276 = vld [vmem:[%s3268 + $0x38] sm:$0xff]
        %v3277 = vld [vmem:[%s3268 + $0x40] sm:$0xff]
        %v3278 = vld [vmem:[%s3268 + $0x48] sm:$0xff]
        %v3279 = vld [vmem:[%s3268 + $0x50] sm:$0xff]
        %v3280 = vld [vmem:[%s3268 + $0x58] sm:$0xff]
        %v3281 = vld [vmem:[%s3268 + $0x60] sm:$0xff]
        %v3282 = vld [vmem:[%s3268 + $0x68] sm:$0xff]
        %v3283 = vld [vmem:[%s3268 + $0x70] sm:$0xff]
        %v3284 = vld [vmem:[%s3268 + $0x78] sm:$0xff]
        %3285 = vmatprep.subr.mxu0 0.0
        %3286 = vmatpush1.msra.mxu0 %v3269
        %3287 = vmatprep.subr.mxu0 0.0
        %3288 = vmatpush1.msra.mxu0 %v3270
        %3289 = vmatprep.subr.mxu0 0.0
        %3290 = vmatpush1.msra.mxu0 %v3271
        %3291 = vmatprep.subr.mxu0 0.0
        %3292 = vmatpush1.msra.mxu0 %v3272
        %3293 = vmatprep.subr.mxu0 0.0
        %3294 = vmatpush1.msra.mxu0 %v3273
        %3295 = vmatprep.subr.mxu0 0.0
        %3296 = vmatpush1.msra.mxu0 %v3274
        %3297 = vmatprep.subr.mxu0 0.0
        %3298 = vmatpush1.msra.mxu0 %v3275
        %3299 = vmatprep.subr.mxu0 0.0
        %3300 = vmatpush1.msra.mxu0 %v3276
        %3301 = vmatprep.subr.mxu0 0.0
        %3302 = vmatpush1.msra.mxu0 %v3277
        %3303 = vmatprep.subr.mxu0 0.0
        %3304 = vmatpush1.msra.mxu0 %v3278
        %3305 = vmatprep.subr.mxu0 0.0
        %3306 = vmatpush1.msra.mxu0 %v3279
        %3307 = vmatprep.subr.mxu0 0.0
        %3308 = vmatpush1.msra.mxu0 %v3280
        %3309 = vmatprep.subr.mxu0 0.0
        %3310 = vmatpush1.msra.mxu0 %v3281
        %3311 = vmatprep.subr.mxu0 0.0
        %3312 = vmatpush1.msra.mxu0 %v3282
        %3313 = vmatprep.subr.mxu0 0.0
        %3314 = vmatpush1.msra.mxu0 %v3283
        %3315 = vmatprep.subr.mxu0 0.0
        %3316 = vmatpush1.msra.mxu0 %v3284
        %3317 = vmatprep.subr.mxu0 0.0
        %3318 = vmatpush1.msra.mxu0 0.0
        %3319 = vmatprep.subr.mxu0 0.0
        %3320 = vmatpush1.msra.mxu0 0.0
        %3321 = vmatprep.subr.mxu0 0.0
        %3322 = vmatpush1.msra.mxu0 0.0
        %3323 = vmatprep.subr.mxu0 0.0
        %3324 = vmatpush1.msra.mxu0 0.0
        %3325 = vmatprep.subr.mxu0 0.0
        %3326 = vmatpush1.msra.mxu0 0.0
        %3327 = vmatprep.subr.mxu0 0.0
        %3328 = vmatpush1.msra.mxu0 0.0
        %3329 = vmatprep.subr.mxu0 0.0
        %3330 = vmatpush1.msra.mxu0 0.0
        %3331 = vmatprep.subr.mxu0 0.0
        %3332 = vmatpush1.msra.mxu0 0.0
        %3333 = vmatprep.subr.mxu0 0.0
        %3334 = vmatpush1.msra.mxu0 0.0
        %3335 = vmatprep.subr.mxu0 0.0
        %3336 = vmatpush1.msra.mxu0 0.0
        %3337 = vmatprep.subr.mxu0 0.0
        %3338 = vmatpush1.msra.mxu0 0.0
        %3339 = vmatprep.subr.mxu0 0.0
        %3340 = vmatpush1.msra.mxu0 0.0
        %3341 = vmatprep.subr.mxu0 0.0
        %3342 = vmatpush1.msra.mxu0 0.0
        %3343 = vmatprep.subr.mxu0 0.0
        %3344 = vmatpush1.msra.mxu0 0.0
        %3345 = vmatprep.subr.mxu0 0.0
        %3346 = vmatpush1.msra.mxu0 0.0
        %3347 = vmatprep.subr.mxu0 0.0
        %3348 = vmatpush1.msra.mxu0 0.0
        %3349 = vmatprep.mubr.f32.mxu0 0.0
        %3350 = vmatmul.mubr.f32.gmra.mrb[0].mxu0 %v3232
        %v3351 = vpop.f32.mrb[0].mxu0
        %v3352 = vadd.f32 0.0, %v3351
        %v3353 = vpop.f32.mrb[0].mxu0
        %3354 = vmatprep.mubr.f32.mxu0 0.0
        %3355 = vmatmul.mubr.f32.gmra.mrb[0].mxu0 %v3233
        %v3356 = vpop.f32.mrb[0].mxu0
        %v3357 = vadd.f32 0.0, %v3356
        %v3358 = vpop.f32.mrb[0].mxu0
        %3359 = vmatprep.mubr.f32.mxu0 0.0
        %3360 = vmatmul.mubr.f32.gmra.mrb[0].mxu0 %v3234
        %v3361 = vpop.f32.mrb[0].mxu0
        %v3362 = vadd.f32 0.0, %v3361
        %v3363 = vpop.f32.mrb[0].mxu0
        %3364 = vmatprep.mubr.f32.mxu0 0.0
        %3365 = vmatmul.mubr.f32.gmra.mrb[0].mxu0 %v3235
        %v3366 = vpop.f32.mrb[0].mxu0
        %v3367 = vadd.f32 0.0, %v3366
        %v3368 = vpop.f32.mrb[0].mxu0
        %3369 = vmatprep.mubr.f32.mxu0 0.0
        %3370 = vmatmul.mubr.f32.gmra.mrb[0].mxu0 %v3236
        %v3371 = vpop.f32.mrb[0].mxu0
        %v3372 = vadd.f32 0.0, %v3371
        %v3373 = vpop.f32.mrb[0].mxu0
        %3374 = vmatprep.mubr.f32.mxu0 0.0
        %3375 = vmatmul.mubr.f32.gmra.mrb[0].mxu0 %v3237
        %v3376 = vpop.f32.mrb[0].mxu0
        %v3377 = vadd.f32 0.0, %v3376
        %v3378 = vpop.f32.mrb[0].mxu0
        %3379 = vmatprep.mubr.f32.mxu0 0.0
        %3380 = vmatmul.mubr.f32.gmra.mrb[0].mxu0 %v3238
        %v3381 = vpop.f32.mrb[0].mxu0
        %v3382 = vadd.f32 0.0, %v3381
        %v3383 = vpop.f32.mrb[0].mxu0
        %3384 = vmatprep.mubr.f32.mxu0 0.0
        %3385 = vmatmul.mubr.f32.gmra.mrb[0].mxu0 %v3239
        %v3386 = vpop.f32.mrb[0].mxu0
        %v3387 = vadd.f32 0.0, %v3386
        %v3388 = vpop.f32.mrb[0].mxu0
        %3389 = vmatprep.mubr.f32.mxu0 0.0
        %3390 = vmatmul.mubr.f32.gmra.mrb[0].mxu0 %v3240
        %v3391 = vpop.f32.mrb[0].mxu0
        %v3392 = vadd.f32 0.0, %v3391
        %v3393 = vpop.f32.mrb[0].mxu0
        %3394 = vmatprep.mubr.f32.mxu0 0.0
        %3395 = vmatmul.mubr.f32.gmra.mrb[0].mxu0 %v3241
        %v3396 = vpop.f32.mrb[0].mxu0
        %v3397 = vadd.f32 0.0, %v3396
        %v3398 = vpop.f32.mrb[0].mxu0
        %3399 = vmatprep.mubr.f32.mxu0 0.0
        %3400 = vmatmul.mubr.f32.gmra.mrb[0].mxu0 %v3242
        %v3401 = vpop.f32.mrb[0].mxu0
        %v3402 = vadd.f32 0.0, %v3401
        %v3403 = vpop.f32.mrb[0].mxu0
        %3404 = vmatprep.mubr.f32.mxu0 0.0
        %3405 = vmatmul.mubr.f32.gmra.mrb[0].mxu0 %v3243
        %v3406 = vpop.f32.mrb[0].mxu0
        %v3407 = vadd.f32 0.0, %v3406
        %v3408 = vpop.f32.mrb[0].mxu0
        %3409 = vmatprep.mubr.f32.mxu0 0.0
        %3410 = vmatmul.mubr.f32.gmra.mrb[0].mxu0 %v3244
        %v3411 = vpop.f32.mrb[0].mxu0
        %v3412 = vadd.f32 0.0, %v3411
        %v3413 = vpop.f32.mrb[0].mxu0
        %3414 = vmatprep.mubr.f32.mxu0 0.0
        %3415 = vmatmul.mubr.f32.gmra.mrb[0].mxu0 %v3245
        %v3416 = vpop.f32.mrb[0].mxu0
        %v3417 = vadd.f32 0.0, %v3416
        %v3418 = vpop.f32.mrb[0].mxu0
        %3419 = vmatprep.mubr.f32.mxu0 0.0
        %3420 = vmatmul.mubr.f32.gmra.mrb[0].mxu0 %v3246
        %v3421 = vpop.f32.mrb[0].mxu0
        %v3422 = vadd.f32 0.0, %v3421
        %v3423 = vpop.f32.mrb[0].mxu0
        %3424 = vmatprep.mubr.f32.mxu0 0.0
        %3425 = vmatmul.mubr.f32.gmra.mrb[0].mxu0 %v3247
        %v3426 = vpop.f32.mrb[0].mxu0
        %v3427 = vadd.f32 0.0, %v3426
        %v3428 = vpop.f32.mrb[0].mxu0
        %3429 = vmatprep.mubr.f32.mxu0 0.0
        %3430 = vmatmul.mubr.f32.gmra.mrb[0].mxu0 %v3248
        %v3431 = vpop.f32.mrb[0].mxu0
        %v3432 = vadd.f32 0.0, %v3431
        %v3433 = vpop.f32.mrb[0].mxu0
        %3434 = vmatprep.mubr.f32.mxu0 0.0
        %3435 = vmatmul.mubr.f32.gmra.mrb[0].mxu0 %v3249
        %v3436 = vpop.f32.mrb[0].mxu0
        %v3437 = vadd.f32 0.0, %v3436
        %v3438 = vpop.f32.mrb[0].mxu0
        %3439 = vmatprep.mubr.f32.mxu0 0.0
        %3440 = vmatmul.mubr.f32.gmra.mrb[0].mxu0 %v3250
        %v3441 = vpop.f32.mrb[0].mxu0
        %v3442 = vadd.f32 0.0, %v3441
        %v3443 = vpop.f32.mrb[0].mxu0
        %3444 = vmatprep.mubr.f32.mxu0 0.0
        %3445 = vmatmul.mubr.f32.gmra.mrb[0].mxu0 %v3251
        %v3446 = vpop.f32.mrb[0].mxu0
        %v3447 = vadd.f32 0.0, %v3446
        %v3448 = vpop.f32.mrb[0].mxu0
        %3449 = vmatprep.mubr.f32.mxu0 0.0
        %3450 = vmatmul.mubr.f32.gmra.mrb[0].mxu0 %v3252
        %v3451 = vpop.f32.mrb[0].mxu0
        %v3452 = vadd.f32 0.0, %v3451
        %v3453 = vpop.f32.mrb[0].mxu0
        %3454 = vmatprep.mubr.f32.mxu0 0.0
        %3455 = vmatmul.mubr.f32.gmra.mrb[0].mxu0 %v3253
        %v3456 = vpop.f32.mrb[0].mxu0
        %v3457 = vadd.f32 0.0, %v3456
        %v3458 = vpop.f32.mrb[0].mxu0
        %3459 = vmatprep.mubr.f32.mxu0 0.0
        %3460 = vmatmul.mubr.f32.gmra.mrb[0].mxu0 %v3254
        %v3461 = vpop.f32.mrb[0].mxu0
        %v3462 = vadd.f32 0.0, %v3461
        %v3463 = vpop.f32.mrb[0].mxu0
        %3464 = vmatprep.mubr.f32.mxu0 0.0
        %3465 = vmatmul.mubr.f32.gmra.mrb[0].mxu0 %v3255
        %v3466 = vpop.f32.mrb[0].mxu0
        %v3467 = vadd.f32 0.0, %v3466
        %v3468 = vpop.f32.mrb[0].mxu0
        %3469 = vmatprep.mubr.f32.mxu0 0.0
        %3470 = vmatmul.mubr.f32.gmra.mrb[0].mxu0 %v3256
        %v3471 = vpop.f32.mrb[0].mxu0
        %v3472 = vadd.f32 0.0, %v3471
        %v3473 = vpop.f32.mrb[0].mxu0
        %3474 = vmatprep.mubr.f32.mxu0 0.0
        %3475 = vmatmul.mubr.f32.gmra.mrb[0].mxu0 %v3257
        %v3476 = vpop.f32.mrb[0].mxu0
        %v3477 = vadd.f32 0.0, %v3476
        %v3478 = vpop.f32.mrb[0].mxu0
        %3479 = vmatprep.mubr.f32.mxu0 0.0
        %3480 = vmatmul.mubr.f32.gmra.mrb[0].mxu0 %v3258
        %v3481 = vpop.f32.mrb[0].mxu0
        %v3482 = vadd.f32 0.0, %v3481
        %v3483 = vpop.f32.mrb[0].mxu0
        %3484 = vmatprep.mubr.f32.mxu0 0.0
        %3485 = vmatmul.mubr.f32.gmra.mrb[0].mxu0 %v3259
        %v3486 = vpop.f32.mrb[0].mxu0
        %v3487 = vadd.f32 0.0, %v3486
        %v3488 = vpop.f32.mrb[0].mxu0
        %3489 = vmatprep.mubr.f32.mxu0 0.0
        %3490 = vmatmul.mubr.f32.gmra.mrb[0].mxu0 %v3260
        %v3491 = vpop.f32.mrb[0].mxu0
        %v3492 = vadd.f32 0.0, %v3491
        %v3493 = vpop.f32.mrb[0].mxu0
        %3494 = vmatprep.mubr.f32.mxu0 0.0
        %3495 = vmatmul.mubr.f32.gmra.mrb[0].mxu0 %v3261
        %v3496 = vpop.f32.mrb[0].mxu0
        %v3497 = vadd.f32 0.0, %v3496
        %v3498 = vpop.f32.mrb[0].mxu0
        %3499 = vmatprep.mubr.f32.mxu0 0.0
        %3500 = vmatmul.mubr.f32.gmra.mrb[0].mxu0 %v3262
        %v3501 = vpop.f32.mrb[0].mxu0
        %v3502 = vadd.f32 0.0, %v3501
        %v3503 = vpop.f32.mrb[0].mxu0
        %3504 = vmatprep.mubr.f32.mxu0 0.0
        %3505 = vmatmul.mubr.f32.gmra.mrb[0].mxu0 %v3263
        %v3506 = vpop.f32.mrb[0].mxu0
        %v3507 = vadd.f32 0.0, %v3506
        %v3508 = vpop.f32.mrb[0].mxu0
        %3509 = vmatprep.mubr.f32.mxu0 0.0
        %3510 = vmatmul.mubr.f32.gmra.mrb[0].mxu0 %v3264
        %v3511 = vpop.f32.mrb[0].mxu0
        %v3512 = vadd.f32 0.0, %v3511
        %v3513 = vpop.f32.mrb[0].mxu0
        %3514 = vmatprep.mubr.f32.mxu0 0.0
        %3515 = vmatmul.mubr.f32.gmra.mrb[0].mxu0 %v3265
        %v3516 = vpop.f32.mrb[0].mxu0
        %v3517 = vadd.f32 0.0, %v3516
        %v3518 = vpop.f32.mrb[0].mxu0
        %3519 = vmatprep.mubr.f32.mxu0 0.0
        %3520 = vmatmul.mubr.f32.gmra.mrb[0].mxu0 %v3266
        %v3521 = vpop.f32.mrb[0].mxu0
        %v3522 = vadd.f32 0.0, %v3521
        %v3523 = vpop.f32.mrb[0].mxu0
        %3524 = vmatprep.mubr.f32.mxu0 0.0
        %3525 = vmatmul.mubr.f32.gmra.mrb[0].mxu0 %v3267
        %v3526 = vpop.f32.mrb[0].mxu0
        %v3527 = vadd.f32 0.0, %v3526
        %v3528 = vpop.f32.mrb[0].mxu0
        %3529 = vdwg.mxu0
        %v3530 = vadd.f32 %v3196, %v3352
        %v3531 = vadd.f32 %v3197, %v3357
        %v3532 = vadd.f32 %v3198, %v3362
        %v3533 = vadd.f32 %v3199, %v3367
        %v3534 = vadd.f32 %v3200, %v3372
        %v3535 = vadd.f32 %v3201, %v3377
        %v3536 = vadd.f32 %v3202, %v3382
        %v3537 = vadd.f32 %v3203, %v3387
        %v3538 = vadd.f32 %v3204, %v3392
        %v3539 = vadd.f32 %v3205, %v3397
        %v3540 = vadd.f32 %v3206, %v3402
        %v3541 = vadd.f32 %v3207, %v3407
        %v3542 = vadd.f32 %v3208, %v3412
        %v3543 = vadd.f32 %v3209, %v3417
        %v3544 = vadd.f32 %v3210, %v3422
        %v3545 = vadd.f32 %v3211, %v3427
        %v3546 = vadd.f32 %v3212, %v3432
        %v3547 = vadd.f32 %v3213, %v3437
        %v3548 = vadd.f32 %v3214, %v3442
        %v3549 = vadd.f32 %v3215, %v3447
        %v3550 = vadd.f32 %v3216, %v3452
        %v3551 = vadd.f32 %v3217, %v3457
        %v3552 = vadd.f32 %v3218, %v3462
        %v3553 = vadd.f32 %v3219, %v3467
        %v3554 = vadd.f32 %v3220, %v3472
        %v3555 = vadd.f32 %v3221, %v3477
        %v3556 = vadd.f32 %v3222, %v3482
        %v3557 = vadd.f32 %v3223, %v3487
        %v3558 = vadd.f32 %v3224, %v3492
        %v3559 = vadd.f32 %v3225, %v3497
        %v3560 = vadd.f32 %v3226, %v3502
        %v3561 = vadd.f32 %v3227, %v3507
        %v3562 = vadd.f32 %v3228, %v3512
        %v3563 = vadd.f32 %v3229, %v3517
        %v3564 = vadd.f32 %v3230, %v3522
        %v3565 = vadd.f32 %v3231, %v3527
        %v3566 = vld [vmem:[#allocation9] sm:$0x1]
        %v3568 = vlaneseq
        %v3569 = vshrl.u32 %v3568, 7
        %v3570 = vsub.s32 0, %v3569
        %v3571 = vrot.slane %v3566, %v3570
        %v3573 = vadd.f32 %v3530, %v3571
        %v3574 = vadd.f32 %v3531, %v3571
        %v3575 = vadd.f32 %v3532, %v3571
        %v3576 = vadd.f32 %v3533, %v3571
        %v3577 = vadd.f32 %v3534, %v3571
        %v3578 = vadd.f32 %v3535, %v3571
        %v3579 = vadd.f32 %v3536, %v3571
        %v3580 = vadd.f32 %v3537, %v3571
        %v3581 = vadd.f32 %v3538, %v3571
        %v3582 = vadd.f32 %v3539, %v3571
        %v3583 = vadd.f32 %v3540, %v3571
        %v3584 = vadd.f32 %v3541, %v3571
        %v3585 = vadd.f32 %v3542, %v3571
        %v3586 = vadd.f32 %v3543, %v3571
        %v3587 = vadd.f32 %v3544, %v3571
        %v3588 = vadd.f32 %v3545, %v3571
        %v3589 = vadd.f32 %v3546, %v3571
        %v3590 = vadd.f32 %v3547, %v3571
        %v3591 = vadd.f32 %v3548, %v3571
        %v3592 = vadd.f32 %v3549, %v3571
        %v3593 = vadd.f32 %v3550, %v3571
        %v3594 = vadd.f32 %v3551, %v3571
        %v3595 = vadd.f32 %v3552, %v3571
        %v3596 = vadd.f32 %v3553, %v3571
        %v3597 = vadd.f32 %v3554, %v3571
        %v3598 = vadd.f32 %v3555, %v3571
        %v3599 = vadd.f32 %v3556, %v3571
        %v3600 = vadd.f32 %v3557, %v3571
        %v3601 = vadd.f32 %v3558, %v3571
        %v3602 = vadd.f32 %v3559, %v3571
        %v3603 = vadd.f32 %v3560, %v3571
        %v3604 = vadd.f32 %v3561, %v3571
        %v3605 = vadd.f32 %v3562, %v3571
        %v3606 = vadd.f32 %v3563, %v3571
        %v3607 = vadd.f32 %v3564, %v3571
        %v3608 = vadd.f32 %v3565, %v3571
        %v3609 = vmax.f32 %v3573, 0.0
        %v3610 = vmax.f32 %v3574, 0.0
        %v3611 = vmax.f32 %v3575, 0.0
        %v3612 = vmax.f32 %v3576, 0.0
        %v3613 = vmax.f32 %v3577, 0.0
        %v3614 = vmax.f32 %v3578, 0.0
        %v3615 = vmax.f32 %v3579, 0.0
        %v3616 = vmax.f32 %v3580, 0.0
        %v3617 = vmax.f32 %v3581, 0.0
        %v3618 = vmax.f32 %v3582, 0.0
        %v3619 = vmax.f32 %v3583, 0.0
        %v3620 = vmax.f32 %v3584, 0.0
        %v3621 = vmax.f32 %v3585, 0.0
        %v3622 = vmax.f32 %v3586, 0.0
        %v3623 = vmax.f32 %v3587, 0.0
        %v3624 = vmax.f32 %v3588, 0.0
        %v3625 = vmax.f32 %v3589, 0.0
        %v3626 = vmax.f32 %v3590, 0.0
        %v3627 = vmax.f32 %v3591, 0.0
        %v3628 = vmax.f32 %v3592, 0.0
        %v3629 = vmax.f32 %v3593, 0.0
        %v3630 = vmax.f32 %v3594, 0.0
        %v3631 = vmax.f32 %v3595, 0.0
        %v3632 = vmax.f32 %v3596, 0.0
        %v3633 = vmax.f32 %v3597, 0.0
        %v3634 = vmax.f32 %v3598, 0.0
        %v3635 = vmax.f32 %v3599, 0.0
        %v3636 = vmax.f32 %v3600, 0.0
        %v3637 = vmax.f32 %v3601, 0.0
        %v3638 = vmax.f32 %v3602, 0.0
        %v3639 = vmax.f32 %v3603, 0.0
        %v3640 = vmax.f32 %v3604, 0.0
        %v3641 = vmax.f32 %v3605, 0.0
        %v3642 = vmax.f32 %v3606, 0.0
        %v3643 = vmax.f32 %v3607, 0.0
        %v3644 = vmax.f32 %v3608, 0.0
        %3645 = vst [vmem:[%s257] sm:$0xff] %v3609
        %3646 = vst [vmem:[%s257 + $0x8] sm:$0xff] %v3610
        %3647 = vst [vmem:[%s257 + $0x10] sm:$0xff] %v3611
        %3648 = vst [vmem:[%s257 + $0x18] sm:$0xff] %v3612
        %3649 = vst [vmem:[%s257 + $0x20] sm:$0xff] %v3613
        %3650 = vst [vmem:[%s257 + $0x28] sm:$0xff] %v3614
        %3651 = vst [vmem:[%s257 + $0x30] sm:$0xff] %v3615
        %3652 = vst [vmem:[%s257 + $0x38] sm:$0xff] %v3616
        %3653 = vst [vmem:[%s257 + $0x40] sm:$0xff] %v3617
        %3654 = vst [vmem:[%s257 + $0x48] sm:$0xff] %v3618
        %3655 = vst [vmem:[%s257 + $0x50] sm:$0xff] %v3619
        %3656 = vst [vmem:[%s257 + $0x58] sm:$0xff] %v3620
        %3657 = vst [vmem:[%s257 + $0x60] sm:$0xff] %v3621
        %3658 = vst [vmem:[%s257 + $0x68] sm:$0xff] %v3622
        %3659 = vst [vmem:[%s257 + $0x70] sm:$0xff] %v3623
        %3660 = vst [vmem:[%s257 + $0x78] sm:$0xff] %v3624
        %3661 = vst [vmem:[%s257 + $0x80] sm:$0xff] %v3625
        %3662 = vst [vmem:[%s257 + $0x88] sm:$0xff] %v3626
        %3663 = vst [vmem:[%s257 + $0x90] sm:$0xff] %v3627
        %3664 = vst [vmem:[%s257 + $0x98] sm:$0xff] %v3628
        %3665 = vst [vmem:[%s257 + $0xa0] sm:$0xff] %v3629
        %3666 = vst [vmem:[%s257 + $0xa8] sm:$0xff] %v3630
        %3667 = vst [vmem:[%s257 + $0xb0] sm:$0xff] %v3631
        %3668 = vst [vmem:[%s257 + $0xb8] sm:$0xff] %v3632
        %3669 = vst [vmem:[%s257 + $0xc0] sm:$0xff] %v3633
        %3670 = vst [vmem:[%s257 + $0xc8] sm:$0xff] %v3634
        %3671 = vst [vmem:[%s257 + $0xd0] sm:$0xff] %v3635
        %3672 = vst [vmem:[%s257 + $0xd8] sm:$0xff] %v3636
        %3673 = vst [vmem:[%s257 + $0xe0] sm:$0xff] %v3637
        %3674 = vst [vmem:[%s257 + $0xe8] sm:$0xff] %v3638
        %3675 = vst [vmem:[%s257 + $0xf0] sm:$0xff] %v3639
        %3676 = vst [vmem:[%s257 + $0xf8] sm:$0xff] %v3640
        %3677 = vst [vmem:[%s257 + $0x100] sm:$0xff] %v3641
        %3678 = vst [vmem:[%s257 + $0x108] sm:$0xff] %v3642
        %3679 = vst [vmem:[%s257 + $0x110] sm:$0xff] %v3643
        %3680 = vst [vmem:[%s257 + $0x118] sm:$0xff] %v3644
        %s3681 = sand.u32 %s120, 1
        %s3682 = scalar_lea.sflag [#allocation5], %s3681
        %s3683 = sand.u32 %s120, 1
        %s3684 = smul.addr %s3683, 288
        %s3685 = scalar_lea.vmem [#allocation11], %s3684
        // Predicated region
        $region53: #{_prep_and_call.1} parent=35 // pred_check
          %p3686 = pneg %p130
        $region54: #{_prep_and_call.1} parent=35 // pred_check_branch
          %3688 = sbr.rel (%p3686) target = $region56
        $region55: #{_prep_and_call.1} parent=35 // pred_region
          %s3690 = ssub.s32 4608, 4608
          %3691 = vsyncadd %s3682, %s3690
          %s3692 = smul.addr %s23, 36
          %s3693 = smul.addr %s3692, 128
          %s3694 = scalar_lea.hbm %s4, %s3693
          %s3695 = sshll.u32 %s3685, 4
          %s3696 = int_to_ptr.vmem [resolvable:$true] %s3695
          %3701 = dma.vmem_to_hbm [thread:$0]  %s3696, 4608, %s3694, %s3682, 128, 128, 8
        $region56: #{_prep_and_call.1} parent=35 // pred_fallthru
          _
      $region36: #{_prep_and_call.1} parent=5 // pred_fallthru
        _
      %p3702 = scmp.le.s32.totalorder 2, %s18
      // Predicated region
      $region57: #{_prep_and_call.1} parent=5 // pred_check
        %p3703 = pneg %p3702
      $region58: #{_prep_and_call.1} parent=5 // pred_check_branch
        %3705 = sbr.rel (%p3703) target = $region60
      $region59: #{_prep_and_call.1} parent=5 // pred_region
        %s3706 = ssub.s32 %s18, 2
        // Predicated region
        $region61: #{_prep_and_call.1} parent=59 // pred_check
          %p3707 = pneg %p136
        $region62: #{_prep_and_call.1} parent=59 // pred_check_branch
          %3709 = sbr.rel (%p3707) target = $region64
        $region63: #{_prep_and_call.1} parent=59 // pred_region
          %s3710 = sand.u32 %s121, 1
          %s3711 = scalar_lea.sflag [#allocation5], %s3710
          %s3712 = sand.u32 %s121, 1
          %s3713 = smul.addr %s3712, 288
          %s3714 = scalar_lea.vmem [#allocation11], %s3713
          %3715 = dma.done %s3711, 4608
        $region64: #{_prep_and_call.1} parent=59 // pred_fallthru
          _
      $region60: #{_prep_and_call.1} parent=5 // pred_fallthru
        _
    $region6: #{_prep_and_call.1} parent=1 // loop_footer
      %s22 = sadd.s32 1, %s18
    $region7: #{_prep_and_call.1} parent=1 // loop_footer_branch
      %17 = sbr.rel target = $region3
    $region8: #{_prep_and_call.1} parent=1 // loop_exit
      _
    %3716 = vsyncpa [#allocation4], 1
    %s3717 = scalar_lea.sflag [#allocation4], 1
    %3718 = vsyncpa %s3717, 1
    %3719 = vsyncpa [#allocation7], 1
    %3720 = vsyncpa [#allocation10], 1
    %3721 = vsyncpa [#allocation5], 1
    %s3722 = scalar_lea.sflag [#allocation5], 1
    %3723 = vsyncpa %s3722, 1

</llo_original>
